<compile_context>
chip_gen: v7x
topology: tpu7x:2x2x1
jax: 0.10.0
libtpu: 0.0.40
codegen_flags: <defaults>
</compile_context>

<pallas_src>
import jax
import jax.numpy as jnp
from jax import lax
from jax.experimental import pallas as pl
from jax.experimental.pallas import tpu as pltpu

# ----------------------------------------------------------------- constants --
LANE = 128                     # TPU lane width: all matmul N dims padded to this
CPAD = 128                     # padded channel width for conv outputs
FC1_PAD = 512                  # fc1 out 500 -> 512
N_CLASSES = 47
NEG_PAD = -1e30                # fc2 bias padding -> padded lanes vanish in softmax
VMEM_LIMIT = 32 * 1024 * 1024

_COMPILER_PARAMS = pltpu.CompilerParams(
    dimension_semantics=("parallel",),
    vmem_limit_bytes=VMEM_LIMIT,
)


def _row_tile(m, cap):
    # Whole extent if it is smaller than the cap (block == full dim is always
    # legal), otherwise the cap (a multiple of 8/16 sublanes).
    return m if m < cap else cap


# ------------------------------------------------------------------- kernels --

def _matmul_bias_relu_kernel(x_ref, w_ref, b_ref, o_ref):
    # x: (TM, K) bf16, w: (K, Npad) bf16 (VMEM resident), b: (1, Npad) f32.
    acc = jnp.dot(x_ref[...], w_ref[...], preferred_element_type=jnp.float32)
    acc = acc + b_ref[...]
    o_ref[...] = jnp.maximum(acc, 0.0).astype(o_ref.dtype)


def _maxpool2x2_kernel(x_ref, o_ref):
    # x: (G, 2, OW, C) -- G image-row pairs of the NHWC conv output,
    #                      channels lane-dense (C = 128).
    # o: (G, OW // 2, C)
    g, _, ow, c = x_ref.shape
    ow2 = ow // 2
    x = x_ref[...]
    v = jnp.maximum(x[:, 0], x[:, 1])      # vertical (kh) max
    v = v.reshape(g, ow2, 2, c)
    o_ref[...] = jnp.max(v, axis=2)        # horizontal (kw) max


def _fc_tail_kernel(x_ref, w1_ref, b1_ref, w2_ref, b2_ref, o_ref):
    # Fused fc1 + ReLU + fc2 + bias + log_softmax.
    # x: (TB, 800) bf16, w1: (800, 512) bf16, b1: (1, 512) f32,
    # w2: (512, 128) bf16, b2: (1, 128) f32 (pad lanes = -1e30), o: (TB, 128) f32.
    h = jnp.dot(x_ref[...], w1_ref[...], preferred_element_type=jnp.float32)
    h = jnp.maximum(h + b1_ref[...], 0.0).astype(jnp.bfloat16)
    logits = jnp.dot(h, w2_ref[...], preferred_element_type=jnp.float32)
    logits = logits + b2_ref[...]          # padded lanes -> ~-1e30 -> exp() == 0
    m = jnp.max(logits, axis=1, keepdims=True)
    s = logits - m
    lse = jnp.log(jnp.sum(jnp.exp(s), axis=1, keepdims=True))
    o_ref[...] = s - lse


# ------------------------------------------------------------------ wrappers --

def matmul_bias_relu(x, w, b, *, row_cap=512):
    m, k = x.shape
    n = w.shape[1]
    tm = _row_tile(m, row_cap)
    return pl.pallas_call(
        _matmul_bias_relu_kernel,
        out_shape=jax.ShapeDtypeStruct((m, n), jnp.bfloat16),
        grid=(pl.cdiv(m, tm),),
        in_specs=[
            pl.BlockSpec((tm, k), lambda i: (i, 0)),
            pl.BlockSpec((k, n), lambda i: (0, 0)),
            pl.BlockSpec((1, n), lambda i: (0, 0)),
        ],
        out_specs=pl.BlockSpec((tm, n), lambda i: (i, 0)),
        compiler_params=_COMPILER_PARAMS,
    )(x, w, b)


def max_pool_2x2(y, batch, oh, ow, *, group_cap=64):
    # y: (batch*oh*ow, C) rows in NHWC (b, oh, ow) order -> (batch, oh//2, ow//2, C)
    c = y.shape[1]
    oh2, ow2 = oh // 2, ow // 2
    nb = batch * oh2
    x = y.reshape(nb, 2, ow, c)            # free (contiguous) reshape: row pairs
    g = _row_tile(nb, group_cap)
    out = pl.pallas_call(
        _maxpool2x2_kernel,
        out_shape=jax.ShapeDtypeStruct((nb, ow2, c), y.dtype),
        grid=(pl.cdiv(nb, g),),
        in_specs=[pl.BlockSpec((g, 2, ow, c), lambda i: (i, 0, 0, 0))],
        out_specs=pl.BlockSpec((g, ow2, c), lambda i: (i, 0, 0)),
        compiler_params=_COMPILER_PARAMS,
    )(x)
    return out.reshape(batch, oh2, ow2, c)


def fc_tail(x, w1, b1, w2, b2, *, row_cap=256):
    m, k1 = x.shape
    n1 = w1.shape[1]
    n2 = w2.shape[1]
    tb = _row_tile(m, row_cap)
    return pl.pallas_call(
        _fc_tail_kernel,
        out_shape=jax.ShapeDtypeStruct((m, n2), jnp.float32),
        grid=(pl.cdiv(m, tb),),
        in_specs=[
            pl.BlockSpec((tb, k1), lambda i: (i, 0)),
            pl.BlockSpec((k1, n1), lambda i: (0, 0)),
            pl.BlockSpec((1, n1), lambda i: (0, 0)),
            pl.BlockSpec((n1, n2), lambda i: (0, 0)),
            pl.BlockSpec((1, n2), lambda i: (0, 0)),
        ],
        out_specs=pl.BlockSpec((tb, n2), lambda i: (i, 0)),
        compiler_params=_COMPILER_PARAMS,
    )(x, w1, b1, w2, b2)


# ---------------------------------------------------------------- conv layer --

def im2col_nhwc(x, k, cin):
    # x: (B, H, W, C >= cin) -> (B*OH*OW, k*k*cin), feature order (kh, kw, c).
    # Pure layout glue left to XLA (tiny tensors); the matmul is the hot path.
    b, h, w, _ = x.shape
    oh, ow = h - k + 1, w - k + 1
    cols = []
    for kh in range(k):
        for kw in range(k):
            cols.append(x[:, kh:kh + oh, kw:kw + ow, :cin])
    p = jnp.concatenate(cols, axis=-1)
    return p.reshape(b * oh * ow, k * k * cin), oh, ow


def conv2d_relu_pool(x_nhwc, w_mat, b_row, *, cin, k):
    # valid conv (stride 1) + ReLU (Pallas matmul) + 2x2/2 max pool (Pallas), NHWC.
    b = x_nhwc.shape[0]
    patches, oh, ow = im2col_nhwc(x_nhwc, k, cin)      # (B*oh*ow, k*k*cin) bf16
    y = matmul_bias_relu(patches, w_mat, b_row)        # (B*oh*ow, 128) bf16
    return max_pool_2x2(y, b, oh, ow)                  # (B, oh/2, ow/2, 128) bf16


# ------------------------------------------------------------------- params ---

def init_params(key):
    # Parameters in the original PyTorch layout (conv: OIHW, fc: (in, out)).
    ks = jax.random.split(key, 8)
    s = 0.05
    return {
        "conv1_w": jax.random.normal(ks[0], (20, 1, 5, 5), jnp.float32) * s,
        "conv1_b": jax.random.normal(ks[1], (20,), jnp.float32) * s,
        "conv2_w": jax.random.normal(ks[2], (50, 20, 5, 5), jnp.float32) * s,
        "conv2_b": jax.random.normal(ks[3], (50,), jnp.float32) * s,
        "fc1_w": jax.random.normal(ks[4], (800, 500), jnp.float32) * s,
        "fc1_b": jax.random.normal(ks[5], (500,), jnp.float32) * s,
        "fc2_w": jax.random.normal(ks[6], (500, 47), jnp.float32) * s,
        "fc2_b": jax.random.normal(ks[7], (47,), jnp.float32) * s,
    }


def _pad_to(a, axis, target):
    pad = [(0, 0)] * a.ndim
    pad[axis] = (0, target - a.shape[axis])
    return jnp.pad(a, pad)


def prepare_params(p):
    """One-time layout prep: im2col weight layout, lane padding, bf16 cast."""
    def conv_prep(wt, bias):
        cout, cin, kh, kw = wt.shape
        wm = wt.transpose(2, 3, 1, 0).reshape(kh * kw * cin, cout)   # (kh,kw,c) rows
        wm = _pad_to(wm, 1, CPAD).astype(jnp.bfloat16)
        bm = _pad_to(bias, 0, CPAD).reshape(1, CPAD).astype(jnp.float32)
        return wm, bm

    c1w, c1b = conv_prep(p["conv1_w"], p["conv1_b"])
    c2w, c2b = conv_prep(p["conv2_w"], p["conv2_b"])

    # fc1: reorder rows from PyTorch's NCHW flatten order (c, h, w) to the NHWC
    # flatten order (h, w, c) used by the Pallas pipeline; pad out 500 -> 512.
    ch, hh, ww = 50, 4, 4
    c = jnp.arange(ch)
    h = jnp.arange(hh)
    w = jnp.arange(ww)
    perm = (c[None, None, :] * (hh * ww)
            + h[:, None, None] * ww
            + w[None, :, None]).reshape(-1)                  # new row -> old row
    w1 = p["fc1_w"][perm, :]
    w1 = _pad_to(w1, 1, FC1_PAD).astype(jnp.bfloat16)        # (800, 512)
    b1 = _pad_to(p["fc1_b"], 0, FC1_PAD).reshape(1, FC1_PAD).astype(jnp.float32)

    # fc2: pad in 500 -> 512 (zero rows), out 47 -> 128; padded output lanes get a
    # hugely negative bias so the fused log-softmax ignores them exactly.
    w2 = _pad_to(_pad_to(p["fc2_w"], 0, FC1_PAD), 1, LANE).astype(jnp.bfloat16)
    b2 = jnp.full((1, LANE), NEG_PAD, jnp.float32)
    b2 = b2.at[0, :N_CLASSES].set(p["fc2_b"].astype(jnp.float32))

    return {"c1_w": c1w, "c1_b": c1b, "c2_w": c2w, "c2_b": c2b,
            "fc1_w": w1, "fc1_b": b1, "fc2_w": w2, "fc2_b": b2}


# ------------------------------------------------------------------ forward ---

@jax.jit
def simple_net_forward(prep, x):
    # x: (B, 1, 28, 28) float32 NCHW (PyTorch convention) -> (B, 47) log-probs.
    b = x.shape[0]
    xh = jnp.transpose(x, (0, 2, 3, 1)).astype(jnp.bfloat16)            # NHWC bf16
    x1 = conv2d_relu_pool(xh, prep["c1_w"], prep["c1_b"], cin=1, k=5)   # (B,12,12,128)
    x2 = conv2d_relu_pool(x1, prep["c2_w"], prep["c2_b"], cin=20, k=5)  # (B,4,4,128)
    feat = x2[:, :, :, :50].reshape(b, 4 * 4 * 50)       # NHWC flatten, valid channels
    out = fc_tail(feat, prep["fc1_w"], prep["fc1_b"],
                  prep["fc2_w"], prep["fc2_b"])          # (B, 128) f32 log-probs
    return out[:, :N_CLASSES]


def reference_forward(params, x):
    # Pure-JAX f32 reference mirroring the PyTorch module exactly.
    dn = ("NCHW", "OIHW", "NCHW")

    def pool(t):
        b, c, h, w = t.shape
        return jnp.max(t.reshape(b, c, h // 2, 2, w // 2, 2), axis=(3, 5))

    y = lax.conv_general_dilated(x, params["conv1_w"], (1, 1), "VALID",
                                 dimension_numbers=dn)
    y = jax.nn.relu(y + params["conv1_b"][None, :, None, None])
    y = pool(y)
    y = lax.conv_general_dilated(y, params["conv2_w"], (1, 1), "VALID",
                                 dimension_numbers=dn)
    y = jax.nn.relu(y + params["conv2_b"][None, :, None, None])
    y = pool(y)
    y = y.reshape(y.shape[0], -1)
    y = jax.nn.relu(y @ params["fc1_w"] + params["fc1_b"])
    y = y @ params["fc2_w"] + params["fc2_b"]
    return jax.nn.log_softmax(y, axis=1)


if __name__ == "__main__":
    key = jax.random.PRNGKey(0)
    pkey, xkey = jax.random.split(key)
    params = init_params(pkey)
    prep = prepare_params(params)
    # Spatial size must be 28x28 so fc1 sees 4*4*50 features (module spec).
    x = jax.random.normal(xkey, (2, 1, 28, 28), jnp.float32)

    out = jax.block_until_ready(simple_net_forward(prep, x))

    assert out.shape == (2, N_CLASSES), out.shape
    row_sums = jnp.sum(jnp.exp(out), axis=1)
    assert jnp.allclose(row_sums, 1.0, atol=1e-3), row_sums

    ref = reference_forward(params, x)
    max_err = float(jnp.max(jnp.abs(out - ref)))
    assert max_err < 5e-2, f"max |pallas - reference| = {max_err}"
    print("KERNEL_OK")
</pallas_src>

<mosaic_0001>
module attributes {stable_mosaic.version = 11 : i64} {
  func.func @_maxpool2x2_kernel(%arg0: i32, %arg1: memref<24x2x24x128xbf16, #tpu.memory_space<vmem>>, %arg2: memref<24x12x128xbf16, #tpu.memory_space<vmem>>) attributes {dimension_semantics = [#tpu.dimension_semantics<parallel>], iteration_bounds = array<i64: 1>, scalar_prefetch = 0 : i64, scratch_operands = 0 : i64, tpu.core_type = #tpu.core_type<tc>, window_params = [{transform_indices = @transform_0, window_bounds = array<i64: 24, 2, 24, 128>}, {transform_indices = @transform_1, window_bounds = array<i64: 24, 12, 128>}]} {
    %c0 = arith.constant 0 : index
    %c0_0 = arith.constant 0 : index
    %c0_1 = arith.constant 0 : index
    %c0_2 = arith.constant 0 : index
    %0 = vector.load %arg1[%c0, %c0_0, %c0_1, %c0_2] : memref<24x2x24x128xbf16, #tpu.memory_space<vmem>>, vector<24x2x24x128xbf16>
    %1 = vector.extract_strided_slice %0 {offsets = [0, 0, 0, 0], sizes = [24, 1, 24, 128], strides = [1, 1, 1, 1]} : vector<24x2x24x128xbf16> to vector<24x1x24x128xbf16>
    %2 = vector.shape_cast %1 : vector<24x1x24x128xbf16> to vector<24x24x128xbf16>
    %3 = vector.extract_strided_slice %0 {offsets = [0, 1, 0, 0], sizes = [24, 1, 24, 128], strides = [1, 1, 1, 1]} : vector<24x2x24x128xbf16> to vector<24x1x24x128xbf16>
    %4 = vector.shape_cast %3 : vector<24x1x24x128xbf16> to vector<24x24x128xbf16>
    %5 = arith.maximumf %2, %4 : vector<24x24x128xbf16>
    %6 = vector.shape_cast %5 : vector<24x24x128xbf16> to vector<24x12x2x128xbf16>
    %cst = arith.constant dense<0xFF80> : vector<24x12x128xbf16>
    %7 = vector.multi_reduction <maximumf>, %6, %cst [2] : vector<24x12x2x128xbf16> to vector<24x12x128xbf16>
    %c0_3 = arith.constant 0 : index
    %c0_4 = arith.constant 0 : index
    %c0_5 = arith.constant 0 : index
    %8 = vector.load %arg2[%c0_3, %c0_4, %c0_5] : memref<24x12x128xbf16, #tpu.memory_space<vmem>>, vector<24x12x128xbf16>
    tpu.vector_store %arg2[%c0_3, %c0_4, %c0_5], %7 {strides = array<i32>} : memref<24x12x128xbf16, #tpu.memory_space<vmem>>, vector<24x12x128xbf16>,
    return
  }
  func.func @transform_0(%arg0: i32) -> (i32, i32, i32, i32) {
    %c0_i32 = arith.constant 0 : i32
    %c0_i32_0 = arith.constant 0 : i32
    %c0_i32_1 = arith.constant 0 : i32
    %c0_i32_2 = arith.constant 0 : i32
    return %arg0, %c0_i32, %c0_i32_0, %c0_i32_1 : i32, i32, i32, i32
  }
  func.func @transform_1(%arg0: i32) -> (i32, i32, i32) {
    %c0_i32 = arith.constant 0 : i32
    %c0_i32_0 = arith.constant 0 : i32
    %c0_i32_1 = arith.constant 0 : i32
    return %arg0, %c0_i32, %c0_i32_0 : i32, i32, i32
  }
}

module attributes {stable_mosaic.version = 11 : i64} {
  func.func @_matmul_bias_relu_kernel(%arg0: i32, %arg1: memref<512x25xbf16, #tpu.memory_space<vmem>>, %arg2: memref<25x128xbf16, #tpu.memory_space<vmem>>, %arg3: memref<1x128xf32, #tpu.memory_space<vmem>>, %arg4: memref<512x128xbf16, #tpu.memory_space<vmem>>) attributes {dimension_semantics = [#tpu.dimension_semantics<parallel>], iteration_bounds = array<i64: 3>, scalar_prefetch = 0 : i64, scratch_operands = 0 : i64, tpu.core_type = #tpu.core_type<tc>, window_params = [{transform_indices = @transform_0, window_bounds = array<i64: 512, 25>}, {pipeline_mode = #tpu.pipeline_mode<synchronous>, transform_indices = @transform_1, window_bounds = array<i64: 25, 128>}, {pipeline_mode = #tpu.pipeline_mode<synchronous>, transform_indices = @transform_2, window_bounds = array<i64: 1, 128>}, {transform_indices = @transform_3, window_bounds = array<i64: 512, 128>}]} {
    %c0 = arith.constant 0 : index
    %c0_0 = arith.constant 0 : index
    %0 = vector.load %arg1[%c0, %c0_0] : memref<512x25xbf16, #tpu.memory_space<vmem>>, vector<512x25xbf16>
    %c0_1 = arith.constant 0 : index
    %c0_2 = arith.constant 0 : index
    %1 = vector.load %arg2[%c0_1, %c0_2] : memref<25x128xbf16, #tpu.memory_space<vmem>>, vector<25x128xbf16>
    %cst = arith.constant dense<0.000000e+00> : vector<512x128xf32>
    %2 = tpu.matmul %0, %1, %cst {dimension_numbers = #tpu.dot_dimension_numbers<[1], [0], [0], [1], [0, 0, 1, 1], [], []>} : vector<512x25xbf16>, vector<25x128xbf16>, vector<512x128xf32> -> vector<512x128xf32>
    %c0_3 = arith.constant 0 : index
    %c0_4 = arith.constant 0 : index
    %3 = vector.load %arg3[%c0_3, %c0_4] : memref<1x128xf32, #tpu.memory_space<vmem>>, vector<1x128xf32>
    %4 = vector.broadcast %3 : vector<1x128xf32> to vector<512x128xf32>
    %5 = arith.addf %2, %4 : vector<512x128xf32>
    %cst_5 = arith.constant 0.000000e+00 : f32
    %6 = vector.broadcast %cst_5 : f32 to vector<512x128xf32>
    %7 = arith.maximumf %5, %6 : vector<512x128xf32>
    %8 = arith.truncf %7 : vector<512x128xf32> to vector<512x128xbf16>
    %c0_6 = arith.constant 0 : index
    %c0_7 = arith.constant 0 : index
    %9 = vector.load %arg4[%c0_6, %c0_7] : memref<512x128xbf16, #tpu.memory_space<vmem>>, vector<512x128xbf16>
    tpu.vector_store %arg4[%c0_6, %c0_7], %8 {strides = array<i32>} : memref<512x128xbf16, #tpu.memory_space<vmem>>, vector<512x128xbf16>,
    return
  }
  func.func @transform_0(%arg0: i32) -> (i32, i32) {
    %c0_i32 = arith.constant 0 : i32
    %c0_i32_0 = arith.constant 0 : i32
    return %arg0, %c0_i32 : i32, i32
  }
  func.func @transform_1(%arg0: i32) -> (i32, i32) {
    %c0_i32 = arith.constant 0 : i32
    %c0_i32_0 = arith.constant 0 : i32
    %c0_i32_1 = arith.constant 0 : i32
    return %c0_i32, %c0_i32_0 : i32, i32
  }
  func.func @transform_2(%arg0: i32) -> (i32, i32) {
    %c0_i32 = arith.constant 0 : i32
    %c0_i32_0 = arith.constant 0 : i32
    %c0_i32_1 = arith.constant 0 : i32
    return %c0_i32, %c0_i32_0 : i32, i32
  }
  func.func @transform_3(%arg0: i32) -> (i32, i32) {
    %c0_i32 = arith.constant 0 : i32
    %c0_i32_0 = arith.constant 0 : i32
    return %arg0, %c0_i32 : i32, i32
  }
}

module attributes {stable_mosaic.version = 11 : i64} {
  func.func @_matmul_bias_relu_kernel(%arg0: i32, %arg1: memref<128x500xbf16, #tpu.memory_space<vmem>>, %arg2: memref<500x128xbf16, #tpu.memory_space<vmem>>, %arg3: memref<1x128xf32, #tpu.memory_space<vmem>>, %arg4: memref<128x128xbf16, #tpu.memory_space<vmem>>) attributes {dimension_semantics = [#tpu.dimension_semantics<parallel>], iteration_bounds = array<i64: 1>, scalar_prefetch = 0 : i64, scratch_operands = 0 : i64, tpu.core_type = #tpu.core_type<tc>, window_params = [{transform_indices = @transform_0, window_bounds = array<i64: 128, 500>}, {pipeline_mode = #tpu.pipeline_mode<synchronous>, transform_indices = @transform_1, window_bounds = array<i64: 500, 128>}, {pipeline_mode = #tpu.pipeline_mode<synchronous>, transform_indices = @transform_2, window_bounds = array<i64: 1, 128>}, {transform_indices = @transform_3, window_bounds = array<i64: 128, 128>}]} {
    %c0 = arith.constant 0 : index
    %c0_0 = arith.constant 0 : index
    %0 = vector.load %arg1[%c0, %c0_0] : memref<128x500xbf16, #tpu.memory_space<vmem>>, vector<128x500xbf16>
    %c0_1 = arith.constant 0 : index
    %c0_2 = arith.constant 0 : index
    %1 = vector.load %arg2[%c0_1, %c0_2] : memref<500x128xbf16, #tpu.memory_space<vmem>>, vector<500x128xbf16>
    %cst = arith.constant dense<0.000000e+00> : vector<128x128xf32>
    %2 = tpu.matmul %0, %1, %cst {dimension_numbers = #tpu.dot_dimension_numbers<[1], [0], [0], [1], [0, 0, 1, 1], [], []>} : vector<128x500xbf16>, vector<500x128xbf16>, vector<128x128xf32> -> vector<128x128xf32>
    %c0_3 = arith.constant 0 : index
    %c0_4 = arith.constant 0 : index
    %3 = vector.load %arg3[%c0_3, %c0_4] : memref<1x128xf32, #tpu.memory_space<vmem>>, vector<1x128xf32>
    %4 = vector.broadcast %3 : vector<1x128xf32> to vector<128x128xf32>
    %5 = arith.addf %2, %4 : vector<128x128xf32>
    %cst_5 = arith.constant 0.000000e+00 : f32
    %6 = vector.broadcast %cst_5 : f32 to vector<128x128xf32>
    %7 = arith.maximumf %5, %6 : vector<128x128xf32>
    %8 = arith.truncf %7 : vector<128x128xf32> to vector<128x128xbf16>
    %c0_6 = arith.constant 0 : index
    %c0_7 = arith.constant 0 : index
    %9 = vector.load %arg4[%c0_6, %c0_7] : memref<128x128xbf16, #tpu.memory_space<vmem>>, vector<128x128xbf16>
    tpu.vector_store %arg4[%c0_6, %c0_7], %8 {strides = array<i32>} : memref<128x128xbf16, #tpu.memory_space<vmem>>, vector<128x128xbf16>,
    return
  }
  func.func @transform_0(%arg0: i32) -> (i32, i32) {
    %c0_i32 = arith.constant 0 : i32
    %c0_i32_0 = arith.constant 0 : i32
    return %arg0, %c0_i32 : i32, i32
  }
  func.func @transform_1(%arg0: i32) -> (i32, i32) {
    %c0_i32 = arith.constant 0 : i32
    %c0_i32_0 = arith.constant 0 : i32
    %c0_i32_1 = arith.constant 0 : i32
    return %c0_i32, %c0_i32_0 : i32, i32
  }
  func.func @transform_2(%arg0: i32) -> (i32, i32) {
    %c0_i32 = arith.constant 0 : i32
    %c0_i32_0 = arith.constant 0 : i32
    %c0_i32_1 = arith.constant 0 : i32
    return %c0_i32, %c0_i32_0 : i32, i32
  }
  func.func @transform_3(%arg0: i32) -> (i32, i32) {
    %c0_i32 = arith.constant 0 : i32
    %c0_i32_0 = arith.constant 0 : i32
    return %arg0, %c0_i32 : i32, i32
  }
}

module attributes {stable_mosaic.version = 11 : i64} {
  func.func @_maxpool2x2_kernel(%arg0: i32, %arg1: memref<8x2x8x128xbf16, #tpu.memory_space<vmem>>, %arg2: memref<8x4x128xbf16, #tpu.memory_space<vmem>>) attributes {dimension_semantics = [#tpu.dimension_semantics<parallel>], iteration_bounds = array<i64: 1>, scalar_prefetch = 0 : i64, scratch_operands = 0 : i64, tpu.core_type = #tpu.core_type<tc>, window_params = [{transform_indices = @transform_0, window_bounds = array<i64: 8, 2, 8, 128>}, {transform_indices = @transform_1, window_bounds = array<i64: 8, 4, 128>}]} {
    %c0 = arith.constant 0 : index
    %c0_0 = arith.constant 0 : index
    %c0_1 = arith.constant 0 : index
    %c0_2 = arith.constant 0 : index
    %0 = vector.load %arg1[%c0, %c0_0, %c0_1, %c0_2] : memref<8x2x8x128xbf16, #tpu.memory_space<vmem>>, vector<8x2x8x128xbf16>
    %1 = vector.extract_strided_slice %0 {offsets = [0, 0, 0, 0], sizes = [8, 1, 8, 128], strides = [1, 1, 1, 1]} : vector<8x2x8x128xbf16> to vector<8x1x8x128xbf16>
    %2 = vector.shape_cast %1 : vector<8x1x8x128xbf16> to vector<8x8x128xbf16>
    %3 = vector.extract_strided_slice %0 {offsets = [0, 1, 0, 0], sizes = [8, 1, 8, 128], strides = [1, 1, 1, 1]} : vector<8x2x8x128xbf16> to vector<8x1x8x128xbf16>
    %4 = vector.shape_cast %3 : vector<8x1x8x128xbf16> to vector<8x8x128xbf16>
    %5 = arith.maximumf %2, %4 : vector<8x8x128xbf16>
    %6 = vector.shape_cast %5 : vector<8x8x128xbf16> to vector<8x4x2x128xbf16>
    %cst = arith.constant dense<0xFF80> : vector<8x4x128xbf16>
    %7 = vector.multi_reduction <maximumf>, %6, %cst [2] : vector<8x4x2x128xbf16> to vector<8x4x128xbf16>
    %c0_3 = arith.constant 0 : index
    %c0_4 = arith.constant 0 : index
    %c0_5 = arith.constant 0 : index
    %8 = vector.load %arg2[%c0_3, %c0_4, %c0_5] : memref<8x4x128xbf16, #tpu.memory_space<vmem>>, vector<8x4x128xbf16>
    tpu.vector_store %arg2[%c0_3, %c0_4, %c0_5], %7 {strides = array<i32>} : memref<8x4x128xbf16, #tpu.memory_space<vmem>>, vector<8x4x128xbf16>,
    return
  }
  func.func @transform_0(%arg0: i32) -> (i32, i32, i32, i32) {
    %c0_i32 = arith.constant 0 : i32
    %c0_i32_0 = arith.constant 0 : i32
    %c0_i32_1 = arith.constant 0 : i32
    %c0_i32_2 = arith.constant 0 : i32
    return %arg0, %c0_i32, %c0_i32_0, %c0_i32_1 : i32, i32, i32, i32
  }
  func.func @transform_1(%arg0: i32) -> (i32, i32, i32) {
    %c0_i32 = arith.constant 0 : i32
    %c0_i32_0 = arith.constant 0 : i32
    %c0_i32_1 = arith.constant 0 : i32
    return %arg0, %c0_i32, %c0_i32_0 : i32, i32, i32
  }
}

module attributes {stable_mosaic.version = 11 : i64} {
  func.func @_fc_tail_kernel(%arg0: i32, %arg1: memref<2x800xbf16, #tpu.memory_space<vmem>>, %arg2: memref<800x512xbf16, #tpu.memory_space<vmem>>, %arg3: memref<1x512xf32, #tpu.memory_space<vmem>>, %arg4: memref<512x128xbf16, #tpu.memory_space<vmem>>, %arg5: memref<1x128xf32, #tpu.memory_space<vmem>>, %arg6: memref<2x128xf32, #tpu.memory_space<vmem>>) attributes {dimension_semantics = [#tpu.dimension_semantics<parallel>], iteration_bounds = array<i64: 1>, scalar_prefetch = 0 : i64, scratch_operands = 0 : i64, tpu.core_type = #tpu.core_type<tc>, window_params = [{transform_indices = @transform_0, window_bounds = array<i64: 2, 800>}, {pipeline_mode = #tpu.pipeline_mode<synchronous>, transform_indices = @transform_1, window_bounds = array<i64: 800, 512>}, {pipeline_mode = #tpu.pipeline_mode<synchronous>, transform_indices = @transform_2, window_bounds = array<i64: 1, 512>}, {pipeline_mode = #tpu.pipeline_mode<synchronous>, transform_indices = @transform_3, window_bounds = array<i64: 512, 128>}, {pipeline_mode = #tpu.pipeline_mode<synchronous>, transform_indices = @transform_4, window_bounds = array<i64: 1, 128>}, {transform_indices = @transform_5, window_bounds = array<i64: 2, 128>}]} {
    %c0 = arith.constant 0 : index
    %c0_0 = arith.constant 0 : index
    %0 = vector.load %arg1[%c0, %c0_0] : memref<2x800xbf16, #tpu.memory_space<vmem>>, vector<2x800xbf16>
    %c0_1 = arith.constant 0 : index
    %c0_2 = arith.constant 0 : index
    %1 = vector.load %arg2[%c0_1, %c0_2] : memref<800x512xbf16, #tpu.memory_space<vmem>>, vector<800x512xbf16>
    %cst = arith.constant dense<0.000000e+00> : vector<2x512xf32>
    %2 = tpu.matmul %0, %1, %cst {dimension_numbers = #tpu.dot_dimension_numbers<[1], [0], [0], [1], [0, 0, 1, 1], [], []>} : vector<2x800xbf16>, vector<800x512xbf16>, vector<2x512xf32> -> vector<2x512xf32>
    %c0_3 = arith.constant 0 : index
    %c0_4 = arith.constant 0 : index
    %3 = vector.load %arg3[%c0_3, %c0_4] : memref<1x512xf32, #tpu.memory_space<vmem>>, vector<1x512xf32>
    %4 = vector.broadcast %3 : vector<1x512xf32> to vector<2x512xf32>
    %5 = arith.addf %2, %4 : vector<2x512xf32>
    %cst_5 = arith.constant 0.000000e+00 : f32
    %6 = vector.broadcast %cst_5 : f32 to vector<2x512xf32>
    %7 = arith.maximumf %5, %6 : vector<2x512xf32>
    %8 = arith.truncf %7 : vector<2x512xf32> to vector<2x512xbf16>
    %c0_6 = arith.constant 0 : index
    %c0_7 = arith.constant 0 : index
    %9 = vector.load %arg4[%c0_6, %c0_7] : memref<512x128xbf16, #tpu.memory_space<vmem>>, vector<512x128xbf16>
    %cst_8 = arith.constant dense<0.000000e+00> : vector<2x128xf32>
    %10 = tpu.matmul %8, %9, %cst_8 {dimension_numbers = #tpu.dot_dimension_numbers<[1], [0], [0], [1], [0, 0, 1, 1], [], []>} : vector<2x512xbf16>, vector<512x128xbf16>, vector<2x128xf32> -> vector<2x128xf32>
    %c0_9 = arith.constant 0 : index
    %c0_10 = arith.constant 0 : index
    %11 = vector.load %arg5[%c0_9, %c0_10] : memref<1x128xf32, #tpu.memory_space<vmem>>, vector<1x128xf32>
    %12 = vector.broadcast %11 : vector<1x128xf32> to vector<2x128xf32>
    %13 = arith.addf %10, %12 : vector<2x128xf32>
    %cst_11 = arith.constant dense<0xFF800000> : vector<2xf32>
    %14 = vector.multi_reduction <maximumf>, %13, %cst_11 [1] : vector<2x128xf32> to vector<2xf32>
    %15 = vector.shape_cast %14 : vector<2xf32> to vector<2x1xf32>
    %16 = vector.broadcast %15 : vector<2x1xf32> to vector<2x128xf32>
    %17 = arith.subf %13, %16 : vector<2x128xf32>
    %18 = math.exp %17 : vector<2x128xf32>
    %cst_12 = arith.constant dense<0.000000e+00> : vector<2xf32>
    %19 = vector.multi_reduction <add>, %18, %cst_12 [1] : vector<2x128xf32> to vector<2xf32>
    %20 = vector.shape_cast %19 : vector<2xf32> to vector<2x1xf32>
    %21 = math.log %20 : vector<2x1xf32>
    %22 = vector.broadcast %21 : vector<2x1xf32> to vector<2x128xf32>
    %23 = arith.subf %17, %22 : vector<2x128xf32>
    %c0_13 = arith.constant 0 : index
    %c0_14 = arith.constant 0 : index
    %24 = vector.load %arg6[%c0_13, %c0_14] : memref<2x128xf32, #tpu.memory_space<vmem>>, vector<2x128xf32>
    tpu.vector_store %arg6[%c0_13, %c0_14], %23 {strides = array<i32>} : memref<2x128xf32, #tpu.memory_space<vmem>>, vector<2x128xf32>,
    return
  }
  func.func @transform_0(%arg0: i32) -> (i32, i32) {
    %c0_i32 = arith.constant 0 : i32
    %c0_i32_0 = arith.constant 0 : i32
    return %arg0, %c0_i32 : i32, i32
  }
  func.func @transform_1(%arg0: i32) -> (i32, i32) {
    %c0_i32 = arith.constant 0 : i32
    %c0_i32_0 = arith.constant 0 : i32
    %c0_i32_1 = arith.constant 0 : i32
    return %c0_i32, %c0_i32_0 : i32, i32
  }
  func.func @transform_2(%arg0: i32) -> (i32, i32) {
    %c0_i32 = arith.constant 0 : i32
    %c0_i32_0 = arith.constant 0 : i32
    %c0_i32_1 = arith.constant 0 : i32
    return %c0_i32, %c0_i32_0 : i32, i32
  }
  func.func @transform_3(%arg0: i32) -> (i32, i32) {
    %c0_i32 = arith.constant 0 : i32
    %c0_i32_0 = arith.constant 0 : i32
    %c0_i32_1 = arith.constant 0 : i32
    return %c0_i32, %c0_i32_0 : i32, i32
  }
  func.func @transform_4(%arg0: i32) -> (i32, i32) {
    %c0_i32 = arith.constant 0 : i32
    %c0_i32_0 = arith.constant 0 : i32
    %c0_i32_1 = arith.constant 0 : i32
    return %c0_i32, %c0_i32_0 : i32, i32
  }
  func.func @transform_5(%arg0: i32) -> (i32, i32) {
    %c0_i32 = arith.constant 0 : i32
    %c0_i32_0 = arith.constant 0 : i32
    return %arg0, %c0_i32 : i32, i32
  }
}

</mosaic_0001>

<llo_original>
// kernel: simple_net_forward.5
$region0: #{simple_net_forward.5}
  #allocation0 [shape = 'u32[]', space=smem, size = 0x4, offset = 0x4, fixed_abs, tag = 'smem constant byte address 0x4 - core index']
  #allocation1 [shape = 'u32[144,128]{1,0:T(1,128)}', space=vmem, size = 0x12000, scoped, tag = 'internal scratch']
  %s0 = inlined_call_operand.vmem [shape: bf16[1152,25], index: 0, kind: input, shape index: {}]
  %s1 = inlined_call_operand.vmem [shape: bf16[25,128], index: 1, kind: input, shape index: {}]
  %s2 = inlined_call_operand.vmem [shape: f32[1,128], index: 2, kind: input, shape index: {}]
  %s3 = inlined_call_operand.vmem [shape: bf16[1152,128], index: 3, kind: output, shape index: {}]
  %s4 = sld [smem:[#allocation0]]
  $region89: #{simple_net_forward.5} parent=0
    _
  %s6 = ssub.s32 1, %s4
  %s7 = scalar_select 0, %s6, %s4
  $region1: #{simple_net_forward.5} parent=0
    #allocation2 [shape = 'u8[262144]{0}', space=vmem, size = 0x40000, scoped, tag = 'output window, operand 0']
    loop: start=0, step=1, limit=5
    $region2: #{simple_net_forward.5} parent=1 // loop_pre_header
      _
    $region3: #{simple_net_forward.5} parent=1 // loop_header
      %s9 = sphi 0, %s13
      %p10 = scmp.ge.s32.totalorder %s9, 5
      %s19 = sphi 0, %s21
      %s22 = sphi 0, %s19
      %s23 = sphi 0, %s22
      %s39 = sphi 0, %s23
      %s43 = sphi 0, %s43
      %s45 = sphi 0, %s43
      %s46 = sphi 0, %s45
      %s60 = sphi 0, %s46
      %s64 = sphi 0, %s64
      %s66 = sphi 0, %s64
      %s67 = sphi 0, %s66
      %s81 = sphi 0, %s67
      %s87 = sphi 0, %s89
      %s90 = sphi 0, %s87
      %s91 = sphi 0, %s90
      %s107 = sphi 0, %s91
    $region4: #{simple_net_forward.5} parent=1 // loop_header_branch
      %12 = sbr.rel (%p10) target = $region8
    $region5: #{simple_net_forward.5} parent=1 // loop_body
      %s14 = ssub.s32 %s9, 1
      %s15 = ssub.s32 %s9, 2
      %s16 = sadd.s32 %s9, 1
      %s17 = ssub.s32 %s9, %s16
      %p18 = scmp.eq.s32.totalorder %s17, 0
      %s20 = sadd.s32 %s19, 1
      %s21 = scalar_select %p18, %s19, %s20
      %p24 = pneg %p18
      %p25 = scmp.eq.s32.totalorder %s9, 2
      %p26 = por %p24, %p25
      %p27 = scmp.ne.s32.totalorder %s19, %s22
      %p28 = scmp.eq.s32.totalorder %s9, 0
      %p29 = por %p27, %p28
      %p30 = scmp.ne.s32.totalorder %s19, %s22
      %p31 = scmp.eq.s32.totalorder %s14, 2
      %p32 = por %p30, %p31
      %p33 = scmp.ne.s32.totalorder %s22, %s23
      %p34 = scmp.eq.s32.totalorder %s14, 0
      %p35 = por %p33, %p34
      %p36 = scmp.ne.s32.totalorder %s22, %s23
      %p37 = scmp.eq.s32.totalorder %s15, 2
      %p38 = por %p36, %p37
      %p40 = scmp.ne.s32.totalorder %s23, %s39
      %p41 = scmp.eq.s32.totalorder %s15, 0
      %p42 = por %p40, %p41
      %s44 = sadd.s32 %s43, 1
      %p47 = scmp.eq.s32.totalorder %s9, 2
      %p48 = scmp.ne.s32.totalorder %s43, %s45
      %p49 = scmp.eq.s32.totalorder %s9, 0
      %p50 = por %p48, %p49
      %p51 = scmp.ne.s32.totalorder %s43, %s45
      %p52 = scmp.eq.s32.totalorder %s14, 2
      %p53 = por %p51, %p52
      %p54 = scmp.ne.s32.totalorder %s45, %s46
      %p55 = scmp.eq.s32.totalorder %s14, 0
      %p56 = por %p54, %p55
      %p57 = scmp.ne.s32.totalorder %s45, %s46
      %p58 = scmp.eq.s32.totalorder %s15, 2
      %p59 = por %p57, %p58
      %p61 = scmp.ne.s32.totalorder %s46, %s60
      %p62 = scmp.eq.s32.totalorder %s15, 0
      %p63 = por %p61, %p62
      %s65 = sadd.s32 %s64, 1
      %p68 = scmp.eq.s32.totalorder %s9, 2
      %p69 = scmp.ne.s32.totalorder %s64, %s66
      %p70 = scmp.eq.s32.totalorder %s9, 0
      %p71 = por %p69, %p70
      %p72 = scmp.ne.s32.totalorder %s64, %s66
      %p73 = scmp.eq.s32.totalorder %s14, 2
      %p74 = por %p72, %p73
      %p75 = scmp.ne.s32.totalorder %s66, %s67
      %p76 = scmp.eq.s32.totalorder %s14, 0
      %p77 = por %p75, %p76
      %p78 = scmp.ne.s32.totalorder %s66, %s67
      %p79 = scmp.eq.s32.totalorder %s15, 2
      %p80 = por %p78, %p79
      %p82 = scmp.ne.s32.totalorder %s67, %s81
      %p83 = scmp.eq.s32.totalorder %s15, 0
      %p84 = por %p82, %p83
      %s85 = ssub.s32 %s9, %s16
      %p86 = scmp.eq.s32.totalorder %s85, 0
      %s88 = sadd.s32 %s87, 1
      %s89 = scalar_select %p86, %s87, %s88
      %p92 = pneg %p86
      %p93 = scmp.eq.s32.totalorder %s9, 2
      %p94 = por %p92, %p93
      %p95 = scmp.ne.s32.totalorder %s87, %s90
      %p96 = scmp.eq.s32.totalorder %s9, 0
      %p97 = por %p95, %p96
      %p98 = scmp.ne.s32.totalorder %s87, %s90
      %p99 = scmp.eq.s32.totalorder %s14, 2
      %p100 = por %p98, %p99
      %p101 = scmp.ne.s32.totalorder %s90, %s91
      %p102 = scmp.eq.s32.totalorder %s14, 0
      %p103 = por %p101, %p102
      %p104 = scmp.ne.s32.totalorder %s90, %s91
      %p105 = scmp.eq.s32.totalorder %s15, 2
      %p106 = por %p104, %p105
      %p108 = scmp.ne.s32.totalorder %s91, %s107
      %p109 = scmp.eq.s32.totalorder %s15, 0
      %p110 = por %p108, %p109
      %p111 = scmp.le.s32.totalorder 1, %s9
      %p112 = scmp.lt.s32.totalorder %s9, 4
      %p113 = pnand %p111, %p112
      %p114 = pneg %p113
      // Predicated region
      $region9: #{simple_net_forward.5} parent=5 // pred_check
        _
      $region10: #{simple_net_forward.5} parent=5 // pred_check_branch
        %116 = sbr.rel (%p113) target = $region12
      $region11: #{simple_net_forward.5} parent=5 // pred_region
        %s117 = ssub.s32 %s9, 1
        // Predicated region
        $region13: #{simple_net_forward.5} parent=11 // pred_check
          %p118 = pneg %p56
        $region14: #{simple_net_forward.5} parent=11 // pred_check_branch
          %120 = sbr.rel (%p118) target = $region16
        $region15: #{simple_net_forward.5} parent=11 // pred_region
          _
        $region16: #{simple_net_forward.5} parent=11 // pred_fallthru
          _
        // Predicated region
        $region17: #{simple_net_forward.5} parent=11 // pred_check
          %p121 = pneg %p77
        $region18: #{simple_net_forward.5} parent=11 // pred_check_branch
          %123 = sbr.rel (%p121) target = $region20
        $region19: #{simple_net_forward.5} parent=11 // pred_region
          _
        $region20: #{simple_net_forward.5} parent=11 // pred_fallthru
          _
      $region12: #{simple_net_forward.5} parent=5 // pred_fallthru
        _
      %p124 = scmp.lt.s32.totalorder %s9, 3
      // Predicated region
      $region21: #{simple_net_forward.5} parent=5 // pred_check
        %p125 = pneg %p124
      $region22: #{simple_net_forward.5} parent=5 // pred_check_branch
        %127 = sbr.rel (%p125) target = $region24
      $region23: #{simple_net_forward.5} parent=5 // pred_region
        // Predicated region
        $region25: #{simple_net_forward.5} parent=23 // pred_check
          %p128 = pneg %p29
        $region26: #{simple_net_forward.5} parent=23 // pred_check_branch
          %130 = sbr.rel (%p128) target = $region28
        $region27: #{simple_net_forward.5} parent=23 // pred_region
          %s131 = smul.u32 64, %s9
          %s132 = ssub.s32 144, %s131
          %p133 = scmp.lt.s32.totalorder %s132, 64
          %s134 = scalar_select %p133, %s132, 64
          %s135 = smul.u32 64, %s134
          %p136 = scmp.lt.s32.totalorder %s131, 143
          %s137 = scalar_select %p136, %s131, 143
          %s138 = smul.addr %s137, 4
          %s139 = scalar_lea.vmem %s0, %s138
          %s140 = smul.u32 64, %s9
          %s141 = ssub.s32 144, %s140
          %p142 = scmp.lt.s32.totalorder %s141, 64
          %s143 = scalar_select %p142, %s141, 64
          %s144 = smul.u32 64, %s143
        $region28: #{simple_net_forward.5} parent=23 // pred_fallthru
          _
      $region24: #{simple_net_forward.5} parent=5 // pred_fallthru
        _
      %p145 = scmp.le.s32.totalorder 1, %s9
      %p146 = scmp.lt.s32.totalorder %s9, 4
      %p147 = pnand %p145, %p146
      %p148 = pneg %p147
      // Predicated region
      $region29: #{simple_net_forward.5} parent=5 // pred_check
        _
      $region30: #{simple_net_forward.5} parent=5 // pred_check_branch
        %150 = sbr.rel (%p147) target = $region32
      $region31: #{simple_net_forward.5} parent=5 // pred_region
        %s151 = ssub.s32 %s9, 1
        %s152 = smul.u32 64, %s14
        %s153 = ssub.s32 144, %s152
        %p154 = scmp.lt.s32.totalorder %s153, 64
        %s155 = scalar_select %p154, %s153, 64
        %s156 = smul.u32 64, %s155
        %p157 = scmp.lt.s32.totalorder %s152, 143
        %s158 = scalar_select %p157, %s152, 143
        %s159 = smul.addr %s158, 4
        %s160 = scalar_lea.vmem %s0, %s159
        %p161 = pneg %p35
        %p162 = pneg %p32
        %p163 = pneg %p56
        %p164 = pneg %p53
        %p165 = pneg %p77
        %p166 = pneg %p74
        %p167 = pneg %p103
        %p168 = pneg %p100
        %s169 = sand.u32 %s90, 1
        %s170 = sand.u32 %s90, 1
        %s171 = smul.addr %s170, 256
        %s172 = scalar_lea.vmem [#allocation2], %s171
        %s173 = smul.u32 64, %s14
        %s174 = ssub.s32 144, %s173
        %p175 = scmp.lt.s32.totalorder %s174, 64
        %s176 = scalar_select %p175, %s174, 64
        %s177 = smul.u32 64, %s176
        %p178 = scmp.lt.s32.totalorder %s173, 143
        %s179 = scalar_select %p178, %s173, 143
        %s180 = smul.addr %s179, 4
        %s181 = scalar_lea.vmem %s0, %s180
        %s182 = smul.u32 64, %s14
        %s183 = ssub.s32 144, %s182
        %p184 = scmp.lt.s32.totalorder %s183, 64
        %s185 = scalar_select %p184, %s183, 64
        %s186 = smul.u32 64, %s185
        %s187 = smul.u32 64, %s14
        %s188 = ssub.s32 144, %s187
        %p189 = scmp.lt.s32.totalorder %s188, 64
        %s190 = scalar_select %p189, %s188, 64
        %s191 = smul.u32 64, %s190
        %v193 = vld [vmem:[%s181] sm:$0xf]
        %v194 = vld [vmem:[%s181 + $0x4] sm:$0xf]
        %v195 = vld [vmem:[%s181 + $0x8] sm:$0xf]
        %v196 = vld [vmem:[%s181 + $0xc] sm:$0xf]
        %v197 = vld [vmem:[%s181 + $0x10] sm:$0xf]
        %v198 = vld [vmem:[%s181 + $0x14] sm:$0xf]
        %v199 = vld [vmem:[%s181 + $0x18] sm:$0xf]
        %v200 = vld [vmem:[%s181 + $0x1c] sm:$0xf]
        %v201 = vld [vmem:[%s181 + $0x20] sm:$0xf]
        %v202 = vld [vmem:[%s181 + $0x24] sm:$0xf]
        %v203 = vld [vmem:[%s181 + $0x28] sm:$0xf]
        %v204 = vld [vmem:[%s181 + $0x2c] sm:$0xf]
        %v205 = vld [vmem:[%s181 + $0x30] sm:$0xf]
        %v206 = vld [vmem:[%s181 + $0x34] sm:$0xf]
        %v207 = vld [vmem:[%s181 + $0x38] sm:$0xf]
        %v208 = vld [vmem:[%s181 + $0x3c] sm:$0xf]
        %v209 = vld [vmem:[%s181 + $0x40] sm:$0xf]
        %v210 = vld [vmem:[%s181 + $0x44] sm:$0xf]
        %v211 = vld [vmem:[%s181 + $0x48] sm:$0xf]
        %v212 = vld [vmem:[%s181 + $0x4c] sm:$0xf]
        %v213 = vld [vmem:[%s181 + $0x50] sm:$0xf]
        %v214 = vld [vmem:[%s181 + $0x54] sm:$0xf]
        %v215 = vld [vmem:[%s181 + $0x58] sm:$0xf]
        %v216 = vld [vmem:[%s181 + $0x5c] sm:$0xf]
        %v217 = vld [vmem:[%s181 + $0x60] sm:$0xf]
        %v218 = vld [vmem:[%s181 + $0x64] sm:$0xf]
        %v219 = vld [vmem:[%s181 + $0x68] sm:$0xf]
        %v220 = vld [vmem:[%s181 + $0x6c] sm:$0xf]
        %v221 = vld [vmem:[%s181 + $0x70] sm:$0xf]
        %v222 = vld [vmem:[%s181 + $0x74] sm:$0xf]
        %v223 = vld [vmem:[%s181 + $0x78] sm:$0xf]
        %v224 = vld [vmem:[%s181 + $0x7c] sm:$0xf]
        %v225 = vld [vmem:[%s181 + $0x80] sm:$0xf]
        %v226 = vld [vmem:[%s181 + $0x84] sm:$0xf]
        %v227 = vld [vmem:[%s181 + $0x88] sm:$0xf]
        %v228 = vld [vmem:[%s181 + $0x8c] sm:$0xf]
        %v229 = vld [vmem:[%s181 + $0x90] sm:$0xf]
        %v230 = vld [vmem:[%s181 + $0x94] sm:$0xf]
        %v231 = vld [vmem:[%s181 + $0x98] sm:$0xf]
        %v232 = vld [vmem:[%s181 + $0x9c] sm:$0xf]
        %v233 = vld [vmem:[%s181 + $0xa0] sm:$0xf]
        %v234 = vld [vmem:[%s181 + $0xa4] sm:$0xf]
        %v235 = vld [vmem:[%s181 + $0xa8] sm:$0xf]
        %v236 = vld [vmem:[%s181 + $0xac] sm:$0xf]
        %v237 = vld [vmem:[%s181 + $0xb0] sm:$0xf]
        %v238 = vld [vmem:[%s181 + $0xb4] sm:$0xf]
        %v239 = vld [vmem:[%s181 + $0xb8] sm:$0xf]
        %v240 = vld [vmem:[%s181 + $0xbc] sm:$0xf]
        %v241 = vld [vmem:[%s181 + $0xc0] sm:$0xf]
        %v242 = vld [vmem:[%s181 + $0xc4] sm:$0xf]
        %v243 = vld [vmem:[%s181 + $0xc8] sm:$0xf]
        %v244 = vld [vmem:[%s181 + $0xcc] sm:$0xf]
        %v245 = vld [vmem:[%s181 + $0xd0] sm:$0xf]
        %v246 = vld [vmem:[%s181 + $0xd4] sm:$0xf]
        %v247 = vld [vmem:[%s181 + $0xd8] sm:$0xf]
        %v248 = vld [vmem:[%s181 + $0xdc] sm:$0xf]
        %v249 = vld [vmem:[%s181 + $0xe0] sm:$0xf]
        %v250 = vld [vmem:[%s181 + $0xe4] sm:$0xf]
        %v251 = vld [vmem:[%s181 + $0xe8] sm:$0xf]
        %v252 = vld [vmem:[%s181 + $0xec] sm:$0xf]
        %v253 = vld [vmem:[%s181 + $0xf0] sm:$0xf]
        %v254 = vld [vmem:[%s181 + $0xf4] sm:$0xf]
        %v255 = vld [vmem:[%s181 + $0xf8] sm:$0xf]
        %v256 = vld [vmem:[%s181 + $0xfc] sm:$0xf]
        %v257 = vld [vmem:[%s1] sm:$0xf]
        %v258 = vld [vmem:[%s1 + $0x4] sm:$0xf]
        %v259 = vld [vmem:[%s1 + $0x8] sm:$0xf]
        %v260 = vld [vmem:[%s1 + $0xc] sm:$0x1]
        %v261 = vld [vmem:[%s2] sm:$0x1]
        %v263 = vlaneseq
        %v264 = vshrl.u32 %v263, 7
        %v265 = vsub.s32 0, %v264
        %v266 = vrot.slane %v261, %v265
        %v332 = vunpack.c.l.b16 %v193
        %v333 = vunpack.c.l.b16 %v194
        %v334 = vunpack.c.l.b16 %v195
        %v335 = vunpack.c.l.b16 %v196
        %v336 = vunpack.c.l.b16 %v197
        %v337 = vunpack.c.l.b16 %v198
        %v338 = vunpack.c.l.b16 %v199
        %v339 = vunpack.c.l.b16 %v200
        %v340 = vunpack.c.l.b16 %v201
        %v341 = vunpack.c.l.b16 %v202
        %v342 = vunpack.c.l.b16 %v203
        %v343 = vunpack.c.l.b16 %v204
        %v344 = vunpack.c.l.b16 %v205
        %v345 = vunpack.c.l.b16 %v206
        %v346 = vunpack.c.l.b16 %v207
        %v347 = vunpack.c.l.b16 %v208
        %v348 = vunpack.c.l.b16 %v209
        %v349 = vunpack.c.l.b16 %v210
        %v350 = vunpack.c.l.b16 %v211
        %v351 = vunpack.c.l.b16 %v212
        %v352 = vunpack.c.l.b16 %v213
        %v353 = vunpack.c.l.b16 %v214
        %v354 = vunpack.c.l.b16 %v215
        %v355 = vunpack.c.l.b16 %v216
        %v356 = vunpack.c.l.b16 %v217
        %v357 = vunpack.c.l.b16 %v218
        %v358 = vunpack.c.l.b16 %v219
        %v359 = vunpack.c.l.b16 %v220
        %v360 = vunpack.c.l.b16 %v221
        %v361 = vunpack.c.l.b16 %v222
        %v362 = vunpack.c.l.b16 %v223
        %v363 = vunpack.c.l.b16 %v224
        %v364 = vunpack.c.l.b16 %v225
        %v365 = vunpack.c.l.b16 %v226
        %v366 = vunpack.c.l.b16 %v227
        %v367 = vunpack.c.l.b16 %v228
        %v368 = vunpack.c.l.b16 %v229
        %v369 = vunpack.c.l.b16 %v230
        %v370 = vunpack.c.l.b16 %v231
        %v371 = vunpack.c.l.b16 %v232
        %v372 = vunpack.c.l.b16 %v233
        %v373 = vunpack.c.l.b16 %v234
        %v374 = vunpack.c.l.b16 %v235
        %v375 = vunpack.c.l.b16 %v236
        %v376 = vunpack.c.l.b16 %v237
        %v377 = vunpack.c.l.b16 %v238
        %v378 = vunpack.c.l.b16 %v239
        %v379 = vunpack.c.l.b16 %v240
        %v380 = vunpack.c.l.b16 %v241
        %v381 = vunpack.c.l.b16 %v242
        %v382 = vunpack.c.l.b16 %v243
        %v383 = vunpack.c.l.b16 %v244
        %v384 = vunpack.c.l.b16 %v245
        %v385 = vunpack.c.l.b16 %v246
        %v386 = vunpack.c.l.b16 %v247
        %v387 = vunpack.c.l.b16 %v248
        %v388 = vunpack.c.l.b16 %v249
        %v389 = vunpack.c.l.b16 %v250
        %v390 = vunpack.c.l.b16 %v251
        %v391 = vunpack.c.l.b16 %v252
        %v392 = vunpack.c.l.b16 %v253
        %v393 = vunpack.c.l.b16 %v254
        %v394 = vunpack.c.l.b16 %v255
        %v395 = vunpack.c.l.b16 %v256
        %v396 = vpack.c.b16 %v333, %v332
        %v397 = vpack.c.b16 %v335, %v334
        %v398 = vpack.c.b16 %v337, %v336
        %v399 = vpack.c.b16 %v339, %v338
        %v400 = vpack.c.b16 %v341, %v340
        %v401 = vpack.c.b16 %v343, %v342
        %v402 = vpack.c.b16 %v345, %v344
        %v403 = vpack.c.b16 %v347, %v346
        %v404 = vpack.c.b16 %v349, %v348
        %v405 = vpack.c.b16 %v351, %v350
        %v406 = vpack.c.b16 %v353, %v352
        %v407 = vpack.c.b16 %v355, %v354
        %v408 = vpack.c.b16 %v357, %v356
        %v409 = vpack.c.b16 %v359, %v358
        %v410 = vpack.c.b16 %v361, %v360
        %v411 = vpack.c.b16 %v363, %v362
        %v412 = vpack.c.b16 %v365, %v364
        %v413 = vpack.c.b16 %v367, %v366
        %v414 = vpack.c.b16 %v369, %v368
        %v415 = vpack.c.b16 %v371, %v370
        %v416 = vpack.c.b16 %v373, %v372
        %v417 = vpack.c.b16 %v375, %v374
        %v418 = vpack.c.b16 %v377, %v376
        %v419 = vpack.c.b16 %v379, %v378
        %v420 = vpack.c.b16 %v381, %v380
        %v421 = vpack.c.b16 %v383, %v382
        %v422 = vpack.c.b16 %v385, %v384
        %v423 = vpack.c.b16 %v387, %v386
        %v424 = vpack.c.b16 %v389, %v388
        %v425 = vpack.c.b16 %v391, %v390
        %v426 = vpack.c.b16 %v393, %v392
        %v427 = vpack.c.b16 %v395, %v394
        %v432 = vunpack.c.l.b16 %v257
        %v433 = vunpack.c.l.b16 %v258
        %v434 = vunpack.c.l.b16 %v259
        %v435 = vunpack.c.l.b16 %v260
        %v436 = vpack.c.b16 %v433, %v432
        %v437 = vpack.c.b16 %v435, %v434
        %vm439 = vcmask 203776
        %v441 = vsel %vm439, %v396, 0
        %v444 = vsel %vm439, %v397, 0
        %v447 = vsel %vm439, %v398, 0
        %v450 = vsel %vm439, %v399, 0
        %v453 = vsel %vm439, %v400, 0
        %v456 = vsel %vm439, %v401, 0
        %v459 = vsel %vm439, %v402, 0
        %v462 = vsel %vm439, %v403, 0
        %v465 = vsel %vm439, %v404, 0
        %v468 = vsel %vm439, %v405, 0
        %v471 = vsel %vm439, %v406, 0
        %v474 = vsel %vm439, %v407, 0
        %v477 = vsel %vm439, %v408, 0
        %v480 = vsel %vm439, %v409, 0
        %v483 = vsel %vm439, %v410, 0
        %v486 = vsel %vm439, %v411, 0
        %v489 = vsel %vm439, %v412, 0
        %v492 = vsel %vm439, %v413, 0
        %v495 = vsel %vm439, %v414, 0
        %v498 = vsel %vm439, %v415, 0
        %v501 = vsel %vm439, %v416, 0
        %v504 = vsel %vm439, %v417, 0
        %v507 = vsel %vm439, %v418, 0
        %v510 = vsel %vm439, %v419, 0
        %v513 = vsel %vm439, %v420, 0
        %v516 = vsel %vm439, %v421, 0
        %v519 = vsel %vm439, %v422, 0
        %v522 = vsel %vm439, %v423, 0
        %v525 = vsel %vm439, %v424, 0
        %v528 = vsel %vm439, %v425, 0
        %v531 = vsel %vm439, %v426, 0
        %v534 = vsel %vm439, %v427, 0
        %vm536 = vcmask 1043456
        %vm537 = vcmask 1044480
        %v538 = vsel %vm536, 4294967295, 65535
        %v539 = vsel %vm537, %v538, 0
        %v541 = vand.u32 %v437, %v539
        %543 = vmatprep.subr.bf16.mxu0 0
        %544 = vmatpush1.bf16.msra.mxu0 %v436
        %545 = vmatprep.subr.bf16.mxu0 0
        %546 = vmatpush1.bf16.msra.mxu0 %v541
        %547 = vmatprep.subr.bf16.mxu0 0
        %548 = vmatpush1.bf16.msra.mxu0 0
        %549 = vmatprep.subr.bf16.mxu0 0
        %550 = vmatpush1.bf16.msra.mxu0 0
        %551 = vmatprep.subr.bf16.mxu0 0
        %552 = vmatpush1.bf16.msra.mxu0 0
        %553 = vmatprep.subr.bf16.mxu0 0
        %554 = vmatpush1.bf16.msra.mxu0 0
        %555 = vmatprep.subr.bf16.mxu0 0
        %556 = vmatpush1.bf16.msra.mxu0 0
        %557 = vmatprep.subr.bf16.mxu0 0
        %558 = vmatpush1.bf16.msra.mxu0 0
        %559 = vmatprep.subr.bf16.mxu0 0
        %560 = vmatpush1.bf16.msra.mxu0 0
        %561 = vmatprep.subr.bf16.mxu0 0
        %562 = vmatpush1.bf16.msra.mxu0 0
        %563 = vmatprep.subr.bf16.mxu0 0
        %564 = vmatpush1.bf16.msra.mxu0 0
        %565 = vmatprep.subr.bf16.mxu0 0
        %566 = vmatpush1.bf16.msra.mxu0 0
        %567 = vmatprep.subr.bf16.mxu0 0
        %568 = vmatpush1.bf16.msra.mxu0 0
        %569 = vmatprep.subr.bf16.mxu0 0
        %570 = vmatpush1.bf16.msra.mxu0 0
        %571 = vmatprep.subr.bf16.mxu0 0
        %572 = vmatpush1.bf16.msra.mxu0 0
        %573 = vmatprep.subr.bf16.mxu0 0
        %574 = vmatpush1.bf16.msra.mxu0 0
        %575 = vmatprep.mubr.bf16.mxu0 0
        %576 = vmatmul.mubr.bf16.gmra.mrb[0].mxu0 %v441
        %v577 = vpop.f32.mrb[0].mxu0
        %v578 = vadd.f32 %v266, %v577
        %v579 = vpop.f32.mrb[0].mxu0
        %v580 = vpop.f32.mrb[0].mxu0
        %v581 = vadd.f32 %v266, %v580
        %v582 = vpop.f32.mrb[0].mxu0
        %583 = vmatprep.mubr.bf16.mxu0 0
        %584 = vmatmul.mubr.bf16.gmra.mrb[0].mxu0 %v444
        %v585 = vpop.f32.mrb[0].mxu0
        %v586 = vadd.f32 %v266, %v585
        %v587 = vpop.f32.mrb[0].mxu0
        %v588 = vpop.f32.mrb[0].mxu0
        %v589 = vadd.f32 %v266, %v588
        %v590 = vpop.f32.mrb[0].mxu0
        %591 = vmatprep.mubr.bf16.mxu0 0
        %592 = vmatmul.mubr.bf16.gmra.mrb[0].mxu0 %v447
        %v593 = vpop.f32.mrb[0].mxu0
        %v594 = vadd.f32 %v266, %v593
        %v595 = vpop.f32.mrb[0].mxu0
        %v596 = vpop.f32.mrb[0].mxu0
        %v597 = vadd.f32 %v266, %v596
        %v598 = vpop.f32.mrb[0].mxu0
        %599 = vmatprep.mubr.bf16.mxu0 0
        %600 = vmatmul.mubr.bf16.gmra.mrb[0].mxu0 %v450
        %v601 = vpop.f32.mrb[0].mxu0
        %v602 = vadd.f32 %v266, %v601
        %v603 = vpop.f32.mrb[0].mxu0
        %v604 = vpop.f32.mrb[0].mxu0
        %v605 = vadd.f32 %v266, %v604
        %v606 = vpop.f32.mrb[0].mxu0
        %607 = vmatprep.mubr.bf16.mxu0 0
        %608 = vmatmul.mubr.bf16.gmra.mrb[0].mxu0 %v453
        %v609 = vpop.f32.mrb[0].mxu0
        %v610 = vadd.f32 %v266, %v609
        %v611 = vpop.f32.mrb[0].mxu0
        %v612 = vpop.f32.mrb[0].mxu0
        %v613 = vadd.f32 %v266, %v612
        %v614 = vpop.f32.mrb[0].mxu0
        %615 = vmatprep.mubr.bf16.mxu0 0
        %616 = vmatmul.mubr.bf16.gmra.mrb[0].mxu0 %v456
        %v617 = vpop.f32.mrb[0].mxu0
        %v618 = vadd.f32 %v266, %v617
        %v619 = vpop.f32.mrb[0].mxu0
        %v620 = vpop.f32.mrb[0].mxu0
        %v621 = vadd.f32 %v266, %v620
        %v622 = vpop.f32.mrb[0].mxu0
        %623 = vmatprep.mubr.bf16.mxu0 0
        %624 = vmatmul.mubr.bf16.gmra.mrb[0].mxu0 %v459
        %v625 = vpop.f32.mrb[0].mxu0
        %v626 = vadd.f32 %v266, %v625
        %v627 = vpop.f32.mrb[0].mxu0
        %v628 = vpop.f32.mrb[0].mxu0
        %v629 = vadd.f32 %v266, %v628
        %v630 = vpop.f32.mrb[0].mxu0
        %631 = vmatprep.mubr.bf16.mxu0 0
        %632 = vmatmul.mubr.bf16.gmra.mrb[0].mxu0 %v462
        %v633 = vpop.f32.mrb[0].mxu0
        %v634 = vadd.f32 %v266, %v633
        %v635 = vpop.f32.mrb[0].mxu0
        %v636 = vpop.f32.mrb[0].mxu0
        %v637 = vadd.f32 %v266, %v636
        %v638 = vpop.f32.mrb[0].mxu0
        %639 = vmatprep.mubr.bf16.mxu0 0
        %640 = vmatmul.mubr.bf16.gmra.mrb[0].mxu0 %v465
        %v641 = vpop.f32.mrb[0].mxu0
        %v642 = vadd.f32 %v266, %v641
        %v643 = vpop.f32.mrb[0].mxu0
        %v644 = vpop.f32.mrb[0].mxu0
        %v645 = vadd.f32 %v266, %v644
        %v646 = vpop.f32.mrb[0].mxu0
        %647 = vmatprep.mubr.bf16.mxu0 0
        %648 = vmatmul.mubr.bf16.gmra.mrb[0].mxu0 %v468
        %v649 = vpop.f32.mrb[0].mxu0
        %v650 = vadd.f32 %v266, %v649
        %v651 = vpop.f32.mrb[0].mxu0
        %v652 = vpop.f32.mrb[0].mxu0
        %v653 = vadd.f32 %v266, %v652
        %v654 = vpop.f32.mrb[0].mxu0
        %655 = vmatprep.mubr.bf16.mxu0 0
        %656 = vmatmul.mubr.bf16.gmra.mrb[0].mxu0 %v471
        %v657 = vpop.f32.mrb[0].mxu0
        %v658 = vadd.f32 %v266, %v657
        %v659 = vpop.f32.mrb[0].mxu0
        %v660 = vpop.f32.mrb[0].mxu0
        %v661 = vadd.f32 %v266, %v660
        %v662 = vpop.f32.mrb[0].mxu0
        %663 = vmatprep.mubr.bf16.mxu0 0
        %664 = vmatmul.mubr.bf16.gmra.mrb[0].mxu0 %v474
        %v665 = vpop.f32.mrb[0].mxu0
        %v666 = vadd.f32 %v266, %v665
        %v667 = vpop.f32.mrb[0].mxu0
        %v668 = vpop.f32.mrb[0].mxu0
        %v669 = vadd.f32 %v266, %v668
        %v670 = vpop.f32.mrb[0].mxu0
        %671 = vmatprep.mubr.bf16.mxu0 0
        %672 = vmatmul.mubr.bf16.gmra.mrb[0].mxu0 %v477
        %v673 = vpop.f32.mrb[0].mxu0
        %v674 = vadd.f32 %v266, %v673
        %v675 = vpop.f32.mrb[0].mxu0
        %v676 = vpop.f32.mrb[0].mxu0
        %v677 = vadd.f32 %v266, %v676
        %v678 = vpop.f32.mrb[0].mxu0
        %679 = vmatprep.mubr.bf16.mxu0 0
        %680 = vmatmul.mubr.bf16.gmra.mrb[0].mxu0 %v480
        %v681 = vpop.f32.mrb[0].mxu0
        %v682 = vadd.f32 %v266, %v681
        %v683 = vpop.f32.mrb[0].mxu0
        %v684 = vpop.f32.mrb[0].mxu0
        %v685 = vadd.f32 %v266, %v684
        %v686 = vpop.f32.mrb[0].mxu0
        %687 = vmatprep.mubr.bf16.mxu0 0
        %688 = vmatmul.mubr.bf16.gmra.mrb[0].mxu0 %v483
        %v689 = vpop.f32.mrb[0].mxu0
        %v690 = vadd.f32 %v266, %v689
        %v691 = vpop.f32.mrb[0].mxu0
        %v692 = vpop.f32.mrb[0].mxu0
        %v693 = vadd.f32 %v266, %v692
        %v694 = vpop.f32.mrb[0].mxu0
        %695 = vmatprep.mubr.bf16.mxu0 0
        %696 = vmatmul.mubr.bf16.gmra.mrb[0].mxu0 %v486
        %v697 = vpop.f32.mrb[0].mxu0
        %v698 = vadd.f32 %v266, %v697
        %v699 = vpop.f32.mrb[0].mxu0
        %v700 = vpop.f32.mrb[0].mxu0
        %v701 = vadd.f32 %v266, %v700
        %v702 = vpop.f32.mrb[0].mxu0
        %703 = vmatprep.mubr.bf16.mxu0 0
        %704 = vmatmul.mubr.bf16.gmra.mrb[0].mxu0 %v489
        %v705 = vpop.f32.mrb[0].mxu0
        %v706 = vadd.f32 %v266, %v705
        %v707 = vpop.f32.mrb[0].mxu0
        %v708 = vpop.f32.mrb[0].mxu0
        %v709 = vadd.f32 %v266, %v708
        %v710 = vpop.f32.mrb[0].mxu0
        %711 = vmatprep.mubr.bf16.mxu0 0
        %712 = vmatmul.mubr.bf16.gmra.mrb[0].mxu0 %v492
        %v713 = vpop.f32.mrb[0].mxu0
        %v714 = vadd.f32 %v266, %v713
        %v715 = vpop.f32.mrb[0].mxu0
        %v716 = vpop.f32.mrb[0].mxu0
        %v717 = vadd.f32 %v266, %v716
        %v718 = vpop.f32.mrb[0].mxu0
        %719 = vmatprep.mubr.bf16.mxu0 0
        %720 = vmatmul.mubr.bf16.gmra.mrb[0].mxu0 %v495
        %v721 = vpop.f32.mrb[0].mxu0
        %v722 = vadd.f32 %v266, %v721
        %v723 = vpop.f32.mrb[0].mxu0
        %v724 = vpop.f32.mrb[0].mxu0
        %v725 = vadd.f32 %v266, %v724
        %v726 = vpop.f32.mrb[0].mxu0
        %727 = vmatprep.mubr.bf16.mxu0 0
        %728 = vmatmul.mubr.bf16.gmra.mrb[0].mxu0 %v498
        %v729 = vpop.f32.mrb[0].mxu0
        %v730 = vadd.f32 %v266, %v729
        %v731 = vpop.f32.mrb[0].mxu0
        %v732 = vpop.f32.mrb[0].mxu0
        %v733 = vadd.f32 %v266, %v732
        %v734 = vpop.f32.mrb[0].mxu0
        %735 = vmatprep.mubr.bf16.mxu0 0
        %736 = vmatmul.mubr.bf16.gmra.mrb[0].mxu0 %v501
        %v737 = vpop.f32.mrb[0].mxu0
        %v738 = vadd.f32 %v266, %v737
        %v739 = vpop.f32.mrb[0].mxu0
        %v740 = vpop.f32.mrb[0].mxu0
        %v741 = vadd.f32 %v266, %v740
        %v742 = vpop.f32.mrb[0].mxu0
        %743 = vmatprep.mubr.bf16.mxu0 0
        %744 = vmatmul.mubr.bf16.gmra.mrb[0].mxu0 %v504
        %v745 = vpop.f32.mrb[0].mxu0
        %v746 = vadd.f32 %v266, %v745
        %v747 = vpop.f32.mrb[0].mxu0
        %v748 = vpop.f32.mrb[0].mxu0
        %v749 = vadd.f32 %v266, %v748
        %v750 = vpop.f32.mrb[0].mxu0
        %751 = vmatprep.mubr.bf16.mxu0 0
        %752 = vmatmul.mubr.bf16.gmra.mrb[0].mxu0 %v507
        %v753 = vpop.f32.mrb[0].mxu0
        %v754 = vadd.f32 %v266, %v753
        %v755 = vpop.f32.mrb[0].mxu0
        %v756 = vpop.f32.mrb[0].mxu0
        %v757 = vadd.f32 %v266, %v756
        %v758 = vpop.f32.mrb[0].mxu0
        %759 = vmatprep.mubr.bf16.mxu0 0
        %760 = vmatmul.mubr.bf16.gmra.mrb[0].mxu0 %v510
        %v761 = vpop.f32.mrb[0].mxu0
        %v762 = vadd.f32 %v266, %v761
        %v763 = vpop.f32.mrb[0].mxu0
        %v764 = vpop.f32.mrb[0].mxu0
        %v765 = vadd.f32 %v266, %v764
        %v766 = vpop.f32.mrb[0].mxu0
        %767 = vmatprep.mubr.bf16.mxu0 0
        %768 = vmatmul.mubr.bf16.gmra.mrb[0].mxu0 %v513
        %v769 = vpop.f32.mrb[0].mxu0
        %v770 = vadd.f32 %v266, %v769
        %v771 = vpop.f32.mrb[0].mxu0
        %v772 = vpop.f32.mrb[0].mxu0
        %v773 = vadd.f32 %v266, %v772
        %v774 = vpop.f32.mrb[0].mxu0
        %775 = vmatprep.mubr.bf16.mxu0 0
        %776 = vmatmul.mubr.bf16.gmra.mrb[0].mxu0 %v516
        %v777 = vpop.f32.mrb[0].mxu0
        %v778 = vadd.f32 %v266, %v777
        %v779 = vpop.f32.mrb[0].mxu0
        %v780 = vpop.f32.mrb[0].mxu0
        %v781 = vadd.f32 %v266, %v780
        %v782 = vpop.f32.mrb[0].mxu0
        %783 = vmatprep.mubr.bf16.mxu0 0
        %784 = vmatmul.mubr.bf16.gmra.mrb[0].mxu0 %v519
        %v785 = vpop.f32.mrb[0].mxu0
        %v786 = vadd.f32 %v266, %v785
        %v787 = vpop.f32.mrb[0].mxu0
        %v788 = vpop.f32.mrb[0].mxu0
        %v789 = vadd.f32 %v266, %v788
        %v790 = vpop.f32.mrb[0].mxu0
        %791 = vmatprep.mubr.bf16.mxu0 0
        %792 = vmatmul.mubr.bf16.gmra.mrb[0].mxu0 %v522
        %v793 = vpop.f32.mrb[0].mxu0
        %v794 = vadd.f32 %v266, %v793
        %v795 = vpop.f32.mrb[0].mxu0
        %v796 = vpop.f32.mrb[0].mxu0
        %v797 = vadd.f32 %v266, %v796
        %v798 = vpop.f32.mrb[0].mxu0
        %799 = vmatprep.mubr.bf16.mxu0 0
        %800 = vmatmul.mubr.bf16.gmra.mrb[0].mxu0 %v525
        %v801 = vpop.f32.mrb[0].mxu0
        %v802 = vadd.f32 %v266, %v801
        %v803 = vpop.f32.mrb[0].mxu0
        %v804 = vpop.f32.mrb[0].mxu0
        %v805 = vadd.f32 %v266, %v804
        %v806 = vpop.f32.mrb[0].mxu0
        %807 = vmatprep.mubr.bf16.mxu0 0
        %808 = vmatmul.mubr.bf16.gmra.mrb[0].mxu0 %v528
        %v809 = vpop.f32.mrb[0].mxu0
        %v810 = vadd.f32 %v266, %v809
        %v811 = vpop.f32.mrb[0].mxu0
        %v812 = vpop.f32.mrb[0].mxu0
        %v813 = vadd.f32 %v266, %v812
        %v814 = vpop.f32.mrb[0].mxu0
        %815 = vmatprep.mubr.bf16.mxu0 0
        %816 = vmatmul.mubr.bf16.gmra.mrb[0].mxu0 %v531
        %v817 = vpop.f32.mrb[0].mxu0
        %v818 = vadd.f32 %v266, %v817
        %v819 = vpop.f32.mrb[0].mxu0
        %v820 = vpop.f32.mrb[0].mxu0
        %v821 = vadd.f32 %v266, %v820
        %v822 = vpop.f32.mrb[0].mxu0
        %823 = vmatprep.mubr.bf16.mxu0 0
        %824 = vmatmul.mubr.bf16.gmra.mrb[0].mxu0 %v534
        %v825 = vpop.f32.mrb[0].mxu0
        %v826 = vadd.f32 %v266, %v825
        %v827 = vpop.f32.mrb[0].mxu0
        %v828 = vpop.f32.mrb[0].mxu0
        %v829 = vadd.f32 %v266, %v828
        %v830 = vpop.f32.mrb[0].mxu0
        %831 = vdwg.mxu0
        %v832 = vmax.f32 %v578, 0.0
        %v833 = vmax.f32 %v581, 0.0
        %v834 = vmax.f32 %v586, 0.0
        %v835 = vmax.f32 %v589, 0.0
        %v836 = vmax.f32 %v594, 0.0
        %v837 = vmax.f32 %v597, 0.0
        %v838 = vmax.f32 %v602, 0.0
        %v839 = vmax.f32 %v605, 0.0
        %v840 = vmax.f32 %v610, 0.0
        %v841 = vmax.f32 %v613, 0.0
        %v842 = vmax.f32 %v618, 0.0
        %v843 = vmax.f32 %v621, 0.0
        %v844 = vmax.f32 %v626, 0.0
        %v845 = vmax.f32 %v629, 0.0
        %v846 = vmax.f32 %v634, 0.0
        %v847 = vmax.f32 %v637, 0.0
        %v848 = vmax.f32 %v642, 0.0
        %v849 = vmax.f32 %v645, 0.0
        %v850 = vmax.f32 %v650, 0.0
        %v851 = vmax.f32 %v653, 0.0
        %v852 = vmax.f32 %v658, 0.0
        %v853 = vmax.f32 %v661, 0.0
        %v854 = vmax.f32 %v666, 0.0
        %v855 = vmax.f32 %v669, 0.0
        %v856 = vmax.f32 %v674, 0.0
        %v857 = vmax.f32 %v677, 0.0
        %v858 = vmax.f32 %v682, 0.0
        %v859 = vmax.f32 %v685, 0.0
        %v860 = vmax.f32 %v690, 0.0
        %v861 = vmax.f32 %v693, 0.0
        %v862 = vmax.f32 %v698, 0.0
        %v863 = vmax.f32 %v701, 0.0
        %v864 = vmax.f32 %v706, 0.0
        %v865 = vmax.f32 %v709, 0.0
        %v866 = vmax.f32 %v714, 0.0
        %v867 = vmax.f32 %v717, 0.0
        %v868 = vmax.f32 %v722, 0.0
        %v869 = vmax.f32 %v725, 0.0
        %v870 = vmax.f32 %v730, 0.0
        %v871 = vmax.f32 %v733, 0.0
        %v872 = vmax.f32 %v738, 0.0
        %v873 = vmax.f32 %v741, 0.0
        %v874 = vmax.f32 %v746, 0.0
        %v875 = vmax.f32 %v749, 0.0
        %v876 = vmax.f32 %v754, 0.0
        %v877 = vmax.f32 %v757, 0.0
        %v878 = vmax.f32 %v762, 0.0
        %v879 = vmax.f32 %v765, 0.0
        %v880 = vmax.f32 %v770, 0.0
        %v881 = vmax.f32 %v773, 0.0
        %v882 = vmax.f32 %v778, 0.0
        %v883 = vmax.f32 %v781, 0.0
        %v884 = vmax.f32 %v786, 0.0
        %v885 = vmax.f32 %v789, 0.0
        %v886 = vmax.f32 %v794, 0.0
        %v887 = vmax.f32 %v797, 0.0
        %v888 = vmax.f32 %v802, 0.0
        %v889 = vmax.f32 %v805, 0.0
        %v890 = vmax.f32 %v810, 0.0
        %v891 = vmax.f32 %v813, 0.0
        %v892 = vmax.f32 %v818, 0.0
        %v893 = vmax.f32 %v821, 0.0
        %v894 = vmax.f32 %v826, 0.0
        %v895 = vmax.f32 %v829, 0.0
        %v896 = vpack.c.bf16 %v833, %v832
        %v897 = vpack.c.bf16 %v835, %v834
        %v898 = vpack.c.bf16 %v837, %v836
        %v899 = vpack.c.bf16 %v839, %v838
        %v900 = vpack.c.bf16 %v841, %v840
        %v901 = vpack.c.bf16 %v843, %v842
        %v902 = vpack.c.bf16 %v845, %v844
        %v903 = vpack.c.bf16 %v847, %v846
        %v904 = vpack.c.bf16 %v849, %v848
        %v905 = vpack.c.bf16 %v851, %v850
        %v906 = vpack.c.bf16 %v853, %v852
        %v907 = vpack.c.bf16 %v855, %v854
        %v908 = vpack.c.bf16 %v857, %v856
        %v909 = vpack.c.bf16 %v859, %v858
        %v910 = vpack.c.bf16 %v861, %v860
        %v911 = vpack.c.bf16 %v863, %v862
        %v912 = vpack.c.bf16 %v865, %v864
        %v913 = vpack.c.bf16 %v867, %v866
        %v914 = vpack.c.bf16 %v869, %v868
        %v915 = vpack.c.bf16 %v871, %v870
        %v916 = vpack.c.bf16 %v873, %v872
        %v917 = vpack.c.bf16 %v875, %v874
        %v918 = vpack.c.bf16 %v877, %v876
        %v919 = vpack.c.bf16 %v879, %v878
        %v920 = vpack.c.bf16 %v881, %v880
        %v921 = vpack.c.bf16 %v883, %v882
        %v922 = vpack.c.bf16 %v885, %v884
        %v923 = vpack.c.bf16 %v887, %v886
        %v924 = vpack.c.bf16 %v889, %v888
        %v925 = vpack.c.bf16 %v891, %v890
        %v926 = vpack.c.bf16 %v893, %v892
        %v927 = vpack.c.bf16 %v895, %v894
        %v960 = vunpack.c.l.b16 %v896
        %v961 = vunpack.c.h.b16 %v896
        %v962 = vunpack.c.l.b16 %v897
        %v963 = vunpack.c.h.b16 %v897
        %v964 = vunpack.c.l.b16 %v898
        %v965 = vunpack.c.h.b16 %v898
        %v966 = vunpack.c.l.b16 %v899
        %v967 = vunpack.c.h.b16 %v899
        %v968 = vunpack.c.l.b16 %v900
        %v969 = vunpack.c.h.b16 %v900
        %v970 = vunpack.c.l.b16 %v901
        %v971 = vunpack.c.h.b16 %v901
        %v972 = vunpack.c.l.b16 %v902
        %v973 = vunpack.c.h.b16 %v902
        %v974 = vunpack.c.l.b16 %v903
        %v975 = vunpack.c.h.b16 %v903
        %v976 = vunpack.c.l.b16 %v904
        %v977 = vunpack.c.h.b16 %v904
        %v978 = vunpack.c.l.b16 %v905
        %v979 = vunpack.c.h.b16 %v905
        %v980 = vunpack.c.l.b16 %v906
        %v981 = vunpack.c.h.b16 %v906
        %v982 = vunpack.c.l.b16 %v907
        %v983 = vunpack.c.h.b16 %v907
        %v984 = vunpack.c.l.b16 %v908
        %v985 = vunpack.c.h.b16 %v908
        %v986 = vunpack.c.l.b16 %v909
        %v987 = vunpack.c.h.b16 %v909
        %v988 = vunpack.c.l.b16 %v910
        %v989 = vunpack.c.h.b16 %v910
        %v990 = vunpack.c.l.b16 %v911
        %v991 = vunpack.c.h.b16 %v911
        %v992 = vunpack.c.l.b16 %v912
        %v993 = vunpack.c.h.b16 %v912
        %v994 = vunpack.c.l.b16 %v913
        %v995 = vunpack.c.h.b16 %v913
        %v996 = vunpack.c.l.b16 %v914
        %v997 = vunpack.c.h.b16 %v914
        %v998 = vunpack.c.l.b16 %v915
        %v999 = vunpack.c.h.b16 %v915
        %v1000 = vunpack.c.l.b16 %v916
        %v1001 = vunpack.c.h.b16 %v916
        %v1002 = vunpack.c.l.b16 %v917
        %v1003 = vunpack.c.h.b16 %v917
        %v1004 = vunpack.c.l.b16 %v918
        %v1005 = vunpack.c.h.b16 %v918
        %v1006 = vunpack.c.l.b16 %v919
        %v1007 = vunpack.c.h.b16 %v919
        %v1008 = vunpack.c.l.b16 %v920
        %v1009 = vunpack.c.h.b16 %v920
        %v1010 = vunpack.c.l.b16 %v921
        %v1011 = vunpack.c.h.b16 %v921
        %v1012 = vunpack.c.l.b16 %v922
        %v1013 = vunpack.c.h.b16 %v922
        %v1014 = vunpack.c.l.b16 %v923
        %v1015 = vunpack.c.h.b16 %v923
        %v1016 = vunpack.c.l.b16 %v924
        %v1017 = vunpack.c.h.b16 %v924
        %v1018 = vunpack.c.l.b16 %v925
        %v1019 = vunpack.c.h.b16 %v925
        %v1020 = vunpack.c.l.b16 %v926
        %v1021 = vunpack.c.h.b16 %v926
        %v1022 = vunpack.c.l.b16 %v927
        %v1023 = vunpack.c.h.b16 %v927
        %v1024 = vpack.c.b16 %v960, %v960
        %v1025 = vpack.c.b16 %v961, %v961
        %v1026 = vpack.c.b16 %v962, %v962
        %v1027 = vpack.c.b16 %v963, %v963
        %v1028 = vpack.c.b16 %v964, %v964
        %v1029 = vpack.c.b16 %v965, %v965
        %v1030 = vpack.c.b16 %v966, %v966
        %v1031 = vpack.c.b16 %v967, %v967
        %v1032 = vpack.c.b16 %v968, %v968
        %v1033 = vpack.c.b16 %v969, %v969
        %v1034 = vpack.c.b16 %v970, %v970
        %v1035 = vpack.c.b16 %v971, %v971
        %v1036 = vpack.c.b16 %v972, %v972
        %v1037 = vpack.c.b16 %v973, %v973
        %v1038 = vpack.c.b16 %v974, %v974
        %v1039 = vpack.c.b16 %v975, %v975
        %v1040 = vpack.c.b16 %v976, %v976
        %v1041 = vpack.c.b16 %v977, %v977
        %v1042 = vpack.c.b16 %v978, %v978
        %v1043 = vpack.c.b16 %v979, %v979
        %v1044 = vpack.c.b16 %v980, %v980
        %v1045 = vpack.c.b16 %v981, %v981
        %v1046 = vpack.c.b16 %v982, %v982
        %v1047 = vpack.c.b16 %v983, %v983
        %v1048 = vpack.c.b16 %v984, %v984
        %v1049 = vpack.c.b16 %v985, %v985
        %v1050 = vpack.c.b16 %v986, %v986
        %v1051 = vpack.c.b16 %v987, %v987
        %v1052 = vpack.c.b16 %v988, %v988
        %v1053 = vpack.c.b16 %v989, %v989
        %v1054 = vpack.c.b16 %v990, %v990
        %v1055 = vpack.c.b16 %v991, %v991
        %v1056 = vpack.c.b16 %v992, %v992
        %v1057 = vpack.c.b16 %v993, %v993
        %v1058 = vpack.c.b16 %v994, %v994
        %v1059 = vpack.c.b16 %v995, %v995
        %v1060 = vpack.c.b16 %v996, %v996
        %v1061 = vpack.c.b16 %v997, %v997
        %v1062 = vpack.c.b16 %v998, %v998
        %v1063 = vpack.c.b16 %v999, %v999
        %v1064 = vpack.c.b16 %v1000, %v1000
        %v1065 = vpack.c.b16 %v1001, %v1001
        %v1066 = vpack.c.b16 %v1002, %v1002
        %v1067 = vpack.c.b16 %v1003, %v1003
        %v1068 = vpack.c.b16 %v1004, %v1004
        %v1069 = vpack.c.b16 %v1005, %v1005
        %v1070 = vpack.c.b16 %v1006, %v1006
        %v1071 = vpack.c.b16 %v1007, %v1007
        %v1072 = vpack.c.b16 %v1008, %v1008
        %v1073 = vpack.c.b16 %v1009, %v1009
        %v1074 = vpack.c.b16 %v1010, %v1010
        %v1075 = vpack.c.b16 %v1011, %v1011
        %v1076 = vpack.c.b16 %v1012, %v1012
        %v1077 = vpack.c.b16 %v1013, %v1013
        %v1078 = vpack.c.b16 %v1014, %v1014
        %v1079 = vpack.c.b16 %v1015, %v1015
        %v1080 = vpack.c.b16 %v1016, %v1016
        %v1081 = vpack.c.b16 %v1017, %v1017
        %v1082 = vpack.c.b16 %v1018, %v1018
        %v1083 = vpack.c.b16 %v1019, %v1019
        %v1084 = vpack.c.b16 %v1020, %v1020
        %v1085 = vpack.c.b16 %v1021, %v1021
        %v1086 = vpack.c.b16 %v1022, %v1022
        %v1087 = vpack.c.b16 %v1023, %v1023
        %1152 = vst [vmem:[%s172] sm:$0xf] %v1024
        %1153 = vst [vmem:[%s172 + $0x4] sm:$0xf] %v1025
        %1154 = vst [vmem:[%s172 + $0x8] sm:$0xf] %v1026
        %1155 = vst [vmem:[%s172 + $0xc] sm:$0xf] %v1027
        %1156 = vst [vmem:[%s172 + $0x10] sm:$0xf] %v1028
        %1157 = vst [vmem:[%s172 + $0x14] sm:$0xf] %v1029
        %1158 = vst [vmem:[%s172 + $0x18] sm:$0xf] %v1030
        %1159 = vst [vmem:[%s172 + $0x1c] sm:$0xf] %v1031
        %1160 = vst [vmem:[%s172 + $0x20] sm:$0xf] %v1032
        %1161 = vst [vmem:[%s172 + $0x24] sm:$0xf] %v1033
        %1162 = vst [vmem:[%s172 + $0x28] sm:$0xf] %v1034
        %1163 = vst [vmem:[%s172 + $0x2c] sm:$0xf] %v1035
        %1164 = vst [vmem:[%s172 + $0x30] sm:$0xf] %v1036
        %1165 = vst [vmem:[%s172 + $0x34] sm:$0xf] %v1037
        %1166 = vst [vmem:[%s172 + $0x38] sm:$0xf] %v1038
        %1167 = vst [vmem:[%s172 + $0x3c] sm:$0xf] %v1039
        %1168 = vst [vmem:[%s172 + $0x40] sm:$0xf] %v1040
        %1169 = vst [vmem:[%s172 + $0x44] sm:$0xf] %v1041
        %1170 = vst [vmem:[%s172 + $0x48] sm:$0xf] %v1042
        %1171 = vst [vmem:[%s172 + $0x4c] sm:$0xf] %v1043
        %1172 = vst [vmem:[%s172 + $0x50] sm:$0xf] %v1044
        %1173 = vst [vmem:[%s172 + $0x54] sm:$0xf] %v1045
        %1174 = vst [vmem:[%s172 + $0x58] sm:$0xf] %v1046
        %1175 = vst [vmem:[%s172 + $0x5c] sm:$0xf] %v1047
        %1176 = vst [vmem:[%s172 + $0x60] sm:$0xf] %v1048
        %1177 = vst [vmem:[%s172 + $0x64] sm:$0xf] %v1049
        %1178 = vst [vmem:[%s172 + $0x68] sm:$0xf] %v1050
        %1179 = vst [vmem:[%s172 + $0x6c] sm:$0xf] %v1051
        %1180 = vst [vmem:[%s172 + $0x70] sm:$0xf] %v1052
        %1181 = vst [vmem:[%s172 + $0x74] sm:$0xf] %v1053
        %1182 = vst [vmem:[%s172 + $0x78] sm:$0xf] %v1054
        %1183 = vst [vmem:[%s172 + $0x7c] sm:$0xf] %v1055
        %1184 = vst [vmem:[%s172 + $0x80] sm:$0xf] %v1056
        %1185 = vst [vmem:[%s172 + $0x84] sm:$0xf] %v1057
        %1186 = vst [vmem:[%s172 + $0x88] sm:$0xf] %v1058
        %1187 = vst [vmem:[%s172 + $0x8c] sm:$0xf] %v1059
        %1188 = vst [vmem:[%s172 + $0x90] sm:$0xf] %v1060
        %1189 = vst [vmem:[%s172 + $0x94] sm:$0xf] %v1061
        %1190 = vst [vmem:[%s172 + $0x98] sm:$0xf] %v1062
        %1191 = vst [vmem:[%s172 + $0x9c] sm:$0xf] %v1063
        %1192 = vst [vmem:[%s172 + $0xa0] sm:$0xf] %v1064
        %1193 = vst [vmem:[%s172 + $0xa4] sm:$0xf] %v1065
        %1194 = vst [vmem:[%s172 + $0xa8] sm:$0xf] %v1066
        %1195 = vst [vmem:[%s172 + $0xac] sm:$0xf] %v1067
        %1196 = vst [vmem:[%s172 + $0xb0] sm:$0xf] %v1068
        %1197 = vst [vmem:[%s172 + $0xb4] sm:$0xf] %v1069
        %1198 = vst [vmem:[%s172 + $0xb8] sm:$0xf] %v1070
        %1199 = vst [vmem:[%s172 + $0xbc] sm:$0xf] %v1071
        %1200 = vst [vmem:[%s172 + $0xc0] sm:$0xf] %v1072
        %1201 = vst [vmem:[%s172 + $0xc4] sm:$0xf] %v1073
        %1202 = vst [vmem:[%s172 + $0xc8] sm:$0xf] %v1074
        %1203 = vst [vmem:[%s172 + $0xcc] sm:$0xf] %v1075
        %1204 = vst [vmem:[%s172 + $0xd0] sm:$0xf] %v1076
        %1205 = vst [vmem:[%s172 + $0xd4] sm:$0xf] %v1077
        %1206 = vst [vmem:[%s172 + $0xd8] sm:$0xf] %v1078
        %1207 = vst [vmem:[%s172 + $0xdc] sm:$0xf] %v1079
        %1208 = vst [vmem:[%s172 + $0xe0] sm:$0xf] %v1080
        %1209 = vst [vmem:[%s172 + $0xe4] sm:$0xf] %v1081
        %1210 = vst [vmem:[%s172 + $0xe8] sm:$0xf] %v1082
        %1211 = vst [vmem:[%s172 + $0xec] sm:$0xf] %v1083
        %1212 = vst [vmem:[%s172 + $0xf0] sm:$0xf] %v1084
        %1213 = vst [vmem:[%s172 + $0xf4] sm:$0xf] %v1085
        %1214 = vst [vmem:[%s172 + $0xf8] sm:$0xf] %v1086
        %1215 = vst [vmem:[%s172 + $0xfc] sm:$0xf] %v1087
        %s1216 = sand.u32 %s90, 1
        %s1217 = sand.u32 %s90, 1
        %s1218 = smul.addr %s1217, 256
        %s1219 = scalar_lea.vmem [#allocation2], %s1218
        // Predicated region
        $region33: #{simple_net_forward.5} parent=31 // pred_check
          %p1220 = pneg %p100
        $region34: #{simple_net_forward.5} parent=31 // pred_check_branch
          %1222 = sbr.rel (%p1220) target = $region36
        $region35: #{simple_net_forward.5} parent=31 // pred_region
          %s1223 = smul.u32 64, %s14
          %s1224 = ssub.s32 144, %s1223
          %p1225 = scmp.lt.s32.totalorder %s1224, 64
          %s1226 = scalar_select %p1225, %s1224, 64
          %s1227 = smul.u32 64, %s1226
          %p1228 = scmp.ne.s32.totalorder 0, %s1227
          %s1229 = smul.addr %s1223, 4
          %s1230 = scalar_lea.vmem %s3, %s1229
          // Predicated region
          $region37: #{simple_net_forward.5} parent=35 // pred_check
            %p1231 = pneg %p1228
          $region38: #{simple_net_forward.5} parent=35 // pred_check_branch
            %1233 = sbr.rel (%p1231) target = $region40
          $region39: #{simple_net_forward.5} parent=35 // pred_region
            // Predicated region
            $region41: #{simple_net_forward.5} parent=39 // pred_check
              _
            $region42: #{simple_net_forward.5} parent=39 // pred_check_branch
              %1235 = sbr.rel target = $region44
            $region43: #{simple_net_forward.5} parent=39 // pred_region
              // Predicated region
              $region63: #{simple_net_forward.5} parent=43 // pred_check
                _
              $region64: #{simple_net_forward.5} parent=43 // pred_check_branch
                %1410 = sbr.rel (0) target = $region66
              $region65: #{simple_net_forward.5} parent=43 // pred_region
                %s1412 = sshrl.u32 %s1226, 6
                // While loop
                $region67: #{simple_net_forward.5} parent=65 // loop_pre_header
                  _
                $region68: #{simple_net_forward.5} parent=65 // loop_header
                  %s1414 = sphi 0, %s1416
                  %p1415 = scmp.ge.s32.totalorder %s1414, %s1412
                  %s1419 = sphi 0, %s1552
                  %s1420 = sphi %s1219, %s1555
                  %s1421 = sphi %s1230, %s1556
                $region69: #{simple_net_forward.5} parent=65 // loop_header_branch
                  %1418 = sbr.rel (%p1415) target = $region73
                $region70: #{simple_net_forward.5} parent=65 // loop_body
                  %v1422 = vld [vmem:[%s1420] sm:$0xf]
                  %1423 = vst [vmem:[%s1421] sm:$0xf] %v1422
                  %v1424 = vld [vmem:[%s1420 + $0x4] sm:$0xf]
                  %1425 = vst [vmem:[%s1421 + $0x4] sm:$0xf] %v1424
                  %v1426 = vld [vmem:[%s1420 + $0x8] sm:$0xf]
                  %1427 = vst [vmem:[%s1421 + $0x8] sm:$0xf] %v1426
                  %v1428 = vld [vmem:[%s1420 + $0xc] sm:$0xf]
                  %1429 = vst [vmem:[%s1421 + $0xc] sm:$0xf] %v1428
                  %v1430 = vld [vmem:[%s1420 + $0x10] sm:$0xf]
                  %1431 = vst [vmem:[%s1421 + $0x10] sm:$0xf] %v1430
                  %v1432 = vld [vmem:[%s1420 + $0x14] sm:$0xf]
                  %1433 = vst [vmem:[%s1421 + $0x14] sm:$0xf] %v1432
                  %v1434 = vld [vmem:[%s1420 + $0x18] sm:$0xf]
                  %1435 = vst [vmem:[%s1421 + $0x18] sm:$0xf] %v1434
                  %v1436 = vld [vmem:[%s1420 + $0x1c] sm:$0xf]
                  %1437 = vst [vmem:[%s1421 + $0x1c] sm:$0xf] %v1436
                  %v1438 = vld [vmem:[%s1420 + $0x20] sm:$0xf]
                  %1439 = vst [vmem:[%s1421 + $0x20] sm:$0xf] %v1438
                  %v1440 = vld [vmem:[%s1420 + $0x24] sm:$0xf]
                  %1441 = vst [vmem:[%s1421 + $0x24] sm:$0xf] %v1440
                  %v1442 = vld [vmem:[%s1420 + $0x28] sm:$0xf]
                  %1443 = vst [vmem:[%s1421 + $0x28] sm:$0xf] %v1442
                  %v1444 = vld [vmem:[%s1420 + $0x2c] sm:$0xf]
                  %1445 = vst [vmem:[%s1421 + $0x2c] sm:$0xf] %v1444
                  %v1446 = vld [vmem:[%s1420 + $0x30] sm:$0xf]
                  %1447 = vst [vmem:[%s1421 + $0x30] sm:$0xf] %v1446
                  %v1448 = vld [vmem:[%s1420 + $0x34] sm:$0xf]
                  %1449 = vst [vmem:[%s1421 + $0x34] sm:$0xf] %v1448
                  %v1450 = vld [vmem:[%s1420 + $0x38] sm:$0xf]
                  %1451 = vst [vmem:[%s1421 + $0x38] sm:$0xf] %v1450
                  %v1452 = vld [vmem:[%s1420 + $0x3c] sm:$0xf]
                  %1453 = vst [vmem:[%s1421 + $0x3c] sm:$0xf] %v1452
                  %v1454 = vld [vmem:[%s1420 + $0x40] sm:$0xf]
                  %1455 = vst [vmem:[%s1421 + $0x40] sm:$0xf] %v1454
                  %v1456 = vld [vmem:[%s1420 + $0x44] sm:$0xf]
                  %1457 = vst [vmem:[%s1421 + $0x44] sm:$0xf] %v1456
                  %v1458 = vld [vmem:[%s1420 + $0x48] sm:$0xf]
                  %1459 = vst [vmem:[%s1421 + $0x48] sm:$0xf] %v1458
                  %v1460 = vld [vmem:[%s1420 + $0x4c] sm:$0xf]
                  %1461 = vst [vmem:[%s1421 + $0x4c] sm:$0xf] %v1460
                  %v1462 = vld [vmem:[%s1420 + $0x50] sm:$0xf]
                  %1463 = vst [vmem:[%s1421 + $0x50] sm:$0xf] %v1462
                  %v1464 = vld [vmem:[%s1420 + $0x54] sm:$0xf]
                  %1465 = vst [vmem:[%s1421 + $0x54] sm:$0xf] %v1464
                  %v1466 = vld [vmem:[%s1420 + $0x58] sm:$0xf]
                  %1467 = vst [vmem:[%s1421 + $0x58] sm:$0xf] %v1466
                  %v1468 = vld [vmem:[%s1420 + $0x5c] sm:$0xf]
                  %1469 = vst [vmem:[%s1421 + $0x5c] sm:$0xf] %v1468
                  %v1470 = vld [vmem:[%s1420 + $0x60] sm:$0xf]
                  %1471 = vst [vmem:[%s1421 + $0x60] sm:$0xf] %v1470
                  %v1472 = vld [vmem:[%s1420 + $0x64] sm:$0xf]
                  %1473 = vst [vmem:[%s1421 + $0x64] sm:$0xf] %v1472
                  %v1474 = vld [vmem:[%s1420 + $0x68] sm:$0xf]
                  %1475 = vst [vmem:[%s1421 + $0x68] sm:$0xf] %v1474
                  %v1476 = vld [vmem:[%s1420 + $0x6c] sm:$0xf]
                  %1477 = vst [vmem:[%s1421 + $0x6c] sm:$0xf] %v1476
                  %v1478 = vld [vmem:[%s1420 + $0x70] sm:$0xf]
                  %1479 = vst [vmem:[%s1421 + $0x70] sm:$0xf] %v1478
                  %v1480 = vld [vmem:[%s1420 + $0x74] sm:$0xf]
                  %1481 = vst [vmem:[%s1421 + $0x74] sm:$0xf] %v1480
                  %v1482 = vld [vmem:[%s1420 + $0x78] sm:$0xf]
                  %1483 = vst [vmem:[%s1421 + $0x78] sm:$0xf] %v1482
                  %v1484 = vld [vmem:[%s1420 + $0x7c] sm:$0xf]
                  %1485 = vst [vmem:[%s1421 + $0x7c] sm:$0xf] %v1484
                  %v1486 = vld [vmem:[%s1420 + $0x80] sm:$0xf]
                  %1487 = vst [vmem:[%s1421 + $0x80] sm:$0xf] %v1486
                  %v1488 = vld [vmem:[%s1420 + $0x84] sm:$0xf]
                  %1489 = vst [vmem:[%s1421 + $0x84] sm:$0xf] %v1488
                  %v1490 = vld [vmem:[%s1420 + $0x88] sm:$0xf]
                  %1491 = vst [vmem:[%s1421 + $0x88] sm:$0xf] %v1490
                  %v1492 = vld [vmem:[%s1420 + $0x8c] sm:$0xf]
                  %1493 = vst [vmem:[%s1421 + $0x8c] sm:$0xf] %v1492
                  %v1494 = vld [vmem:[%s1420 + $0x90] sm:$0xf]
                  %1495 = vst [vmem:[%s1421 + $0x90] sm:$0xf] %v1494
                  %v1496 = vld [vmem:[%s1420 + $0x94] sm:$0xf]
                  %1497 = vst [vmem:[%s1421 + $0x94] sm:$0xf] %v1496
                  %v1498 = vld [vmem:[%s1420 + $0x98] sm:$0xf]
                  %1499 = vst [vmem:[%s1421 + $0x98] sm:$0xf] %v1498
                  %v1500 = vld [vmem:[%s1420 + $0x9c] sm:$0xf]
                  %1501 = vst [vmem:[%s1421 + $0x9c] sm:$0xf] %v1500
                  %v1502 = vld [vmem:[%s1420 + $0xa0] sm:$0xf]
                  %1503 = vst [vmem:[%s1421 + $0xa0] sm:$0xf] %v1502
                  %v1504 = vld [vmem:[%s1420 + $0xa4] sm:$0xf]
                  %1505 = vst [vmem:[%s1421 + $0xa4] sm:$0xf] %v1504
                  %v1506 = vld [vmem:[%s1420 + $0xa8] sm:$0xf]
                  %1507 = vst [vmem:[%s1421 + $0xa8] sm:$0xf] %v1506
                  %v1508 = vld [vmem:[%s1420 + $0xac] sm:$0xf]
                  %1509 = vst [vmem:[%s1421 + $0xac] sm:$0xf] %v1508
                  %v1510 = vld [vmem:[%s1420 + $0xb0] sm:$0xf]
                  %1511 = vst [vmem:[%s1421 + $0xb0] sm:$0xf] %v1510
                  %v1512 = vld [vmem:[%s1420 + $0xb4] sm:$0xf]
                  %1513 = vst [vmem:[%s1421 + $0xb4] sm:$0xf] %v1512
                  %v1514 = vld [vmem:[%s1420 + $0xb8] sm:$0xf]
                  %1515 = vst [vmem:[%s1421 + $0xb8] sm:$0xf] %v1514
                  %v1516 = vld [vmem:[%s1420 + $0xbc] sm:$0xf]
                  %1517 = vst [vmem:[%s1421 + $0xbc] sm:$0xf] %v1516
                  %v1518 = vld [vmem:[%s1420 + $0xc0] sm:$0xf]
                  %1519 = vst [vmem:[%s1421 + $0xc0] sm:$0xf] %v1518
                  %v1520 = vld [vmem:[%s1420 + $0xc4] sm:$0xf]
                  %1521 = vst [vmem:[%s1421 + $0xc4] sm:$0xf] %v1520
                  %v1522 = vld [vmem:[%s1420 + $0xc8] sm:$0xf]
                  %1523 = vst [vmem:[%s1421 + $0xc8] sm:$0xf] %v1522
                  %v1524 = vld [vmem:[%s1420 + $0xcc] sm:$0xf]
                  %1525 = vst [vmem:[%s1421 + $0xcc] sm:$0xf] %v1524
                  %v1526 = vld [vmem:[%s1420 + $0xd0] sm:$0xf]
                  %1527 = vst [vmem:[%s1421 + $0xd0] sm:$0xf] %v1526
                  %v1528 = vld [vmem:[%s1420 + $0xd4] sm:$0xf]
                  %1529 = vst [vmem:[%s1421 + $0xd4] sm:$0xf] %v1528
                  %v1530 = vld [vmem:[%s1420 + $0xd8] sm:$0xf]
                  %1531 = vst [vmem:[%s1421 + $0xd8] sm:$0xf] %v1530
                  %v1532 = vld [vmem:[%s1420 + $0xdc] sm:$0xf]
                  %1533 = vst [vmem:[%s1421 + $0xdc] sm:$0xf] %v1532
                  %v1534 = vld [vmem:[%s1420 + $0xe0] sm:$0xf]
                  %1535 = vst [vmem:[%s1421 + $0xe0] sm:$0xf] %v1534
                  %v1536 = vld [vmem:[%s1420 + $0xe4] sm:$0xf]
                  %1537 = vst [vmem:[%s1421 + $0xe4] sm:$0xf] %v1536
                  %v1538 = vld [vmem:[%s1420 + $0xe8] sm:$0xf]
                  %1539 = vst [vmem:[%s1421 + $0xe8] sm:$0xf] %v1538
                  %v1540 = vld [vmem:[%s1420 + $0xec] sm:$0xf]
                  %1541 = vst [vmem:[%s1421 + $0xec] sm:$0xf] %v1540
                  %v1542 = vld [vmem:[%s1420 + $0xf0] sm:$0xf]
                  %1543 = vst [vmem:[%s1421 + $0xf0] sm:$0xf] %v1542
                  %v1544 = vld [vmem:[%s1420 + $0xf4] sm:$0xf]
                  %1545 = vst [vmem:[%s1421 + $0xf4] sm:$0xf] %v1544
                  %v1546 = vld [vmem:[%s1420 + $0xf8] sm:$0xf]
                  %1547 = vst [vmem:[%s1421 + $0xf8] sm:$0xf] %v1546
                  %v1548 = vld [vmem:[%s1420 + $0xfc] sm:$0xf]
                  %1549 = vst [vmem:[%s1421 + $0xfc] sm:$0xf] %v1548
                  %s1550 = sadd.s32 1, %s1419
                  %p1551 = scmp.ge.s32.totalorder %s1550, %s1412
                  %s1552 = scalar_select %p1551, 0, %s1550
                  %s1553 = smul.u32 %s1552, 256
                  %s1554 = smul.u32 %s1552, 256
                  %s1555 = scalar_lea.vmem %s1219, %s1553 [#allocation2]
                  %s1556 = scalar_lea.vmem %s1230, %s1554
                $region71: #{simple_net_forward.5} parent=65 // loop_footer
                  %s1416 = sadd.s32 %s1414, 1
                $region72: #{simple_net_forward.5} parent=65 // loop_footer_branch
                  %1413 = sbr.rel target = $region68
                $region73: #{simple_net_forward.5} parent=65 // loop_exit
                  _
                %s1557 = sshrl.u32 %s1226, 6
                %s1558 = sand.u32 %s1226, 63
                %s1559 = smul.u32 %s1557, 64
                %s1560 = smul.u32 4, %s1559
                %s1561 = scalar_lea.vmem %s1219, %s1560 [#allocation2]
                %s1562 = smul.u32 4, %s1559
                %s1563 = scalar_lea.vmem %s1230, %s1562
                // While loop
                $region74: #{simple_net_forward.5} parent=65 // loop_pre_header
                  _
                $region75: #{simple_net_forward.5} parent=65 // loop_header
                  %s1565 = sphi 0, %s1567
                  %p1566 = scmp.ge.s32.totalorder %s1565, %s1558
                  %s1570 = sphi 0, %s1577
                  %s1571 = sphi %s1561, %s1580
                  %s1572 = sphi %s1563, %s1581
                $region76: #{simple_net_forward.5} parent=65 // loop_header_branch
                  %1569 = sbr.rel (%p1566) target = $region80
                $region77: #{simple_net_forward.5} parent=65 // loop_body
                  %v1573 = vld [vmem:[%s1571] sm:$0xf]
                  %1574 = vst [vmem:[%s1572] sm:$0xf] %v1573
                  %s1575 = sadd.s32 1, %s1570
                  %p1576 = scmp.ge.s32.totalorder %s1575, %s1558
                  %s1577 = scalar_select %p1576, 0, %s1575
                  %s1578 = smul.u32 %s1577, 4
                  %s1579 = smul.u32 %s1577, 4
                  %s1580 = scalar_lea.vmem %s1561, %s1578 [#allocation2]
                  %s1581 = scalar_lea.vmem %s1563, %s1579
                $region78: #{simple_net_forward.5} parent=65 // loop_footer
                  %s1567 = sadd.s32 %s1565, 1
                $region79: #{simple_net_forward.5} parent=65 // loop_footer_branch
                  %1564 = sbr.rel target = $region75
                $region80: #{simple_net_forward.5} parent=65 // loop_exit
                  _
              $region66: #{simple_net_forward.5} parent=43 // pred_fallthru
                _
            $region44: #{simple_net_forward.5} parent=39 // pred_fallthru
              _
            // Predicated region
            $region45: #{simple_net_forward.5} parent=39 // pred_check
              _
            $region46: #{simple_net_forward.5} parent=39 // pred_check_branch
              %1237 = sbr.rel (0) target = $region48
            $region47: #{simple_net_forward.5} parent=39 // pred_region
              %s1239 = sshrl.u32 %s1226, 6
              // While loop
              $region49: #{simple_net_forward.5} parent=47 // loop_pre_header
                _
              $region50: #{simple_net_forward.5} parent=47 // loop_header
                %s1241 = sphi 0, %s1243
                %p1242 = scmp.ge.s32.totalorder %s1241, %s1239
                %s1246 = sphi 0, %s1379
                %s1247 = sphi %s1219, %s1382
                %s1248 = sphi %s1230, %s1383
              $region51: #{simple_net_forward.5} parent=47 // loop_header_branch
                %1245 = sbr.rel (%p1242) target = $region55
              $region52: #{simple_net_forward.5} parent=47 // loop_body
                %v1249 = vld [vmem:[%s1247] sm:$0xf]
                %1250 = vst [vmem:[%s1248] sm:$0xf] %v1249
                %v1251 = vld [vmem:[%s1247 + $0x4] sm:$0xf]
                %1252 = vst [vmem:[%s1248 + $0x4] sm:$0xf] %v1251
                %v1253 = vld [vmem:[%s1247 + $0x8] sm:$0xf]
                %1254 = vst [vmem:[%s1248 + $0x8] sm:$0xf] %v1253
                %v1255 = vld [vmem:[%s1247 + $0xc] sm:$0xf]
                %1256 = vst [vmem:[%s1248 + $0xc] sm:$0xf] %v1255
                %v1257 = vld [vmem:[%s1247 + $0x10] sm:$0xf]
                %1258 = vst [vmem:[%s1248 + $0x10] sm:$0xf] %v1257
                %v1259 = vld [vmem:[%s1247 + $0x14] sm:$0xf]
                %1260 = vst [vmem:[%s1248 + $0x14] sm:$0xf] %v1259
                %v1261 = vld [vmem:[%s1247 + $0x18] sm:$0xf]
                %1262 = vst [vmem:[%s1248 + $0x18] sm:$0xf] %v1261
                %v1263 = vld [vmem:[%s1247 + $0x1c] sm:$0xf]
                %1264 = vst [vmem:[%s1248 + $0x1c] sm:$0xf] %v1263
                %v1265 = vld [vmem:[%s1247 + $0x20] sm:$0xf]
                %1266 = vst [vmem:[%s1248 + $0x20] sm:$0xf] %v1265
                %v1267 = vld [vmem:[%s1247 + $0x24] sm:$0xf]
                %1268 = vst [vmem:[%s1248 + $0x24] sm:$0xf] %v1267
                %v1269 = vld [vmem:[%s1247 + $0x28] sm:$0xf]
                %1270 = vst [vmem:[%s1248 + $0x28] sm:$0xf] %v1269
                %v1271 = vld [vmem:[%s1247 + $0x2c] sm:$0xf]
                %1272 = vst [vmem:[%s1248 + $0x2c] sm:$0xf] %v1271
                %v1273 = vld [vmem:[%s1247 + $0x30] sm:$0xf]
                %1274 = vst [vmem:[%s1248 + $0x30] sm:$0xf] %v1273
                %v1275 = vld [vmem:[%s1247 + $0x34] sm:$0xf]
                %1276 = vst [vmem:[%s1248 + $0x34] sm:$0xf] %v1275
                %v1277 = vld [vmem:[%s1247 + $0x38] sm:$0xf]
                %1278 = vst [vmem:[%s1248 + $0x38] sm:$0xf] %v1277
                %v1279 = vld [vmem:[%s1247 + $0x3c] sm:$0xf]
                %1280 = vst [vmem:[%s1248 + $0x3c] sm:$0xf] %v1279
                %v1281 = vld [vmem:[%s1247 + $0x40] sm:$0xf]
                %1282 = vst [vmem:[%s1248 + $0x40] sm:$0xf] %v1281
                %v1283 = vld [vmem:[%s1247 + $0x44] sm:$0xf]
                %1284 = vst [vmem:[%s1248 + $0x44] sm:$0xf] %v1283
                %v1285 = vld [vmem:[%s1247 + $0x48] sm:$0xf]
                %1286 = vst [vmem:[%s1248 + $0x48] sm:$0xf] %v1285
                %v1287 = vld [vmem:[%s1247 + $0x4c] sm:$0xf]
                %1288 = vst [vmem:[%s1248 + $0x4c] sm:$0xf] %v1287
                %v1289 = vld [vmem:[%s1247 + $0x50] sm:$0xf]
                %1290 = vst [vmem:[%s1248 + $0x50] sm:$0xf] %v1289
                %v1291 = vld [vmem:[%s1247 + $0x54] sm:$0xf]
                %1292 = vst [vmem:[%s1248 + $0x54] sm:$0xf] %v1291
                %v1293 = vld [vmem:[%s1247 + $0x58] sm:$0xf]
                %1294 = vst [vmem:[%s1248 + $0x58] sm:$0xf] %v1293
                %v1295 = vld [vmem:[%s1247 + $0x5c] sm:$0xf]
                %1296 = vst [vmem:[%s1248 + $0x5c] sm:$0xf] %v1295
                %v1297 = vld [vmem:[%s1247 + $0x60] sm:$0xf]
                %1298 = vst [vmem:[%s1248 + $0x60] sm:$0xf] %v1297
                %v1299 = vld [vmem:[%s1247 + $0x64] sm:$0xf]
                %1300 = vst [vmem:[%s1248 + $0x64] sm:$0xf] %v1299
                %v1301 = vld [vmem:[%s1247 + $0x68] sm:$0xf]
                %1302 = vst [vmem:[%s1248 + $0x68] sm:$0xf] %v1301
                %v1303 = vld [vmem:[%s1247 + $0x6c] sm:$0xf]
                %1304 = vst [vmem:[%s1248 + $0x6c] sm:$0xf] %v1303
                %v1305 = vld [vmem:[%s1247 + $0x70] sm:$0xf]
                %1306 = vst [vmem:[%s1248 + $0x70] sm:$0xf] %v1305
                %v1307 = vld [vmem:[%s1247 + $0x74] sm:$0xf]
                %1308 = vst [vmem:[%s1248 + $0x74] sm:$0xf] %v1307
                %v1309 = vld [vmem:[%s1247 + $0x78] sm:$0xf]
                %1310 = vst [vmem:[%s1248 + $0x78] sm:$0xf] %v1309
                %v1311 = vld [vmem:[%s1247 + $0x7c] sm:$0xf]
                %1312 = vst [vmem:[%s1248 + $0x7c] sm:$0xf] %v1311
                %v1313 = vld [vmem:[%s1247 + $0x80] sm:$0xf]
                %1314 = vst [vmem:[%s1248 + $0x80] sm:$0xf] %v1313
                %v1315 = vld [vmem:[%s1247 + $0x84] sm:$0xf]
                %1316 = vst [vmem:[%s1248 + $0x84] sm:$0xf] %v1315
                %v1317 = vld [vmem:[%s1247 + $0x88] sm:$0xf]
                %1318 = vst [vmem:[%s1248 + $0x88] sm:$0xf] %v1317
                %v1319 = vld [vmem:[%s1247 + $0x8c] sm:$0xf]
                %1320 = vst [vmem:[%s1248 + $0x8c] sm:$0xf] %v1319
                %v1321 = vld [vmem:[%s1247 + $0x90] sm:$0xf]
                %1322 = vst [vmem:[%s1248 + $0x90] sm:$0xf] %v1321
                %v1323 = vld [vmem:[%s1247 + $0x94] sm:$0xf]
                %1324 = vst [vmem:[%s1248 + $0x94] sm:$0xf] %v1323
                %v1325 = vld [vmem:[%s1247 + $0x98] sm:$0xf]
                %1326 = vst [vmem:[%s1248 + $0x98] sm:$0xf] %v1325
                %v1327 = vld [vmem:[%s1247 + $0x9c] sm:$0xf]
                %1328 = vst [vmem:[%s1248 + $0x9c] sm:$0xf] %v1327
                %v1329 = vld [vmem:[%s1247 + $0xa0] sm:$0xf]
                %1330 = vst [vmem:[%s1248 + $0xa0] sm:$0xf] %v1329
                %v1331 = vld [vmem:[%s1247 + $0xa4] sm:$0xf]
                %1332 = vst [vmem:[%s1248 + $0xa4] sm:$0xf] %v1331
                %v1333 = vld [vmem:[%s1247 + $0xa8] sm:$0xf]
                %1334 = vst [vmem:[%s1248 + $0xa8] sm:$0xf] %v1333
                %v1335 = vld [vmem:[%s1247 + $0xac] sm:$0xf]
                %1336 = vst [vmem:[%s1248 + $0xac] sm:$0xf] %v1335
                %v1337 = vld [vmem:[%s1247 + $0xb0] sm:$0xf]
                %1338 = vst [vmem:[%s1248 + $0xb0] sm:$0xf] %v1337
                %v1339 = vld [vmem:[%s1247 + $0xb4] sm:$0xf]
                %1340 = vst [vmem:[%s1248 + $0xb4] sm:$0xf] %v1339
                %v1341 = vld [vmem:[%s1247 + $0xb8] sm:$0xf]
                %1342 = vst [vmem:[%s1248 + $0xb8] sm:$0xf] %v1341
                %v1343 = vld [vmem:[%s1247 + $0xbc] sm:$0xf]
                %1344 = vst [vmem:[%s1248 + $0xbc] sm:$0xf] %v1343
                %v1345 = vld [vmem:[%s1247 + $0xc0] sm:$0xf]
                %1346 = vst [vmem:[%s1248 + $0xc0] sm:$0xf] %v1345
                %v1347 = vld [vmem:[%s1247 + $0xc4] sm:$0xf]
                %1348 = vst [vmem:[%s1248 + $0xc4] sm:$0xf] %v1347
                %v1349 = vld [vmem:[%s1247 + $0xc8] sm:$0xf]
                %1350 = vst [vmem:[%s1248 + $0xc8] sm:$0xf] %v1349
                %v1351 = vld [vmem:[%s1247 + $0xcc] sm:$0xf]
                %1352 = vst [vmem:[%s1248 + $0xcc] sm:$0xf] %v1351
                %v1353 = vld [vmem:[%s1247 + $0xd0] sm:$0xf]
                %1354 = vst [vmem:[%s1248 + $0xd0] sm:$0xf] %v1353
                %v1355 = vld [vmem:[%s1247 + $0xd4] sm:$0xf]
                %1356 = vst [vmem:[%s1248 + $0xd4] sm:$0xf] %v1355
                %v1357 = vld [vmem:[%s1247 + $0xd8] sm:$0xf]
                %1358 = vst [vmem:[%s1248 + $0xd8] sm:$0xf] %v1357
                %v1359 = vld [vmem:[%s1247 + $0xdc] sm:$0xf]
                %1360 = vst [vmem:[%s1248 + $0xdc] sm:$0xf] %v1359
                %v1361 = vld [vmem:[%s1247 + $0xe0] sm:$0xf]
                %1362 = vst [vmem:[%s1248 + $0xe0] sm:$0xf] %v1361
                %v1363 = vld [vmem:[%s1247 + $0xe4] sm:$0xf]
                %1364 = vst [vmem:[%s1248 + $0xe4] sm:$0xf] %v1363
                %v1365 = vld [vmem:[%s1247 + $0xe8] sm:$0xf]
                %1366 = vst [vmem:[%s1248 + $0xe8] sm:$0xf] %v1365
                %v1367 = vld [vmem:[%s1247 + $0xec] sm:$0xf]
                %1368 = vst [vmem:[%s1248 + $0xec] sm:$0xf] %v1367
                %v1369 = vld [vmem:[%s1247 + $0xf0] sm:$0xf]
                %1370 = vst [vmem:[%s1248 + $0xf0] sm:$0xf] %v1369
                %v1371 = vld [vmem:[%s1247 + $0xf4] sm:$0xf]
                %1372 = vst [vmem:[%s1248 + $0xf4] sm:$0xf] %v1371
                %v1373 = vld [vmem:[%s1247 + $0xf8] sm:$0xf]
                %1374 = vst [vmem:[%s1248 + $0xf8] sm:$0xf] %v1373
                %v1375 = vld [vmem:[%s1247 + $0xfc] sm:$0xf]
                %1376 = vst [vmem:[%s1248 + $0xfc] sm:$0xf] %v1375
                %s1377 = sadd.s32 1, %s1246
                %p1378 = scmp.ge.s32.totalorder %s1377, %s1239
                %s1379 = scalar_select %p1378, 0, %s1377
                %s1380 = smul.u32 %s1379, 256
                %s1381 = smul.u32 %s1379, 256
                %s1382 = scalar_lea.vmem %s1219, %s1380 [#allocation2]
                %s1383 = scalar_lea.vmem %s1230, %s1381
              $region53: #{simple_net_forward.5} parent=47 // loop_footer
                %s1243 = sadd.s32 %s1241, 1
              $region54: #{simple_net_forward.5} parent=47 // loop_footer_branch
                %1240 = sbr.rel target = $region50
              $region55: #{simple_net_forward.5} parent=47 // loop_exit
                _
              %s1384 = sshrl.u32 %s1226, 6
              %s1385 = sand.u32 %s1226, 63
              %s1386 = smul.u32 %s1384, 64
              %s1387 = smul.u32 4, %s1386
              %s1388 = scalar_lea.vmem %s1219, %s1387 [#allocation2]
              %s1389 = smul.u32 4, %s1386
              %s1390 = scalar_lea.vmem %s1230, %s1389
              // While loop
              $region56: #{simple_net_forward.5} parent=47 // loop_pre_header
                _
              $region57: #{simple_net_forward.5} parent=47 // loop_header
                %s1392 = sphi 0, %s1394
                %p1393 = scmp.ge.s32.totalorder %s1392, %s1385
                %s1397 = sphi 0, %s1404
                %s1398 = sphi %s1388, %s1407
                %s1399 = sphi %s1390, %s1408
              $region58: #{simple_net_forward.5} parent=47 // loop_header_branch
                %1396 = sbr.rel (%p1393) target = $region62
              $region59: #{simple_net_forward.5} parent=47 // loop_body
                %v1400 = vld [vmem:[%s1398] sm:$0xf]
                %1401 = vst [vmem:[%s1399] sm:$0xf] %v1400
                %s1402 = sadd.s32 1, %s1397
                %p1403 = scmp.ge.s32.totalorder %s1402, %s1385
                %s1404 = scalar_select %p1403, 0, %s1402
                %s1405 = smul.u32 %s1404, 4
                %s1406 = smul.u32 %s1404, 4
                %s1407 = scalar_lea.vmem %s1388, %s1405 [#allocation2]
                %s1408 = scalar_lea.vmem %s1390, %s1406
              $region60: #{simple_net_forward.5} parent=47 // loop_footer
                %s1394 = sadd.s32 %s1392, 1
              $region61: #{simple_net_forward.5} parent=47 // loop_footer_branch
                %1391 = sbr.rel target = $region57
              $region62: #{simple_net_forward.5} parent=47 // loop_exit
                _
            $region48: #{simple_net_forward.5} parent=39 // pred_fallthru
              _
          $region40: #{simple_net_forward.5} parent=35 // pred_fallthru
            _
          %1582 = vnop
        $region36: #{simple_net_forward.5} parent=31 // pred_fallthru
          _
      $region32: #{simple_net_forward.5} parent=5 // pred_fallthru
        _
      %p1583 = scmp.le.s32.totalorder 2, %s9
      // Predicated region
      $region81: #{simple_net_forward.5} parent=5 // pred_check
        %p1584 = pneg %p1583
      $region82: #{simple_net_forward.5} parent=5 // pred_check_branch
        %1586 = sbr.rel (%p1584) target = $region84
      $region83: #{simple_net_forward.5} parent=5 // pred_region
        %s1587 = ssub.s32 %s9, 2
        // Predicated region
        $region85: #{simple_net_forward.5} parent=83 // pred_check
          %p1588 = pneg %p106
        $region86: #{simple_net_forward.5} parent=83 // pred_check_branch
          %1590 = sbr.rel (%p1588) target = $region88
        $region87: #{simple_net_forward.5} parent=83 // pred_region
          %s1591 = sand.u32 %s91, 1
          %s1592 = sand.u32 %s91, 1
          %s1593 = smul.addr %s1592, 256
          %s1594 = scalar_lea.vmem [#allocation2], %s1593
        $region88: #{simple_net_forward.5} parent=83 // pred_fallthru
          _
      $region84: #{simple_net_forward.5} parent=5 // pred_fallthru
        _
    $region6: #{simple_net_forward.5} parent=1 // loop_footer
      %s13 = sadd.s32 1, %s9
    $region7: #{simple_net_forward.5} parent=1 // loop_footer_branch
      %8 = sbr.rel target = $region3
    $region8: #{simple_net_forward.5} parent=1 // loop_exit
      _

// kernel: simple_net_forward.7
$region0: #{simple_net_forward.7}
  #allocation0 [shape = 'u32[]', space=smem, size = 0x4, offset = 0x4, fixed_abs, tag = 'smem constant byte address 0x4 - core index']
  #allocation1 [shape = 'u32[144,128]{1,0:T(1,128)}', space=vmem, size = 0x12000, scoped, tag = 'internal scratch']
  %s0 = inlined_call_operand.vmem [shape: bf16[128,500], index: 0, kind: input, shape index: {}]
  %s1 = inlined_call_operand.vmem [shape: bf16[500,128], index: 1, kind: input, shape index: {}]
  %s2 = inlined_call_operand.vmem [shape: f32[1,128], index: 2, kind: input, shape index: {}]
  %s3 = inlined_call_operand.vmem [shape: bf16[128,128], index: 3, kind: output, shape index: {}]
  %s4 = sld [smem:[#allocation0]]
  $region22: #{simple_net_forward.7} parent=0
    _
  %s6 = ssub.s32 1, %s4
  %s7 = scalar_select 0, %s6, %s4
  // Predicated region
  $region2: #{simple_net_forward.7} parent=0 // pred_check
    _
  $region3: #{simple_net_forward.7} parent=0 // pred_check_branch
    %9 = sbr.rel (0) target = $region5
  $region4: #{simple_net_forward.7} parent=0 // pred_region
    _
  $region5: #{simple_net_forward.7} parent=0 // pred_fallthru
    _
  // Predicated region
  $region6: #{simple_net_forward.7} parent=0 // pred_check
    _
  $region7: #{simple_net_forward.7} parent=0 // pred_check_branch
    %11 = sbr.rel (0) target = $region9
  $region8: #{simple_net_forward.7} parent=0 // pred_region
    _
  $region9: #{simple_net_forward.7} parent=0 // pred_fallthru
    _
  // Predicated region
  $region10: #{simple_net_forward.7} parent=0 // pred_check
    _
  $region11: #{simple_net_forward.7} parent=0 // pred_check_branch
    %13 = sbr.rel (0) target = $region13
  $region12: #{simple_net_forward.7} parent=0 // pred_region
    _
  $region13: #{simple_net_forward.7} parent=0 // pred_fallthru
    _
  %v15 = vld [vmem:[%s0] sm:$0xff]
  %v16 = vld [vmem:[%s0 + $0x8] sm:$0xff]
  %v17 = vld [vmem:[%s0 + $0x10] sm:$0xff]
  %v18 = vld [vmem:[%s0 + $0x18] sm:$0xff]
  %v19 = vld [vmem:[%s0 + $0x20] sm:$0xff]
  %v20 = vld [vmem:[%s0 + $0x28] sm:$0xff]
  %v21 = vld [vmem:[%s0 + $0x30] sm:$0xff]
  %v22 = vld [vmem:[%s0 + $0x38] sm:$0xff]
  %v23 = vld [vmem:[%s0 + $0x40] sm:$0xff]
  %v24 = vld [vmem:[%s0 + $0x48] sm:$0xff]
  %v25 = vld [vmem:[%s0 + $0x50] sm:$0xff]
  %v26 = vld [vmem:[%s0 + $0x58] sm:$0xff]
  %v27 = vld [vmem:[%s0 + $0x60] sm:$0xff]
  %v28 = vld [vmem:[%s0 + $0x68] sm:$0xff]
  %v29 = vld [vmem:[%s0 + $0x70] sm:$0xff]
  %v30 = vld [vmem:[%s0 + $0x78] sm:$0xff]
  %v31 = vld [vmem:[%s0 + $0x80] sm:$0xff]
  %v32 = vld [vmem:[%s0 + $0x88] sm:$0xff]
  %v33 = vld [vmem:[%s0 + $0x90] sm:$0xff]
  %v34 = vld [vmem:[%s0 + $0x98] sm:$0xff]
  %v35 = vld [vmem:[%s0 + $0xa0] sm:$0xff]
  %v36 = vld [vmem:[%s0 + $0xa8] sm:$0xff]
  %v37 = vld [vmem:[%s0 + $0xb0] sm:$0xff]
  %v38 = vld [vmem:[%s0 + $0xb8] sm:$0xff]
  %v39 = vld [vmem:[%s0 + $0xc0] sm:$0xff]
  %v40 = vld [vmem:[%s0 + $0xc8] sm:$0xff]
  %v41 = vld [vmem:[%s0 + $0xd0] sm:$0xff]
  %v42 = vld [vmem:[%s0 + $0xd8] sm:$0xff]
  %v43 = vld [vmem:[%s0 + $0xe0] sm:$0xff]
  %v44 = vld [vmem:[%s0 + $0xe8] sm:$0xff]
  %v45 = vld [vmem:[%s0 + $0xf0] sm:$0xff]
  %v46 = vld [vmem:[%s0 + $0xf8] sm:$0xff]
  %v47 = vld [vmem:[%s1] sm:$0xf]
  %v48 = vld [vmem:[%s1 + $0x4] sm:$0xf]
  %v49 = vld [vmem:[%s1 + $0x8] sm:$0xf]
  %v50 = vld [vmem:[%s1 + $0xc] sm:$0xf]
  %v51 = vld [vmem:[%s1 + $0x10] sm:$0xf]
  %v52 = vld [vmem:[%s1 + $0x14] sm:$0xf]
  %v53 = vld [vmem:[%s1 + $0x18] sm:$0xf]
  %v54 = vld [vmem:[%s1 + $0x1c] sm:$0xf]
  %v55 = vld [vmem:[%s1 + $0x20] sm:$0xf]
  %v56 = vld [vmem:[%s1 + $0x24] sm:$0xf]
  %v57 = vld [vmem:[%s1 + $0x28] sm:$0xf]
  %v58 = vld [vmem:[%s1 + $0x2c] sm:$0xf]
  %v59 = vld [vmem:[%s1 + $0x30] sm:$0xf]
  %v60 = vld [vmem:[%s1 + $0x34] sm:$0xf]
  %v61 = vld [vmem:[%s1 + $0x38] sm:$0xf]
  %v62 = vld [vmem:[%s1 + $0x3c] sm:$0xf]
  %v63 = vld [vmem:[%s1 + $0x40] sm:$0xf]
  %v64 = vld [vmem:[%s1 + $0x44] sm:$0xf]
  %v65 = vld [vmem:[%s1 + $0x48] sm:$0xf]
  %v66 = vld [vmem:[%s1 + $0x4c] sm:$0xf]
  %v67 = vld [vmem:[%s1 + $0x50] sm:$0xf]
  %v68 = vld [vmem:[%s1 + $0x54] sm:$0xf]
  %v69 = vld [vmem:[%s1 + $0x58] sm:$0xf]
  %v70 = vld [vmem:[%s1 + $0x5c] sm:$0xf]
  %v71 = vld [vmem:[%s1 + $0x60] sm:$0xf]
  %v72 = vld [vmem:[%s1 + $0x64] sm:$0xf]
  %v73 = vld [vmem:[%s1 + $0x68] sm:$0xf]
  %v74 = vld [vmem:[%s1 + $0x6c] sm:$0xf]
  %v75 = vld [vmem:[%s1 + $0x70] sm:$0xf]
  %v76 = vld [vmem:[%s1 + $0x74] sm:$0xf]
  %v77 = vld [vmem:[%s1 + $0x78] sm:$0xf]
  %v78 = vld [vmem:[%s1 + $0x7c] sm:$0xf]
  %v79 = vld [vmem:[%s1 + $0x80] sm:$0xf]
  %v80 = vld [vmem:[%s1 + $0x84] sm:$0xf]
  %v81 = vld [vmem:[%s1 + $0x88] sm:$0xf]
  %v82 = vld [vmem:[%s1 + $0x8c] sm:$0xf]
  %v83 = vld [vmem:[%s1 + $0x90] sm:$0xf]
  %v84 = vld [vmem:[%s1 + $0x94] sm:$0xf]
  %v85 = vld [vmem:[%s1 + $0x98] sm:$0xf]
  %v86 = vld [vmem:[%s1 + $0x9c] sm:$0xf]
  %v87 = vld [vmem:[%s1 + $0xa0] sm:$0xf]
  %v88 = vld [vmem:[%s1 + $0xa4] sm:$0xf]
  %v89 = vld [vmem:[%s1 + $0xa8] sm:$0xf]
  %v90 = vld [vmem:[%s1 + $0xac] sm:$0xf]
  %v91 = vld [vmem:[%s1 + $0xb0] sm:$0xf]
  %v92 = vld [vmem:[%s1 + $0xb4] sm:$0xf]
  %v93 = vld [vmem:[%s1 + $0xb8] sm:$0xf]
  %v94 = vld [vmem:[%s1 + $0xbc] sm:$0xf]
  %v95 = vld [vmem:[%s1 + $0xc0] sm:$0xf]
  %v96 = vld [vmem:[%s1 + $0xc4] sm:$0xf]
  %v97 = vld [vmem:[%s1 + $0xc8] sm:$0xf]
  %v98 = vld [vmem:[%s1 + $0xcc] sm:$0xf]
  %v99 = vld [vmem:[%s1 + $0xd0] sm:$0xf]
  %v100 = vld [vmem:[%s1 + $0xd4] sm:$0xf]
  %v101 = vld [vmem:[%s1 + $0xd8] sm:$0xf]
  %v102 = vld [vmem:[%s1 + $0xdc] sm:$0xf]
  %v103 = vld [vmem:[%s1 + $0xe0] sm:$0xf]
  %v104 = vld [vmem:[%s1 + $0xe4] sm:$0xf]
  %v105 = vld [vmem:[%s1 + $0xe8] sm:$0xf]
  %v106 = vld [vmem:[%s1 + $0xec] sm:$0xf]
  %v107 = vld [vmem:[%s1 + $0xf0] sm:$0xf]
  %v108 = vld [vmem:[%s1 + $0xf4] sm:$0xf]
  %v109 = vld [vmem:[%s1 + $0xf8] sm:$0x3]
  %v110 = vld [vmem:[%s2] sm:$0x1]
  %v112 = vlaneseq
  %v113 = vshrl.u32 %v112, 7
  %v114 = vsub.s32 0, %v113
  %v115 = vrot.slane %v110, %v114
  %v149 = vunpack.c.l.b16 %v15
  %v150 = vunpack.c.h.b16 %v15
  %v151 = vunpack.c.l.b16 %v16
  %v152 = vunpack.c.h.b16 %v16
  %v153 = vunpack.c.l.b16 %v17
  %v154 = vunpack.c.h.b16 %v17
  %v155 = vunpack.c.l.b16 %v18
  %v156 = vunpack.c.h.b16 %v18
  %v157 = vunpack.c.l.b16 %v19
  %v158 = vunpack.c.h.b16 %v19
  %v159 = vunpack.c.l.b16 %v20
  %v160 = vunpack.c.h.b16 %v20
  %v161 = vunpack.c.l.b16 %v21
  %v162 = vunpack.c.h.b16 %v21
  %v163 = vunpack.c.l.b16 %v22
  %v164 = vunpack.c.h.b16 %v22
  %v165 = vunpack.c.l.b16 %v23
  %v166 = vunpack.c.h.b16 %v23
  %v167 = vunpack.c.l.b16 %v24
  %v168 = vunpack.c.h.b16 %v24
  %v169 = vunpack.c.l.b16 %v25
  %v170 = vunpack.c.h.b16 %v25
  %v171 = vunpack.c.l.b16 %v26
  %v172 = vunpack.c.h.b16 %v26
  %v173 = vunpack.c.l.b16 %v27
  %v174 = vunpack.c.h.b16 %v27
  %v175 = vunpack.c.l.b16 %v28
  %v176 = vunpack.c.h.b16 %v28
  %v177 = vunpack.c.l.b16 %v29
  %v178 = vunpack.c.h.b16 %v29
  %v179 = vunpack.c.l.b16 %v30
  %v180 = vunpack.c.h.b16 %v30
  %v181 = vunpack.c.l.b16 %v31
  %v182 = vunpack.c.h.b16 %v31
  %v183 = vunpack.c.l.b16 %v32
  %v184 = vunpack.c.h.b16 %v32
  %v185 = vunpack.c.l.b16 %v33
  %v186 = vunpack.c.h.b16 %v33
  %v187 = vunpack.c.l.b16 %v34
  %v188 = vunpack.c.h.b16 %v34
  %v189 = vunpack.c.l.b16 %v35
  %v190 = vunpack.c.h.b16 %v35
  %v191 = vunpack.c.l.b16 %v36
  %v192 = vunpack.c.h.b16 %v36
  %v193 = vunpack.c.l.b16 %v37
  %v194 = vunpack.c.h.b16 %v37
  %v195 = vunpack.c.l.b16 %v38
  %v196 = vunpack.c.h.b16 %v38
  %v197 = vunpack.c.l.b16 %v39
  %v198 = vunpack.c.h.b16 %v39
  %v199 = vunpack.c.l.b16 %v40
  %v200 = vunpack.c.h.b16 %v40
  %v201 = vunpack.c.l.b16 %v41
  %v202 = vunpack.c.h.b16 %v41
  %v203 = vunpack.c.l.b16 %v42
  %v204 = vunpack.c.h.b16 %v42
  %v205 = vunpack.c.l.b16 %v43
  %v206 = vunpack.c.h.b16 %v43
  %v207 = vunpack.c.l.b16 %v44
  %v208 = vunpack.c.h.b16 %v44
  %v209 = vunpack.c.l.b16 %v45
  %v210 = vunpack.c.h.b16 %v45
  %v211 = vunpack.c.l.b16 %v46
  %v212 = vunpack.c.h.b16 %v46
  %v213 = vpack.c.b16 %v153, %v149
  %v214 = vpack.c.b16 %v154, %v150
  %v215 = vpack.c.b16 %v155, %v151
  %v216 = vpack.c.b16 %v156, %v152
  %v217 = vpack.c.b16 %v161, %v157
  %v218 = vpack.c.b16 %v162, %v158
  %v219 = vpack.c.b16 %v163, %v159
  %v220 = vpack.c.b16 %v164, %v160
  %v221 = vpack.c.b16 %v169, %v165
  %v222 = vpack.c.b16 %v170, %v166
  %v223 = vpack.c.b16 %v171, %v167
  %v224 = vpack.c.b16 %v172, %v168
  %v225 = vpack.c.b16 %v177, %v173
  %v226 = vpack.c.b16 %v178, %v174
  %v227 = vpack.c.b16 %v179, %v175
  %v228 = vpack.c.b16 %v180, %v176
  %v229 = vpack.c.b16 %v185, %v181
  %v230 = vpack.c.b16 %v186, %v182
  %v231 = vpack.c.b16 %v187, %v183
  %v232 = vpack.c.b16 %v188, %v184
  %v233 = vpack.c.b16 %v193, %v189
  %v234 = vpack.c.b16 %v194, %v190
  %v235 = vpack.c.b16 %v195, %v191
  %v236 = vpack.c.b16 %v196, %v192
  %v237 = vpack.c.b16 %v201, %v197
  %v238 = vpack.c.b16 %v202, %v198
  %v239 = vpack.c.b16 %v203, %v199
  %v240 = vpack.c.b16 %v204, %v200
  %v241 = vpack.c.b16 %v209, %v205
  %v242 = vpack.c.b16 %v210, %v206
  %v243 = vpack.c.b16 %v211, %v207
  %v244 = vpack.c.b16 %v212, %v208
  %v332 = vunpack.c.l.b16 %v47
  %v333 = vunpack.c.l.b16 %v48
  %v334 = vunpack.c.l.b16 %v49
  %v335 = vunpack.c.l.b16 %v50
  %v336 = vunpack.c.l.b16 %v51
  %v337 = vunpack.c.l.b16 %v52
  %v338 = vunpack.c.l.b16 %v53
  %v339 = vunpack.c.l.b16 %v54
  %v340 = vunpack.c.l.b16 %v55
  %v341 = vunpack.c.l.b16 %v56
  %v342 = vunpack.c.l.b16 %v57
  %v343 = vunpack.c.l.b16 %v58
  %v344 = vunpack.c.l.b16 %v59
  %v345 = vunpack.c.l.b16 %v60
  %v346 = vunpack.c.l.b16 %v61
  %v347 = vunpack.c.l.b16 %v62
  %v348 = vunpack.c.l.b16 %v63
  %v349 = vunpack.c.l.b16 %v64
  %v350 = vunpack.c.l.b16 %v65
  %v351 = vunpack.c.l.b16 %v66
  %v352 = vunpack.c.l.b16 %v67
  %v353 = vunpack.c.l.b16 %v68
  %v354 = vunpack.c.l.b16 %v69
  %v355 = vunpack.c.l.b16 %v70
  %v356 = vunpack.c.l.b16 %v71
  %v357 = vunpack.c.l.b16 %v72
  %v358 = vunpack.c.l.b16 %v73
  %v359 = vunpack.c.l.b16 %v74
  %v360 = vunpack.c.l.b16 %v75
  %v361 = vunpack.c.l.b16 %v76
  %v362 = vunpack.c.l.b16 %v77
  %v363 = vunpack.c.l.b16 %v78
  %v364 = vunpack.c.l.b16 %v79
  %v365 = vunpack.c.l.b16 %v80
  %v366 = vunpack.c.l.b16 %v81
  %v367 = vunpack.c.l.b16 %v82
  %v368 = vunpack.c.l.b16 %v83
  %v369 = vunpack.c.l.b16 %v84
  %v370 = vunpack.c.l.b16 %v85
  %v371 = vunpack.c.l.b16 %v86
  %v372 = vunpack.c.l.b16 %v87
  %v373 = vunpack.c.l.b16 %v88
  %v374 = vunpack.c.l.b16 %v89
  %v375 = vunpack.c.l.b16 %v90
  %v376 = vunpack.c.l.b16 %v91
  %v377 = vunpack.c.l.b16 %v92
  %v378 = vunpack.c.l.b16 %v93
  %v379 = vunpack.c.l.b16 %v94
  %v380 = vunpack.c.l.b16 %v95
  %v381 = vunpack.c.l.b16 %v96
  %v382 = vunpack.c.l.b16 %v97
  %v383 = vunpack.c.l.b16 %v98
  %v384 = vunpack.c.l.b16 %v99
  %v385 = vunpack.c.l.b16 %v100
  %v386 = vunpack.c.l.b16 %v101
  %v387 = vunpack.c.l.b16 %v102
  %v388 = vunpack.c.l.b16 %v103
  %v389 = vunpack.c.l.b16 %v104
  %v390 = vunpack.c.l.b16 %v105
  %v391 = vunpack.c.l.b16 %v106
  %v392 = vunpack.c.l.b16 %v107
  %v393 = vunpack.c.l.b16 %v108
  %v394 = vunpack.c.l.b16 %v109
  %v395 = vpack.c.b16 %v333, %v332
  %v396 = vpack.c.b16 %v335, %v334
  %v397 = vpack.c.b16 %v337, %v336
  %v398 = vpack.c.b16 %v339, %v338
  %v399 = vpack.c.b16 %v341, %v340
  %v400 = vpack.c.b16 %v343, %v342
  %v401 = vpack.c.b16 %v345, %v344
  %v402 = vpack.c.b16 %v347, %v346
  %v403 = vpack.c.b16 %v349, %v348
  %v404 = vpack.c.b16 %v351, %v350
  %v405 = vpack.c.b16 %v353, %v352
  %v406 = vpack.c.b16 %v355, %v354
  %v407 = vpack.c.b16 %v357, %v356
  %v408 = vpack.c.b16 %v359, %v358
  %v409 = vpack.c.b16 %v361, %v360
  %v410 = vpack.c.b16 %v363, %v362
  %v411 = vpack.c.b16 %v365, %v364
  %v412 = vpack.c.b16 %v367, %v366
  %v413 = vpack.c.b16 %v369, %v368
  %v414 = vpack.c.b16 %v371, %v370
  %v415 = vpack.c.b16 %v373, %v372
  %v416 = vpack.c.b16 %v375, %v374
  %v417 = vpack.c.b16 %v377, %v376
  %v418 = vpack.c.b16 %v379, %v378
  %v419 = vpack.c.b16 %v381, %v380
  %v420 = vpack.c.b16 %v383, %v382
  %v421 = vpack.c.b16 %v385, %v384
  %v422 = vpack.c.b16 %v387, %v386
  %v423 = vpack.c.b16 %v389, %v388
  %v424 = vpack.c.b16 %v391, %v390
  %v425 = vpack.c.b16 %v393, %v392
  %v426 = vpack.c.b16 %v394, %v394
  %vm458 = vcmask 949248
  %v460 = vsel %vm458, %v216, 0
  %v463 = vsel %vm458, %v220, 0
  %v466 = vsel %vm458, %v224, 0
  %v469 = vsel %vm458, %v228, 0
  %v472 = vsel %vm458, %v232, 0
  %v475 = vsel %vm458, %v236, 0
  %v478 = vsel %vm458, %v240, 0
  %v481 = vsel %vm458, %v244, 0
  %vm483 = vcmask 1041408
  %v485 = vsel %vm483, %v426, 0
  %487 = vmatprep.subr.bf16.mxu0 0
  %488 = vmatpush1.bf16.msra.mxu0 %v395
  %489 = vmatprep.subr.bf16.mxu0 0
  %490 = vmatpush1.bf16.msra.mxu0 %v396
  %491 = vmatprep.subr.bf16.mxu0 0
  %492 = vmatpush1.bf16.msra.mxu0 %v397
  %493 = vmatprep.subr.bf16.mxu0 0
  %494 = vmatpush1.bf16.msra.mxu0 %v398
  %495 = vmatprep.subr.bf16.mxu0 0
  %496 = vmatpush1.bf16.msra.mxu0 %v399
  %497 = vmatprep.subr.bf16.mxu0 0
  %498 = vmatpush1.bf16.msra.mxu0 %v400
  %499 = vmatprep.subr.bf16.mxu0 0
  %500 = vmatpush1.bf16.msra.mxu0 %v401
  %501 = vmatprep.subr.bf16.mxu0 0
  %502 = vmatpush1.bf16.msra.mxu0 %v402
  %503 = vmatprep.subr.bf16.mxu0 0
  %504 = vmatpush1.bf16.msra.mxu0 %v403
  %505 = vmatprep.subr.bf16.mxu0 0
  %506 = vmatpush1.bf16.msra.mxu0 %v404
  %507 = vmatprep.subr.bf16.mxu0 0
  %508 = vmatpush1.bf16.msra.mxu0 %v405
  %509 = vmatprep.subr.bf16.mxu0 0
  %510 = vmatpush1.bf16.msra.mxu0 %v406
  %511 = vmatprep.subr.bf16.mxu0 0
  %512 = vmatpush1.bf16.msra.mxu0 %v407
  %513 = vmatprep.subr.bf16.mxu0 0
  %514 = vmatpush1.bf16.msra.mxu0 %v408
  %515 = vmatprep.subr.bf16.mxu0 0
  %516 = vmatpush1.bf16.msra.mxu0 %v409
  %517 = vmatprep.subr.bf16.mxu0 0
  %518 = vmatpush1.bf16.msra.mxu0 %v410
  %519 = vmatprep.mubr.bf16.mxu0 %v214
  %520 = vmatmul.mubr.bf16.gmra.mrb[0].mxu0 %v213
  %v521 = vpop.f32.mrb[0].mxu0
  %v522 = vadd.f32 %v115, %v521
  %v523 = vpop.f32.mrb[0].mxu0
  %v524 = vpop.f32.mrb[0].mxu0
  %v525 = vadd.f32 %v115, %v524
  %v526 = vpop.f32.mrb[0].mxu0
  %527 = vmatprep.mubr.bf16.mxu0 %v218
  %528 = vmatmul.mubr.bf16.gmra.mrb[0].mxu0 %v217
  %v529 = vpop.f32.mrb[0].mxu0
  %v530 = vadd.f32 %v115, %v529
  %v531 = vpop.f32.mrb[0].mxu0
  %v532 = vpop.f32.mrb[0].mxu0
  %v533 = vadd.f32 %v115, %v532
  %v534 = vpop.f32.mrb[0].mxu0
  %535 = vmatprep.mubr.bf16.mxu0 %v222
  %536 = vmatmul.mubr.bf16.gmra.mrb[0].mxu0 %v221
  %v537 = vpop.f32.mrb[0].mxu0
  %v538 = vadd.f32 %v115, %v537
  %v539 = vpop.f32.mrb[0].mxu0
  %v540 = vpop.f32.mrb[0].mxu0
  %v541 = vadd.f32 %v115, %v540
  %v542 = vpop.f32.mrb[0].mxu0
  %543 = vmatprep.mubr.bf16.mxu0 %v226
  %544 = vmatmul.mubr.bf16.gmra.mrb[0].mxu0 %v225
  %v545 = vpop.f32.mrb[0].mxu0
  %v546 = vadd.f32 %v115, %v545
  %v547 = vpop.f32.mrb[0].mxu0
  %v548 = vpop.f32.mrb[0].mxu0
  %v549 = vadd.f32 %v115, %v548
  %v550 = vpop.f32.mrb[0].mxu0
  %551 = vmatprep.mubr.bf16.mxu0 %v230
  %552 = vmatmul.mubr.bf16.gmra.mrb[0].mxu0 %v229
  %v553 = vpop.f32.mrb[0].mxu0
  %v554 = vadd.f32 %v115, %v553
  %v555 = vpop.f32.mrb[0].mxu0
  %v556 = vpop.f32.mrb[0].mxu0
  %v557 = vadd.f32 %v115, %v556
  %v558 = vpop.f32.mrb[0].mxu0
  %559 = vmatprep.mubr.bf16.mxu0 %v234
  %560 = vmatmul.mubr.bf16.gmra.mrb[0].mxu0 %v233
  %v561 = vpop.f32.mrb[0].mxu0
  %v562 = vadd.f32 %v115, %v561
  %v563 = vpop.f32.mrb[0].mxu0
  %v564 = vpop.f32.mrb[0].mxu0
  %v565 = vadd.f32 %v115, %v564
  %v566 = vpop.f32.mrb[0].mxu0
  %567 = vmatprep.mubr.bf16.mxu0 %v238
  %568 = vmatmul.mubr.bf16.gmra.mrb[0].mxu0 %v237
  %v569 = vpop.f32.mrb[0].mxu0
  %v570 = vadd.f32 %v115, %v569
  %v571 = vpop.f32.mrb[0].mxu0
  %v572 = vpop.f32.mrb[0].mxu0
  %v573 = vadd.f32 %v115, %v572
  %v574 = vpop.f32.mrb[0].mxu0
  %575 = vmatprep.mubr.bf16.mxu0 %v242
  %576 = vmatmul.mubr.bf16.gmra.mrb[0].mxu0 %v241
  %v577 = vpop.f32.mrb[0].mxu0
  %v578 = vadd.f32 %v115, %v577
  %v579 = vpop.f32.mrb[0].mxu0
  %v580 = vpop.f32.mrb[0].mxu0
  %v581 = vadd.f32 %v115, %v580
  %v582 = vpop.f32.mrb[0].mxu0
  %583 = vdwg.mxu0
  %584 = vmatprep.subr.bf16.mxu0 0
  %585 = vmatpush1.bf16.msra.mxu0 %v411
  %586 = vmatprep.subr.bf16.mxu0 0
  %587 = vmatpush1.bf16.msra.mxu0 %v412
  %588 = vmatprep.subr.bf16.mxu0 0
  %589 = vmatpush1.bf16.msra.mxu0 %v413
  %590 = vmatprep.subr.bf16.mxu0 0
  %591 = vmatpush1.bf16.msra.mxu0 %v414
  %592 = vmatprep.subr.bf16.mxu0 0
  %593 = vmatpush1.bf16.msra.mxu0 %v415
  %594 = vmatprep.subr.bf16.mxu0 0
  %595 = vmatpush1.bf16.msra.mxu0 %v416
  %596 = vmatprep.subr.bf16.mxu0 0
  %597 = vmatpush1.bf16.msra.mxu0 %v417
  %598 = vmatprep.subr.bf16.mxu0 0
  %599 = vmatpush1.bf16.msra.mxu0 %v418
  %600 = vmatprep.subr.bf16.mxu0 0
  %601 = vmatpush1.bf16.msra.mxu0 %v419
  %602 = vmatprep.subr.bf16.mxu0 0
  %603 = vmatpush1.bf16.msra.mxu0 %v420
  %604 = vmatprep.subr.bf16.mxu0 0
  %605 = vmatpush1.bf16.msra.mxu0 %v421
  %606 = vmatprep.subr.bf16.mxu0 0
  %607 = vmatpush1.bf16.msra.mxu0 %v422
  %608 = vmatprep.subr.bf16.mxu0 0
  %609 = vmatpush1.bf16.msra.mxu0 %v423
  %610 = vmatprep.subr.bf16.mxu0 0
  %611 = vmatpush1.bf16.msra.mxu0 %v424
  %612 = vmatprep.subr.bf16.mxu0 0
  %613 = vmatpush1.bf16.msra.mxu0 %v425
  %614 = vmatprep.subr.bf16.mxu0 0
  %615 = vmatpush1.bf16.msra.mxu0 %v485
  %616 = vmatprep.mubr.bf16.mxu0 %v460
  %617 = vmatmul.mubr.bf16.gmra.mrb[0].mxu0 %v215
  %v618 = vpop.f32.mrb[0].mxu0
  %v619 = vadd.f32 %v522, %v618
  %v620 = vpop.f32.mrb[0].mxu0
  %v621 = vpop.f32.mrb[0].mxu0
  %v622 = vadd.f32 %v525, %v621
  %v623 = vpop.f32.mrb[0].mxu0
  %624 = vmatprep.mubr.bf16.mxu0 %v463
  %625 = vmatmul.mubr.bf16.gmra.mrb[0].mxu0 %v219
  %v626 = vpop.f32.mrb[0].mxu0
  %v627 = vadd.f32 %v530, %v626
  %v628 = vpop.f32.mrb[0].mxu0
  %v629 = vpop.f32.mrb[0].mxu0
  %v630 = vadd.f32 %v533, %v629
  %v631 = vpop.f32.mrb[0].mxu0
  %632 = vmatprep.mubr.bf16.mxu0 %v466
  %633 = vmatmul.mubr.bf16.gmra.mrb[0].mxu0 %v223
  %v634 = vpop.f32.mrb[0].mxu0
  %v635 = vadd.f32 %v538, %v634
  %v636 = vpop.f32.mrb[0].mxu0
  %v637 = vpop.f32.mrb[0].mxu0
  %v638 = vadd.f32 %v541, %v637
  %v639 = vpop.f32.mrb[0].mxu0
  %640 = vmatprep.mubr.bf16.mxu0 %v469
  %641 = vmatmul.mubr.bf16.gmra.mrb[0].mxu0 %v227
  %v642 = vpop.f32.mrb[0].mxu0
  %v643 = vadd.f32 %v546, %v642
  %v644 = vpop.f32.mrb[0].mxu0
  %v645 = vpop.f32.mrb[0].mxu0
  %v646 = vadd.f32 %v549, %v645
  %v647 = vpop.f32.mrb[0].mxu0
  %648 = vmatprep.mubr.bf16.mxu0 %v472
  %649 = vmatmul.mubr.bf16.gmra.mrb[0].mxu0 %v231
  %v650 = vpop.f32.mrb[0].mxu0
  %v651 = vadd.f32 %v554, %v650
  %v652 = vpop.f32.mrb[0].mxu0
  %v653 = vpop.f32.mrb[0].mxu0
  %v654 = vadd.f32 %v557, %v653
  %v655 = vpop.f32.mrb[0].mxu0
  %656 = vmatprep.mubr.bf16.mxu0 %v475
  %657 = vmatmul.mubr.bf16.gmra.mrb[0].mxu0 %v235
  %v658 = vpop.f32.mrb[0].mxu0
  %v659 = vadd.f32 %v562, %v658
  %v660 = vpop.f32.mrb[0].mxu0
  %v661 = vpop.f32.mrb[0].mxu0
  %v662 = vadd.f32 %v565, %v661
  %v663 = vpop.f32.mrb[0].mxu0
  %664 = vmatprep.mubr.bf16.mxu0 %v478
  %665 = vmatmul.mubr.bf16.gmra.mrb[0].mxu0 %v239
  %v666 = vpop.f32.mrb[0].mxu0
  %v667 = vadd.f32 %v570, %v666
  %v668 = vpop.f32.mrb[0].mxu0
  %v669 = vpop.f32.mrb[0].mxu0
  %v670 = vadd.f32 %v573, %v669
  %v671 = vpop.f32.mrb[0].mxu0
  %672 = vmatprep.mubr.bf16.mxu0 %v481
  %673 = vmatmul.mubr.bf16.gmra.mrb[0].mxu0 %v243
  %v674 = vpop.f32.mrb[0].mxu0
  %v675 = vadd.f32 %v578, %v674
  %v676 = vpop.f32.mrb[0].mxu0
  %v677 = vpop.f32.mrb[0].mxu0
  %v678 = vadd.f32 %v581, %v677
  %v679 = vpop.f32.mrb[0].mxu0
  %680 = vdwg.mxu0
  %v681 = vmax.f32 %v619, 0.0
  %v682 = vmax.f32 %v622, 0.0
  %v683 = vmax.f32 %v627, 0.0
  %v684 = vmax.f32 %v630, 0.0
  %v685 = vmax.f32 %v635, 0.0
  %v686 = vmax.f32 %v638, 0.0
  %v687 = vmax.f32 %v643, 0.0
  %v688 = vmax.f32 %v646, 0.0
  %v689 = vmax.f32 %v651, 0.0
  %v690 = vmax.f32 %v654, 0.0
  %v691 = vmax.f32 %v659, 0.0
  %v692 = vmax.f32 %v662, 0.0
  %v693 = vmax.f32 %v667, 0.0
  %v694 = vmax.f32 %v670, 0.0
  %v695 = vmax.f32 %v675, 0.0
  %v696 = vmax.f32 %v678, 0.0
  %v697 = vpack.c.bf16 %v682, %v681
  %v698 = vpack.c.bf16 %v684, %v683
  %v699 = vpack.c.bf16 %v686, %v685
  %v700 = vpack.c.bf16 %v688, %v687
  %v701 = vpack.c.bf16 %v690, %v689
  %v702 = vpack.c.bf16 %v692, %v691
  %v703 = vpack.c.bf16 %v694, %v693
  %v704 = vpack.c.bf16 %v696, %v695
  %v713 = vunpack.c.l.b16 %v697
  %v714 = vunpack.c.h.b16 %v697
  %v715 = vunpack.c.l.b16 %v698
  %v716 = vunpack.c.h.b16 %v698
  %v717 = vunpack.c.l.b16 %v699
  %v718 = vunpack.c.h.b16 %v699
  %v719 = vunpack.c.l.b16 %v700
  %v720 = vunpack.c.h.b16 %v700
  %v721 = vunpack.c.l.b16 %v701
  %v722 = vunpack.c.h.b16 %v701
  %v723 = vunpack.c.l.b16 %v702
  %v724 = vunpack.c.h.b16 %v702
  %v725 = vunpack.c.l.b16 %v703
  %v726 = vunpack.c.h.b16 %v703
  %v727 = vunpack.c.l.b16 %v704
  %v728 = vunpack.c.h.b16 %v704
  %v729 = vpack.c.b16 %v713, %v713
  %v730 = vpack.c.b16 %v714, %v714
  %v731 = vpack.c.b16 %v715, %v715
  %v732 = vpack.c.b16 %v716, %v716
  %v733 = vpack.c.b16 %v717, %v717
  %v734 = vpack.c.b16 %v718, %v718
  %v735 = vpack.c.b16 %v719, %v719
  %v736 = vpack.c.b16 %v720, %v720
  %v737 = vpack.c.b16 %v721, %v721
  %v738 = vpack.c.b16 %v722, %v722
  %v739 = vpack.c.b16 %v723, %v723
  %v740 = vpack.c.b16 %v724, %v724
  %v741 = vpack.c.b16 %v725, %v725
  %v742 = vpack.c.b16 %v726, %v726
  %v743 = vpack.c.b16 %v727, %v727
  %v744 = vpack.c.b16 %v728, %v728
  %761 = vst [vmem:[%s3] sm:$0xf] %v729
  %762 = vst [vmem:[%s3 + $0x4] sm:$0xf] %v730
  %763 = vst [vmem:[%s3 + $0x8] sm:$0xf] %v731
  %764 = vst [vmem:[%s3 + $0xc] sm:$0xf] %v732
  %765 = vst [vmem:[%s3 + $0x10] sm:$0xf] %v733
  %766 = vst [vmem:[%s3 + $0x14] sm:$0xf] %v734
  %767 = vst [vmem:[%s3 + $0x18] sm:$0xf] %v735
  %768 = vst [vmem:[%s3 + $0x1c] sm:$0xf] %v736
  %769 = vst [vmem:[%s3 + $0x20] sm:$0xf] %v737
  %770 = vst [vmem:[%s3 + $0x24] sm:$0xf] %v738
  %771 = vst [vmem:[%s3 + $0x28] sm:$0xf] %v739
  %772 = vst [vmem:[%s3 + $0x2c] sm:$0xf] %v740
  %773 = vst [vmem:[%s3 + $0x30] sm:$0xf] %v741
  %774 = vst [vmem:[%s3 + $0x34] sm:$0xf] %v742
  %775 = vst [vmem:[%s3 + $0x38] sm:$0xf] %v743
  %776 = vst [vmem:[%s3 + $0x3c] sm:$0xf] %v744
  // Predicated region
  $region14: #{simple_net_forward.7} parent=0 // pred_check
    _
  $region15: #{simple_net_forward.7} parent=0 // pred_check_branch
    %778 = sbr.rel (0) target = $region17
  $region16: #{simple_net_forward.7} parent=0 // pred_region
    _
  $region17: #{simple_net_forward.7} parent=0 // pred_fallthru
    _
  // Predicated region
  $region18: #{simple_net_forward.7} parent=0 // pred_check
    _
  $region19: #{simple_net_forward.7} parent=0 // pred_check_branch
    %780 = sbr.rel (0) target = $region21
  $region20: #{simple_net_forward.7} parent=0 // pred_region
    _
  $region21: #{simple_net_forward.7} parent=0 // pred_fallthru
    _

// kernel: simple_net_forward.6
$region0: #{simple_net_forward.6}
  #allocation0 [shape = 'u32[]', space=smem, size = 0x4, offset = 0x4, fixed_abs, tag = 'smem constant byte address 0x4 - core index']
  #allocation1 [shape = 'u32[144,128]{1,0:T(1,128)}', space=vmem, size = 0x12000, scoped, tag = 'internal scratch']
  %s0 = inlined_call_operand.vmem [shape: bf16[24,2,24,128], index: 0, kind: input, shape index: {}]
  %s1 = inlined_call_operand.vmem [shape: bf16[24,12,128], index: 1, kind: output, shape index: {}]
  %s2 = sld [smem:[#allocation0]]
  $region14: #{simple_net_forward.6} parent=0
    _
  %s4 = ssub.s32 1, %s2
  %s5 = scalar_select 0, %s4, %s2
  // Predicated region
  $region2: #{simple_net_forward.6} parent=0 // pred_check
    _
  $region3: #{simple_net_forward.6} parent=0 // pred_check_branch
    %7 = sbr.rel (0) target = $region5
  $region4: #{simple_net_forward.6} parent=0 // pred_region
    _
  $region5: #{simple_net_forward.6} parent=0 // pred_fallthru
    _
  %v9 = vld [vmem:[%s0] sm:$0xf]
  %v10 = vld [vmem:[%s0 + $0x4] sm:$0xf]
  %v11 = vld [vmem:[%s0 + $0x8] sm:$0xf]
  %v12 = vld [vmem:[%s0 + $0xc] sm:$0xf]
  %v13 = vld [vmem:[%s0 + $0x10] sm:$0xf]
  %v14 = vld [vmem:[%s0 + $0x14] sm:$0xf]
  %v15 = vld [vmem:[%s0 + $0x18] sm:$0xf]
  %v16 = vld [vmem:[%s0 + $0x1c] sm:$0xf]
  %v17 = vld [vmem:[%s0 + $0x20] sm:$0xf]
  %v18 = vld [vmem:[%s0 + $0x24] sm:$0xf]
  %v19 = vld [vmem:[%s0 + $0x28] sm:$0xf]
  %v20 = vld [vmem:[%s0 + $0x2c] sm:$0xf]
  %v21 = vld [vmem:[%s0 + $0x30] sm:$0xf]
  %v22 = vld [vmem:[%s0 + $0x34] sm:$0xf]
  %v23 = vld [vmem:[%s0 + $0x38] sm:$0xf]
  %v24 = vld [vmem:[%s0 + $0x3c] sm:$0xf]
  %v25 = vld [vmem:[%s0 + $0x40] sm:$0xf]
  %v26 = vld [vmem:[%s0 + $0x44] sm:$0xf]
  %v27 = vld [vmem:[%s0 + $0x48] sm:$0xf]
  %v28 = vld [vmem:[%s0 + $0x4c] sm:$0xf]
  %v29 = vld [vmem:[%s0 + $0x50] sm:$0xf]
  %v30 = vld [vmem:[%s0 + $0x54] sm:$0xf]
  %v31 = vld [vmem:[%s0 + $0x58] sm:$0xf]
  %v32 = vld [vmem:[%s0 + $0x5c] sm:$0xf]
  %v33 = vld [vmem:[%s0 + $0x60] sm:$0xf]
  %v34 = vld [vmem:[%s0 + $0x64] sm:$0xf]
  %v35 = vld [vmem:[%s0 + $0x68] sm:$0xf]
  %v36 = vld [vmem:[%s0 + $0x6c] sm:$0xf]
  %v37 = vld [vmem:[%s0 + $0x70] sm:$0xf]
  %v38 = vld [vmem:[%s0 + $0x74] sm:$0xf]
  %v39 = vld [vmem:[%s0 + $0x78] sm:$0xf]
  %v40 = vld [vmem:[%s0 + $0x7c] sm:$0xf]
  %v41 = vld [vmem:[%s0 + $0x80] sm:$0xf]
  %v42 = vld [vmem:[%s0 + $0x84] sm:$0xf]
  %v43 = vld [vmem:[%s0 + $0x88] sm:$0xf]
  %v44 = vld [vmem:[%s0 + $0x8c] sm:$0xf]
  %v45 = vld [vmem:[%s0 + $0x90] sm:$0xf]
  %v46 = vld [vmem:[%s0 + $0x94] sm:$0xf]
  %v47 = vld [vmem:[%s0 + $0x98] sm:$0xf]
  %v48 = vld [vmem:[%s0 + $0x9c] sm:$0xf]
  %v49 = vld [vmem:[%s0 + $0xa0] sm:$0xf]
  %v50 = vld [vmem:[%s0 + $0xa4] sm:$0xf]
  %v51 = vld [vmem:[%s0 + $0xa8] sm:$0xf]
  %v52 = vld [vmem:[%s0 + $0xac] sm:$0xf]
  %v53 = vld [vmem:[%s0 + $0xb0] sm:$0xf]
  %v54 = vld [vmem:[%s0 + $0xb4] sm:$0xf]
  %v55 = vld [vmem:[%s0 + $0xb8] sm:$0xf]
  %v56 = vld [vmem:[%s0 + $0xbc] sm:$0xf]
  %v57 = vld [vmem:[%s0 + $0xc0] sm:$0xf]
  %v58 = vld [vmem:[%s0 + $0xc4] sm:$0xf]
  %v59 = vld [vmem:[%s0 + $0xc8] sm:$0xf]
  %v60 = vld [vmem:[%s0 + $0xcc] sm:$0xf]
  %v61 = vld [vmem:[%s0 + $0xd0] sm:$0xf]
  %v62 = vld [vmem:[%s0 + $0xd4] sm:$0xf]
  %v63 = vld [vmem:[%s0 + $0xd8] sm:$0xf]
  %v64 = vld [vmem:[%s0 + $0xdc] sm:$0xf]
  %v65 = vld [vmem:[%s0 + $0xe0] sm:$0xf]
  %v66 = vld [vmem:[%s0 + $0xe4] sm:$0xf]
  %v67 = vld [vmem:[%s0 + $0xe8] sm:$0xf]
  %v68 = vld [vmem:[%s0 + $0xec] sm:$0xf]
  %v69 = vld [vmem:[%s0 + $0xf0] sm:$0xf]
  %v70 = vld [vmem:[%s0 + $0xf4] sm:$0xf]
  %v71 = vld [vmem:[%s0 + $0xf8] sm:$0xf]
  %v72 = vld [vmem:[%s0 + $0xfc] sm:$0xf]
  %v73 = vld [vmem:[%s0 + $0x100] sm:$0xf]
  %v74 = vld [vmem:[%s0 + $0x104] sm:$0xf]
  %v75 = vld [vmem:[%s0 + $0x108] sm:$0xf]
  %v76 = vld [vmem:[%s0 + $0x10c] sm:$0xf]
  %v77 = vld [vmem:[%s0 + $0x110] sm:$0xf]
  %v78 = vld [vmem:[%s0 + $0x114] sm:$0xf]
  %v79 = vld [vmem:[%s0 + $0x118] sm:$0xf]
  %v80 = vld [vmem:[%s0 + $0x11c] sm:$0xf]
  %v81 = vld [vmem:[%s0 + $0x120] sm:$0xf]
  %v82 = vld [vmem:[%s0 + $0x124] sm:$0xf]
  %v83 = vld [vmem:[%s0 + $0x128] sm:$0xf]
  %v84 = vld [vmem:[%s0 + $0x12c] sm:$0xf]
  %v85 = vld [vmem:[%s0 + $0x130] sm:$0xf]
  %v86 = vld [vmem:[%s0 + $0x134] sm:$0xf]
  %v87 = vld [vmem:[%s0 + $0x138] sm:$0xf]
  %v88 = vld [vmem:[%s0 + $0x13c] sm:$0xf]
  %v89 = vld [vmem:[%s0 + $0x140] sm:$0xf]
  %v90 = vld [vmem:[%s0 + $0x144] sm:$0xf]
  %v91 = vld [vmem:[%s0 + $0x148] sm:$0xf]
  %v92 = vld [vmem:[%s0 + $0x14c] sm:$0xf]
  %v93 = vld [vmem:[%s0 + $0x150] sm:$0xf]
  %v94 = vld [vmem:[%s0 + $0x154] sm:$0xf]
  %v95 = vld [vmem:[%s0 + $0x158] sm:$0xf]
  %v96 = vld [vmem:[%s0 + $0x15c] sm:$0xf]
  %v97 = vld [vmem:[%s0 + $0x160] sm:$0xf]
  %v98 = vld [vmem:[%s0 + $0x164] sm:$0xf]
  %v99 = vld [vmem:[%s0 + $0x168] sm:$0xf]
  %v100 = vld [vmem:[%s0 + $0x16c] sm:$0xf]
  %v101 = vld [vmem:[%s0 + $0x170] sm:$0xf]
  %v102 = vld [vmem:[%s0 + $0x174] sm:$0xf]
  %v103 = vld [vmem:[%s0 + $0x178] sm:$0xf]
  %v104 = vld [vmem:[%s0 + $0x17c] sm:$0xf]
  %v105 = vld [vmem:[%s0 + $0x180] sm:$0xf]
  %v106 = vld [vmem:[%s0 + $0x184] sm:$0xf]
  %v107 = vld [vmem:[%s0 + $0x188] sm:$0xf]
  %v108 = vld [vmem:[%s0 + $0x18c] sm:$0xf]
  %v109 = vld [vmem:[%s0 + $0x190] sm:$0xf]
  %v110 = vld [vmem:[%s0 + $0x194] sm:$0xf]
  %v111 = vld [vmem:[%s0 + $0x198] sm:$0xf]
  %v112 = vld [vmem:[%s0 + $0x19c] sm:$0xf]
  %v113 = vld [vmem:[%s0 + $0x1a0] sm:$0xf]
  %v114 = vld [vmem:[%s0 + $0x1a4] sm:$0xf]
  %v115 = vld [vmem:[%s0 + $0x1a8] sm:$0xf]
  %v116 = vld [vmem:[%s0 + $0x1ac] sm:$0xf]
  %v117 = vld [vmem:[%s0 + $0x1b0] sm:$0xf]
  %v118 = vld [vmem:[%s0 + $0x1b4] sm:$0xf]
  %v119 = vld [vmem:[%s0 + $0x1b8] sm:$0xf]
  %v120 = vld [vmem:[%s0 + $0x1bc] sm:$0xf]
  %v121 = vld [vmem:[%s0 + $0x1c0] sm:$0xf]
  %v122 = vld [vmem:[%s0 + $0x1c4] sm:$0xf]
  %v123 = vld [vmem:[%s0 + $0x1c8] sm:$0xf]
  %v124 = vld [vmem:[%s0 + $0x1cc] sm:$0xf]
  %v125 = vld [vmem:[%s0 + $0x1d0] sm:$0xf]
  %v126 = vld [vmem:[%s0 + $0x1d4] sm:$0xf]
  %v127 = vld [vmem:[%s0 + $0x1d8] sm:$0xf]
  %v128 = vld [vmem:[%s0 + $0x1dc] sm:$0xf]
  %v129 = vld [vmem:[%s0 + $0x1e0] sm:$0xf]
  %v130 = vld [vmem:[%s0 + $0x1e4] sm:$0xf]
  %v131 = vld [vmem:[%s0 + $0x1e8] sm:$0xf]
  %v132 = vld [vmem:[%s0 + $0x1ec] sm:$0xf]
  %v133 = vld [vmem:[%s0 + $0x1f0] sm:$0xf]
  %v134 = vld [vmem:[%s0 + $0x1f4] sm:$0xf]
  %v135 = vld [vmem:[%s0 + $0x1f8] sm:$0xf]
  %v136 = vld [vmem:[%s0 + $0x1fc] sm:$0xf]
  %v137 = vld [vmem:[%s0 + $0x200] sm:$0xf]
  %v138 = vld [vmem:[%s0 + $0x204] sm:$0xf]
  %v139 = vld [vmem:[%s0 + $0x208] sm:$0xf]
  %v140 = vld [vmem:[%s0 + $0x20c] sm:$0xf]
  %v141 = vld [vmem:[%s0 + $0x210] sm:$0xf]
  %v142 = vld [vmem:[%s0 + $0x214] sm:$0xf]
  %v143 = vld [vmem:[%s0 + $0x218] sm:$0xf]
  %v144 = vld [vmem:[%s0 + $0x21c] sm:$0xf]
  %v145 = vld [vmem:[%s0 + $0x220] sm:$0xf]
  %v146 = vld [vmem:[%s0 + $0x224] sm:$0xf]
  %v147 = vld [vmem:[%s0 + $0x228] sm:$0xf]
  %v148 = vld [vmem:[%s0 + $0x22c] sm:$0xf]
  %v149 = vld [vmem:[%s0 + $0x230] sm:$0xf]
  %v150 = vld [vmem:[%s0 + $0x234] sm:$0xf]
  %v151 = vld [vmem:[%s0 + $0x238] sm:$0xf]
  %v152 = vld [vmem:[%s0 + $0x23c] sm:$0xf]
  %v153 = vmax.bf16 %v9, %v12
  %v154 = vmax.bf16 %v10, %v13
  %v155 = vmax.bf16 %v11, %v14
  %v156 = vmax.bf16 %v15, %v18
  %v157 = vmax.bf16 %v16, %v19
  %v158 = vmax.bf16 %v17, %v20
  %v159 = vmax.bf16 %v21, %v24
  %v160 = vmax.bf16 %v22, %v25
  %v161 = vmax.bf16 %v23, %v26
  %v162 = vmax.bf16 %v27, %v30
  %v163 = vmax.bf16 %v28, %v31
  %v164 = vmax.bf16 %v29, %v32
  %v165 = vmax.bf16 %v33, %v36
  %v166 = vmax.bf16 %v34, %v37
  %v167 = vmax.bf16 %v35, %v38
  %v168 = vmax.bf16 %v39, %v42
  %v169 = vmax.bf16 %v40, %v43
  %v170 = vmax.bf16 %v41, %v44
  %v171 = vmax.bf16 %v45, %v48
  %v172 = vmax.bf16 %v46, %v49
  %v173 = vmax.bf16 %v47, %v50
  %v174 = vmax.bf16 %v51, %v54
  %v175 = vmax.bf16 %v52, %v55
  %v176 = vmax.bf16 %v53, %v56
  %v177 = vmax.bf16 %v57, %v60
  %v178 = vmax.bf16 %v58, %v61
  %v179 = vmax.bf16 %v59, %v62
  %v180 = vmax.bf16 %v63, %v66
  %v181 = vmax.bf16 %v64, %v67
  %v182 = vmax.bf16 %v65, %v68
  %v183 = vmax.bf16 %v69, %v72
  %v184 = vmax.bf16 %v70, %v73
  %v185 = vmax.bf16 %v71, %v74
  %v186 = vmax.bf16 %v75, %v78
  %v187 = vmax.bf16 %v76, %v79
  %v188 = vmax.bf16 %v77, %v80
  %v189 = vmax.bf16 %v81, %v84
  %v190 = vmax.bf16 %v82, %v85
  %v191 = vmax.bf16 %v83, %v86
  %v192 = vmax.bf16 %v87, %v90
  %v193 = vmax.bf16 %v88, %v91
  %v194 = vmax.bf16 %v89, %v92
  %v195 = vmax.bf16 %v93, %v96
  %v196 = vmax.bf16 %v94, %v97
  %v197 = vmax.bf16 %v95, %v98
  %v198 = vmax.bf16 %v99, %v102
  %v199 = vmax.bf16 %v100, %v103
  %v200 = vmax.bf16 %v101, %v104
  %v201 = vmax.bf16 %v105, %v108
  %v202 = vmax.bf16 %v106, %v109
  %v203 = vmax.bf16 %v107, %v110
  %v204 = vmax.bf16 %v111, %v114
  %v205 = vmax.bf16 %v112, %v115
  %v206 = vmax.bf16 %v113, %v116
  %v207 = vmax.bf16 %v117, %v120
  %v208 = vmax.bf16 %v118, %v121
  %v209 = vmax.bf16 %v119, %v122
  %v210 = vmax.bf16 %v123, %v126
  %v211 = vmax.bf16 %v124, %v127
  %v212 = vmax.bf16 %v125, %v128
  %v213 = vmax.bf16 %v129, %v132
  %v214 = vmax.bf16 %v130, %v133
  %v215 = vmax.bf16 %v131, %v134
  %v216 = vmax.bf16 %v135, %v138
  %v217 = vmax.bf16 %v136, %v139
  %v218 = vmax.bf16 %v137, %v140
  %v219 = vmax.bf16 %v141, %v144
  %v220 = vmax.bf16 %v142, %v145
  %v221 = vmax.bf16 %v143, %v146
  %v222 = vmax.bf16 %v147, %v150
  %v223 = vmax.bf16 %v148, %v151
  %v224 = vmax.bf16 %v149, %v152
  %v298 = vunpack.c.l.s4 1966171168
  %v299 = vunpack.c.0.s8 %v298
  %v300 = vlaneseq
  %v301 = vshrl.u32 %v300, 7
  %v302 = vsub.s32 %v299, %v301
  %v303 = vrot.slane %v153, %v302
  %v304 = vcombine.high %v303, %v303
  %v306 = vunpack.c.l.s4 1966171168
  %v307 = vunpack.c.0.s8 %v306
  %v308 = vlaneseq
  %v309 = vshrl.u32 %v308, 7
  %v310 = vsub.s32 %v307, %v309
  %v311 = vrot.slane %v303, %v310
  %v313 = vunpack.c.l.s4 1966171168
  %v314 = vunpack.c.0.s8 %v313
  %v315 = vlaneseq
  %v316 = vshrl.u32 %v315, 7
  %v317 = vsub.s32 %v314, %v316
  %v318 = vrot.slane %v304, %v317
  %v319 = vcombine.high %v311, %v311
  %v320 = vcombine.high %v318, %v318
  %v322 = vunpack.c.l.s4 1966171168
  %v323 = vunpack.c.0.s8 %v322
  %v324 = vlaneseq
  %v325 = vshrl.u32 %v324, 7
  %v326 = vsub.s32 %v323, %v325
  %v327 = vrot.slane %v154, %v326
  %v328 = vcombine.high %v327, %v327
  %v330 = vunpack.c.l.s4 1966171168
  %v331 = vunpack.c.0.s8 %v330
  %v332 = vlaneseq
  %v333 = vshrl.u32 %v332, 7
  %v334 = vsub.s32 %v331, %v333
  %v335 = vrot.slane %v327, %v334
  %v337 = vunpack.c.l.s4 1966171168
  %v338 = vunpack.c.0.s8 %v337
  %v339 = vlaneseq
  %v340 = vshrl.u32 %v339, 7
  %v341 = vsub.s32 %v338, %v340
  %v342 = vrot.slane %v328, %v341
  %v343 = vcombine.high %v335, %v335
  %v344 = vcombine.high %v342, %v342
  %v346 = vunpack.c.l.s4 1966171168
  %v347 = vunpack.c.0.s8 %v346
  %v348 = vlaneseq
  %v349 = vshrl.u32 %v348, 7
  %v350 = vsub.s32 %v347, %v349
  %v351 = vrot.slane %v155, %v350
  %v352 = vcombine.high %v351, %v351
  %v354 = vunpack.c.l.s4 1966171168
  %v355 = vunpack.c.0.s8 %v354
  %v356 = vlaneseq
  %v357 = vshrl.u32 %v356, 7
  %v358 = vsub.s32 %v355, %v357
  %v359 = vrot.slane %v351, %v358
  %v361 = vunpack.c.l.s4 1966171168
  %v362 = vunpack.c.0.s8 %v361
  %v363 = vlaneseq
  %v364 = vshrl.u32 %v363, 7
  %v365 = vsub.s32 %v362, %v364
  %v366 = vrot.slane %v352, %v365
  %v367 = vcombine.high %v359, %v359
  %v368 = vcombine.high %v366, %v366
  %v370 = vunpack.c.l.s4 1966171168
  %v371 = vunpack.c.0.s8 %v370
  %v372 = vlaneseq
  %v373 = vshrl.u32 %v372, 7
  %v374 = vsub.s32 %v371, %v373
  %v375 = vrot.slane %v156, %v374
  %v376 = vcombine.high %v375, %v375
  %v378 = vunpack.c.l.s4 1966171168
  %v379 = vunpack.c.0.s8 %v378
  %v380 = vlaneseq
  %v381 = vshrl.u32 %v380, 7
  %v382 = vsub.s32 %v379, %v381
  %v383 = vrot.slane %v375, %v382
  %v385 = vunpack.c.l.s4 1966171168
  %v386 = vunpack.c.0.s8 %v385
  %v387 = vlaneseq
  %v388 = vshrl.u32 %v387, 7
  %v389 = vsub.s32 %v386, %v388
  %v390 = vrot.slane %v376, %v389
  %v391 = vcombine.high %v383, %v383
  %v392 = vcombine.high %v390, %v390
  %v394 = vunpack.c.l.s4 1966171168
  %v395 = vunpack.c.0.s8 %v394
  %v396 = vlaneseq
  %v397 = vshrl.u32 %v396, 7
  %v398 = vsub.s32 %v395, %v397
  %v399 = vrot.slane %v157, %v398
  %v400 = vcombine.high %v399, %v399
  %v402 = vunpack.c.l.s4 1966171168
  %v403 = vunpack.c.0.s8 %v402
  %v404 = vlaneseq
  %v405 = vshrl.u32 %v404, 7
  %v406 = vsub.s32 %v403, %v405
  %v407 = vrot.slane %v399, %v406
  %v409 = vunpack.c.l.s4 1966171168
  %v410 = vunpack.c.0.s8 %v409
  %v411 = vlaneseq
  %v412 = vshrl.u32 %v411, 7
  %v413 = vsub.s32 %v410, %v412
  %v414 = vrot.slane %v400, %v413
  %v415 = vcombine.high %v407, %v407
  %v416 = vcombine.high %v414, %v414
  %v418 = vunpack.c.l.s4 1966171168
  %v419 = vunpack.c.0.s8 %v418
  %v420 = vlaneseq
  %v421 = vshrl.u32 %v420, 7
  %v422 = vsub.s32 %v419, %v421
  %v423 = vrot.slane %v158, %v422
  %v424 = vcombine.high %v423, %v423
  %v426 = vunpack.c.l.s4 1966171168
  %v427 = vunpack.c.0.s8 %v426
  %v428 = vlaneseq
  %v429 = vshrl.u32 %v428, 7
  %v430 = vsub.s32 %v427, %v429
  %v431 = vrot.slane %v423, %v430
  %v433 = vunpack.c.l.s4 1966171168
  %v434 = vunpack.c.0.s8 %v433
  %v435 = vlaneseq
  %v436 = vshrl.u32 %v435, 7
  %v437 = vsub.s32 %v434, %v436
  %v438 = vrot.slane %v424, %v437
  %v439 = vcombine.high %v431, %v431
  %v440 = vcombine.high %v438, %v438
  %v442 = vunpack.c.l.s4 1966171168
  %v443 = vunpack.c.0.s8 %v442
  %v444 = vlaneseq
  %v445 = vshrl.u32 %v444, 7
  %v446 = vsub.s32 %v443, %v445
  %v447 = vrot.slane %v159, %v446
  %v448 = vcombine.high %v447, %v447
  %v450 = vunpack.c.l.s4 1966171168
  %v451 = vunpack.c.0.s8 %v450
  %v452 = vlaneseq
  %v453 = vshrl.u32 %v452, 7
  %v454 = vsub.s32 %v451, %v453
  %v455 = vrot.slane %v447, %v454
  %v457 = vunpack.c.l.s4 1966171168
  %v458 = vunpack.c.0.s8 %v457
  %v459 = vlaneseq
  %v460 = vshrl.u32 %v459, 7
  %v461 = vsub.s32 %v458, %v460
  %v462 = vrot.slane %v448, %v461
  %v463 = vcombine.high %v455, %v455
  %v464 = vcombine.high %v462, %v462
  %v466 = vunpack.c.l.s4 1966171168
  %v467 = vunpack.c.0.s8 %v466
  %v468 = vlaneseq
  %v469 = vshrl.u32 %v468, 7
  %v470 = vsub.s32 %v467, %v469
  %v471 = vrot.slane %v160, %v470
  %v472 = vcombine.high %v471, %v471
  %v474 = vunpack.c.l.s4 1966171168
  %v475 = vunpack.c.0.s8 %v474
  %v476 = vlaneseq
  %v477 = vshrl.u32 %v476, 7
  %v478 = vsub.s32 %v475, %v477
  %v479 = vrot.slane %v471, %v478
  %v481 = vunpack.c.l.s4 1966171168
  %v482 = vunpack.c.0.s8 %v481
  %v483 = vlaneseq
  %v484 = vshrl.u32 %v483, 7
  %v485 = vsub.s32 %v482, %v484
  %v486 = vrot.slane %v472, %v485
  %v487 = vcombine.high %v479, %v479
  %v488 = vcombine.high %v486, %v486
  %v490 = vunpack.c.l.s4 1966171168
  %v491 = vunpack.c.0.s8 %v490
  %v492 = vlaneseq
  %v493 = vshrl.u32 %v492, 7
  %v494 = vsub.s32 %v491, %v493
  %v495 = vrot.slane %v161, %v494
  %v496 = vcombine.high %v495, %v495
  %v498 = vunpack.c.l.s4 1966171168
  %v499 = vunpack.c.0.s8 %v498
  %v500 = vlaneseq
  %v501 = vshrl.u32 %v500, 7
  %v502 = vsub.s32 %v499, %v501
  %v503 = vrot.slane %v495, %v502
  %v505 = vunpack.c.l.s4 1966171168
  %v506 = vunpack.c.0.s8 %v505
  %v507 = vlaneseq
  %v508 = vshrl.u32 %v507, 7
  %v509 = vsub.s32 %v506, %v508
  %v510 = vrot.slane %v496, %v509
  %v511 = vcombine.high %v503, %v503
  %v512 = vcombine.high %v510, %v510
  %v514 = vunpack.c.l.s4 1966171168
  %v515 = vunpack.c.0.s8 %v514
  %v516 = vlaneseq
  %v517 = vshrl.u32 %v516, 7
  %v518 = vsub.s32 %v515, %v517
  %v519 = vrot.slane %v162, %v518
  %v520 = vcombine.high %v519, %v519
  %v522 = vunpack.c.l.s4 1966171168
  %v523 = vunpack.c.0.s8 %v522
  %v524 = vlaneseq
  %v525 = vshrl.u32 %v524, 7
  %v526 = vsub.s32 %v523, %v525
  %v527 = vrot.slane %v519, %v526
  %v529 = vunpack.c.l.s4 1966171168
  %v530 = vunpack.c.0.s8 %v529
  %v531 = vlaneseq
  %v532 = vshrl.u32 %v531, 7
  %v533 = vsub.s32 %v530, %v532
  %v534 = vrot.slane %v520, %v533
  %v535 = vcombine.high %v527, %v527
  %v536 = vcombine.high %v534, %v534
  %v538 = vunpack.c.l.s4 1966171168
  %v539 = vunpack.c.0.s8 %v538
  %v540 = vlaneseq
  %v541 = vshrl.u32 %v540, 7
  %v542 = vsub.s32 %v539, %v541
  %v543 = vrot.slane %v163, %v542
  %v544 = vcombine.high %v543, %v543
  %v546 = vunpack.c.l.s4 1966171168
  %v547 = vunpack.c.0.s8 %v546
  %v548 = vlaneseq
  %v549 = vshrl.u32 %v548, 7
  %v550 = vsub.s32 %v547, %v549
  %v551 = vrot.slane %v543, %v550
  %v553 = vunpack.c.l.s4 1966171168
  %v554 = vunpack.c.0.s8 %v553
  %v555 = vlaneseq
  %v556 = vshrl.u32 %v555, 7
  %v557 = vsub.s32 %v554, %v556
  %v558 = vrot.slane %v544, %v557
  %v559 = vcombine.high %v551, %v551
  %v560 = vcombine.high %v558, %v558
  %v562 = vunpack.c.l.s4 1966171168
  %v563 = vunpack.c.0.s8 %v562
  %v564 = vlaneseq
  %v565 = vshrl.u32 %v564, 7
  %v566 = vsub.s32 %v563, %v565
  %v567 = vrot.slane %v164, %v566
  %v568 = vcombine.high %v567, %v567
  %v570 = vunpack.c.l.s4 1966171168
  %v571 = vunpack.c.0.s8 %v570
  %v572 = vlaneseq
  %v573 = vshrl.u32 %v572, 7
  %v574 = vsub.s32 %v571, %v573
  %v575 = vrot.slane %v567, %v574
  %v577 = vunpack.c.l.s4 1966171168
  %v578 = vunpack.c.0.s8 %v577
  %v579 = vlaneseq
  %v580 = vshrl.u32 %v579, 7
  %v581 = vsub.s32 %v578, %v580
  %v582 = vrot.slane %v568, %v581
  %v583 = vcombine.high %v575, %v575
  %v584 = vcombine.high %v582, %v582
  %v586 = vunpack.c.l.s4 1966171168
  %v587 = vunpack.c.0.s8 %v586
  %v588 = vlaneseq
  %v589 = vshrl.u32 %v588, 7
  %v590 = vsub.s32 %v587, %v589
  %v591 = vrot.slane %v165, %v590
  %v592 = vcombine.high %v591, %v591
  %v594 = vunpack.c.l.s4 1966171168
  %v595 = vunpack.c.0.s8 %v594
  %v596 = vlaneseq
  %v597 = vshrl.u32 %v596, 7
  %v598 = vsub.s32 %v595, %v597
  %v599 = vrot.slane %v591, %v598
  %v601 = vunpack.c.l.s4 1966171168
  %v602 = vunpack.c.0.s8 %v601
  %v603 = vlaneseq
  %v604 = vshrl.u32 %v603, 7
  %v605 = vsub.s32 %v602, %v604
  %v606 = vrot.slane %v592, %v605
  %v607 = vcombine.high %v599, %v599
  %v608 = vcombine.high %v606, %v606
  %v610 = vunpack.c.l.s4 1966171168
  %v611 = vunpack.c.0.s8 %v610
  %v612 = vlaneseq
  %v613 = vshrl.u32 %v612, 7
  %v614 = vsub.s32 %v611, %v613
  %v615 = vrot.slane %v166, %v614
  %v616 = vcombine.high %v615, %v615
  %v618 = vunpack.c.l.s4 1966171168
  %v619 = vunpack.c.0.s8 %v618
  %v620 = vlaneseq
  %v621 = vshrl.u32 %v620, 7
  %v622 = vsub.s32 %v619, %v621
  %v623 = vrot.slane %v615, %v622
  %v625 = vunpack.c.l.s4 1966171168
  %v626 = vunpack.c.0.s8 %v625
  %v627 = vlaneseq
  %v628 = vshrl.u32 %v627, 7
  %v629 = vsub.s32 %v626, %v628
  %v630 = vrot.slane %v616, %v629
  %v631 = vcombine.high %v623, %v623
  %v632 = vcombine.high %v630, %v630
  %v634 = vunpack.c.l.s4 1966171168
  %v635 = vunpack.c.0.s8 %v634
  %v636 = vlaneseq
  %v637 = vshrl.u32 %v636, 7
  %v638 = vsub.s32 %v635, %v637
  %v639 = vrot.slane %v167, %v638
  %v640 = vcombine.high %v639, %v639
  %v642 = vunpack.c.l.s4 1966171168
  %v643 = vunpack.c.0.s8 %v642
  %v644 = vlaneseq
  %v645 = vshrl.u32 %v644, 7
  %v646 = vsub.s32 %v643, %v645
  %v647 = vrot.slane %v639, %v646
  %v649 = vunpack.c.l.s4 1966171168
  %v650 = vunpack.c.0.s8 %v649
  %v651 = vlaneseq
  %v652 = vshrl.u32 %v651, 7
  %v653 = vsub.s32 %v650, %v652
  %v654 = vrot.slane %v640, %v653
  %v655 = vcombine.high %v647, %v647
  %v656 = vcombine.high %v654, %v654
  %v658 = vunpack.c.l.s4 1966171168
  %v659 = vunpack.c.0.s8 %v658
  %v660 = vlaneseq
  %v661 = vshrl.u32 %v660, 7
  %v662 = vsub.s32 %v659, %v661
  %v663 = vrot.slane %v168, %v662
  %v664 = vcombine.high %v663, %v663
  %v666 = vunpack.c.l.s4 1966171168
  %v667 = vunpack.c.0.s8 %v666
  %v668 = vlaneseq
  %v669 = vshrl.u32 %v668, 7
  %v670 = vsub.s32 %v667, %v669
  %v671 = vrot.slane %v663, %v670
  %v673 = vunpack.c.l.s4 1966171168
  %v674 = vunpack.c.0.s8 %v673
  %v675 = vlaneseq
  %v676 = vshrl.u32 %v675, 7
  %v677 = vsub.s32 %v674, %v676
  %v678 = vrot.slane %v664, %v677
  %v679 = vcombine.high %v671, %v671
  %v680 = vcombine.high %v678, %v678
  %v682 = vunpack.c.l.s4 1966171168
  %v683 = vunpack.c.0.s8 %v682
  %v684 = vlaneseq
  %v685 = vshrl.u32 %v684, 7
  %v686 = vsub.s32 %v683, %v685
  %v687 = vrot.slane %v169, %v686
  %v688 = vcombine.high %v687, %v687
  %v690 = vunpack.c.l.s4 1966171168
  %v691 = vunpack.c.0.s8 %v690
  %v692 = vlaneseq
  %v693 = vshrl.u32 %v692, 7
  %v694 = vsub.s32 %v691, %v693
  %v695 = vrot.slane %v687, %v694
  %v697 = vunpack.c.l.s4 1966171168
  %v698 = vunpack.c.0.s8 %v697
  %v699 = vlaneseq
  %v700 = vshrl.u32 %v699, 7
  %v701 = vsub.s32 %v698, %v700
  %v702 = vrot.slane %v688, %v701
  %v703 = vcombine.high %v695, %v695
  %v704 = vcombine.high %v702, %v702
  %v706 = vunpack.c.l.s4 1966171168
  %v707 = vunpack.c.0.s8 %v706
  %v708 = vlaneseq
  %v709 = vshrl.u32 %v708, 7
  %v710 = vsub.s32 %v707, %v709
  %v711 = vrot.slane %v170, %v710
  %v712 = vcombine.high %v711, %v711
  %v714 = vunpack.c.l.s4 1966171168
  %v715 = vunpack.c.0.s8 %v714
  %v716 = vlaneseq
  %v717 = vshrl.u32 %v716, 7
  %v718 = vsub.s32 %v715, %v717
  %v719 = vrot.slane %v711, %v718
  %v721 = vunpack.c.l.s4 1966171168
  %v722 = vunpack.c.0.s8 %v721
  %v723 = vlaneseq
  %v724 = vshrl.u32 %v723, 7
  %v725 = vsub.s32 %v722, %v724
  %v726 = vrot.slane %v712, %v725
  %v727 = vcombine.high %v719, %v719
  %v728 = vcombine.high %v726, %v726
  %v730 = vunpack.c.l.s4 1966171168
  %v731 = vunpack.c.0.s8 %v730
  %v732 = vlaneseq
  %v733 = vshrl.u32 %v732, 7
  %v734 = vsub.s32 %v731, %v733
  %v735 = vrot.slane %v171, %v734
  %v736 = vcombine.high %v735, %v735
  %v738 = vunpack.c.l.s4 1966171168
  %v739 = vunpack.c.0.s8 %v738
  %v740 = vlaneseq
  %v741 = vshrl.u32 %v740, 7
  %v742 = vsub.s32 %v739, %v741
  %v743 = vrot.slane %v735, %v742
  %v745 = vunpack.c.l.s4 1966171168
  %v746 = vunpack.c.0.s8 %v745
  %v747 = vlaneseq
  %v748 = vshrl.u32 %v747, 7
  %v749 = vsub.s32 %v746, %v748
  %v750 = vrot.slane %v736, %v749
  %v751 = vcombine.high %v743, %v743
  %v752 = vcombine.high %v750, %v750
  %v754 = vunpack.c.l.s4 1966171168
  %v755 = vunpack.c.0.s8 %v754
  %v756 = vlaneseq
  %v757 = vshrl.u32 %v756, 7
  %v758 = vsub.s32 %v755, %v757
  %v759 = vrot.slane %v172, %v758
  %v760 = vcombine.high %v759, %v759
  %v762 = vunpack.c.l.s4 1966171168
  %v763 = vunpack.c.0.s8 %v762
  %v764 = vlaneseq
  %v765 = vshrl.u32 %v764, 7
  %v766 = vsub.s32 %v763, %v765
  %v767 = vrot.slane %v759, %v766
  %v769 = vunpack.c.l.s4 1966171168
  %v770 = vunpack.c.0.s8 %v769
  %v771 = vlaneseq
  %v772 = vshrl.u32 %v771, 7
  %v773 = vsub.s32 %v770, %v772
  %v774 = vrot.slane %v760, %v773
  %v775 = vcombine.high %v767, %v767
  %v776 = vcombine.high %v774, %v774
  %v778 = vunpack.c.l.s4 1966171168
  %v779 = vunpack.c.0.s8 %v778
  %v780 = vlaneseq
  %v781 = vshrl.u32 %v780, 7
  %v782 = vsub.s32 %v779, %v781
  %v783 = vrot.slane %v173, %v782
  %v784 = vcombine.high %v783, %v783
  %v786 = vunpack.c.l.s4 1966171168
  %v787 = vunpack.c.0.s8 %v786
  %v788 = vlaneseq
  %v789 = vshrl.u32 %v788, 7
  %v790 = vsub.s32 %v787, %v789
  %v791 = vrot.slane %v783, %v790
  %v793 = vunpack.c.l.s4 1966171168
  %v794 = vunpack.c.0.s8 %v793
  %v795 = vlaneseq
  %v796 = vshrl.u32 %v795, 7
  %v797 = vsub.s32 %v794, %v796
  %v798 = vrot.slane %v784, %v797
  %v799 = vcombine.high %v791, %v791
  %v800 = vcombine.high %v798, %v798
  %v802 = vunpack.c.l.s4 1966171168
  %v803 = vunpack.c.0.s8 %v802
  %v804 = vlaneseq
  %v805 = vshrl.u32 %v804, 7
  %v806 = vsub.s32 %v803, %v805
  %v807 = vrot.slane %v174, %v806
  %v808 = vcombine.high %v807, %v807
  %v810 = vunpack.c.l.s4 1966171168
  %v811 = vunpack.c.0.s8 %v810
  %v812 = vlaneseq
  %v813 = vshrl.u32 %v812, 7
  %v814 = vsub.s32 %v811, %v813
  %v815 = vrot.slane %v807, %v814
  %v817 = vunpack.c.l.s4 1966171168
  %v818 = vunpack.c.0.s8 %v817
  %v819 = vlaneseq
  %v820 = vshrl.u32 %v819, 7
  %v821 = vsub.s32 %v818, %v820
  %v822 = vrot.slane %v808, %v821
  %v823 = vcombine.high %v815, %v815
  %v824 = vcombine.high %v822, %v822
  %v826 = vunpack.c.l.s4 1966171168
  %v827 = vunpack.c.0.s8 %v826
  %v828 = vlaneseq
  %v829 = vshrl.u32 %v828, 7
  %v830 = vsub.s32 %v827, %v829
  %v831 = vrot.slane %v175, %v830
  %v832 = vcombine.high %v831, %v831
  %v834 = vunpack.c.l.s4 1966171168
  %v835 = vunpack.c.0.s8 %v834
  %v836 = vlaneseq
  %v837 = vshrl.u32 %v836, 7
  %v838 = vsub.s32 %v835, %v837
  %v839 = vrot.slane %v831, %v838
  %v841 = vunpack.c.l.s4 1966171168
  %v842 = vunpack.c.0.s8 %v841
  %v843 = vlaneseq
  %v844 = vshrl.u32 %v843, 7
  %v845 = vsub.s32 %v842, %v844
  %v846 = vrot.slane %v832, %v845
  %v847 = vcombine.high %v839, %v839
  %v848 = vcombine.high %v846, %v846
  %v850 = vunpack.c.l.s4 1966171168
  %v851 = vunpack.c.0.s8 %v850
  %v852 = vlaneseq
  %v853 = vshrl.u32 %v852, 7
  %v854 = vsub.s32 %v851, %v853
  %v855 = vrot.slane %v176, %v854
  %v856 = vcombine.high %v855, %v855
  %v858 = vunpack.c.l.s4 1966171168
  %v859 = vunpack.c.0.s8 %v858
  %v860 = vlaneseq
  %v861 = vshrl.u32 %v860, 7
  %v862 = vsub.s32 %v859, %v861
  %v863 = vrot.slane %v855, %v862
  %v865 = vunpack.c.l.s4 1966171168
  %v866 = vunpack.c.0.s8 %v865
  %v867 = vlaneseq
  %v868 = vshrl.u32 %v867, 7
  %v869 = vsub.s32 %v866, %v868
  %v870 = vrot.slane %v856, %v869
  %v871 = vcombine.high %v863, %v863
  %v872 = vcombine.high %v870, %v870
  %v874 = vunpack.c.l.s4 1966171168
  %v875 = vunpack.c.0.s8 %v874
  %v876 = vlaneseq
  %v877 = vshrl.u32 %v876, 7
  %v878 = vsub.s32 %v875, %v877
  %v879 = vrot.slane %v177, %v878
  %v880 = vcombine.high %v879, %v879
  %v882 = vunpack.c.l.s4 1966171168
  %v883 = vunpack.c.0.s8 %v882
  %v884 = vlaneseq
  %v885 = vshrl.u32 %v884, 7
  %v886 = vsub.s32 %v883, %v885
  %v887 = vrot.slane %v879, %v886
  %v889 = vunpack.c.l.s4 1966171168
  %v890 = vunpack.c.0.s8 %v889
  %v891 = vlaneseq
  %v892 = vshrl.u32 %v891, 7
  %v893 = vsub.s32 %v890, %v892
  %v894 = vrot.slane %v880, %v893
  %v895 = vcombine.high %v887, %v887
  %v896 = vcombine.high %v894, %v894
  %v898 = vunpack.c.l.s4 1966171168
  %v899 = vunpack.c.0.s8 %v898
  %v900 = vlaneseq
  %v901 = vshrl.u32 %v900, 7
  %v902 = vsub.s32 %v899, %v901
  %v903 = vrot.slane %v178, %v902
  %v904 = vcombine.high %v903, %v903
  %v906 = vunpack.c.l.s4 1966171168
  %v907 = vunpack.c.0.s8 %v906
  %v908 = vlaneseq
  %v909 = vshrl.u32 %v908, 7
  %v910 = vsub.s32 %v907, %v909
  %v911 = vrot.slane %v903, %v910
  %v913 = vunpack.c.l.s4 1966171168
  %v914 = vunpack.c.0.s8 %v913
  %v915 = vlaneseq
  %v916 = vshrl.u32 %v915, 7
  %v917 = vsub.s32 %v914, %v916
  %v918 = vrot.slane %v904, %v917
  %v919 = vcombine.high %v911, %v911
  %v920 = vcombine.high %v918, %v918
  %v922 = vunpack.c.l.s4 1966171168
  %v923 = vunpack.c.0.s8 %v922
  %v924 = vlaneseq
  %v925 = vshrl.u32 %v924, 7
  %v926 = vsub.s32 %v923, %v925
  %v927 = vrot.slane %v179, %v926
  %v928 = vcombine.high %v927, %v927
  %v930 = vunpack.c.l.s4 1966171168
  %v931 = vunpack.c.0.s8 %v930
  %v932 = vlaneseq
  %v933 = vshrl.u32 %v932, 7
  %v934 = vsub.s32 %v931, %v933
  %v935 = vrot.slane %v927, %v934
  %v937 = vunpack.c.l.s4 1966171168
  %v938 = vunpack.c.0.s8 %v937
  %v939 = vlaneseq
  %v940 = vshrl.u32 %v939, 7
  %v941 = vsub.s32 %v938, %v940
  %v942 = vrot.slane %v928, %v941
  %v943 = vcombine.high %v935, %v935
  %v944 = vcombine.high %v942, %v942
  %v946 = vunpack.c.l.s4 1966171168
  %v947 = vunpack.c.0.s8 %v946
  %v948 = vlaneseq
  %v949 = vshrl.u32 %v948, 7
  %v950 = vsub.s32 %v947, %v949
  %v951 = vrot.slane %v180, %v950
  %v952 = vcombine.high %v951, %v951
  %v954 = vunpack.c.l.s4 1966171168
  %v955 = vunpack.c.0.s8 %v954
  %v956 = vlaneseq
  %v957 = vshrl.u32 %v956, 7
  %v958 = vsub.s32 %v955, %v957
  %v959 = vrot.slane %v951, %v958
  %v961 = vunpack.c.l.s4 1966171168
  %v962 = vunpack.c.0.s8 %v961
  %v963 = vlaneseq
  %v964 = vshrl.u32 %v963, 7
  %v965 = vsub.s32 %v962, %v964
  %v966 = vrot.slane %v952, %v965
  %v967 = vcombine.high %v959, %v959
  %v968 = vcombine.high %v966, %v966
  %v970 = vunpack.c.l.s4 1966171168
  %v971 = vunpack.c.0.s8 %v970
  %v972 = vlaneseq
  %v973 = vshrl.u32 %v972, 7
  %v974 = vsub.s32 %v971, %v973
  %v975 = vrot.slane %v181, %v974
  %v976 = vcombine.high %v975, %v975
  %v978 = vunpack.c.l.s4 1966171168
  %v979 = vunpack.c.0.s8 %v978
  %v980 = vlaneseq
  %v981 = vshrl.u32 %v980, 7
  %v982 = vsub.s32 %v979, %v981
  %v983 = vrot.slane %v975, %v982
  %v985 = vunpack.c.l.s4 1966171168
  %v986 = vunpack.c.0.s8 %v985
  %v987 = vlaneseq
  %v988 = vshrl.u32 %v987, 7
  %v989 = vsub.s32 %v986, %v988
  %v990 = vrot.slane %v976, %v989
  %v991 = vcombine.high %v983, %v983
  %v992 = vcombine.high %v990, %v990
  %v994 = vunpack.c.l.s4 1966171168
  %v995 = vunpack.c.0.s8 %v994
  %v996 = vlaneseq
  %v997 = vshrl.u32 %v996, 7
  %v998 = vsub.s32 %v995, %v997
  %v999 = vrot.slane %v182, %v998
  %v1000 = vcombine.high %v999, %v999
  %v1002 = vunpack.c.l.s4 1966171168
  %v1003 = vunpack.c.0.s8 %v1002
  %v1004 = vlaneseq
  %v1005 = vshrl.u32 %v1004, 7
  %v1006 = vsub.s32 %v1003, %v1005
  %v1007 = vrot.slane %v999, %v1006
  %v1009 = vunpack.c.l.s4 1966171168
  %v1010 = vunpack.c.0.s8 %v1009
  %v1011 = vlaneseq
  %v1012 = vshrl.u32 %v1011, 7
  %v1013 = vsub.s32 %v1010, %v1012
  %v1014 = vrot.slane %v1000, %v1013
  %v1015 = vcombine.high %v1007, %v1007
  %v1016 = vcombine.high %v1014, %v1014
  %v1018 = vunpack.c.l.s4 1966171168
  %v1019 = vunpack.c.0.s8 %v1018
  %v1020 = vlaneseq
  %v1021 = vshrl.u32 %v1020, 7
  %v1022 = vsub.s32 %v1019, %v1021
  %v1023 = vrot.slane %v183, %v1022
  %v1024 = vcombine.high %v1023, %v1023
  %v1026 = vunpack.c.l.s4 1966171168
  %v1027 = vunpack.c.0.s8 %v1026
  %v1028 = vlaneseq
  %v1029 = vshrl.u32 %v1028, 7
  %v1030 = vsub.s32 %v1027, %v1029
  %v1031 = vrot.slane %v1023, %v1030
  %v1033 = vunpack.c.l.s4 1966171168
  %v1034 = vunpack.c.0.s8 %v1033
  %v1035 = vlaneseq
  %v1036 = vshrl.u32 %v1035, 7
  %v1037 = vsub.s32 %v1034, %v1036
  %v1038 = vrot.slane %v1024, %v1037
  %v1039 = vcombine.high %v1031, %v1031
  %v1040 = vcombine.high %v1038, %v1038
  %v1042 = vunpack.c.l.s4 1966171168
  %v1043 = vunpack.c.0.s8 %v1042
  %v1044 = vlaneseq
  %v1045 = vshrl.u32 %v1044, 7
  %v1046 = vsub.s32 %v1043, %v1045
  %v1047 = vrot.slane %v184, %v1046
  %v1048 = vcombine.high %v1047, %v1047
  %v1050 = vunpack.c.l.s4 1966171168
  %v1051 = vunpack.c.0.s8 %v1050
  %v1052 = vlaneseq
  %v1053 = vshrl.u32 %v1052, 7
  %v1054 = vsub.s32 %v1051, %v1053
  %v1055 = vrot.slane %v1047, %v1054
  %v1057 = vunpack.c.l.s4 1966171168
  %v1058 = vunpack.c.0.s8 %v1057
  %v1059 = vlaneseq
  %v1060 = vshrl.u32 %v1059, 7
  %v1061 = vsub.s32 %v1058, %v1060
  %v1062 = vrot.slane %v1048, %v1061
  %v1063 = vcombine.high %v1055, %v1055
  %v1064 = vcombine.high %v1062, %v1062
  %v1066 = vunpack.c.l.s4 1966171168
  %v1067 = vunpack.c.0.s8 %v1066
  %v1068 = vlaneseq
  %v1069 = vshrl.u32 %v1068, 7
  %v1070 = vsub.s32 %v1067, %v1069
  %v1071 = vrot.slane %v185, %v1070
  %v1072 = vcombine.high %v1071, %v1071
  %v1074 = vunpack.c.l.s4 1966171168
  %v1075 = vunpack.c.0.s8 %v1074
  %v1076 = vlaneseq
  %v1077 = vshrl.u32 %v1076, 7
  %v1078 = vsub.s32 %v1075, %v1077
  %v1079 = vrot.slane %v1071, %v1078
  %v1081 = vunpack.c.l.s4 1966171168
  %v1082 = vunpack.c.0.s8 %v1081
  %v1083 = vlaneseq
  %v1084 = vshrl.u32 %v1083, 7
  %v1085 = vsub.s32 %v1082, %v1084
  %v1086 = vrot.slane %v1072, %v1085
  %v1087 = vcombine.high %v1079, %v1079
  %v1088 = vcombine.high %v1086, %v1086
  %v1090 = vunpack.c.l.s4 1966171168
  %v1091 = vunpack.c.0.s8 %v1090
  %v1092 = vlaneseq
  %v1093 = vshrl.u32 %v1092, 7
  %v1094 = vsub.s32 %v1091, %v1093
  %v1095 = vrot.slane %v186, %v1094
  %v1096 = vcombine.high %v1095, %v1095
  %v1098 = vunpack.c.l.s4 1966171168
  %v1099 = vunpack.c.0.s8 %v1098
  %v1100 = vlaneseq
  %v1101 = vshrl.u32 %v1100, 7
  %v1102 = vsub.s32 %v1099, %v1101
  %v1103 = vrot.slane %v1095, %v1102
  %v1105 = vunpack.c.l.s4 1966171168
  %v1106 = vunpack.c.0.s8 %v1105
  %v1107 = vlaneseq
  %v1108 = vshrl.u32 %v1107, 7
  %v1109 = vsub.s32 %v1106, %v1108
  %v1110 = vrot.slane %v1096, %v1109
  %v1111 = vcombine.high %v1103, %v1103
  %v1112 = vcombine.high %v1110, %v1110
  %v1114 = vunpack.c.l.s4 1966171168
  %v1115 = vunpack.c.0.s8 %v1114
  %v1116 = vlaneseq
  %v1117 = vshrl.u32 %v1116, 7
  %v1118 = vsub.s32 %v1115, %v1117
  %v1119 = vrot.slane %v187, %v1118
  %v1120 = vcombine.high %v1119, %v1119
  %v1122 = vunpack.c.l.s4 1966171168
  %v1123 = vunpack.c.0.s8 %v1122
  %v1124 = vlaneseq
  %v1125 = vshrl.u32 %v1124, 7
  %v1126 = vsub.s32 %v1123, %v1125
  %v1127 = vrot.slane %v1119, %v1126
  %v1129 = vunpack.c.l.s4 1966171168
  %v1130 = vunpack.c.0.s8 %v1129
  %v1131 = vlaneseq
  %v1132 = vshrl.u32 %v1131, 7
  %v1133 = vsub.s32 %v1130, %v1132
  %v1134 = vrot.slane %v1120, %v1133
  %v1135 = vcombine.high %v1127, %v1127
  %v1136 = vcombine.high %v1134, %v1134
  %v1138 = vunpack.c.l.s4 1966171168
  %v1139 = vunpack.c.0.s8 %v1138
  %v1140 = vlaneseq
  %v1141 = vshrl.u32 %v1140, 7
  %v1142 = vsub.s32 %v1139, %v1141
  %v1143 = vrot.slane %v188, %v1142
  %v1144 = vcombine.high %v1143, %v1143
  %v1146 = vunpack.c.l.s4 1966171168
  %v1147 = vunpack.c.0.s8 %v1146
  %v1148 = vlaneseq
  %v1149 = vshrl.u32 %v1148, 7
  %v1150 = vsub.s32 %v1147, %v1149
  %v1151 = vrot.slane %v1143, %v1150
  %v1153 = vunpack.c.l.s4 1966171168
  %v1154 = vunpack.c.0.s8 %v1153
  %v1155 = vlaneseq
  %v1156 = vshrl.u32 %v1155, 7
  %v1157 = vsub.s32 %v1154, %v1156
  %v1158 = vrot.slane %v1144, %v1157
  %v1159 = vcombine.high %v1151, %v1151
  %v1160 = vcombine.high %v1158, %v1158
  %v1162 = vunpack.c.l.s4 1966171168
  %v1163 = vunpack.c.0.s8 %v1162
  %v1164 = vlaneseq
  %v1165 = vshrl.u32 %v1164, 7
  %v1166 = vsub.s32 %v1163, %v1165
  %v1167 = vrot.slane %v189, %v1166
  %v1168 = vcombine.high %v1167, %v1167
  %v1170 = vunpack.c.l.s4 1966171168
  %v1171 = vunpack.c.0.s8 %v1170
  %v1172 = vlaneseq
  %v1173 = vshrl.u32 %v1172, 7
  %v1174 = vsub.s32 %v1171, %v1173
  %v1175 = vrot.slane %v1167, %v1174
  %v1177 = vunpack.c.l.s4 1966171168
  %v1178 = vunpack.c.0.s8 %v1177
  %v1179 = vlaneseq
  %v1180 = vshrl.u32 %v1179, 7
  %v1181 = vsub.s32 %v1178, %v1180
  %v1182 = vrot.slane %v1168, %v1181
  %v1183 = vcombine.high %v1175, %v1175
  %v1184 = vcombine.high %v1182, %v1182
  %v1186 = vunpack.c.l.s4 1966171168
  %v1187 = vunpack.c.0.s8 %v1186
  %v1188 = vlaneseq
  %v1189 = vshrl.u32 %v1188, 7
  %v1190 = vsub.s32 %v1187, %v1189
  %v1191 = vrot.slane %v190, %v1190
  %v1192 = vcombine.high %v1191, %v1191
  %v1194 = vunpack.c.l.s4 1966171168
  %v1195 = vunpack.c.0.s8 %v1194
  %v1196 = vlaneseq
  %v1197 = vshrl.u32 %v1196, 7
  %v1198 = vsub.s32 %v1195, %v1197
  %v1199 = vrot.slane %v1191, %v1198
  %v1201 = vunpack.c.l.s4 1966171168
  %v1202 = vunpack.c.0.s8 %v1201
  %v1203 = vlaneseq
  %v1204 = vshrl.u32 %v1203, 7
  %v1205 = vsub.s32 %v1202, %v1204
  %v1206 = vrot.slane %v1192, %v1205
  %v1207 = vcombine.high %v1199, %v1199
  %v1208 = vcombine.high %v1206, %v1206
  %v1210 = vunpack.c.l.s4 1966171168
  %v1211 = vunpack.c.0.s8 %v1210
  %v1212 = vlaneseq
  %v1213 = vshrl.u32 %v1212, 7
  %v1214 = vsub.s32 %v1211, %v1213
  %v1215 = vrot.slane %v191, %v1214
  %v1216 = vcombine.high %v1215, %v1215
  %v1218 = vunpack.c.l.s4 1966171168
  %v1219 = vunpack.c.0.s8 %v1218
  %v1220 = vlaneseq
  %v1221 = vshrl.u32 %v1220, 7
  %v1222 = vsub.s32 %v1219, %v1221
  %v1223 = vrot.slane %v1215, %v1222
  %v1225 = vunpack.c.l.s4 1966171168
  %v1226 = vunpack.c.0.s8 %v1225
  %v1227 = vlaneseq
  %v1228 = vshrl.u32 %v1227, 7
  %v1229 = vsub.s32 %v1226, %v1228
  %v1230 = vrot.slane %v1216, %v1229
  %v1231 = vcombine.high %v1223, %v1223
  %v1232 = vcombine.high %v1230, %v1230
  %v1234 = vunpack.c.l.s4 1966171168
  %v1235 = vunpack.c.0.s8 %v1234
  %v1236 = vlaneseq
  %v1237 = vshrl.u32 %v1236, 7
  %v1238 = vsub.s32 %v1235, %v1237
  %v1239 = vrot.slane %v192, %v1238
  %v1240 = vcombine.high %v1239, %v1239
  %v1242 = vunpack.c.l.s4 1966171168
  %v1243 = vunpack.c.0.s8 %v1242
  %v1244 = vlaneseq
  %v1245 = vshrl.u32 %v1244, 7
  %v1246 = vsub.s32 %v1243, %v1245
  %v1247 = vrot.slane %v1239, %v1246
  %v1249 = vunpack.c.l.s4 1966171168
  %v1250 = vunpack.c.0.s8 %v1249
  %v1251 = vlaneseq
  %v1252 = vshrl.u32 %v1251, 7
  %v1253 = vsub.s32 %v1250, %v1252
  %v1254 = vrot.slane %v1240, %v1253
  %v1255 = vcombine.high %v1247, %v1247
  %v1256 = vcombine.high %v1254, %v1254
  %v1258 = vunpack.c.l.s4 1966171168
  %v1259 = vunpack.c.0.s8 %v1258
  %v1260 = vlaneseq
  %v1261 = vshrl.u32 %v1260, 7
  %v1262 = vsub.s32 %v1259, %v1261
  %v1263 = vrot.slane %v193, %v1262
  %v1264 = vcombine.high %v1263, %v1263
  %v1266 = vunpack.c.l.s4 1966171168
  %v1267 = vunpack.c.0.s8 %v1266
  %v1268 = vlaneseq
  %v1269 = vshrl.u32 %v1268, 7
  %v1270 = vsub.s32 %v1267, %v1269
  %v1271 = vrot.slane %v1263, %v1270
  %v1273 = vunpack.c.l.s4 1966171168
  %v1274 = vunpack.c.0.s8 %v1273
  %v1275 = vlaneseq
  %v1276 = vshrl.u32 %v1275, 7
  %v1277 = vsub.s32 %v1274, %v1276
  %v1278 = vrot.slane %v1264, %v1277
  %v1279 = vcombine.high %v1271, %v1271
  %v1280 = vcombine.high %v1278, %v1278
  %v1282 = vunpack.c.l.s4 1966171168
  %v1283 = vunpack.c.0.s8 %v1282
  %v1284 = vlaneseq
  %v1285 = vshrl.u32 %v1284, 7
  %v1286 = vsub.s32 %v1283, %v1285
  %v1287 = vrot.slane %v194, %v1286
  %v1288 = vcombine.high %v1287, %v1287
  %v1290 = vunpack.c.l.s4 1966171168
  %v1291 = vunpack.c.0.s8 %v1290
  %v1292 = vlaneseq
  %v1293 = vshrl.u32 %v1292, 7
  %v1294 = vsub.s32 %v1291, %v1293
  %v1295 = vrot.slane %v1287, %v1294
  %v1297 = vunpack.c.l.s4 1966171168
  %v1298 = vunpack.c.0.s8 %v1297
  %v1299 = vlaneseq
  %v1300 = vshrl.u32 %v1299, 7
  %v1301 = vsub.s32 %v1298, %v1300
  %v1302 = vrot.slane %v1288, %v1301
  %v1303 = vcombine.high %v1295, %v1295
  %v1304 = vcombine.high %v1302, %v1302
  %v1306 = vunpack.c.l.s4 1966171168
  %v1307 = vunpack.c.0.s8 %v1306
  %v1308 = vlaneseq
  %v1309 = vshrl.u32 %v1308, 7
  %v1310 = vsub.s32 %v1307, %v1309
  %v1311 = vrot.slane %v195, %v1310
  %v1312 = vcombine.high %v1311, %v1311
  %v1314 = vunpack.c.l.s4 1966171168
  %v1315 = vunpack.c.0.s8 %v1314
  %v1316 = vlaneseq
  %v1317 = vshrl.u32 %v1316, 7
  %v1318 = vsub.s32 %v1315, %v1317
  %v1319 = vrot.slane %v1311, %v1318
  %v1321 = vunpack.c.l.s4 1966171168
  %v1322 = vunpack.c.0.s8 %v1321
  %v1323 = vlaneseq
  %v1324 = vshrl.u32 %v1323, 7
  %v1325 = vsub.s32 %v1322, %v1324
  %v1326 = vrot.slane %v1312, %v1325
  %v1327 = vcombine.high %v1319, %v1319
  %v1328 = vcombine.high %v1326, %v1326
  %v1330 = vunpack.c.l.s4 1966171168
  %v1331 = vunpack.c.0.s8 %v1330
  %v1332 = vlaneseq
  %v1333 = vshrl.u32 %v1332, 7
  %v1334 = vsub.s32 %v1331, %v1333
  %v1335 = vrot.slane %v196, %v1334
  %v1336 = vcombine.high %v1335, %v1335
  %v1338 = vunpack.c.l.s4 1966171168
  %v1339 = vunpack.c.0.s8 %v1338
  %v1340 = vlaneseq
  %v1341 = vshrl.u32 %v1340, 7
  %v1342 = vsub.s32 %v1339, %v1341
  %v1343 = vrot.slane %v1335, %v1342
  %v1345 = vunpack.c.l.s4 1966171168
  %v1346 = vunpack.c.0.s8 %v1345
  %v1347 = vlaneseq
  %v1348 = vshrl.u32 %v1347, 7
  %v1349 = vsub.s32 %v1346, %v1348
  %v1350 = vrot.slane %v1336, %v1349
  %v1351 = vcombine.high %v1343, %v1343
  %v1352 = vcombine.high %v1350, %v1350
  %v1354 = vunpack.c.l.s4 1966171168
  %v1355 = vunpack.c.0.s8 %v1354
  %v1356 = vlaneseq
  %v1357 = vshrl.u32 %v1356, 7
  %v1358 = vsub.s32 %v1355, %v1357
  %v1359 = vrot.slane %v197, %v1358
  %v1360 = vcombine.high %v1359, %v1359
  %v1362 = vunpack.c.l.s4 1966171168
  %v1363 = vunpack.c.0.s8 %v1362
  %v1364 = vlaneseq
  %v1365 = vshrl.u32 %v1364, 7
  %v1366 = vsub.s32 %v1363, %v1365
  %v1367 = vrot.slane %v1359, %v1366
  %v1369 = vunpack.c.l.s4 1966171168
  %v1370 = vunpack.c.0.s8 %v1369
  %v1371 = vlaneseq
  %v1372 = vshrl.u32 %v1371, 7
  %v1373 = vsub.s32 %v1370, %v1372
  %v1374 = vrot.slane %v1360, %v1373
  %v1375 = vcombine.high %v1367, %v1367
  %v1376 = vcombine.high %v1374, %v1374
  %v1378 = vunpack.c.l.s4 1966171168
  %v1379 = vunpack.c.0.s8 %v1378
  %v1380 = vlaneseq
  %v1381 = vshrl.u32 %v1380, 7
  %v1382 = vsub.s32 %v1379, %v1381
  %v1383 = vrot.slane %v198, %v1382
  %v1384 = vcombine.high %v1383, %v1383
  %v1386 = vunpack.c.l.s4 1966171168
  %v1387 = vunpack.c.0.s8 %v1386
  %v1388 = vlaneseq
  %v1389 = vshrl.u32 %v1388, 7
  %v1390 = vsub.s32 %v1387, %v1389
  %v1391 = vrot.slane %v1383, %v1390
  %v1393 = vunpack.c.l.s4 1966171168
  %v1394 = vunpack.c.0.s8 %v1393
  %v1395 = vlaneseq
  %v1396 = vshrl.u32 %v1395, 7
  %v1397 = vsub.s32 %v1394, %v1396
  %v1398 = vrot.slane %v1384, %v1397
  %v1399 = vcombine.high %v1391, %v1391
  %v1400 = vcombine.high %v1398, %v1398
  %v1402 = vunpack.c.l.s4 1966171168
  %v1403 = vunpack.c.0.s8 %v1402
  %v1404 = vlaneseq
  %v1405 = vshrl.u32 %v1404, 7
  %v1406 = vsub.s32 %v1403, %v1405
  %v1407 = vrot.slane %v199, %v1406
  %v1408 = vcombine.high %v1407, %v1407
  %v1410 = vunpack.c.l.s4 1966171168
  %v1411 = vunpack.c.0.s8 %v1410
  %v1412 = vlaneseq
  %v1413 = vshrl.u32 %v1412, 7
  %v1414 = vsub.s32 %v1411, %v1413
  %v1415 = vrot.slane %v1407, %v1414
  %v1417 = vunpack.c.l.s4 1966171168
  %v1418 = vunpack.c.0.s8 %v1417
  %v1419 = vlaneseq
  %v1420 = vshrl.u32 %v1419, 7
  %v1421 = vsub.s32 %v1418, %v1420
  %v1422 = vrot.slane %v1408, %v1421
  %v1423 = vcombine.high %v1415, %v1415
  %v1424 = vcombine.high %v1422, %v1422
  %v1426 = vunpack.c.l.s4 1966171168
  %v1427 = vunpack.c.0.s8 %v1426
  %v1428 = vlaneseq
  %v1429 = vshrl.u32 %v1428, 7
  %v1430 = vsub.s32 %v1427, %v1429
  %v1431 = vrot.slane %v200, %v1430
  %v1432 = vcombine.high %v1431, %v1431
  %v1434 = vunpack.c.l.s4 1966171168
  %v1435 = vunpack.c.0.s8 %v1434
  %v1436 = vlaneseq
  %v1437 = vshrl.u32 %v1436, 7
  %v1438 = vsub.s32 %v1435, %v1437
  %v1439 = vrot.slane %v1431, %v1438
  %v1441 = vunpack.c.l.s4 1966171168
  %v1442 = vunpack.c.0.s8 %v1441
  %v1443 = vlaneseq
  %v1444 = vshrl.u32 %v1443, 7
  %v1445 = vsub.s32 %v1442, %v1444
  %v1446 = vrot.slane %v1432, %v1445
  %v1447 = vcombine.high %v1439, %v1439
  %v1448 = vcombine.high %v1446, %v1446
  %v1450 = vunpack.c.l.s4 1966171168
  %v1451 = vunpack.c.0.s8 %v1450
  %v1452 = vlaneseq
  %v1453 = vshrl.u32 %v1452, 7
  %v1454 = vsub.s32 %v1451, %v1453
  %v1455 = vrot.slane %v201, %v1454
  %v1456 = vcombine.high %v1455, %v1455
  %v1458 = vunpack.c.l.s4 1966171168
  %v1459 = vunpack.c.0.s8 %v1458
  %v1460 = vlaneseq
  %v1461 = vshrl.u32 %v1460, 7
  %v1462 = vsub.s32 %v1459, %v1461
  %v1463 = vrot.slane %v1455, %v1462
  %v1465 = vunpack.c.l.s4 1966171168
  %v1466 = vunpack.c.0.s8 %v1465
  %v1467 = vlaneseq
  %v1468 = vshrl.u32 %v1467, 7
  %v1469 = vsub.s32 %v1466, %v1468
  %v1470 = vrot.slane %v1456, %v1469
  %v1471 = vcombine.high %v1463, %v1463
  %v1472 = vcombine.high %v1470, %v1470
  %v1474 = vunpack.c.l.s4 1966171168
  %v1475 = vunpack.c.0.s8 %v1474
  %v1476 = vlaneseq
  %v1477 = vshrl.u32 %v1476, 7
  %v1478 = vsub.s32 %v1475, %v1477
  %v1479 = vrot.slane %v202, %v1478
  %v1480 = vcombine.high %v1479, %v1479
  %v1482 = vunpack.c.l.s4 1966171168
  %v1483 = vunpack.c.0.s8 %v1482
  %v1484 = vlaneseq
  %v1485 = vshrl.u32 %v1484, 7
  %v1486 = vsub.s32 %v1483, %v1485
  %v1487 = vrot.slane %v1479, %v1486
  %v1489 = vunpack.c.l.s4 1966171168
  %v1490 = vunpack.c.0.s8 %v1489
  %v1491 = vlaneseq
  %v1492 = vshrl.u32 %v1491, 7
  %v1493 = vsub.s32 %v1490, %v1492
  %v1494 = vrot.slane %v1480, %v1493
  %v1495 = vcombine.high %v1487, %v1487
  %v1496 = vcombine.high %v1494, %v1494
  %v1498 = vunpack.c.l.s4 1966171168
  %v1499 = vunpack.c.0.s8 %v1498
  %v1500 = vlaneseq
  %v1501 = vshrl.u32 %v1500, 7
  %v1502 = vsub.s32 %v1499, %v1501
  %v1503 = vrot.slane %v203, %v1502
  %v1504 = vcombine.high %v1503, %v1503
  %v1506 = vunpack.c.l.s4 1966171168
  %v1507 = vunpack.c.0.s8 %v1506
  %v1508 = vlaneseq
  %v1509 = vshrl.u32 %v1508, 7
  %v1510 = vsub.s32 %v1507, %v1509
  %v1511 = vrot.slane %v1503, %v1510
  %v1513 = vunpack.c.l.s4 1966171168
  %v1514 = vunpack.c.0.s8 %v1513
  %v1515 = vlaneseq
  %v1516 = vshrl.u32 %v1515, 7
  %v1517 = vsub.s32 %v1514, %v1516
  %v1518 = vrot.slane %v1504, %v1517
  %v1519 = vcombine.high %v1511, %v1511
  %v1520 = vcombine.high %v1518, %v1518
  %v1522 = vunpack.c.l.s4 1966171168
  %v1523 = vunpack.c.0.s8 %v1522
  %v1524 = vlaneseq
  %v1525 = vshrl.u32 %v1524, 7
  %v1526 = vsub.s32 %v1523, %v1525
  %v1527 = vrot.slane %v204, %v1526
  %v1528 = vcombine.high %v1527, %v1527
  %v1530 = vunpack.c.l.s4 1966171168
  %v1531 = vunpack.c.0.s8 %v1530
  %v1532 = vlaneseq
  %v1533 = vshrl.u32 %v1532, 7
  %v1534 = vsub.s32 %v1531, %v1533
  %v1535 = vrot.slane %v1527, %v1534
  %v1537 = vunpack.c.l.s4 1966171168
  %v1538 = vunpack.c.0.s8 %v1537
  %v1539 = vlaneseq
  %v1540 = vshrl.u32 %v1539, 7
  %v1541 = vsub.s32 %v1538, %v1540
  %v1542 = vrot.slane %v1528, %v1541
  %v1543 = vcombine.high %v1535, %v1535
  %v1544 = vcombine.high %v1542, %v1542
  %v1546 = vunpack.c.l.s4 1966171168
  %v1547 = vunpack.c.0.s8 %v1546
  %v1548 = vlaneseq
  %v1549 = vshrl.u32 %v1548, 7
  %v1550 = vsub.s32 %v1547, %v1549
  %v1551 = vrot.slane %v205, %v1550
  %v1552 = vcombine.high %v1551, %v1551
  %v1554 = vunpack.c.l.s4 1966171168
  %v1555 = vunpack.c.0.s8 %v1554
  %v1556 = vlaneseq
  %v1557 = vshrl.u32 %v1556, 7
  %v1558 = vsub.s32 %v1555, %v1557
  %v1559 = vrot.slane %v1551, %v1558
  %v1561 = vunpack.c.l.s4 1966171168
  %v1562 = vunpack.c.0.s8 %v1561
  %v1563 = vlaneseq
  %v1564 = vshrl.u32 %v1563, 7
  %v1565 = vsub.s32 %v1562, %v1564
  %v1566 = vrot.slane %v1552, %v1565
  %v1567 = vcombine.high %v1559, %v1559
  %v1568 = vcombine.high %v1566, %v1566
  %v1570 = vunpack.c.l.s4 1966171168
  %v1571 = vunpack.c.0.s8 %v1570
  %v1572 = vlaneseq
  %v1573 = vshrl.u32 %v1572, 7
  %v1574 = vsub.s32 %v1571, %v1573
  %v1575 = vrot.slane %v206, %v1574
  %v1576 = vcombine.high %v1575, %v1575
  %v1578 = vunpack.c.l.s4 1966171168
  %v1579 = vunpack.c.0.s8 %v1578
  %v1580 = vlaneseq
  %v1581 = vshrl.u32 %v1580, 7
  %v1582 = vsub.s32 %v1579, %v1581
  %v1583 = vrot.slane %v1575, %v1582
  %v1585 = vunpack.c.l.s4 1966171168
  %v1586 = vunpack.c.0.s8 %v1585
  %v1587 = vlaneseq
  %v1588 = vshrl.u32 %v1587, 7
  %v1589 = vsub.s32 %v1586, %v1588
  %v1590 = vrot.slane %v1576, %v1589
  %v1591 = vcombine.high %v1583, %v1583
  %v1592 = vcombine.high %v1590, %v1590
  %v1594 = vunpack.c.l.s4 1966171168
  %v1595 = vunpack.c.0.s8 %v1594
  %v1596 = vlaneseq
  %v1597 = vshrl.u32 %v1596, 7
  %v1598 = vsub.s32 %v1595, %v1597
  %v1599 = vrot.slane %v207, %v1598
  %v1600 = vcombine.high %v1599, %v1599
  %v1602 = vunpack.c.l.s4 1966171168
  %v1603 = vunpack.c.0.s8 %v1602
  %v1604 = vlaneseq
  %v1605 = vshrl.u32 %v1604, 7
  %v1606 = vsub.s32 %v1603, %v1605
  %v1607 = vrot.slane %v1599, %v1606
  %v1609 = vunpack.c.l.s4 1966171168
  %v1610 = vunpack.c.0.s8 %v1609
  %v1611 = vlaneseq
  %v1612 = vshrl.u32 %v1611, 7
  %v1613 = vsub.s32 %v1610, %v1612
  %v1614 = vrot.slane %v1600, %v1613
  %v1615 = vcombine.high %v1607, %v1607
  %v1616 = vcombine.high %v1614, %v1614
  %v1618 = vunpack.c.l.s4 1966171168
  %v1619 = vunpack.c.0.s8 %v1618
  %v1620 = vlaneseq
  %v1621 = vshrl.u32 %v1620, 7
  %v1622 = vsub.s32 %v1619, %v1621
  %v1623 = vrot.slane %v208, %v1622
  %v1624 = vcombine.high %v1623, %v1623
  %v1626 = vunpack.c.l.s4 1966171168
  %v1627 = vunpack.c.0.s8 %v1626
  %v1628 = vlaneseq
  %v1629 = vshrl.u32 %v1628, 7
  %v1630 = vsub.s32 %v1627, %v1629
  %v1631 = vrot.slane %v1623, %v1630
  %v1633 = vunpack.c.l.s4 1966171168
  %v1634 = vunpack.c.0.s8 %v1633
  %v1635 = vlaneseq
  %v1636 = vshrl.u32 %v1635, 7
  %v1637 = vsub.s32 %v1634, %v1636
  %v1638 = vrot.slane %v1624, %v1637
  %v1639 = vcombine.high %v1631, %v1631
  %v1640 = vcombine.high %v1638, %v1638
  %v1642 = vunpack.c.l.s4 1966171168
  %v1643 = vunpack.c.0.s8 %v1642
  %v1644 = vlaneseq
  %v1645 = vshrl.u32 %v1644, 7
  %v1646 = vsub.s32 %v1643, %v1645
  %v1647 = vrot.slane %v209, %v1646
  %v1648 = vcombine.high %v1647, %v1647
  %v1650 = vunpack.c.l.s4 1966171168
  %v1651 = vunpack.c.0.s8 %v1650
  %v1652 = vlaneseq
  %v1653 = vshrl.u32 %v1652, 7
  %v1654 = vsub.s32 %v1651, %v1653
  %v1655 = vrot.slane %v1647, %v1654
  %v1657 = vunpack.c.l.s4 1966171168
  %v1658 = vunpack.c.0.s8 %v1657
  %v1659 = vlaneseq
  %v1660 = vshrl.u32 %v1659, 7
  %v1661 = vsub.s32 %v1658, %v1660
  %v1662 = vrot.slane %v1648, %v1661
  %v1663 = vcombine.high %v1655, %v1655
  %v1664 = vcombine.high %v1662, %v1662
  %v1666 = vunpack.c.l.s4 1966171168
  %v1667 = vunpack.c.0.s8 %v1666
  %v1668 = vlaneseq
  %v1669 = vshrl.u32 %v1668, 7
  %v1670 = vsub.s32 %v1667, %v1669
  %v1671 = vrot.slane %v210, %v1670
  %v1672 = vcombine.high %v1671, %v1671
  %v1674 = vunpack.c.l.s4 1966171168
  %v1675 = vunpack.c.0.s8 %v1674
  %v1676 = vlaneseq
  %v1677 = vshrl.u32 %v1676, 7
  %v1678 = vsub.s32 %v1675, %v1677
  %v1679 = vrot.slane %v1671, %v1678
  %v1681 = vunpack.c.l.s4 1966171168
  %v1682 = vunpack.c.0.s8 %v1681
  %v1683 = vlaneseq
  %v1684 = vshrl.u32 %v1683, 7
  %v1685 = vsub.s32 %v1682, %v1684
  %v1686 = vrot.slane %v1672, %v1685
  %v1687 = vcombine.high %v1679, %v1679
  %v1688 = vcombine.high %v1686, %v1686
  %v1690 = vunpack.c.l.s4 1966171168
  %v1691 = vunpack.c.0.s8 %v1690
  %v1692 = vlaneseq
  %v1693 = vshrl.u32 %v1692, 7
  %v1694 = vsub.s32 %v1691, %v1693
  %v1695 = vrot.slane %v211, %v1694
  %v1696 = vcombine.high %v1695, %v1695
  %v1698 = vunpack.c.l.s4 1966171168
  %v1699 = vunpack.c.0.s8 %v1698
  %v1700 = vlaneseq
  %v1701 = vshrl.u32 %v1700, 7
  %v1702 = vsub.s32 %v1699, %v1701
  %v1703 = vrot.slane %v1695, %v1702
  %v1705 = vunpack.c.l.s4 1966171168
  %v1706 = vunpack.c.0.s8 %v1705
  %v1707 = vlaneseq
  %v1708 = vshrl.u32 %v1707, 7
  %v1709 = vsub.s32 %v1706, %v1708
  %v1710 = vrot.slane %v1696, %v1709
  %v1711 = vcombine.high %v1703, %v1703
  %v1712 = vcombine.high %v1710, %v1710
  %v1714 = vunpack.c.l.s4 1966171168
  %v1715 = vunpack.c.0.s8 %v1714
  %v1716 = vlaneseq
  %v1717 = vshrl.u32 %v1716, 7
  %v1718 = vsub.s32 %v1715, %v1717
  %v1719 = vrot.slane %v212, %v1718
  %v1720 = vcombine.high %v1719, %v1719
  %v1722 = vunpack.c.l.s4 1966171168
  %v1723 = vunpack.c.0.s8 %v1722
  %v1724 = vlaneseq
  %v1725 = vshrl.u32 %v1724, 7
  %v1726 = vsub.s32 %v1723, %v1725
  %v1727 = vrot.slane %v1719, %v1726
  %v1729 = vunpack.c.l.s4 1966171168
  %v1730 = vunpack.c.0.s8 %v1729
  %v1731 = vlaneseq
  %v1732 = vshrl.u32 %v1731, 7
  %v1733 = vsub.s32 %v1730, %v1732
  %v1734 = vrot.slane %v1720, %v1733
  %v1735 = vcombine.high %v1727, %v1727
  %v1736 = vcombine.high %v1734, %v1734
  %v1738 = vunpack.c.l.s4 1966171168
  %v1739 = vunpack.c.0.s8 %v1738
  %v1740 = vlaneseq
  %v1741 = vshrl.u32 %v1740, 7
  %v1742 = vsub.s32 %v1739, %v1741
  %v1743 = vrot.slane %v213, %v1742
  %v1744 = vcombine.high %v1743, %v1743
  %v1746 = vunpack.c.l.s4 1966171168
  %v1747 = vunpack.c.0.s8 %v1746
  %v1748 = vlaneseq
  %v1749 = vshrl.u32 %v1748, 7
  %v1750 = vsub.s32 %v1747, %v1749
  %v1751 = vrot.slane %v1743, %v1750
  %v1753 = vunpack.c.l.s4 1966171168
  %v1754 = vunpack.c.0.s8 %v1753
  %v1755 = vlaneseq
  %v1756 = vshrl.u32 %v1755, 7
  %v1757 = vsub.s32 %v1754, %v1756
  %v1758 = vrot.slane %v1744, %v1757
  %v1759 = vcombine.high %v1751, %v1751
  %v1760 = vcombine.high %v1758, %v1758
  %v1762 = vunpack.c.l.s4 1966171168
  %v1763 = vunpack.c.0.s8 %v1762
  %v1764 = vlaneseq
  %v1765 = vshrl.u32 %v1764, 7
  %v1766 = vsub.s32 %v1763, %v1765
  %v1767 = vrot.slane %v214, %v1766
  %v1768 = vcombine.high %v1767, %v1767
  %v1770 = vunpack.c.l.s4 1966171168
  %v1771 = vunpack.c.0.s8 %v1770
  %v1772 = vlaneseq
  %v1773 = vshrl.u32 %v1772, 7
  %v1774 = vsub.s32 %v1771, %v1773
  %v1775 = vrot.slane %v1767, %v1774
  %v1777 = vunpack.c.l.s4 1966171168
  %v1778 = vunpack.c.0.s8 %v1777
  %v1779 = vlaneseq
  %v1780 = vshrl.u32 %v1779, 7
  %v1781 = vsub.s32 %v1778, %v1780
  %v1782 = vrot.slane %v1768, %v1781
  %v1783 = vcombine.high %v1775, %v1775
  %v1784 = vcombine.high %v1782, %v1782
  %v1786 = vunpack.c.l.s4 1966171168
  %v1787 = vunpack.c.0.s8 %v1786
  %v1788 = vlaneseq
  %v1789 = vshrl.u32 %v1788, 7
  %v1790 = vsub.s32 %v1787, %v1789
  %v1791 = vrot.slane %v215, %v1790
  %v1792 = vcombine.high %v1791, %v1791
  %v1794 = vunpack.c.l.s4 1966171168
  %v1795 = vunpack.c.0.s8 %v1794
  %v1796 = vlaneseq
  %v1797 = vshrl.u32 %v1796, 7
  %v1798 = vsub.s32 %v1795, %v1797
  %v1799 = vrot.slane %v1791, %v1798
  %v1801 = vunpack.c.l.s4 1966171168
  %v1802 = vunpack.c.0.s8 %v1801
  %v1803 = vlaneseq
  %v1804 = vshrl.u32 %v1803, 7
  %v1805 = vsub.s32 %v1802, %v1804
  %v1806 = vrot.slane %v1792, %v1805
  %v1807 = vcombine.high %v1799, %v1799
  %v1808 = vcombine.high %v1806, %v1806
  %v1810 = vunpack.c.l.s4 1966171168
  %v1811 = vunpack.c.0.s8 %v1810
  %v1812 = vlaneseq
  %v1813 = vshrl.u32 %v1812, 7
  %v1814 = vsub.s32 %v1811, %v1813
  %v1815 = vrot.slane %v216, %v1814
  %v1816 = vcombine.high %v1815, %v1815
  %v1818 = vunpack.c.l.s4 1966171168
  %v1819 = vunpack.c.0.s8 %v1818
  %v1820 = vlaneseq
  %v1821 = vshrl.u32 %v1820, 7
  %v1822 = vsub.s32 %v1819, %v1821
  %v1823 = vrot.slane %v1815, %v1822
  %v1825 = vunpack.c.l.s4 1966171168
  %v1826 = vunpack.c.0.s8 %v1825
  %v1827 = vlaneseq
  %v1828 = vshrl.u32 %v1827, 7
  %v1829 = vsub.s32 %v1826, %v1828
  %v1830 = vrot.slane %v1816, %v1829
  %v1831 = vcombine.high %v1823, %v1823
  %v1832 = vcombine.high %v1830, %v1830
  %v1834 = vunpack.c.l.s4 1966171168
  %v1835 = vunpack.c.0.s8 %v1834
  %v1836 = vlaneseq
  %v1837 = vshrl.u32 %v1836, 7
  %v1838 = vsub.s32 %v1835, %v1837
  %v1839 = vrot.slane %v217, %v1838
  %v1840 = vcombine.high %v1839, %v1839
  %v1842 = vunpack.c.l.s4 1966171168
  %v1843 = vunpack.c.0.s8 %v1842
  %v1844 = vlaneseq
  %v1845 = vshrl.u32 %v1844, 7
  %v1846 = vsub.s32 %v1843, %v1845
  %v1847 = vrot.slane %v1839, %v1846
  %v1849 = vunpack.c.l.s4 1966171168
  %v1850 = vunpack.c.0.s8 %v1849
  %v1851 = vlaneseq
  %v1852 = vshrl.u32 %v1851, 7
  %v1853 = vsub.s32 %v1850, %v1852
  %v1854 = vrot.slane %v1840, %v1853
  %v1855 = vcombine.high %v1847, %v1847
  %v1856 = vcombine.high %v1854, %v1854
  %v1858 = vunpack.c.l.s4 1966171168
  %v1859 = vunpack.c.0.s8 %v1858
  %v1860 = vlaneseq
  %v1861 = vshrl.u32 %v1860, 7
  %v1862 = vsub.s32 %v1859, %v1861
  %v1863 = vrot.slane %v218, %v1862
  %v1864 = vcombine.high %v1863, %v1863
  %v1866 = vunpack.c.l.s4 1966171168
  %v1867 = vunpack.c.0.s8 %v1866
  %v1868 = vlaneseq
  %v1869 = vshrl.u32 %v1868, 7
  %v1870 = vsub.s32 %v1867, %v1869
  %v1871 = vrot.slane %v1863, %v1870
  %v1873 = vunpack.c.l.s4 1966171168
  %v1874 = vunpack.c.0.s8 %v1873
  %v1875 = vlaneseq
  %v1876 = vshrl.u32 %v1875, 7
  %v1877 = vsub.s32 %v1874, %v1876
  %v1878 = vrot.slane %v1864, %v1877
  %v1879 = vcombine.high %v1871, %v1871
  %v1880 = vcombine.high %v1878, %v1878
  %v1882 = vunpack.c.l.s4 1966171168
  %v1883 = vunpack.c.0.s8 %v1882
  %v1884 = vlaneseq
  %v1885 = vshrl.u32 %v1884, 7
  %v1886 = vsub.s32 %v1883, %v1885
  %v1887 = vrot.slane %v219, %v1886
  %v1888 = vcombine.high %v1887, %v1887
  %v1890 = vunpack.c.l.s4 1966171168
  %v1891 = vunpack.c.0.s8 %v1890
  %v1892 = vlaneseq
  %v1893 = vshrl.u32 %v1892, 7
  %v1894 = vsub.s32 %v1891, %v1893
  %v1895 = vrot.slane %v1887, %v1894
  %v1897 = vunpack.c.l.s4 1966171168
  %v1898 = vunpack.c.0.s8 %v1897
  %v1899 = vlaneseq
  %v1900 = vshrl.u32 %v1899, 7
  %v1901 = vsub.s32 %v1898, %v1900
  %v1902 = vrot.slane %v1888, %v1901
  %v1903 = vcombine.high %v1895, %v1895
  %v1904 = vcombine.high %v1902, %v1902
  %v1906 = vunpack.c.l.s4 1966171168
  %v1907 = vunpack.c.0.s8 %v1906
  %v1908 = vlaneseq
  %v1909 = vshrl.u32 %v1908, 7
  %v1910 = vsub.s32 %v1907, %v1909
  %v1911 = vrot.slane %v220, %v1910
  %v1912 = vcombine.high %v1911, %v1911
  %v1914 = vunpack.c.l.s4 1966171168
  %v1915 = vunpack.c.0.s8 %v1914
  %v1916 = vlaneseq
  %v1917 = vshrl.u32 %v1916, 7
  %v1918 = vsub.s32 %v1915, %v1917
  %v1919 = vrot.slane %v1911, %v1918
  %v1921 = vunpack.c.l.s4 1966171168
  %v1922 = vunpack.c.0.s8 %v1921
  %v1923 = vlaneseq
  %v1924 = vshrl.u32 %v1923, 7
  %v1925 = vsub.s32 %v1922, %v1924
  %v1926 = vrot.slane %v1912, %v1925
  %v1927 = vcombine.high %v1919, %v1919
  %v1928 = vcombine.high %v1926, %v1926
  %v1930 = vunpack.c.l.s4 1966171168
  %v1931 = vunpack.c.0.s8 %v1930
  %v1932 = vlaneseq
  %v1933 = vshrl.u32 %v1932, 7
  %v1934 = vsub.s32 %v1931, %v1933
  %v1935 = vrot.slane %v221, %v1934
  %v1936 = vcombine.high %v1935, %v1935
  %v1938 = vunpack.c.l.s4 1966171168
  %v1939 = vunpack.c.0.s8 %v1938
  %v1940 = vlaneseq
  %v1941 = vshrl.u32 %v1940, 7
  %v1942 = vsub.s32 %v1939, %v1941
  %v1943 = vrot.slane %v1935, %v1942
  %v1945 = vunpack.c.l.s4 1966171168
  %v1946 = vunpack.c.0.s8 %v1945
  %v1947 = vlaneseq
  %v1948 = vshrl.u32 %v1947, 7
  %v1949 = vsub.s32 %v1946, %v1948
  %v1950 = vrot.slane %v1936, %v1949
  %v1951 = vcombine.high %v1943, %v1943
  %v1952 = vcombine.high %v1950, %v1950
  %v1954 = vunpack.c.l.s4 1966171168
  %v1955 = vunpack.c.0.s8 %v1954
  %v1956 = vlaneseq
  %v1957 = vshrl.u32 %v1956, 7
  %v1958 = vsub.s32 %v1955, %v1957
  %v1959 = vrot.slane %v222, %v1958
  %v1960 = vcombine.high %v1959, %v1959
  %v1962 = vunpack.c.l.s4 1966171168
  %v1963 = vunpack.c.0.s8 %v1962
  %v1964 = vlaneseq
  %v1965 = vshrl.u32 %v1964, 7
  %v1966 = vsub.s32 %v1963, %v1965
  %v1967 = vrot.slane %v1959, %v1966
  %v1969 = vunpack.c.l.s4 1966171168
  %v1970 = vunpack.c.0.s8 %v1969
  %v1971 = vlaneseq
  %v1972 = vshrl.u32 %v1971, 7
  %v1973 = vsub.s32 %v1970, %v1972
  %v1974 = vrot.slane %v1960, %v1973
  %v1975 = vcombine.high %v1967, %v1967
  %v1976 = vcombine.high %v1974, %v1974
  %v1978 = vunpack.c.l.s4 1966171168
  %v1979 = vunpack.c.0.s8 %v1978
  %v1980 = vlaneseq
  %v1981 = vshrl.u32 %v1980, 7
  %v1982 = vsub.s32 %v1979, %v1981
  %v1983 = vrot.slane %v223, %v1982
  %v1984 = vcombine.high %v1983, %v1983
  %v1986 = vunpack.c.l.s4 1966171168
  %v1987 = vunpack.c.0.s8 %v1986
  %v1988 = vlaneseq
  %v1989 = vshrl.u32 %v1988, 7
  %v1990 = vsub.s32 %v1987, %v1989
  %v1991 = vrot.slane %v1983, %v1990
  %v1993 = vunpack.c.l.s4 1966171168
  %v1994 = vunpack.c.0.s8 %v1993
  %v1995 = vlaneseq
  %v1996 = vshrl.u32 %v1995, 7
  %v1997 = vsub.s32 %v1994, %v1996
  %v1998 = vrot.slane %v1984, %v1997
  %v1999 = vcombine.high %v1991, %v1991
  %v2000 = vcombine.high %v1998, %v1998
  %v2002 = vunpack.c.l.s4 1966171168
  %v2003 = vunpack.c.0.s8 %v2002
  %v2004 = vlaneseq
  %v2005 = vshrl.u32 %v2004, 7
  %v2006 = vsub.s32 %v2003, %v2005
  %v2007 = vrot.slane %v224, %v2006
  %v2008 = vcombine.high %v2007, %v2007
  %v2010 = vunpack.c.l.s4 1966171168
  %v2011 = vunpack.c.0.s8 %v2010
  %v2012 = vlaneseq
  %v2013 = vshrl.u32 %v2012, 7
  %v2014 = vsub.s32 %v2011, %v2013
  %v2015 = vrot.slane %v2007, %v2014
  %v2017 = vunpack.c.l.s4 1966171168
  %v2018 = vunpack.c.0.s8 %v2017
  %v2019 = vlaneseq
  %v2020 = vshrl.u32 %v2019, 7
  %v2021 = vsub.s32 %v2018, %v2020
  %v2022 = vrot.slane %v2008, %v2021
  %v2023 = vcombine.high %v2015, %v2015
  %v2024 = vcombine.high %v2022, %v2022
  %vm2025 = vcmask 1040384
  %v2028 = vsel %vm2025, %v311, 4286644096
  %v2030 = vunpack.i.l.bf16 %v2028
  %v2031 = vunpack.i.h.bf16 %v2028
  %v2032 = vmax.f32 %v2030, %v2031
  %v2033 = vrot.slane %v2032, 4
  %v2034 = vmax.f32 %v2032, %v2033
  %v2035 = vrot.slane %v2034, 2
  %v2036 = vmax.f32 %v2034, %v2035
  %v2037 = vrot.slane %v2036, 1
  %v2038 = vmax.f32 %v2036, %v2037
  %v2039 = vpack.i.bf16 %v2038, %v2038
  %v2041 = vsel %vm2025, %v318, 4286644096
  %v2043 = vunpack.i.l.bf16 %v2041
  %v2044 = vunpack.i.h.bf16 %v2041
  %v2045 = vmax.f32 %v2043, %v2044
  %v2046 = vrot.slane %v2045, 4
  %v2047 = vmax.f32 %v2045, %v2046
  %v2048 = vrot.slane %v2047, 2
  %v2049 = vmax.f32 %v2047, %v2048
  %v2050 = vrot.slane %v2049, 1
  %v2051 = vmax.f32 %v2049, %v2050
  %v2052 = vpack.i.bf16 %v2051, %v2051
  %v2054 = vsel %vm2025, %v319, 4286644096
  %v2056 = vunpack.i.l.bf16 %v2054
  %v2057 = vunpack.i.h.bf16 %v2054
  %v2058 = vmax.f32 %v2056, %v2057
  %v2059 = vrot.slane %v2058, 4
  %v2060 = vmax.f32 %v2058, %v2059
  %v2061 = vrot.slane %v2060, 2
  %v2062 = vmax.f32 %v2060, %v2061
  %v2063 = vrot.slane %v2062, 1
  %v2064 = vmax.f32 %v2062, %v2063
  %v2065 = vpack.i.bf16 %v2064, %v2064
  %v2067 = vsel %vm2025, %v320, 4286644096
  %v2069 = vunpack.i.l.bf16 %v2067
  %v2070 = vunpack.i.h.bf16 %v2067
  %v2071 = vmax.f32 %v2069, %v2070
  %v2072 = vrot.slane %v2071, 4
  %v2073 = vmax.f32 %v2071, %v2072
  %v2074 = vrot.slane %v2073, 2
  %v2075 = vmax.f32 %v2073, %v2074
  %v2076 = vrot.slane %v2075, 1
  %v2077 = vmax.f32 %v2075, %v2076
  %v2078 = vpack.i.bf16 %v2077, %v2077
  %v2080 = vsel %vm2025, %v335, 4286644096
  %v2082 = vunpack.i.l.bf16 %v2080
  %v2083 = vunpack.i.h.bf16 %v2080
  %v2084 = vmax.f32 %v2082, %v2083
  %v2085 = vrot.slane %v2084, 4
  %v2086 = vmax.f32 %v2084, %v2085
  %v2087 = vrot.slane %v2086, 2
  %v2088 = vmax.f32 %v2086, %v2087
  %v2089 = vrot.slane %v2088, 1
  %v2090 = vmax.f32 %v2088, %v2089
  %v2091 = vpack.i.bf16 %v2090, %v2090
  %v2093 = vsel %vm2025, %v342, 4286644096
  %v2095 = vunpack.i.l.bf16 %v2093
  %v2096 = vunpack.i.h.bf16 %v2093
  %v2097 = vmax.f32 %v2095, %v2096
  %v2098 = vrot.slane %v2097, 4
  %v2099 = vmax.f32 %v2097, %v2098
  %v2100 = vrot.slane %v2099, 2
  %v2101 = vmax.f32 %v2099, %v2100
  %v2102 = vrot.slane %v2101, 1
  %v2103 = vmax.f32 %v2101, %v2102
  %v2104 = vpack.i.bf16 %v2103, %v2103
  %v2106 = vsel %vm2025, %v343, 4286644096
  %v2108 = vunpack.i.l.bf16 %v2106
  %v2109 = vunpack.i.h.bf16 %v2106
  %v2110 = vmax.f32 %v2108, %v2109
  %v2111 = vrot.slane %v2110, 4
  %v2112 = vmax.f32 %v2110, %v2111
  %v2113 = vrot.slane %v2112, 2
  %v2114 = vmax.f32 %v2112, %v2113
  %v2115 = vrot.slane %v2114, 1
  %v2116 = vmax.f32 %v2114, %v2115
  %v2117 = vpack.i.bf16 %v2116, %v2116
  %v2119 = vsel %vm2025, %v344, 4286644096
  %v2121 = vunpack.i.l.bf16 %v2119
  %v2122 = vunpack.i.h.bf16 %v2119
  %v2123 = vmax.f32 %v2121, %v2122
  %v2124 = vrot.slane %v2123, 4
  %v2125 = vmax.f32 %v2123, %v2124
  %v2126 = vrot.slane %v2125, 2
  %v2127 = vmax.f32 %v2125, %v2126
  %v2128 = vrot.slane %v2127, 1
  %v2129 = vmax.f32 %v2127, %v2128
  %v2130 = vpack.i.bf16 %v2129, %v2129
  %v2132 = vsel %vm2025, %v359, 4286644096
  %v2134 = vunpack.i.l.bf16 %v2132
  %v2135 = vunpack.i.h.bf16 %v2132
  %v2136 = vmax.f32 %v2134, %v2135
  %v2137 = vrot.slane %v2136, 4
  %v2138 = vmax.f32 %v2136, %v2137
  %v2139 = vrot.slane %v2138, 2
  %v2140 = vmax.f32 %v2138, %v2139
  %v2141 = vrot.slane %v2140, 1
  %v2142 = vmax.f32 %v2140, %v2141
  %v2143 = vpack.i.bf16 %v2142, %v2142
  %v2145 = vsel %vm2025, %v366, 4286644096
  %v2147 = vunpack.i.l.bf16 %v2145
  %v2148 = vunpack.i.h.bf16 %v2145
  %v2149 = vmax.f32 %v2147, %v2148
  %v2150 = vrot.slane %v2149, 4
  %v2151 = vmax.f32 %v2149, %v2150
  %v2152 = vrot.slane %v2151, 2
  %v2153 = vmax.f32 %v2151, %v2152
  %v2154 = vrot.slane %v2153, 1
  %v2155 = vmax.f32 %v2153, %v2154
  %v2156 = vpack.i.bf16 %v2155, %v2155
  %v2158 = vsel %vm2025, %v367, 4286644096
  %v2160 = vunpack.i.l.bf16 %v2158
  %v2161 = vunpack.i.h.bf16 %v2158
  %v2162 = vmax.f32 %v2160, %v2161
  %v2163 = vrot.slane %v2162, 4
  %v2164 = vmax.f32 %v2162, %v2163
  %v2165 = vrot.slane %v2164, 2
  %v2166 = vmax.f32 %v2164, %v2165
  %v2167 = vrot.slane %v2166, 1
  %v2168 = vmax.f32 %v2166, %v2167
  %v2169 = vpack.i.bf16 %v2168, %v2168
  %v2171 = vsel %vm2025, %v368, 4286644096
  %v2173 = vunpack.i.l.bf16 %v2171
  %v2174 = vunpack.i.h.bf16 %v2171
  %v2175 = vmax.f32 %v2173, %v2174
  %v2176 = vrot.slane %v2175, 4
  %v2177 = vmax.f32 %v2175, %v2176
  %v2178 = vrot.slane %v2177, 2
  %v2179 = vmax.f32 %v2177, %v2178
  %v2180 = vrot.slane %v2179, 1
  %v2181 = vmax.f32 %v2179, %v2180
  %v2182 = vpack.i.bf16 %v2181, %v2181
  %v2184 = vsel %vm2025, %v383, 4286644096
  %v2186 = vunpack.i.l.bf16 %v2184
  %v2187 = vunpack.i.h.bf16 %v2184
  %v2188 = vmax.f32 %v2186, %v2187
  %v2189 = vrot.slane %v2188, 4
  %v2190 = vmax.f32 %v2188, %v2189
  %v2191 = vrot.slane %v2190, 2
  %v2192 = vmax.f32 %v2190, %v2191
  %v2193 = vrot.slane %v2192, 1
  %v2194 = vmax.f32 %v2192, %v2193
  %v2195 = vpack.i.bf16 %v2194, %v2194
  %v2197 = vsel %vm2025, %v390, 4286644096
  %v2199 = vunpack.i.l.bf16 %v2197
  %v2200 = vunpack.i.h.bf16 %v2197
  %v2201 = vmax.f32 %v2199, %v2200
  %v2202 = vrot.slane %v2201, 4
  %v2203 = vmax.f32 %v2201, %v2202
  %v2204 = vrot.slane %v2203, 2
  %v2205 = vmax.f32 %v2203, %v2204
  %v2206 = vrot.slane %v2205, 1
  %v2207 = vmax.f32 %v2205, %v2206
  %v2208 = vpack.i.bf16 %v2207, %v2207
  %v2210 = vsel %vm2025, %v391, 4286644096
  %v2212 = vunpack.i.l.bf16 %v2210
  %v2213 = vunpack.i.h.bf16 %v2210
  %v2214 = vmax.f32 %v2212, %v2213
  %v2215 = vrot.slane %v2214, 4
  %v2216 = vmax.f32 %v2214, %v2215
  %v2217 = vrot.slane %v2216, 2
  %v2218 = vmax.f32 %v2216, %v2217
  %v2219 = vrot.slane %v2218, 1
  %v2220 = vmax.f32 %v2218, %v2219
  %v2221 = vpack.i.bf16 %v2220, %v2220
  %v2223 = vsel %vm2025, %v392, 4286644096
  %v2225 = vunpack.i.l.bf16 %v2223
  %v2226 = vunpack.i.h.bf16 %v2223
  %v2227 = vmax.f32 %v2225, %v2226
  %v2228 = vrot.slane %v2227, 4
  %v2229 = vmax.f32 %v2227, %v2228
  %v2230 = vrot.slane %v2229, 2
  %v2231 = vmax.f32 %v2229, %v2230
  %v2232 = vrot.slane %v2231, 1
  %v2233 = vmax.f32 %v2231, %v2232
  %v2234 = vpack.i.bf16 %v2233, %v2233
  %v2236 = vsel %vm2025, %v407, 4286644096
  %v2238 = vunpack.i.l.bf16 %v2236
  %v2239 = vunpack.i.h.bf16 %v2236
  %v2240 = vmax.f32 %v2238, %v2239
  %v2241 = vrot.slane %v2240, 4
  %v2242 = vmax.f32 %v2240, %v2241
  %v2243 = vrot.slane %v2242, 2
  %v2244 = vmax.f32 %v2242, %v2243
  %v2245 = vrot.slane %v2244, 1
  %v2246 = vmax.f32 %v2244, %v2245
  %v2247 = vpack.i.bf16 %v2246, %v2246
  %v2249 = vsel %vm2025, %v414, 4286644096
  %v2251 = vunpack.i.l.bf16 %v2249
  %v2252 = vunpack.i.h.bf16 %v2249
  %v2253 = vmax.f32 %v2251, %v2252
  %v2254 = vrot.slane %v2253, 4
  %v2255 = vmax.f32 %v2253, %v2254
  %v2256 = vrot.slane %v2255, 2
  %v2257 = vmax.f32 %v2255, %v2256
  %v2258 = vrot.slane %v2257, 1
  %v2259 = vmax.f32 %v2257, %v2258
  %v2260 = vpack.i.bf16 %v2259, %v2259
  %v2262 = vsel %vm2025, %v415, 4286644096
  %v2264 = vunpack.i.l.bf16 %v2262
  %v2265 = vunpack.i.h.bf16 %v2262
  %v2266 = vmax.f32 %v2264, %v2265
  %v2267 = vrot.slane %v2266, 4
  %v2268 = vmax.f32 %v2266, %v2267
  %v2269 = vrot.slane %v2268, 2
  %v2270 = vmax.f32 %v2268, %v2269
  %v2271 = vrot.slane %v2270, 1
  %v2272 = vmax.f32 %v2270, %v2271
  %v2273 = vpack.i.bf16 %v2272, %v2272
  %v2275 = vsel %vm2025, %v416, 4286644096
  %v2277 = vunpack.i.l.bf16 %v2275
  %v2278 = vunpack.i.h.bf16 %v2275
  %v2279 = vmax.f32 %v2277, %v2278
  %v2280 = vrot.slane %v2279, 4
  %v2281 = vmax.f32 %v2279, %v2280
  %v2282 = vrot.slane %v2281, 2
  %v2283 = vmax.f32 %v2281, %v2282
  %v2284 = vrot.slane %v2283, 1
  %v2285 = vmax.f32 %v2283, %v2284
  %v2286 = vpack.i.bf16 %v2285, %v2285
  %v2288 = vsel %vm2025, %v431, 4286644096
  %v2290 = vunpack.i.l.bf16 %v2288
  %v2291 = vunpack.i.h.bf16 %v2288
  %v2292 = vmax.f32 %v2290, %v2291
  %v2293 = vrot.slane %v2292, 4
  %v2294 = vmax.f32 %v2292, %v2293
  %v2295 = vrot.slane %v2294, 2
  %v2296 = vmax.f32 %v2294, %v2295
  %v2297 = vrot.slane %v2296, 1
  %v2298 = vmax.f32 %v2296, %v2297
  %v2299 = vpack.i.bf16 %v2298, %v2298
  %v2301 = vsel %vm2025, %v438, 4286644096
  %v2303 = vunpack.i.l.bf16 %v2301
  %v2304 = vunpack.i.h.bf16 %v2301
  %v2305 = vmax.f32 %v2303, %v2304
  %v2306 = vrot.slane %v2305, 4
  %v2307 = vmax.f32 %v2305, %v2306
  %v2308 = vrot.slane %v2307, 2
  %v2309 = vmax.f32 %v2307, %v2308
  %v2310 = vrot.slane %v2309, 1
  %v2311 = vmax.f32 %v2309, %v2310
  %v2312 = vpack.i.bf16 %v2311, %v2311
  %v2314 = vsel %vm2025, %v439, 4286644096
  %v2316 = vunpack.i.l.bf16 %v2314
  %v2317 = vunpack.i.h.bf16 %v2314
  %v2318 = vmax.f32 %v2316, %v2317
  %v2319 = vrot.slane %v2318, 4
  %v2320 = vmax.f32 %v2318, %v2319
  %v2321 = vrot.slane %v2320, 2
  %v2322 = vmax.f32 %v2320, %v2321
  %v2323 = vrot.slane %v2322, 1
  %v2324 = vmax.f32 %v2322, %v2323
  %v2325 = vpack.i.bf16 %v2324, %v2324
  %v2327 = vsel %vm2025, %v440, 4286644096
  %v2329 = vunpack.i.l.bf16 %v2327
  %v2330 = vunpack.i.h.bf16 %v2327
  %v2331 = vmax.f32 %v2329, %v2330
  %v2332 = vrot.slane %v2331, 4
  %v2333 = vmax.f32 %v2331, %v2332
  %v2334 = vrot.slane %v2333, 2
  %v2335 = vmax.f32 %v2333, %v2334
  %v2336 = vrot.slane %v2335, 1
  %v2337 = vmax.f32 %v2335, %v2336
  %v2338 = vpack.i.bf16 %v2337, %v2337
  %v2340 = vsel %vm2025, %v455, 4286644096
  %v2342 = vunpack.i.l.bf16 %v2340
  %v2343 = vunpack.i.h.bf16 %v2340
  %v2344 = vmax.f32 %v2342, %v2343
  %v2345 = vrot.slane %v2344, 4
  %v2346 = vmax.f32 %v2344, %v2345
  %v2347 = vrot.slane %v2346, 2
  %v2348 = vmax.f32 %v2346, %v2347
  %v2349 = vrot.slane %v2348, 1
  %v2350 = vmax.f32 %v2348, %v2349
  %v2351 = vpack.i.bf16 %v2350, %v2350
  %v2353 = vsel %vm2025, %v462, 4286644096
  %v2355 = vunpack.i.l.bf16 %v2353
  %v2356 = vunpack.i.h.bf16 %v2353
  %v2357 = vmax.f32 %v2355, %v2356
  %v2358 = vrot.slane %v2357, 4
  %v2359 = vmax.f32 %v2357, %v2358
  %v2360 = vrot.slane %v2359, 2
  %v2361 = vmax.f32 %v2359, %v2360
  %v2362 = vrot.slane %v2361, 1
  %v2363 = vmax.f32 %v2361, %v2362
  %v2364 = vpack.i.bf16 %v2363, %v2363
  %v2366 = vsel %vm2025, %v463, 4286644096
  %v2368 = vunpack.i.l.bf16 %v2366
  %v2369 = vunpack.i.h.bf16 %v2366
  %v2370 = vmax.f32 %v2368, %v2369
  %v2371 = vrot.slane %v2370, 4
  %v2372 = vmax.f32 %v2370, %v2371
  %v2373 = vrot.slane %v2372, 2
  %v2374 = vmax.f32 %v2372, %v2373
  %v2375 = vrot.slane %v2374, 1
  %v2376 = vmax.f32 %v2374, %v2375
  %v2377 = vpack.i.bf16 %v2376, %v2376
  %v2379 = vsel %vm2025, %v464, 4286644096
  %v2381 = vunpack.i.l.bf16 %v2379
  %v2382 = vunpack.i.h.bf16 %v2379
  %v2383 = vmax.f32 %v2381, %v2382
  %v2384 = vrot.slane %v2383, 4
  %v2385 = vmax.f32 %v2383, %v2384
  %v2386 = vrot.slane %v2385, 2
  %v2387 = vmax.f32 %v2385, %v2386
  %v2388 = vrot.slane %v2387, 1
  %v2389 = vmax.f32 %v2387, %v2388
  %v2390 = vpack.i.bf16 %v2389, %v2389
  %v2392 = vsel %vm2025, %v479, 4286644096
  %v2394 = vunpack.i.l.bf16 %v2392
  %v2395 = vunpack.i.h.bf16 %v2392
  %v2396 = vmax.f32 %v2394, %v2395
  %v2397 = vrot.slane %v2396, 4
  %v2398 = vmax.f32 %v2396, %v2397
  %v2399 = vrot.slane %v2398, 2
  %v2400 = vmax.f32 %v2398, %v2399
  %v2401 = vrot.slane %v2400, 1
  %v2402 = vmax.f32 %v2400, %v2401
  %v2403 = vpack.i.bf16 %v2402, %v2402
  %v2405 = vsel %vm2025, %v486, 4286644096
  %v2407 = vunpack.i.l.bf16 %v2405
  %v2408 = vunpack.i.h.bf16 %v2405
  %v2409 = vmax.f32 %v2407, %v2408
  %v2410 = vrot.slane %v2409, 4
  %v2411 = vmax.f32 %v2409, %v2410
  %v2412 = vrot.slane %v2411, 2
  %v2413 = vmax.f32 %v2411, %v2412
  %v2414 = vrot.slane %v2413, 1
  %v2415 = vmax.f32 %v2413, %v2414
  %v2416 = vpack.i.bf16 %v2415, %v2415
  %v2418 = vsel %vm2025, %v487, 4286644096
  %v2420 = vunpack.i.l.bf16 %v2418
  %v2421 = vunpack.i.h.bf16 %v2418
  %v2422 = vmax.f32 %v2420, %v2421
  %v2423 = vrot.slane %v2422, 4
  %v2424 = vmax.f32 %v2422, %v2423
  %v2425 = vrot.slane %v2424, 2
  %v2426 = vmax.f32 %v2424, %v2425
  %v2427 = vrot.slane %v2426, 1
  %v2428 = vmax.f32 %v2426, %v2427
  %v2429 = vpack.i.bf16 %v2428, %v2428
  %v2431 = vsel %vm2025, %v488, 4286644096
  %v2433 = vunpack.i.l.bf16 %v2431
  %v2434 = vunpack.i.h.bf16 %v2431
  %v2435 = vmax.f32 %v2433, %v2434
  %v2436 = vrot.slane %v2435, 4
  %v2437 = vmax.f32 %v2435, %v2436
  %v2438 = vrot.slane %v2437, 2
  %v2439 = vmax.f32 %v2437, %v2438
  %v2440 = vrot.slane %v2439, 1
  %v2441 = vmax.f32 %v2439, %v2440
  %v2442 = vpack.i.bf16 %v2441, %v2441
  %v2444 = vsel %vm2025, %v503, 4286644096
  %v2446 = vunpack.i.l.bf16 %v2444
  %v2447 = vunpack.i.h.bf16 %v2444
  %v2448 = vmax.f32 %v2446, %v2447
  %v2449 = vrot.slane %v2448, 4
  %v2450 = vmax.f32 %v2448, %v2449
  %v2451 = vrot.slane %v2450, 2
  %v2452 = vmax.f32 %v2450, %v2451
  %v2453 = vrot.slane %v2452, 1
  %v2454 = vmax.f32 %v2452, %v2453
  %v2455 = vpack.i.bf16 %v2454, %v2454
  %v2457 = vsel %vm2025, %v510, 4286644096
  %v2459 = vunpack.i.l.bf16 %v2457
  %v2460 = vunpack.i.h.bf16 %v2457
  %v2461 = vmax.f32 %v2459, %v2460
  %v2462 = vrot.slane %v2461, 4
  %v2463 = vmax.f32 %v2461, %v2462
  %v2464 = vrot.slane %v2463, 2
  %v2465 = vmax.f32 %v2463, %v2464
  %v2466 = vrot.slane %v2465, 1
  %v2467 = vmax.f32 %v2465, %v2466
  %v2468 = vpack.i.bf16 %v2467, %v2467
  %v2470 = vsel %vm2025, %v511, 4286644096
  %v2472 = vunpack.i.l.bf16 %v2470
  %v2473 = vunpack.i.h.bf16 %v2470
  %v2474 = vmax.f32 %v2472, %v2473
  %v2475 = vrot.slane %v2474, 4
  %v2476 = vmax.f32 %v2474, %v2475
  %v2477 = vrot.slane %v2476, 2
  %v2478 = vmax.f32 %v2476, %v2477
  %v2479 = vrot.slane %v2478, 1
  %v2480 = vmax.f32 %v2478, %v2479
  %v2481 = vpack.i.bf16 %v2480, %v2480
  %v2483 = vsel %vm2025, %v512, 4286644096
  %v2485 = vunpack.i.l.bf16 %v2483
  %v2486 = vunpack.i.h.bf16 %v2483
  %v2487 = vmax.f32 %v2485, %v2486
  %v2488 = vrot.slane %v2487, 4
  %v2489 = vmax.f32 %v2487, %v2488
  %v2490 = vrot.slane %v2489, 2
  %v2491 = vmax.f32 %v2489, %v2490
  %v2492 = vrot.slane %v2491, 1
  %v2493 = vmax.f32 %v2491, %v2492
  %v2494 = vpack.i.bf16 %v2493, %v2493
  %v2496 = vsel %vm2025, %v527, 4286644096
  %v2498 = vunpack.i.l.bf16 %v2496
  %v2499 = vunpack.i.h.bf16 %v2496
  %v2500 = vmax.f32 %v2498, %v2499
  %v2501 = vrot.slane %v2500, 4
  %v2502 = vmax.f32 %v2500, %v2501
  %v2503 = vrot.slane %v2502, 2
  %v2504 = vmax.f32 %v2502, %v2503
  %v2505 = vrot.slane %v2504, 1
  %v2506 = vmax.f32 %v2504, %v2505
  %v2507 = vpack.i.bf16 %v2506, %v2506
  %v2509 = vsel %vm2025, %v534, 4286644096
  %v2511 = vunpack.i.l.bf16 %v2509
  %v2512 = vunpack.i.h.bf16 %v2509
  %v2513 = vmax.f32 %v2511, %v2512
  %v2514 = vrot.slane %v2513, 4
  %v2515 = vmax.f32 %v2513, %v2514
  %v2516 = vrot.slane %v2515, 2
  %v2517 = vmax.f32 %v2515, %v2516
  %v2518 = vrot.slane %v2517, 1
  %v2519 = vmax.f32 %v2517, %v2518
  %v2520 = vpack.i.bf16 %v2519, %v2519
  %v2522 = vsel %vm2025, %v535, 4286644096
  %v2524 = vunpack.i.l.bf16 %v2522
  %v2525 = vunpack.i.h.bf16 %v2522
  %v2526 = vmax.f32 %v2524, %v2525
  %v2527 = vrot.slane %v2526, 4
  %v2528 = vmax.f32 %v2526, %v2527
  %v2529 = vrot.slane %v2528, 2
  %v2530 = vmax.f32 %v2528, %v2529
  %v2531 = vrot.slane %v2530, 1
  %v2532 = vmax.f32 %v2530, %v2531
  %v2533 = vpack.i.bf16 %v2532, %v2532
  %v2535 = vsel %vm2025, %v536, 4286644096
  %v2537 = vunpack.i.l.bf16 %v2535
  %v2538 = vunpack.i.h.bf16 %v2535
  %v2539 = vmax.f32 %v2537, %v2538
  %v2540 = vrot.slane %v2539, 4
  %v2541 = vmax.f32 %v2539, %v2540
  %v2542 = vrot.slane %v2541, 2
  %v2543 = vmax.f32 %v2541, %v2542
  %v2544 = vrot.slane %v2543, 1
  %v2545 = vmax.f32 %v2543, %v2544
  %v2546 = vpack.i.bf16 %v2545, %v2545
  %v2548 = vsel %vm2025, %v551, 4286644096
  %v2550 = vunpack.i.l.bf16 %v2548
  %v2551 = vunpack.i.h.bf16 %v2548
  %v2552 = vmax.f32 %v2550, %v2551
  %v2553 = vrot.slane %v2552, 4
  %v2554 = vmax.f32 %v2552, %v2553
  %v2555 = vrot.slane %v2554, 2
  %v2556 = vmax.f32 %v2554, %v2555
  %v2557 = vrot.slane %v2556, 1
  %v2558 = vmax.f32 %v2556, %v2557
  %v2559 = vpack.i.bf16 %v2558, %v2558
  %v2561 = vsel %vm2025, %v558, 4286644096
  %v2563 = vunpack.i.l.bf16 %v2561
  %v2564 = vunpack.i.h.bf16 %v2561
  %v2565 = vmax.f32 %v2563, %v2564
  %v2566 = vrot.slane %v2565, 4
  %v2567 = vmax.f32 %v2565, %v2566
  %v2568 = vrot.slane %v2567, 2
  %v2569 = vmax.f32 %v2567, %v2568
  %v2570 = vrot.slane %v2569, 1
  %v2571 = vmax.f32 %v2569, %v2570
  %v2572 = vpack.i.bf16 %v2571, %v2571
  %v2574 = vsel %vm2025, %v559, 4286644096
  %v2576 = vunpack.i.l.bf16 %v2574
  %v2577 = vunpack.i.h.bf16 %v2574
  %v2578 = vmax.f32 %v2576, %v2577
  %v2579 = vrot.slane %v2578, 4
  %v2580 = vmax.f32 %v2578, %v2579
  %v2581 = vrot.slane %v2580, 2
  %v2582 = vmax.f32 %v2580, %v2581
  %v2583 = vrot.slane %v2582, 1
  %v2584 = vmax.f32 %v2582, %v2583
  %v2585 = vpack.i.bf16 %v2584, %v2584
  %v2587 = vsel %vm2025, %v560, 4286644096
  %v2589 = vunpack.i.l.bf16 %v2587
  %v2590 = vunpack.i.h.bf16 %v2587
  %v2591 = vmax.f32 %v2589, %v2590
  %v2592 = vrot.slane %v2591, 4
  %v2593 = vmax.f32 %v2591, %v2592
  %v2594 = vrot.slane %v2593, 2
  %v2595 = vmax.f32 %v2593, %v2594
  %v2596 = vrot.slane %v2595, 1
  %v2597 = vmax.f32 %v2595, %v2596
  %v2598 = vpack.i.bf16 %v2597, %v2597
  %v2600 = vsel %vm2025, %v575, 4286644096
  %v2602 = vunpack.i.l.bf16 %v2600
  %v2603 = vunpack.i.h.bf16 %v2600
  %v2604 = vmax.f32 %v2602, %v2603
  %v2605 = vrot.slane %v2604, 4
  %v2606 = vmax.f32 %v2604, %v2605
  %v2607 = vrot.slane %v2606, 2
  %v2608 = vmax.f32 %v2606, %v2607
  %v2609 = vrot.slane %v2608, 1
  %v2610 = vmax.f32 %v2608, %v2609
  %v2611 = vpack.i.bf16 %v2610, %v2610
  %v2613 = vsel %vm2025, %v582, 4286644096
  %v2615 = vunpack.i.l.bf16 %v2613
  %v2616 = vunpack.i.h.bf16 %v2613
  %v2617 = vmax.f32 %v2615, %v2616
  %v2618 = vrot.slane %v2617, 4
  %v2619 = vmax.f32 %v2617, %v2618
  %v2620 = vrot.slane %v2619, 2
  %v2621 = vmax.f32 %v2619, %v2620
  %v2622 = vrot.slane %v2621, 1
  %v2623 = vmax.f32 %v2621, %v2622
  %v2624 = vpack.i.bf16 %v2623, %v2623
  %v2626 = vsel %vm2025, %v583, 4286644096
  %v2628 = vunpack.i.l.bf16 %v2626
  %v2629 = vunpack.i.h.bf16 %v2626
  %v2630 = vmax.f32 %v2628, %v2629
  %v2631 = vrot.slane %v2630, 4
  %v2632 = vmax.f32 %v2630, %v2631
  %v2633 = vrot.slane %v2632, 2
  %v2634 = vmax.f32 %v2632, %v2633
  %v2635 = vrot.slane %v2634, 1
  %v2636 = vmax.f32 %v2634, %v2635
  %v2637 = vpack.i.bf16 %v2636, %v2636
  %v2639 = vsel %vm2025, %v584, 4286644096
  %v2641 = vunpack.i.l.bf16 %v2639
  %v2642 = vunpack.i.h.bf16 %v2639
  %v2643 = vmax.f32 %v2641, %v2642
  %v2644 = vrot.slane %v2643, 4
  %v2645 = vmax.f32 %v2643, %v2644
  %v2646 = vrot.slane %v2645, 2
  %v2647 = vmax.f32 %v2645, %v2646
  %v2648 = vrot.slane %v2647, 1
  %v2649 = vmax.f32 %v2647, %v2648
  %v2650 = vpack.i.bf16 %v2649, %v2649
  %v2652 = vsel %vm2025, %v599, 4286644096
  %v2654 = vunpack.i.l.bf16 %v2652
  %v2655 = vunpack.i.h.bf16 %v2652
  %v2656 = vmax.f32 %v2654, %v2655
  %v2657 = vrot.slane %v2656, 4
  %v2658 = vmax.f32 %v2656, %v2657
  %v2659 = vrot.slane %v2658, 2
  %v2660 = vmax.f32 %v2658, %v2659
  %v2661 = vrot.slane %v2660, 1
  %v2662 = vmax.f32 %v2660, %v2661
  %v2663 = vpack.i.bf16 %v2662, %v2662
  %v2665 = vsel %vm2025, %v606, 4286644096
  %v2667 = vunpack.i.l.bf16 %v2665
  %v2668 = vunpack.i.h.bf16 %v2665
  %v2669 = vmax.f32 %v2667, %v2668
  %v2670 = vrot.slane %v2669, 4
  %v2671 = vmax.f32 %v2669, %v2670
  %v2672 = vrot.slane %v2671, 2
  %v2673 = vmax.f32 %v2671, %v2672
  %v2674 = vrot.slane %v2673, 1
  %v2675 = vmax.f32 %v2673, %v2674
  %v2676 = vpack.i.bf16 %v2675, %v2675
  %v2678 = vsel %vm2025, %v607, 4286644096
  %v2680 = vunpack.i.l.bf16 %v2678
  %v2681 = vunpack.i.h.bf16 %v2678
  %v2682 = vmax.f32 %v2680, %v2681
  %v2683 = vrot.slane %v2682, 4
  %v2684 = vmax.f32 %v2682, %v2683
  %v2685 = vrot.slane %v2684, 2
  %v2686 = vmax.f32 %v2684, %v2685
  %v2687 = vrot.slane %v2686, 1
  %v2688 = vmax.f32 %v2686, %v2687
  %v2689 = vpack.i.bf16 %v2688, %v2688
  %v2691 = vsel %vm2025, %v608, 4286644096
  %v2693 = vunpack.i.l.bf16 %v2691
  %v2694 = vunpack.i.h.bf16 %v2691
  %v2695 = vmax.f32 %v2693, %v2694
  %v2696 = vrot.slane %v2695, 4
  %v2697 = vmax.f32 %v2695, %v2696
  %v2698 = vrot.slane %v2697, 2
  %v2699 = vmax.f32 %v2697, %v2698
  %v2700 = vrot.slane %v2699, 1
  %v2701 = vmax.f32 %v2699, %v2700
  %v2702 = vpack.i.bf16 %v2701, %v2701
  %v2704 = vsel %vm2025, %v623, 4286644096
  %v2706 = vunpack.i.l.bf16 %v2704
  %v2707 = vunpack.i.h.bf16 %v2704
  %v2708 = vmax.f32 %v2706, %v2707
  %v2709 = vrot.slane %v2708, 4
  %v2710 = vmax.f32 %v2708, %v2709
  %v2711 = vrot.slane %v2710, 2
  %v2712 = vmax.f32 %v2710, %v2711
  %v2713 = vrot.slane %v2712, 1
  %v2714 = vmax.f32 %v2712, %v2713
  %v2715 = vpack.i.bf16 %v2714, %v2714
  %v2717 = vsel %vm2025, %v630, 4286644096
  %v2719 = vunpack.i.l.bf16 %v2717
  %v2720 = vunpack.i.h.bf16 %v2717
  %v2721 = vmax.f32 %v2719, %v2720
  %v2722 = vrot.slane %v2721, 4
  %v2723 = vmax.f32 %v2721, %v2722
  %v2724 = vrot.slane %v2723, 2
  %v2725 = vmax.f32 %v2723, %v2724
  %v2726 = vrot.slane %v2725, 1
  %v2727 = vmax.f32 %v2725, %v2726
  %v2728 = vpack.i.bf16 %v2727, %v2727
  %v2730 = vsel %vm2025, %v631, 4286644096
  %v2732 = vunpack.i.l.bf16 %v2730
  %v2733 = vunpack.i.h.bf16 %v2730
  %v2734 = vmax.f32 %v2732, %v2733
  %v2735 = vrot.slane %v2734, 4
  %v2736 = vmax.f32 %v2734, %v2735
  %v2737 = vrot.slane %v2736, 2
  %v2738 = vmax.f32 %v2736, %v2737
  %v2739 = vrot.slane %v2738, 1
  %v2740 = vmax.f32 %v2738, %v2739
  %v2741 = vpack.i.bf16 %v2740, %v2740
  %v2743 = vsel %vm2025, %v632, 4286644096
  %v2745 = vunpack.i.l.bf16 %v2743
  %v2746 = vunpack.i.h.bf16 %v2743
  %v2747 = vmax.f32 %v2745, %v2746
  %v2748 = vrot.slane %v2747, 4
  %v2749 = vmax.f32 %v2747, %v2748
  %v2750 = vrot.slane %v2749, 2
  %v2751 = vmax.f32 %v2749, %v2750
  %v2752 = vrot.slane %v2751, 1
  %v2753 = vmax.f32 %v2751, %v2752
  %v2754 = vpack.i.bf16 %v2753, %v2753
  %v2756 = vsel %vm2025, %v647, 4286644096
  %v2758 = vunpack.i.l.bf16 %v2756
  %v2759 = vunpack.i.h.bf16 %v2756
  %v2760 = vmax.f32 %v2758, %v2759
  %v2761 = vrot.slane %v2760, 4
  %v2762 = vmax.f32 %v2760, %v2761
  %v2763 = vrot.slane %v2762, 2
  %v2764 = vmax.f32 %v2762, %v2763
  %v2765 = vrot.slane %v2764, 1
  %v2766 = vmax.f32 %v2764, %v2765
  %v2767 = vpack.i.bf16 %v2766, %v2766
  %v2769 = vsel %vm2025, %v654, 4286644096
  %v2771 = vunpack.i.l.bf16 %v2769
  %v2772 = vunpack.i.h.bf16 %v2769
  %v2773 = vmax.f32 %v2771, %v2772
  %v2774 = vrot.slane %v2773, 4
  %v2775 = vmax.f32 %v2773, %v2774
  %v2776 = vrot.slane %v2775, 2
  %v2777 = vmax.f32 %v2775, %v2776
  %v2778 = vrot.slane %v2777, 1
  %v2779 = vmax.f32 %v2777, %v2778
  %v2780 = vpack.i.bf16 %v2779, %v2779
  %v2782 = vsel %vm2025, %v655, 4286644096
  %v2784 = vunpack.i.l.bf16 %v2782
  %v2785 = vunpack.i.h.bf16 %v2782
  %v2786 = vmax.f32 %v2784, %v2785
  %v2787 = vrot.slane %v2786, 4
  %v2788 = vmax.f32 %v2786, %v2787
  %v2789 = vrot.slane %v2788, 2
  %v2790 = vmax.f32 %v2788, %v2789
  %v2791 = vrot.slane %v2790, 1
  %v2792 = vmax.f32 %v2790, %v2791
  %v2793 = vpack.i.bf16 %v2792, %v2792
  %v2795 = vsel %vm2025, %v656, 4286644096
  %v2797 = vunpack.i.l.bf16 %v2795
  %v2798 = vunpack.i.h.bf16 %v2795
  %v2799 = vmax.f32 %v2797, %v2798
  %v2800 = vrot.slane %v2799, 4
  %v2801 = vmax.f32 %v2799, %v2800
  %v2802 = vrot.slane %v2801, 2
  %v2803 = vmax.f32 %v2801, %v2802
  %v2804 = vrot.slane %v2803, 1
  %v2805 = vmax.f32 %v2803, %v2804
  %v2806 = vpack.i.bf16 %v2805, %v2805
  %v2808 = vsel %vm2025, %v671, 4286644096
  %v2810 = vunpack.i.l.bf16 %v2808
  %v2811 = vunpack.i.h.bf16 %v2808
  %v2812 = vmax.f32 %v2810, %v2811
  %v2813 = vrot.slane %v2812, 4
  %v2814 = vmax.f32 %v2812, %v2813
  %v2815 = vrot.slane %v2814, 2
  %v2816 = vmax.f32 %v2814, %v2815
  %v2817 = vrot.slane %v2816, 1
  %v2818 = vmax.f32 %v2816, %v2817
  %v2819 = vpack.i.bf16 %v2818, %v2818
  %v2821 = vsel %vm2025, %v678, 4286644096
  %v2823 = vunpack.i.l.bf16 %v2821
  %v2824 = vunpack.i.h.bf16 %v2821
  %v2825 = vmax.f32 %v2823, %v2824
  %v2826 = vrot.slane %v2825, 4
  %v2827 = vmax.f32 %v2825, %v2826
  %v2828 = vrot.slane %v2827, 2
  %v2829 = vmax.f32 %v2827, %v2828
  %v2830 = vrot.slane %v2829, 1
  %v2831 = vmax.f32 %v2829, %v2830
  %v2832 = vpack.i.bf16 %v2831, %v2831
  %v2834 = vsel %vm2025, %v679, 4286644096
  %v2836 = vunpack.i.l.bf16 %v2834
  %v2837 = vunpack.i.h.bf16 %v2834
  %v2838 = vmax.f32 %v2836, %v2837
  %v2839 = vrot.slane %v2838, 4
  %v2840 = vmax.f32 %v2838, %v2839
  %v2841 = vrot.slane %v2840, 2
  %v2842 = vmax.f32 %v2840, %v2841
  %v2843 = vrot.slane %v2842, 1
  %v2844 = vmax.f32 %v2842, %v2843
  %v2845 = vpack.i.bf16 %v2844, %v2844
  %v2847 = vsel %vm2025, %v680, 4286644096
  %v2849 = vunpack.i.l.bf16 %v2847
  %v2850 = vunpack.i.h.bf16 %v2847
  %v2851 = vmax.f32 %v2849, %v2850
  %v2852 = vrot.slane %v2851, 4
  %v2853 = vmax.f32 %v2851, %v2852
  %v2854 = vrot.slane %v2853, 2
  %v2855 = vmax.f32 %v2853, %v2854
  %v2856 = vrot.slane %v2855, 1
  %v2857 = vmax.f32 %v2855, %v2856
  %v2858 = vpack.i.bf16 %v2857, %v2857
  %v2860 = vsel %vm2025, %v695, 4286644096
  %v2862 = vunpack.i.l.bf16 %v2860
  %v2863 = vunpack.i.h.bf16 %v2860
  %v2864 = vmax.f32 %v2862, %v2863
  %v2865 = vrot.slane %v2864, 4
  %v2866 = vmax.f32 %v2864, %v2865
  %v2867 = vrot.slane %v2866, 2
  %v2868 = vmax.f32 %v2866, %v2867
  %v2869 = vrot.slane %v2868, 1
  %v2870 = vmax.f32 %v2868, %v2869
  %v2871 = vpack.i.bf16 %v2870, %v2870
  %v2873 = vsel %vm2025, %v702, 4286644096
  %v2875 = vunpack.i.l.bf16 %v2873
  %v2876 = vunpack.i.h.bf16 %v2873
  %v2877 = vmax.f32 %v2875, %v2876
  %v2878 = vrot.slane %v2877, 4
  %v2879 = vmax.f32 %v2877, %v2878
  %v2880 = vrot.slane %v2879, 2
  %v2881 = vmax.f32 %v2879, %v2880
  %v2882 = vrot.slane %v2881, 1
  %v2883 = vmax.f32 %v2881, %v2882
  %v2884 = vpack.i.bf16 %v2883, %v2883
  %v2886 = vsel %vm2025, %v703, 4286644096
  %v2888 = vunpack.i.l.bf16 %v2886
  %v2889 = vunpack.i.h.bf16 %v2886
  %v2890 = vmax.f32 %v2888, %v2889
  %v2891 = vrot.slane %v2890, 4
  %v2892 = vmax.f32 %v2890, %v2891
  %v2893 = vrot.slane %v2892, 2
  %v2894 = vmax.f32 %v2892, %v2893
  %v2895 = vrot.slane %v2894, 1
  %v2896 = vmax.f32 %v2894, %v2895
  %v2897 = vpack.i.bf16 %v2896, %v2896
  %v2899 = vsel %vm2025, %v704, 4286644096
  %v2901 = vunpack.i.l.bf16 %v2899
  %v2902 = vunpack.i.h.bf16 %v2899
  %v2903 = vmax.f32 %v2901, %v2902
  %v2904 = vrot.slane %v2903, 4
  %v2905 = vmax.f32 %v2903, %v2904
  %v2906 = vrot.slane %v2905, 2
  %v2907 = vmax.f32 %v2905, %v2906
  %v2908 = vrot.slane %v2907, 1
  %v2909 = vmax.f32 %v2907, %v2908
  %v2910 = vpack.i.bf16 %v2909, %v2909
  %v2912 = vsel %vm2025, %v719, 4286644096
  %v2914 = vunpack.i.l.bf16 %v2912
  %v2915 = vunpack.i.h.bf16 %v2912
  %v2916 = vmax.f32 %v2914, %v2915
  %v2917 = vrot.slane %v2916, 4
  %v2918 = vmax.f32 %v2916, %v2917
  %v2919 = vrot.slane %v2918, 2
  %v2920 = vmax.f32 %v2918, %v2919
  %v2921 = vrot.slane %v2920, 1
  %v2922 = vmax.f32 %v2920, %v2921
  %v2923 = vpack.i.bf16 %v2922, %v2922
  %v2925 = vsel %vm2025, %v726, 4286644096
  %v2927 = vunpack.i.l.bf16 %v2925
  %v2928 = vunpack.i.h.bf16 %v2925
  %v2929 = vmax.f32 %v2927, %v2928
  %v2930 = vrot.slane %v2929, 4
  %v2931 = vmax.f32 %v2929, %v2930
  %v2932 = vrot.slane %v2931, 2
  %v2933 = vmax.f32 %v2931, %v2932
  %v2934 = vrot.slane %v2933, 1
  %v2935 = vmax.f32 %v2933, %v2934
  %v2936 = vpack.i.bf16 %v2935, %v2935
  %v2938 = vsel %vm2025, %v727, 4286644096
  %v2940 = vunpack.i.l.bf16 %v2938
  %v2941 = vunpack.i.h.bf16 %v2938
  %v2942 = vmax.f32 %v2940, %v2941
  %v2943 = vrot.slane %v2942, 4
  %v2944 = vmax.f32 %v2942, %v2943
  %v2945 = vrot.slane %v2944, 2
  %v2946 = vmax.f32 %v2944, %v2945
  %v2947 = vrot.slane %v2946, 1
  %v2948 = vmax.f32 %v2946, %v2947
  %v2949 = vpack.i.bf16 %v2948, %v2948
  %v2951 = vsel %vm2025, %v728, 4286644096
  %v2953 = vunpack.i.l.bf16 %v2951
  %v2954 = vunpack.i.h.bf16 %v2951
  %v2955 = vmax.f32 %v2953, %v2954
  %v2956 = vrot.slane %v2955, 4
  %v2957 = vmax.f32 %v2955, %v2956
  %v2958 = vrot.slane %v2957, 2
  %v2959 = vmax.f32 %v2957, %v2958
  %v2960 = vrot.slane %v2959, 1
  %v2961 = vmax.f32 %v2959, %v2960
  %v2962 = vpack.i.bf16 %v2961, %v2961
  %v2964 = vsel %vm2025, %v743, 4286644096
  %v2966 = vunpack.i.l.bf16 %v2964
  %v2967 = vunpack.i.h.bf16 %v2964
  %v2968 = vmax.f32 %v2966, %v2967
  %v2969 = vrot.slane %v2968, 4
  %v2970 = vmax.f32 %v2968, %v2969
  %v2971 = vrot.slane %v2970, 2
  %v2972 = vmax.f32 %v2970, %v2971
  %v2973 = vrot.slane %v2972, 1
  %v2974 = vmax.f32 %v2972, %v2973
  %v2975 = vpack.i.bf16 %v2974, %v2974
  %v2977 = vsel %vm2025, %v750, 4286644096
  %v2979 = vunpack.i.l.bf16 %v2977
  %v2980 = vunpack.i.h.bf16 %v2977
  %v2981 = vmax.f32 %v2979, %v2980
  %v2982 = vrot.slane %v2981, 4
  %v2983 = vmax.f32 %v2981, %v2982
  %v2984 = vrot.slane %v2983, 2
  %v2985 = vmax.f32 %v2983, %v2984
  %v2986 = vrot.slane %v2985, 1
  %v2987 = vmax.f32 %v2985, %v2986
  %v2988 = vpack.i.bf16 %v2987, %v2987
  %v2990 = vsel %vm2025, %v751, 4286644096
  %v2992 = vunpack.i.l.bf16 %v2990
  %v2993 = vunpack.i.h.bf16 %v2990
  %v2994 = vmax.f32 %v2992, %v2993
  %v2995 = vrot.slane %v2994, 4
  %v2996 = vmax.f32 %v2994, %v2995
  %v2997 = vrot.slane %v2996, 2
  %v2998 = vmax.f32 %v2996, %v2997
  %v2999 = vrot.slane %v2998, 1
  %v3000 = vmax.f32 %v2998, %v2999
  %v3001 = vpack.i.bf16 %v3000, %v3000
  %v3003 = vsel %vm2025, %v752, 4286644096
  %v3005 = vunpack.i.l.bf16 %v3003
  %v3006 = vunpack.i.h.bf16 %v3003
  %v3007 = vmax.f32 %v3005, %v3006
  %v3008 = vrot.slane %v3007, 4
  %v3009 = vmax.f32 %v3007, %v3008
  %v3010 = vrot.slane %v3009, 2
  %v3011 = vmax.f32 %v3009, %v3010
  %v3012 = vrot.slane %v3011, 1
  %v3013 = vmax.f32 %v3011, %v3012
  %v3014 = vpack.i.bf16 %v3013, %v3013
  %v3016 = vsel %vm2025, %v767, 4286644096
  %v3018 = vunpack.i.l.bf16 %v3016
  %v3019 = vunpack.i.h.bf16 %v3016
  %v3020 = vmax.f32 %v3018, %v3019
  %v3021 = vrot.slane %v3020, 4
  %v3022 = vmax.f32 %v3020, %v3021
  %v3023 = vrot.slane %v3022, 2
  %v3024 = vmax.f32 %v3022, %v3023
  %v3025 = vrot.slane %v3024, 1
  %v3026 = vmax.f32 %v3024, %v3025
  %v3027 = vpack.i.bf16 %v3026, %v3026
  %v3029 = vsel %vm2025, %v774, 4286644096
  %v3031 = vunpack.i.l.bf16 %v3029
  %v3032 = vunpack.i.h.bf16 %v3029
  %v3033 = vmax.f32 %v3031, %v3032
  %v3034 = vrot.slane %v3033, 4
  %v3035 = vmax.f32 %v3033, %v3034
  %v3036 = vrot.slane %v3035, 2
  %v3037 = vmax.f32 %v3035, %v3036
  %v3038 = vrot.slane %v3037, 1
  %v3039 = vmax.f32 %v3037, %v3038
  %v3040 = vpack.i.bf16 %v3039, %v3039
  %v3042 = vsel %vm2025, %v775, 4286644096
  %v3044 = vunpack.i.l.bf16 %v3042
  %v3045 = vunpack.i.h.bf16 %v3042
  %v3046 = vmax.f32 %v3044, %v3045
  %v3047 = vrot.slane %v3046, 4
  %v3048 = vmax.f32 %v3046, %v3047
  %v3049 = vrot.slane %v3048, 2
  %v3050 = vmax.f32 %v3048, %v3049
  %v3051 = vrot.slane %v3050, 1
  %v3052 = vmax.f32 %v3050, %v3051
  %v3053 = vpack.i.bf16 %v3052, %v3052
  %v3055 = vsel %vm2025, %v776, 4286644096
  %v3057 = vunpack.i.l.bf16 %v3055
  %v3058 = vunpack.i.h.bf16 %v3055
  %v3059 = vmax.f32 %v3057, %v3058
  %v3060 = vrot.slane %v3059, 4
  %v3061 = vmax.f32 %v3059, %v3060
  %v3062 = vrot.slane %v3061, 2
  %v3063 = vmax.f32 %v3061, %v3062
  %v3064 = vrot.slane %v3063, 1
  %v3065 = vmax.f32 %v3063, %v3064
  %v3066 = vpack.i.bf16 %v3065, %v3065
  %v3068 = vsel %vm2025, %v791, 4286644096
  %v3070 = vunpack.i.l.bf16 %v3068
  %v3071 = vunpack.i.h.bf16 %v3068
  %v3072 = vmax.f32 %v3070, %v3071
  %v3073 = vrot.slane %v3072, 4
  %v3074 = vmax.f32 %v3072, %v3073
  %v3075 = vrot.slane %v3074, 2
  %v3076 = vmax.f32 %v3074, %v3075
  %v3077 = vrot.slane %v3076, 1
  %v3078 = vmax.f32 %v3076, %v3077
  %v3079 = vpack.i.bf16 %v3078, %v3078
  %v3081 = vsel %vm2025, %v798, 4286644096
  %v3083 = vunpack.i.l.bf16 %v3081
  %v3084 = vunpack.i.h.bf16 %v3081
  %v3085 = vmax.f32 %v3083, %v3084
  %v3086 = vrot.slane %v3085, 4
  %v3087 = vmax.f32 %v3085, %v3086
  %v3088 = vrot.slane %v3087, 2
  %v3089 = vmax.f32 %v3087, %v3088
  %v3090 = vrot.slane %v3089, 1
  %v3091 = vmax.f32 %v3089, %v3090
  %v3092 = vpack.i.bf16 %v3091, %v3091
  %v3094 = vsel %vm2025, %v799, 4286644096
  %v3096 = vunpack.i.l.bf16 %v3094
  %v3097 = vunpack.i.h.bf16 %v3094
  %v3098 = vmax.f32 %v3096, %v3097
  %v3099 = vrot.slane %v3098, 4
  %v3100 = vmax.f32 %v3098, %v3099
  %v3101 = vrot.slane %v3100, 2
  %v3102 = vmax.f32 %v3100, %v3101
  %v3103 = vrot.slane %v3102, 1
  %v3104 = vmax.f32 %v3102, %v3103
  %v3105 = vpack.i.bf16 %v3104, %v3104
  %v3107 = vsel %vm2025, %v800, 4286644096
  %v3109 = vunpack.i.l.bf16 %v3107
  %v3110 = vunpack.i.h.bf16 %v3107
  %v3111 = vmax.f32 %v3109, %v3110
  %v3112 = vrot.slane %v3111, 4
  %v3113 = vmax.f32 %v3111, %v3112
  %v3114 = vrot.slane %v3113, 2
  %v3115 = vmax.f32 %v3113, %v3114
  %v3116 = vrot.slane %v3115, 1
  %v3117 = vmax.f32 %v3115, %v3116
  %v3118 = vpack.i.bf16 %v3117, %v3117
  %v3120 = vsel %vm2025, %v815, 4286644096
  %v3122 = vunpack.i.l.bf16 %v3120
  %v3123 = vunpack.i.h.bf16 %v3120
  %v3124 = vmax.f32 %v3122, %v3123
  %v3125 = vrot.slane %v3124, 4
  %v3126 = vmax.f32 %v3124, %v3125
  %v3127 = vrot.slane %v3126, 2
  %v3128 = vmax.f32 %v3126, %v3127
  %v3129 = vrot.slane %v3128, 1
  %v3130 = vmax.f32 %v3128, %v3129
  %v3131 = vpack.i.bf16 %v3130, %v3130
  %v3133 = vsel %vm2025, %v822, 4286644096
  %v3135 = vunpack.i.l.bf16 %v3133
  %v3136 = vunpack.i.h.bf16 %v3133
  %v3137 = vmax.f32 %v3135, %v3136
  %v3138 = vrot.slane %v3137, 4
  %v3139 = vmax.f32 %v3137, %v3138
  %v3140 = vrot.slane %v3139, 2
  %v3141 = vmax.f32 %v3139, %v3140
  %v3142 = vrot.slane %v3141, 1
  %v3143 = vmax.f32 %v3141, %v3142
  %v3144 = vpack.i.bf16 %v3143, %v3143
  %v3146 = vsel %vm2025, %v823, 4286644096
  %v3148 = vunpack.i.l.bf16 %v3146
  %v3149 = vunpack.i.h.bf16 %v3146
  %v3150 = vmax.f32 %v3148, %v3149
  %v3151 = vrot.slane %v3150, 4
  %v3152 = vmax.f32 %v3150, %v3151
  %v3153 = vrot.slane %v3152, 2
  %v3154 = vmax.f32 %v3152, %v3153
  %v3155 = vrot.slane %v3154, 1
  %v3156 = vmax.f32 %v3154, %v3155
  %v3157 = vpack.i.bf16 %v3156, %v3156
  %v3159 = vsel %vm2025, %v824, 4286644096
  %v3161 = vunpack.i.l.bf16 %v3159
  %v3162 = vunpack.i.h.bf16 %v3159
  %v3163 = vmax.f32 %v3161, %v3162
  %v3164 = vrot.slane %v3163, 4
  %v3165 = vmax.f32 %v3163, %v3164
  %v3166 = vrot.slane %v3165, 2
  %v3167 = vmax.f32 %v3165, %v3166
  %v3168 = vrot.slane %v3167, 1
  %v3169 = vmax.f32 %v3167, %v3168
  %v3170 = vpack.i.bf16 %v3169, %v3169
  %v3172 = vsel %vm2025, %v839, 4286644096
  %v3174 = vunpack.i.l.bf16 %v3172
  %v3175 = vunpack.i.h.bf16 %v3172
  %v3176 = vmax.f32 %v3174, %v3175
  %v3177 = vrot.slane %v3176, 4
  %v3178 = vmax.f32 %v3176, %v3177
  %v3179 = vrot.slane %v3178, 2
  %v3180 = vmax.f32 %v3178, %v3179
  %v3181 = vrot.slane %v3180, 1
  %v3182 = vmax.f32 %v3180, %v3181
  %v3183 = vpack.i.bf16 %v3182, %v3182
  %v3185 = vsel %vm2025, %v846, 4286644096
  %v3187 = vunpack.i.l.bf16 %v3185
  %v3188 = vunpack.i.h.bf16 %v3185
  %v3189 = vmax.f32 %v3187, %v3188
  %v3190 = vrot.slane %v3189, 4
  %v3191 = vmax.f32 %v3189, %v3190
  %v3192 = vrot.slane %v3191, 2
  %v3193 = vmax.f32 %v3191, %v3192
  %v3194 = vrot.slane %v3193, 1
  %v3195 = vmax.f32 %v3193, %v3194
  %v3196 = vpack.i.bf16 %v3195, %v3195
  %v3198 = vsel %vm2025, %v847, 4286644096
  %v3200 = vunpack.i.l.bf16 %v3198
  %v3201 = vunpack.i.h.bf16 %v3198
  %v3202 = vmax.f32 %v3200, %v3201
  %v3203 = vrot.slane %v3202, 4
  %v3204 = vmax.f32 %v3202, %v3203
  %v3205 = vrot.slane %v3204, 2
  %v3206 = vmax.f32 %v3204, %v3205
  %v3207 = vrot.slane %v3206, 1
  %v3208 = vmax.f32 %v3206, %v3207
  %v3209 = vpack.i.bf16 %v3208, %v3208
  %v3211 = vsel %vm2025, %v848, 4286644096
  %v3213 = vunpack.i.l.bf16 %v3211
  %v3214 = vunpack.i.h.bf16 %v3211
  %v3215 = vmax.f32 %v3213, %v3214
  %v3216 = vrot.slane %v3215, 4
  %v3217 = vmax.f32 %v3215, %v3216
  %v3218 = vrot.slane %v3217, 2
  %v3219 = vmax.f32 %v3217, %v3218
  %v3220 = vrot.slane %v3219, 1
  %v3221 = vmax.f32 %v3219, %v3220
  %v3222 = vpack.i.bf16 %v3221, %v3221
  %v3224 = vsel %vm2025, %v863, 4286644096
  %v3226 = vunpack.i.l.bf16 %v3224
  %v3227 = vunpack.i.h.bf16 %v3224
  %v3228 = vmax.f32 %v3226, %v3227
  %v3229 = vrot.slane %v3228, 4
  %v3230 = vmax.f32 %v3228, %v3229
  %v3231 = vrot.slane %v3230, 2
  %v3232 = vmax.f32 %v3230, %v3231
  %v3233 = vrot.slane %v3232, 1
  %v3234 = vmax.f32 %v3232, %v3233
  %v3235 = vpack.i.bf16 %v3234, %v3234
  %v3237 = vsel %vm2025, %v870, 4286644096
  %v3239 = vunpack.i.l.bf16 %v3237
  %v3240 = vunpack.i.h.bf16 %v3237
  %v3241 = vmax.f32 %v3239, %v3240
  %v3242 = vrot.slane %v3241, 4
  %v3243 = vmax.f32 %v3241, %v3242
  %v3244 = vrot.slane %v3243, 2
  %v3245 = vmax.f32 %v3243, %v3244
  %v3246 = vrot.slane %v3245, 1
  %v3247 = vmax.f32 %v3245, %v3246
  %v3248 = vpack.i.bf16 %v3247, %v3247
  %v3250 = vsel %vm2025, %v871, 4286644096
  %v3252 = vunpack.i.l.bf16 %v3250
  %v3253 = vunpack.i.h.bf16 %v3250
  %v3254 = vmax.f32 %v3252, %v3253
  %v3255 = vrot.slane %v3254, 4
  %v3256 = vmax.f32 %v3254, %v3255
  %v3257 = vrot.slane %v3256, 2
  %v3258 = vmax.f32 %v3256, %v3257
  %v3259 = vrot.slane %v3258, 1
  %v3260 = vmax.f32 %v3258, %v3259
  %v3261 = vpack.i.bf16 %v3260, %v3260
  %v3263 = vsel %vm2025, %v872, 4286644096
  %v3265 = vunpack.i.l.bf16 %v3263
  %v3266 = vunpack.i.h.bf16 %v3263
  %v3267 = vmax.f32 %v3265, %v3266
  %v3268 = vrot.slane %v3267, 4
  %v3269 = vmax.f32 %v3267, %v3268
  %v3270 = vrot.slane %v3269, 2
  %v3271 = vmax.f32 %v3269, %v3270
  %v3272 = vrot.slane %v3271, 1
  %v3273 = vmax.f32 %v3271, %v3272
  %v3274 = vpack.i.bf16 %v3273, %v3273
  %v3276 = vsel %vm2025, %v887, 4286644096
  %v3278 = vunpack.i.l.bf16 %v3276
  %v3279 = vunpack.i.h.bf16 %v3276
  %v3280 = vmax.f32 %v3278, %v3279
  %v3281 = vrot.slane %v3280, 4
  %v3282 = vmax.f32 %v3280, %v3281
  %v3283 = vrot.slane %v3282, 2
  %v3284 = vmax.f32 %v3282, %v3283
  %v3285 = vrot.slane %v3284, 1
  %v3286 = vmax.f32 %v3284, %v3285
  %v3287 = vpack.i.bf16 %v3286, %v3286
  %v3289 = vsel %vm2025, %v894, 4286644096
  %v3291 = vunpack.i.l.bf16 %v3289
  %v3292 = vunpack.i.h.bf16 %v3289
  %v3293 = vmax.f32 %v3291, %v3292
  %v3294 = vrot.slane %v3293, 4
  %v3295 = vmax.f32 %v3293, %v3294
  %v3296 = vrot.slane %v3295, 2
  %v3297 = vmax.f32 %v3295, %v3296
  %v3298 = vrot.slane %v3297, 1
  %v3299 = vmax.f32 %v3297, %v3298
  %v3300 = vpack.i.bf16 %v3299, %v3299
  %v3302 = vsel %vm2025, %v895, 4286644096
  %v3304 = vunpack.i.l.bf16 %v3302
  %v3305 = vunpack.i.h.bf16 %v3302
  %v3306 = vmax.f32 %v3304, %v3305
  %v3307 = vrot.slane %v3306, 4
  %v3308 = vmax.f32 %v3306, %v3307
  %v3309 = vrot.slane %v3308, 2
  %v3310 = vmax.f32 %v3308, %v3309
  %v3311 = vrot.slane %v3310, 1
  %v3312 = vmax.f32 %v3310, %v3311
  %v3313 = vpack.i.bf16 %v3312, %v3312
  %v3315 = vsel %vm2025, %v896, 4286644096
  %v3317 = vunpack.i.l.bf16 %v3315
  %v3318 = vunpack.i.h.bf16 %v3315
  %v3319 = vmax.f32 %v3317, %v3318
  %v3320 = vrot.slane %v3319, 4
  %v3321 = vmax.f32 %v3319, %v3320
  %v3322 = vrot.slane %v3321, 2
  %v3323 = vmax.f32 %v3321, %v3322
  %v3324 = vrot.slane %v3323, 1
  %v3325 = vmax.f32 %v3323, %v3324
  %v3326 = vpack.i.bf16 %v3325, %v3325
  %v3328 = vsel %vm2025, %v911, 4286644096
  %v3330 = vunpack.i.l.bf16 %v3328
  %v3331 = vunpack.i.h.bf16 %v3328
  %v3332 = vmax.f32 %v3330, %v3331
  %v3333 = vrot.slane %v3332, 4
  %v3334 = vmax.f32 %v3332, %v3333
  %v3335 = vrot.slane %v3334, 2
  %v3336 = vmax.f32 %v3334, %v3335
  %v3337 = vrot.slane %v3336, 1
  %v3338 = vmax.f32 %v3336, %v3337
  %v3339 = vpack.i.bf16 %v3338, %v3338
  %v3341 = vsel %vm2025, %v918, 4286644096
  %v3343 = vunpack.i.l.bf16 %v3341
  %v3344 = vunpack.i.h.bf16 %v3341
  %v3345 = vmax.f32 %v3343, %v3344
  %v3346 = vrot.slane %v3345, 4
  %v3347 = vmax.f32 %v3345, %v3346
  %v3348 = vrot.slane %v3347, 2
  %v3349 = vmax.f32 %v3347, %v3348
  %v3350 = vrot.slane %v3349, 1
  %v3351 = vmax.f32 %v3349, %v3350
  %v3352 = vpack.i.bf16 %v3351, %v3351
  %v3354 = vsel %vm2025, %v919, 4286644096
  %v3356 = vunpack.i.l.bf16 %v3354
  %v3357 = vunpack.i.h.bf16 %v3354
  %v3358 = vmax.f32 %v3356, %v3357
  %v3359 = vrot.slane %v3358, 4
  %v3360 = vmax.f32 %v3358, %v3359
  %v3361 = vrot.slane %v3360, 2
  %v3362 = vmax.f32 %v3360, %v3361
  %v3363 = vrot.slane %v3362, 1
  %v3364 = vmax.f32 %v3362, %v3363
  %v3365 = vpack.i.bf16 %v3364, %v3364
  %v3367 = vsel %vm2025, %v920, 4286644096
  %v3369 = vunpack.i.l.bf16 %v3367
  %v3370 = vunpack.i.h.bf16 %v3367
  %v3371 = vmax.f32 %v3369, %v3370
  %v3372 = vrot.slane %v3371, 4
  %v3373 = vmax.f32 %v3371, %v3372
  %v3374 = vrot.slane %v3373, 2
  %v3375 = vmax.f32 %v3373, %v3374
  %v3376 = vrot.slane %v3375, 1
  %v3377 = vmax.f32 %v3375, %v3376
  %v3378 = vpack.i.bf16 %v3377, %v3377
  %v3380 = vsel %vm2025, %v935, 4286644096
  %v3382 = vunpack.i.l.bf16 %v3380
  %v3383 = vunpack.i.h.bf16 %v3380
  %v3384 = vmax.f32 %v3382, %v3383
  %v3385 = vrot.slane %v3384, 4
  %v3386 = vmax.f32 %v3384, %v3385
  %v3387 = vrot.slane %v3386, 2
  %v3388 = vmax.f32 %v3386, %v3387
  %v3389 = vrot.slane %v3388, 1
  %v3390 = vmax.f32 %v3388, %v3389
  %v3391 = vpack.i.bf16 %v3390, %v3390
  %v3393 = vsel %vm2025, %v942, 4286644096
  %v3395 = vunpack.i.l.bf16 %v3393
  %v3396 = vunpack.i.h.bf16 %v3393
  %v3397 = vmax.f32 %v3395, %v3396
  %v3398 = vrot.slane %v3397, 4
  %v3399 = vmax.f32 %v3397, %v3398
  %v3400 = vrot.slane %v3399, 2
  %v3401 = vmax.f32 %v3399, %v3400
  %v3402 = vrot.slane %v3401, 1
  %v3403 = vmax.f32 %v3401, %v3402
  %v3404 = vpack.i.bf16 %v3403, %v3403
  %v3406 = vsel %vm2025, %v943, 4286644096
  %v3408 = vunpack.i.l.bf16 %v3406
  %v3409 = vunpack.i.h.bf16 %v3406
  %v3410 = vmax.f32 %v3408, %v3409
  %v3411 = vrot.slane %v3410, 4
  %v3412 = vmax.f32 %v3410, %v3411
  %v3413 = vrot.slane %v3412, 2
  %v3414 = vmax.f32 %v3412, %v3413
  %v3415 = vrot.slane %v3414, 1
  %v3416 = vmax.f32 %v3414, %v3415
  %v3417 = vpack.i.bf16 %v3416, %v3416
  %v3419 = vsel %vm2025, %v944, 4286644096
  %v3421 = vunpack.i.l.bf16 %v3419
  %v3422 = vunpack.i.h.bf16 %v3419
  %v3423 = vmax.f32 %v3421, %v3422
  %v3424 = vrot.slane %v3423, 4
  %v3425 = vmax.f32 %v3423, %v3424
  %v3426 = vrot.slane %v3425, 2
  %v3427 = vmax.f32 %v3425, %v3426
  %v3428 = vrot.slane %v3427, 1
  %v3429 = vmax.f32 %v3427, %v3428
  %v3430 = vpack.i.bf16 %v3429, %v3429
  %v3432 = vsel %vm2025, %v959, 4286644096
  %v3434 = vunpack.i.l.bf16 %v3432
  %v3435 = vunpack.i.h.bf16 %v3432
  %v3436 = vmax.f32 %v3434, %v3435
  %v3437 = vrot.slane %v3436, 4
  %v3438 = vmax.f32 %v3436, %v3437
  %v3439 = vrot.slane %v3438, 2
  %v3440 = vmax.f32 %v3438, %v3439
  %v3441 = vrot.slane %v3440, 1
  %v3442 = vmax.f32 %v3440, %v3441
  %v3443 = vpack.i.bf16 %v3442, %v3442
  %v3445 = vsel %vm2025, %v966, 4286644096
  %v3447 = vunpack.i.l.bf16 %v3445
  %v3448 = vunpack.i.h.bf16 %v3445
  %v3449 = vmax.f32 %v3447, %v3448
  %v3450 = vrot.slane %v3449, 4
  %v3451 = vmax.f32 %v3449, %v3450
  %v3452 = vrot.slane %v3451, 2
  %v3453 = vmax.f32 %v3451, %v3452
  %v3454 = vrot.slane %v3453, 1
  %v3455 = vmax.f32 %v3453, %v3454
  %v3456 = vpack.i.bf16 %v3455, %v3455
  %v3458 = vsel %vm2025, %v967, 4286644096
  %v3460 = vunpack.i.l.bf16 %v3458
  %v3461 = vunpack.i.h.bf16 %v3458
  %v3462 = vmax.f32 %v3460, %v3461
  %v3463 = vrot.slane %v3462, 4
  %v3464 = vmax.f32 %v3462, %v3463
  %v3465 = vrot.slane %v3464, 2
  %v3466 = vmax.f32 %v3464, %v3465
  %v3467 = vrot.slane %v3466, 1
  %v3468 = vmax.f32 %v3466, %v3467
  %v3469 = vpack.i.bf16 %v3468, %v3468
  %v3471 = vsel %vm2025, %v968, 4286644096
  %v3473 = vunpack.i.l.bf16 %v3471
  %v3474 = vunpack.i.h.bf16 %v3471
  %v3475 = vmax.f32 %v3473, %v3474
  %v3476 = vrot.slane %v3475, 4
  %v3477 = vmax.f32 %v3475, %v3476
  %v3478 = vrot.slane %v3477, 2
  %v3479 = vmax.f32 %v3477, %v3478
  %v3480 = vrot.slane %v3479, 1
  %v3481 = vmax.f32 %v3479, %v3480
  %v3482 = vpack.i.bf16 %v3481, %v3481
  %v3484 = vsel %vm2025, %v983, 4286644096
  %v3486 = vunpack.i.l.bf16 %v3484
  %v3487 = vunpack.i.h.bf16 %v3484
  %v3488 = vmax.f32 %v3486, %v3487
  %v3489 = vrot.slane %v3488, 4
  %v3490 = vmax.f32 %v3488, %v3489
  %v3491 = vrot.slane %v3490, 2
  %v3492 = vmax.f32 %v3490, %v3491
  %v3493 = vrot.slane %v3492, 1
  %v3494 = vmax.f32 %v3492, %v3493
  %v3495 = vpack.i.bf16 %v3494, %v3494
  %v3497 = vsel %vm2025, %v990, 4286644096
  %v3499 = vunpack.i.l.bf16 %v3497
  %v3500 = vunpack.i.h.bf16 %v3497
  %v3501 = vmax.f32 %v3499, %v3500
  %v3502 = vrot.slane %v3501, 4
  %v3503 = vmax.f32 %v3501, %v3502
  %v3504 = vrot.slane %v3503, 2
  %v3505 = vmax.f32 %v3503, %v3504
  %v3506 = vrot.slane %v3505, 1
  %v3507 = vmax.f32 %v3505, %v3506
  %v3508 = vpack.i.bf16 %v3507, %v3507
  %v3510 = vsel %vm2025, %v991, 4286644096
  %v3512 = vunpack.i.l.bf16 %v3510
  %v3513 = vunpack.i.h.bf16 %v3510
  %v3514 = vmax.f32 %v3512, %v3513
  %v3515 = vrot.slane %v3514, 4
  %v3516 = vmax.f32 %v3514, %v3515
  %v3517 = vrot.slane %v3516, 2
  %v3518 = vmax.f32 %v3516, %v3517
  %v3519 = vrot.slane %v3518, 1
  %v3520 = vmax.f32 %v3518, %v3519
  %v3521 = vpack.i.bf16 %v3520, %v3520
  %v3523 = vsel %vm2025, %v992, 4286644096
  %v3525 = vunpack.i.l.bf16 %v3523
  %v3526 = vunpack.i.h.bf16 %v3523
  %v3527 = vmax.f32 %v3525, %v3526
  %v3528 = vrot.slane %v3527, 4
  %v3529 = vmax.f32 %v3527, %v3528
  %v3530 = vrot.slane %v3529, 2
  %v3531 = vmax.f32 %v3529, %v3530
  %v3532 = vrot.slane %v3531, 1
  %v3533 = vmax.f32 %v3531, %v3532
  %v3534 = vpack.i.bf16 %v3533, %v3533
  %v3536 = vsel %vm2025, %v1007, 4286644096
  %v3538 = vunpack.i.l.bf16 %v3536
  %v3539 = vunpack.i.h.bf16 %v3536
  %v3540 = vmax.f32 %v3538, %v3539
  %v3541 = vrot.slane %v3540, 4
  %v3542 = vmax.f32 %v3540, %v3541
  %v3543 = vrot.slane %v3542, 2
  %v3544 = vmax.f32 %v3542, %v3543
  %v3545 = vrot.slane %v3544, 1
  %v3546 = vmax.f32 %v3544, %v3545
  %v3547 = vpack.i.bf16 %v3546, %v3546
  %v3549 = vsel %vm2025, %v1014, 4286644096
  %v3551 = vunpack.i.l.bf16 %v3549
  %v3552 = vunpack.i.h.bf16 %v3549
  %v3553 = vmax.f32 %v3551, %v3552
  %v3554 = vrot.slane %v3553, 4
  %v3555 = vmax.f32 %v3553, %v3554
  %v3556 = vrot.slane %v3555, 2
  %v3557 = vmax.f32 %v3555, %v3556
  %v3558 = vrot.slane %v3557, 1
  %v3559 = vmax.f32 %v3557, %v3558
  %v3560 = vpack.i.bf16 %v3559, %v3559
  %v3562 = vsel %vm2025, %v1015, 4286644096
  %v3564 = vunpack.i.l.bf16 %v3562
  %v3565 = vunpack.i.h.bf16 %v3562
  %v3566 = vmax.f32 %v3564, %v3565
  %v3567 = vrot.slane %v3566, 4
  %v3568 = vmax.f32 %v3566, %v3567
  %v3569 = vrot.slane %v3568, 2
  %v3570 = vmax.f32 %v3568, %v3569
  %v3571 = vrot.slane %v3570, 1
  %v3572 = vmax.f32 %v3570, %v3571
  %v3573 = vpack.i.bf16 %v3572, %v3572
  %v3575 = vsel %vm2025, %v1016, 4286644096
  %v3577 = vunpack.i.l.bf16 %v3575
  %v3578 = vunpack.i.h.bf16 %v3575
  %v3579 = vmax.f32 %v3577, %v3578
  %v3580 = vrot.slane %v3579, 4
  %v3581 = vmax.f32 %v3579, %v3580
  %v3582 = vrot.slane %v3581, 2
  %v3583 = vmax.f32 %v3581, %v3582
  %v3584 = vrot.slane %v3583, 1
  %v3585 = vmax.f32 %v3583, %v3584
  %v3586 = vpack.i.bf16 %v3585, %v3585
  %v3588 = vsel %vm2025, %v1031, 4286644096
  %v3590 = vunpack.i.l.bf16 %v3588
  %v3591 = vunpack.i.h.bf16 %v3588
  %v3592 = vmax.f32 %v3590, %v3591
  %v3593 = vrot.slane %v3592, 4
  %v3594 = vmax.f32 %v3592, %v3593
  %v3595 = vrot.slane %v3594, 2
  %v3596 = vmax.f32 %v3594, %v3595
  %v3597 = vrot.slane %v3596, 1
  %v3598 = vmax.f32 %v3596, %v3597
  %v3599 = vpack.i.bf16 %v3598, %v3598
  %v3601 = vsel %vm2025, %v1038, 4286644096
  %v3603 = vunpack.i.l.bf16 %v3601
  %v3604 = vunpack.i.h.bf16 %v3601
  %v3605 = vmax.f32 %v3603, %v3604
  %v3606 = vrot.slane %v3605, 4
  %v3607 = vmax.f32 %v3605, %v3606
  %v3608 = vrot.slane %v3607, 2
  %v3609 = vmax.f32 %v3607, %v3608
  %v3610 = vrot.slane %v3609, 1
  %v3611 = vmax.f32 %v3609, %v3610
  %v3612 = vpack.i.bf16 %v3611, %v3611
  %v3614 = vsel %vm2025, %v1039, 4286644096
  %v3616 = vunpack.i.l.bf16 %v3614
  %v3617 = vunpack.i.h.bf16 %v3614
  %v3618 = vmax.f32 %v3616, %v3617
  %v3619 = vrot.slane %v3618, 4
  %v3620 = vmax.f32 %v3618, %v3619
  %v3621 = vrot.slane %v3620, 2
  %v3622 = vmax.f32 %v3620, %v3621
  %v3623 = vrot.slane %v3622, 1
  %v3624 = vmax.f32 %v3622, %v3623
  %v3625 = vpack.i.bf16 %v3624, %v3624
  %v3627 = vsel %vm2025, %v1040, 4286644096
  %v3629 = vunpack.i.l.bf16 %v3627
  %v3630 = vunpack.i.h.bf16 %v3627
  %v3631 = vmax.f32 %v3629, %v3630
  %v3632 = vrot.slane %v3631, 4
  %v3633 = vmax.f32 %v3631, %v3632
  %v3634 = vrot.slane %v3633, 2
  %v3635 = vmax.f32 %v3633, %v3634
  %v3636 = vrot.slane %v3635, 1
  %v3637 = vmax.f32 %v3635, %v3636
  %v3638 = vpack.i.bf16 %v3637, %v3637
  %v3640 = vsel %vm2025, %v1055, 4286644096
  %v3642 = vunpack.i.l.bf16 %v3640
  %v3643 = vunpack.i.h.bf16 %v3640
  %v3644 = vmax.f32 %v3642, %v3643
  %v3645 = vrot.slane %v3644, 4
  %v3646 = vmax.f32 %v3644, %v3645
  %v3647 = vrot.slane %v3646, 2
  %v3648 = vmax.f32 %v3646, %v3647
  %v3649 = vrot.slane %v3648, 1
  %v3650 = vmax.f32 %v3648, %v3649
  %v3651 = vpack.i.bf16 %v3650, %v3650
  %v3653 = vsel %vm2025, %v1062, 4286644096
  %v3655 = vunpack.i.l.bf16 %v3653
  %v3656 = vunpack.i.h.bf16 %v3653
  %v3657 = vmax.f32 %v3655, %v3656
  %v3658 = vrot.slane %v3657, 4
  %v3659 = vmax.f32 %v3657, %v3658
  %v3660 = vrot.slane %v3659, 2
  %v3661 = vmax.f32 %v3659, %v3660
  %v3662 = vrot.slane %v3661, 1
  %v3663 = vmax.f32 %v3661, %v3662
  %v3664 = vpack.i.bf16 %v3663, %v3663
  %v3666 = vsel %vm2025, %v1063, 4286644096
  %v3668 = vunpack.i.l.bf16 %v3666
  %v3669 = vunpack.i.h.bf16 %v3666
  %v3670 = vmax.f32 %v3668, %v3669
  %v3671 = vrot.slane %v3670, 4
  %v3672 = vmax.f32 %v3670, %v3671
  %v3673 = vrot.slane %v3672, 2
  %v3674 = vmax.f32 %v3672, %v3673
  %v3675 = vrot.slane %v3674, 1
  %v3676 = vmax.f32 %v3674, %v3675
  %v3677 = vpack.i.bf16 %v3676, %v3676
  %v3679 = vsel %vm2025, %v1064, 4286644096
  %v3681 = vunpack.i.l.bf16 %v3679
  %v3682 = vunpack.i.h.bf16 %v3679
  %v3683 = vmax.f32 %v3681, %v3682
  %v3684 = vrot.slane %v3683, 4
  %v3685 = vmax.f32 %v3683, %v3684
  %v3686 = vrot.slane %v3685, 2
  %v3687 = vmax.f32 %v3685, %v3686
  %v3688 = vrot.slane %v3687, 1
  %v3689 = vmax.f32 %v3687, %v3688
  %v3690 = vpack.i.bf16 %v3689, %v3689
  %v3692 = vsel %vm2025, %v1079, 4286644096
  %v3694 = vunpack.i.l.bf16 %v3692
  %v3695 = vunpack.i.h.bf16 %v3692
  %v3696 = vmax.f32 %v3694, %v3695
  %v3697 = vrot.slane %v3696, 4
  %v3698 = vmax.f32 %v3696, %v3697
  %v3699 = vrot.slane %v3698, 2
  %v3700 = vmax.f32 %v3698, %v3699
  %v3701 = vrot.slane %v3700, 1
  %v3702 = vmax.f32 %v3700, %v3701
  %v3703 = vpack.i.bf16 %v3702, %v3702
  %v3705 = vsel %vm2025, %v1086, 4286644096
  %v3707 = vunpack.i.l.bf16 %v3705
  %v3708 = vunpack.i.h.bf16 %v3705
  %v3709 = vmax.f32 %v3707, %v3708
  %v3710 = vrot.slane %v3709, 4
  %v3711 = vmax.f32 %v3709, %v3710
  %v3712 = vrot.slane %v3711, 2
  %v3713 = vmax.f32 %v3711, %v3712
  %v3714 = vrot.slane %v3713, 1
  %v3715 = vmax.f32 %v3713, %v3714
  %v3716 = vpack.i.bf16 %v3715, %v3715
  %v3718 = vsel %vm2025, %v1087, 4286644096
  %v3720 = vunpack.i.l.bf16 %v3718
  %v3721 = vunpack.i.h.bf16 %v3718
  %v3722 = vmax.f32 %v3720, %v3721
  %v3723 = vrot.slane %v3722, 4
  %v3724 = vmax.f32 %v3722, %v3723
  %v3725 = vrot.slane %v3724, 2
  %v3726 = vmax.f32 %v3724, %v3725
  %v3727 = vrot.slane %v3726, 1
  %v3728 = vmax.f32 %v3726, %v3727
  %v3729 = vpack.i.bf16 %v3728, %v3728
  %v3731 = vsel %vm2025, %v1088, 4286644096
  %v3733 = vunpack.i.l.bf16 %v3731
  %v3734 = vunpack.i.h.bf16 %v3731
  %v3735 = vmax.f32 %v3733, %v3734
  %v3736 = vrot.slane %v3735, 4
  %v3737 = vmax.f32 %v3735, %v3736
  %v3738 = vrot.slane %v3737, 2
  %v3739 = vmax.f32 %v3737, %v3738
  %v3740 = vrot.slane %v3739, 1
  %v3741 = vmax.f32 %v3739, %v3740
  %v3742 = vpack.i.bf16 %v3741, %v3741
  %v3744 = vsel %vm2025, %v1103, 4286644096
  %v3746 = vunpack.i.l.bf16 %v3744
  %v3747 = vunpack.i.h.bf16 %v3744
  %v3748 = vmax.f32 %v3746, %v3747
  %v3749 = vrot.slane %v3748, 4
  %v3750 = vmax.f32 %v3748, %v3749
  %v3751 = vrot.slane %v3750, 2
  %v3752 = vmax.f32 %v3750, %v3751
  %v3753 = vrot.slane %v3752, 1
  %v3754 = vmax.f32 %v3752, %v3753
  %v3755 = vpack.i.bf16 %v3754, %v3754
  %v3757 = vsel %vm2025, %v1110, 4286644096
  %v3759 = vunpack.i.l.bf16 %v3757
  %v3760 = vunpack.i.h.bf16 %v3757
  %v3761 = vmax.f32 %v3759, %v3760
  %v3762 = vrot.slane %v3761, 4
  %v3763 = vmax.f32 %v3761, %v3762
  %v3764 = vrot.slane %v3763, 2
  %v3765 = vmax.f32 %v3763, %v3764
  %v3766 = vrot.slane %v3765, 1
  %v3767 = vmax.f32 %v3765, %v3766
  %v3768 = vpack.i.bf16 %v3767, %v3767
  %v3770 = vsel %vm2025, %v1111, 4286644096
  %v3772 = vunpack.i.l.bf16 %v3770
  %v3773 = vunpack.i.h.bf16 %v3770
  %v3774 = vmax.f32 %v3772, %v3773
  %v3775 = vrot.slane %v3774, 4
  %v3776 = vmax.f32 %v3774, %v3775
  %v3777 = vrot.slane %v3776, 2
  %v3778 = vmax.f32 %v3776, %v3777
  %v3779 = vrot.slane %v3778, 1
  %v3780 = vmax.f32 %v3778, %v3779
  %v3781 = vpack.i.bf16 %v3780, %v3780
  %v3783 = vsel %vm2025, %v1112, 4286644096
  %v3785 = vunpack.i.l.bf16 %v3783
  %v3786 = vunpack.i.h.bf16 %v3783
  %v3787 = vmax.f32 %v3785, %v3786
  %v3788 = vrot.slane %v3787, 4
  %v3789 = vmax.f32 %v3787, %v3788
  %v3790 = vrot.slane %v3789, 2
  %v3791 = vmax.f32 %v3789, %v3790
  %v3792 = vrot.slane %v3791, 1
  %v3793 = vmax.f32 %v3791, %v3792
  %v3794 = vpack.i.bf16 %v3793, %v3793
  %v3796 = vsel %vm2025, %v1127, 4286644096
  %v3798 = vunpack.i.l.bf16 %v3796
  %v3799 = vunpack.i.h.bf16 %v3796
  %v3800 = vmax.f32 %v3798, %v3799
  %v3801 = vrot.slane %v3800, 4
  %v3802 = vmax.f32 %v3800, %v3801
  %v3803 = vrot.slane %v3802, 2
  %v3804 = vmax.f32 %v3802, %v3803
  %v3805 = vrot.slane %v3804, 1
  %v3806 = vmax.f32 %v3804, %v3805
  %v3807 = vpack.i.bf16 %v3806, %v3806
  %v3809 = vsel %vm2025, %v1134, 4286644096
  %v3811 = vunpack.i.l.bf16 %v3809
  %v3812 = vunpack.i.h.bf16 %v3809
  %v3813 = vmax.f32 %v3811, %v3812
  %v3814 = vrot.slane %v3813, 4
  %v3815 = vmax.f32 %v3813, %v3814
  %v3816 = vrot.slane %v3815, 2
  %v3817 = vmax.f32 %v3815, %v3816
  %v3818 = vrot.slane %v3817, 1
  %v3819 = vmax.f32 %v3817, %v3818
  %v3820 = vpack.i.bf16 %v3819, %v3819
  %v3822 = vsel %vm2025, %v1135, 4286644096
  %v3824 = vunpack.i.l.bf16 %v3822
  %v3825 = vunpack.i.h.bf16 %v3822
  %v3826 = vmax.f32 %v3824, %v3825
  %v3827 = vrot.slane %v3826, 4
  %v3828 = vmax.f32 %v3826, %v3827
  %v3829 = vrot.slane %v3828, 2
  %v3830 = vmax.f32 %v3828, %v3829
  %v3831 = vrot.slane %v3830, 1
  %v3832 = vmax.f32 %v3830, %v3831
  %v3833 = vpack.i.bf16 %v3832, %v3832
  %v3835 = vsel %vm2025, %v1136, 4286644096
  %v3837 = vunpack.i.l.bf16 %v3835
  %v3838 = vunpack.i.h.bf16 %v3835
  %v3839 = vmax.f32 %v3837, %v3838
  %v3840 = vrot.slane %v3839, 4
  %v3841 = vmax.f32 %v3839, %v3840
  %v3842 = vrot.slane %v3841, 2
  %v3843 = vmax.f32 %v3841, %v3842
  %v3844 = vrot.slane %v3843, 1
  %v3845 = vmax.f32 %v3843, %v3844
  %v3846 = vpack.i.bf16 %v3845, %v3845
  %v3848 = vsel %vm2025, %v1151, 4286644096
  %v3850 = vunpack.i.l.bf16 %v3848
  %v3851 = vunpack.i.h.bf16 %v3848
  %v3852 = vmax.f32 %v3850, %v3851
  %v3853 = vrot.slane %v3852, 4
  %v3854 = vmax.f32 %v3852, %v3853
  %v3855 = vrot.slane %v3854, 2
  %v3856 = vmax.f32 %v3854, %v3855
  %v3857 = vrot.slane %v3856, 1
  %v3858 = vmax.f32 %v3856, %v3857
  %v3859 = vpack.i.bf16 %v3858, %v3858
  %v3861 = vsel %vm2025, %v1158, 4286644096
  %v3863 = vunpack.i.l.bf16 %v3861
  %v3864 = vunpack.i.h.bf16 %v3861
  %v3865 = vmax.f32 %v3863, %v3864
  %v3866 = vrot.slane %v3865, 4
  %v3867 = vmax.f32 %v3865, %v3866
  %v3868 = vrot.slane %v3867, 2
  %v3869 = vmax.f32 %v3867, %v3868
  %v3870 = vrot.slane %v3869, 1
  %v3871 = vmax.f32 %v3869, %v3870
  %v3872 = vpack.i.bf16 %v3871, %v3871
  %v3874 = vsel %vm2025, %v1159, 4286644096
  %v3876 = vunpack.i.l.bf16 %v3874
  %v3877 = vunpack.i.h.bf16 %v3874
  %v3878 = vmax.f32 %v3876, %v3877
  %v3879 = vrot.slane %v3878, 4
  %v3880 = vmax.f32 %v3878, %v3879
  %v3881 = vrot.slane %v3880, 2
  %v3882 = vmax.f32 %v3880, %v3881
  %v3883 = vrot.slane %v3882, 1
  %v3884 = vmax.f32 %v3882, %v3883
  %v3885 = vpack.i.bf16 %v3884, %v3884
  %v3887 = vsel %vm2025, %v1160, 4286644096
  %v3889 = vunpack.i.l.bf16 %v3887
  %v3890 = vunpack.i.h.bf16 %v3887
  %v3891 = vmax.f32 %v3889, %v3890
  %v3892 = vrot.slane %v3891, 4
  %v3893 = vmax.f32 %v3891, %v3892
  %v3894 = vrot.slane %v3893, 2
  %v3895 = vmax.f32 %v3893, %v3894
  %v3896 = vrot.slane %v3895, 1
  %v3897 = vmax.f32 %v3895, %v3896
  %v3898 = vpack.i.bf16 %v3897, %v3897
  %v3900 = vsel %vm2025, %v1175, 4286644096
  %v3902 = vunpack.i.l.bf16 %v3900
  %v3903 = vunpack.i.h.bf16 %v3900
  %v3904 = vmax.f32 %v3902, %v3903
  %v3905 = vrot.slane %v3904, 4
  %v3906 = vmax.f32 %v3904, %v3905
  %v3907 = vrot.slane %v3906, 2
  %v3908 = vmax.f32 %v3906, %v3907
  %v3909 = vrot.slane %v3908, 1
  %v3910 = vmax.f32 %v3908, %v3909
  %v3911 = vpack.i.bf16 %v3910, %v3910
  %v3913 = vsel %vm2025, %v1182, 4286644096
  %v3915 = vunpack.i.l.bf16 %v3913
  %v3916 = vunpack.i.h.bf16 %v3913
  %v3917 = vmax.f32 %v3915, %v3916
  %v3918 = vrot.slane %v3917, 4
  %v3919 = vmax.f32 %v3917, %v3918
  %v3920 = vrot.slane %v3919, 2
  %v3921 = vmax.f32 %v3919, %v3920
  %v3922 = vrot.slane %v3921, 1
  %v3923 = vmax.f32 %v3921, %v3922
  %v3924 = vpack.i.bf16 %v3923, %v3923
  %v3926 = vsel %vm2025, %v1183, 4286644096
  %v3928 = vunpack.i.l.bf16 %v3926
  %v3929 = vunpack.i.h.bf16 %v3926
  %v3930 = vmax.f32 %v3928, %v3929
  %v3931 = vrot.slane %v3930, 4
  %v3932 = vmax.f32 %v3930, %v3931
  %v3933 = vrot.slane %v3932, 2
  %v3934 = vmax.f32 %v3932, %v3933
  %v3935 = vrot.slane %v3934, 1
  %v3936 = vmax.f32 %v3934, %v3935
  %v3937 = vpack.i.bf16 %v3936, %v3936
  %v3939 = vsel %vm2025, %v1184, 4286644096
  %v3941 = vunpack.i.l.bf16 %v3939
  %v3942 = vunpack.i.h.bf16 %v3939
  %v3943 = vmax.f32 %v3941, %v3942
  %v3944 = vrot.slane %v3943, 4
  %v3945 = vmax.f32 %v3943, %v3944
  %v3946 = vrot.slane %v3945, 2
  %v3947 = vmax.f32 %v3945, %v3946
  %v3948 = vrot.slane %v3947, 1
  %v3949 = vmax.f32 %v3947, %v3948
  %v3950 = vpack.i.bf16 %v3949, %v3949
  %v3952 = vsel %vm2025, %v1199, 4286644096
  %v3954 = vunpack.i.l.bf16 %v3952
  %v3955 = vunpack.i.h.bf16 %v3952
  %v3956 = vmax.f32 %v3954, %v3955
  %v3957 = vrot.slane %v3956, 4
  %v3958 = vmax.f32 %v3956, %v3957
  %v3959 = vrot.slane %v3958, 2
  %v3960 = vmax.f32 %v3958, %v3959
  %v3961 = vrot.slane %v3960, 1
  %v3962 = vmax.f32 %v3960, %v3961
  %v3963 = vpack.i.bf16 %v3962, %v3962
  %v3965 = vsel %vm2025, %v1206, 4286644096
  %v3967 = vunpack.i.l.bf16 %v3965
  %v3968 = vunpack.i.h.bf16 %v3965
  %v3969 = vmax.f32 %v3967, %v3968
  %v3970 = vrot.slane %v3969, 4
  %v3971 = vmax.f32 %v3969, %v3970
  %v3972 = vrot.slane %v3971, 2
  %v3973 = vmax.f32 %v3971, %v3972
  %v3974 = vrot.slane %v3973, 1
  %v3975 = vmax.f32 %v3973, %v3974
  %v3976 = vpack.i.bf16 %v3975, %v3975
  %v3978 = vsel %vm2025, %v1207, 4286644096
  %v3980 = vunpack.i.l.bf16 %v3978
  %v3981 = vunpack.i.h.bf16 %v3978
  %v3982 = vmax.f32 %v3980, %v3981
  %v3983 = vrot.slane %v3982, 4
  %v3984 = vmax.f32 %v3982, %v3983
  %v3985 = vrot.slane %v3984, 2
  %v3986 = vmax.f32 %v3984, %v3985
  %v3987 = vrot.slane %v3986, 1
  %v3988 = vmax.f32 %v3986, %v3987
  %v3989 = vpack.i.bf16 %v3988, %v3988
  %v3991 = vsel %vm2025, %v1208, 4286644096
  %v3993 = vunpack.i.l.bf16 %v3991
  %v3994 = vunpack.i.h.bf16 %v3991
  %v3995 = vmax.f32 %v3993, %v3994
  %v3996 = vrot.slane %v3995, 4
  %v3997 = vmax.f32 %v3995, %v3996
  %v3998 = vrot.slane %v3997, 2
  %v3999 = vmax.f32 %v3997, %v3998
  %v4000 = vrot.slane %v3999, 1
  %v4001 = vmax.f32 %v3999, %v4000
  %v4002 = vpack.i.bf16 %v4001, %v4001
  %v4004 = vsel %vm2025, %v1223, 4286644096
  %v4006 = vunpack.i.l.bf16 %v4004
  %v4007 = vunpack.i.h.bf16 %v4004
  %v4008 = vmax.f32 %v4006, %v4007
  %v4009 = vrot.slane %v4008, 4
  %v4010 = vmax.f32 %v4008, %v4009
  %v4011 = vrot.slane %v4010, 2
  %v4012 = vmax.f32 %v4010, %v4011
  %v4013 = vrot.slane %v4012, 1
  %v4014 = vmax.f32 %v4012, %v4013
  %v4015 = vpack.i.bf16 %v4014, %v4014
  %v4017 = vsel %vm2025, %v1230, 4286644096
  %v4019 = vunpack.i.l.bf16 %v4017
  %v4020 = vunpack.i.h.bf16 %v4017
  %v4021 = vmax.f32 %v4019, %v4020
  %v4022 = vrot.slane %v4021, 4
  %v4023 = vmax.f32 %v4021, %v4022
  %v4024 = vrot.slane %v4023, 2
  %v4025 = vmax.f32 %v4023, %v4024
  %v4026 = vrot.slane %v4025, 1
  %v4027 = vmax.f32 %v4025, %v4026
  %v4028 = vpack.i.bf16 %v4027, %v4027
  %v4030 = vsel %vm2025, %v1231, 4286644096
  %v4032 = vunpack.i.l.bf16 %v4030
  %v4033 = vunpack.i.h.bf16 %v4030
  %v4034 = vmax.f32 %v4032, %v4033
  %v4035 = vrot.slane %v4034, 4
  %v4036 = vmax.f32 %v4034, %v4035
  %v4037 = vrot.slane %v4036, 2
  %v4038 = vmax.f32 %v4036, %v4037
  %v4039 = vrot.slane %v4038, 1
  %v4040 = vmax.f32 %v4038, %v4039
  %v4041 = vpack.i.bf16 %v4040, %v4040
  %v4043 = vsel %vm2025, %v1232, 4286644096
  %v4045 = vunpack.i.l.bf16 %v4043
  %v4046 = vunpack.i.h.bf16 %v4043
  %v4047 = vmax.f32 %v4045, %v4046
  %v4048 = vrot.slane %v4047, 4
  %v4049 = vmax.f32 %v4047, %v4048
  %v4050 = vrot.slane %v4049, 2
  %v4051 = vmax.f32 %v4049, %v4050
  %v4052 = vrot.slane %v4051, 1
  %v4053 = vmax.f32 %v4051, %v4052
  %v4054 = vpack.i.bf16 %v4053, %v4053
  %v4056 = vsel %vm2025, %v1247, 4286644096
  %v4058 = vunpack.i.l.bf16 %v4056
  %v4059 = vunpack.i.h.bf16 %v4056
  %v4060 = vmax.f32 %v4058, %v4059
  %v4061 = vrot.slane %v4060, 4
  %v4062 = vmax.f32 %v4060, %v4061
  %v4063 = vrot.slane %v4062, 2
  %v4064 = vmax.f32 %v4062, %v4063
  %v4065 = vrot.slane %v4064, 1
  %v4066 = vmax.f32 %v4064, %v4065
  %v4067 = vpack.i.bf16 %v4066, %v4066
  %v4069 = vsel %vm2025, %v1254, 4286644096
  %v4071 = vunpack.i.l.bf16 %v4069
  %v4072 = vunpack.i.h.bf16 %v4069
  %v4073 = vmax.f32 %v4071, %v4072
  %v4074 = vrot.slane %v4073, 4
  %v4075 = vmax.f32 %v4073, %v4074
  %v4076 = vrot.slane %v4075, 2
  %v4077 = vmax.f32 %v4075, %v4076
  %v4078 = vrot.slane %v4077, 1
  %v4079 = vmax.f32 %v4077, %v4078
  %v4080 = vpack.i.bf16 %v4079, %v4079
  %v4082 = vsel %vm2025, %v1255, 4286644096
  %v4084 = vunpack.i.l.bf16 %v4082
  %v4085 = vunpack.i.h.bf16 %v4082
  %v4086 = vmax.f32 %v4084, %v4085
  %v4087 = vrot.slane %v4086, 4
  %v4088 = vmax.f32 %v4086, %v4087
  %v4089 = vrot.slane %v4088, 2
  %v4090 = vmax.f32 %v4088, %v4089
  %v4091 = vrot.slane %v4090, 1
  %v4092 = vmax.f32 %v4090, %v4091
  %v4093 = vpack.i.bf16 %v4092, %v4092
  %v4095 = vsel %vm2025, %v1256, 4286644096
  %v4097 = vunpack.i.l.bf16 %v4095
  %v4098 = vunpack.i.h.bf16 %v4095
  %v4099 = vmax.f32 %v4097, %v4098
  %v4100 = vrot.slane %v4099, 4
  %v4101 = vmax.f32 %v4099, %v4100
  %v4102 = vrot.slane %v4101, 2
  %v4103 = vmax.f32 %v4101, %v4102
  %v4104 = vrot.slane %v4103, 1
  %v4105 = vmax.f32 %v4103, %v4104
  %v4106 = vpack.i.bf16 %v4105, %v4105
  %v4108 = vsel %vm2025, %v1271, 4286644096
  %v4110 = vunpack.i.l.bf16 %v4108
  %v4111 = vunpack.i.h.bf16 %v4108
  %v4112 = vmax.f32 %v4110, %v4111
  %v4113 = vrot.slane %v4112, 4
  %v4114 = vmax.f32 %v4112, %v4113
  %v4115 = vrot.slane %v4114, 2
  %v4116 = vmax.f32 %v4114, %v4115
  %v4117 = vrot.slane %v4116, 1
  %v4118 = vmax.f32 %v4116, %v4117
  %v4119 = vpack.i.bf16 %v4118, %v4118
  %v4121 = vsel %vm2025, %v1278, 4286644096
  %v4123 = vunpack.i.l.bf16 %v4121
  %v4124 = vunpack.i.h.bf16 %v4121
  %v4125 = vmax.f32 %v4123, %v4124
  %v4126 = vrot.slane %v4125, 4
  %v4127 = vmax.f32 %v4125, %v4126
  %v4128 = vrot.slane %v4127, 2
  %v4129 = vmax.f32 %v4127, %v4128
  %v4130 = vrot.slane %v4129, 1
  %v4131 = vmax.f32 %v4129, %v4130
  %v4132 = vpack.i.bf16 %v4131, %v4131
  %v4134 = vsel %vm2025, %v1279, 4286644096
  %v4136 = vunpack.i.l.bf16 %v4134
  %v4137 = vunpack.i.h.bf16 %v4134
  %v4138 = vmax.f32 %v4136, %v4137
  %v4139 = vrot.slane %v4138, 4
  %v4140 = vmax.f32 %v4138, %v4139
  %v4141 = vrot.slane %v4140, 2
  %v4142 = vmax.f32 %v4140, %v4141
  %v4143 = vrot.slane %v4142, 1
  %v4144 = vmax.f32 %v4142, %v4143
  %v4145 = vpack.i.bf16 %v4144, %v4144
  %v4147 = vsel %vm2025, %v1280, 4286644096
  %v4149 = vunpack.i.l.bf16 %v4147
  %v4150 = vunpack.i.h.bf16 %v4147
  %v4151 = vmax.f32 %v4149, %v4150
  %v4152 = vrot.slane %v4151, 4
  %v4153 = vmax.f32 %v4151, %v4152
  %v4154 = vrot.slane %v4153, 2
  %v4155 = vmax.f32 %v4153, %v4154
  %v4156 = vrot.slane %v4155, 1
  %v4157 = vmax.f32 %v4155, %v4156
  %v4158 = vpack.i.bf16 %v4157, %v4157
  %v4160 = vsel %vm2025, %v1295, 4286644096
  %v4162 = vunpack.i.l.bf16 %v4160
  %v4163 = vunpack.i.h.bf16 %v4160
  %v4164 = vmax.f32 %v4162, %v4163
  %v4165 = vrot.slane %v4164, 4
  %v4166 = vmax.f32 %v4164, %v4165
  %v4167 = vrot.slane %v4166, 2
  %v4168 = vmax.f32 %v4166, %v4167
  %v4169 = vrot.slane %v4168, 1
  %v4170 = vmax.f32 %v4168, %v4169
  %v4171 = vpack.i.bf16 %v4170, %v4170
  %v4173 = vsel %vm2025, %v1302, 4286644096
  %v4175 = vunpack.i.l.bf16 %v4173
  %v4176 = vunpack.i.h.bf16 %v4173
  %v4177 = vmax.f32 %v4175, %v4176
  %v4178 = vrot.slane %v4177, 4
  %v4179 = vmax.f32 %v4177, %v4178
  %v4180 = vrot.slane %v4179, 2
  %v4181 = vmax.f32 %v4179, %v4180
  %v4182 = vrot.slane %v4181, 1
  %v4183 = vmax.f32 %v4181, %v4182
  %v4184 = vpack.i.bf16 %v4183, %v4183
  %v4186 = vsel %vm2025, %v1303, 4286644096
  %v4188 = vunpack.i.l.bf16 %v4186
  %v4189 = vunpack.i.h.bf16 %v4186
  %v4190 = vmax.f32 %v4188, %v4189
  %v4191 = vrot.slane %v4190, 4
  %v4192 = vmax.f32 %v4190, %v4191
  %v4193 = vrot.slane %v4192, 2
  %v4194 = vmax.f32 %v4192, %v4193
  %v4195 = vrot.slane %v4194, 1
  %v4196 = vmax.f32 %v4194, %v4195
  %v4197 = vpack.i.bf16 %v4196, %v4196
  %v4199 = vsel %vm2025, %v1304, 4286644096
  %v4201 = vunpack.i.l.bf16 %v4199
  %v4202 = vunpack.i.h.bf16 %v4199
  %v4203 = vmax.f32 %v4201, %v4202
  %v4204 = vrot.slane %v4203, 4
  %v4205 = vmax.f32 %v4203, %v4204
  %v4206 = vrot.slane %v4205, 2
  %v4207 = vmax.f32 %v4205, %v4206
  %v4208 = vrot.slane %v4207, 1
  %v4209 = vmax.f32 %v4207, %v4208
  %v4210 = vpack.i.bf16 %v4209, %v4209
  %v4212 = vsel %vm2025, %v1319, 4286644096
  %v4214 = vunpack.i.l.bf16 %v4212
  %v4215 = vunpack.i.h.bf16 %v4212
  %v4216 = vmax.f32 %v4214, %v4215
  %v4217 = vrot.slane %v4216, 4
  %v4218 = vmax.f32 %v4216, %v4217
  %v4219 = vrot.slane %v4218, 2
  %v4220 = vmax.f32 %v4218, %v4219
  %v4221 = vrot.slane %v4220, 1
  %v4222 = vmax.f32 %v4220, %v4221
  %v4223 = vpack.i.bf16 %v4222, %v4222
  %v4225 = vsel %vm2025, %v1326, 4286644096
  %v4227 = vunpack.i.l.bf16 %v4225
  %v4228 = vunpack.i.h.bf16 %v4225
  %v4229 = vmax.f32 %v4227, %v4228
  %v4230 = vrot.slane %v4229, 4
  %v4231 = vmax.f32 %v4229, %v4230
  %v4232 = vrot.slane %v4231, 2
  %v4233 = vmax.f32 %v4231, %v4232
  %v4234 = vrot.slane %v4233, 1
  %v4235 = vmax.f32 %v4233, %v4234
  %v4236 = vpack.i.bf16 %v4235, %v4235
  %v4238 = vsel %vm2025, %v1327, 4286644096
  %v4240 = vunpack.i.l.bf16 %v4238
  %v4241 = vunpack.i.h.bf16 %v4238
  %v4242 = vmax.f32 %v4240, %v4241
  %v4243 = vrot.slane %v4242, 4
  %v4244 = vmax.f32 %v4242, %v4243
  %v4245 = vrot.slane %v4244, 2
  %v4246 = vmax.f32 %v4244, %v4245
  %v4247 = vrot.slane %v4246, 1
  %v4248 = vmax.f32 %v4246, %v4247
  %v4249 = vpack.i.bf16 %v4248, %v4248
  %v4251 = vsel %vm2025, %v1328, 4286644096
  %v4253 = vunpack.i.l.bf16 %v4251
  %v4254 = vunpack.i.h.bf16 %v4251
  %v4255 = vmax.f32 %v4253, %v4254
  %v4256 = vrot.slane %v4255, 4
  %v4257 = vmax.f32 %v4255, %v4256
  %v4258 = vrot.slane %v4257, 2
  %v4259 = vmax.f32 %v4257, %v4258
  %v4260 = vrot.slane %v4259, 1
  %v4261 = vmax.f32 %v4259, %v4260
  %v4262 = vpack.i.bf16 %v4261, %v4261
  %v4264 = vsel %vm2025, %v1343, 4286644096
  %v4266 = vunpack.i.l.bf16 %v4264
  %v4267 = vunpack.i.h.bf16 %v4264
  %v4268 = vmax.f32 %v4266, %v4267
  %v4269 = vrot.slane %v4268, 4
  %v4270 = vmax.f32 %v4268, %v4269
  %v4271 = vrot.slane %v4270, 2
  %v4272 = vmax.f32 %v4270, %v4271
  %v4273 = vrot.slane %v4272, 1
  %v4274 = vmax.f32 %v4272, %v4273
  %v4275 = vpack.i.bf16 %v4274, %v4274
  %v4277 = vsel %vm2025, %v1350, 4286644096
  %v4279 = vunpack.i.l.bf16 %v4277
  %v4280 = vunpack.i.h.bf16 %v4277
  %v4281 = vmax.f32 %v4279, %v4280
  %v4282 = vrot.slane %v4281, 4
  %v4283 = vmax.f32 %v4281, %v4282
  %v4284 = vrot.slane %v4283, 2
  %v4285 = vmax.f32 %v4283, %v4284
  %v4286 = vrot.slane %v4285, 1
  %v4287 = vmax.f32 %v4285, %v4286
  %v4288 = vpack.i.bf16 %v4287, %v4287
  %v4290 = vsel %vm2025, %v1351, 4286644096
  %v4292 = vunpack.i.l.bf16 %v4290
  %v4293 = vunpack.i.h.bf16 %v4290
  %v4294 = vmax.f32 %v4292, %v4293
  %v4295 = vrot.slane %v4294, 4
  %v4296 = vmax.f32 %v4294, %v4295
  %v4297 = vrot.slane %v4296, 2
  %v4298 = vmax.f32 %v4296, %v4297
  %v4299 = vrot.slane %v4298, 1
  %v4300 = vmax.f32 %v4298, %v4299
  %v4301 = vpack.i.bf16 %v4300, %v4300
  %v4303 = vsel %vm2025, %v1352, 4286644096
  %v4305 = vunpack.i.l.bf16 %v4303
  %v4306 = vunpack.i.h.bf16 %v4303
  %v4307 = vmax.f32 %v4305, %v4306
  %v4308 = vrot.slane %v4307, 4
  %v4309 = vmax.f32 %v4307, %v4308
  %v4310 = vrot.slane %v4309, 2
  %v4311 = vmax.f32 %v4309, %v4310
  %v4312 = vrot.slane %v4311, 1
  %v4313 = vmax.f32 %v4311, %v4312
  %v4314 = vpack.i.bf16 %v4313, %v4313
  %v4316 = vsel %vm2025, %v1367, 4286644096
  %v4318 = vunpack.i.l.bf16 %v4316
  %v4319 = vunpack.i.h.bf16 %v4316
  %v4320 = vmax.f32 %v4318, %v4319
  %v4321 = vrot.slane %v4320, 4
  %v4322 = vmax.f32 %v4320, %v4321
  %v4323 = vrot.slane %v4322, 2
  %v4324 = vmax.f32 %v4322, %v4323
  %v4325 = vrot.slane %v4324, 1
  %v4326 = vmax.f32 %v4324, %v4325
  %v4327 = vpack.i.bf16 %v4326, %v4326
  %v4329 = vsel %vm2025, %v1374, 4286644096
  %v4331 = vunpack.i.l.bf16 %v4329
  %v4332 = vunpack.i.h.bf16 %v4329
  %v4333 = vmax.f32 %v4331, %v4332
  %v4334 = vrot.slane %v4333, 4
  %v4335 = vmax.f32 %v4333, %v4334
  %v4336 = vrot.slane %v4335, 2
  %v4337 = vmax.f32 %v4335, %v4336
  %v4338 = vrot.slane %v4337, 1
  %v4339 = vmax.f32 %v4337, %v4338
  %v4340 = vpack.i.bf16 %v4339, %v4339
  %v4342 = vsel %vm2025, %v1375, 4286644096
  %v4344 = vunpack.i.l.bf16 %v4342
  %v4345 = vunpack.i.h.bf16 %v4342
  %v4346 = vmax.f32 %v4344, %v4345
  %v4347 = vrot.slane %v4346, 4
  %v4348 = vmax.f32 %v4346, %v4347
  %v4349 = vrot.slane %v4348, 2
  %v4350 = vmax.f32 %v4348, %v4349
  %v4351 = vrot.slane %v4350, 1
  %v4352 = vmax.f32 %v4350, %v4351
  %v4353 = vpack.i.bf16 %v4352, %v4352
  %v4355 = vsel %vm2025, %v1376, 4286644096
  %v4357 = vunpack.i.l.bf16 %v4355
  %v4358 = vunpack.i.h.bf16 %v4355
  %v4359 = vmax.f32 %v4357, %v4358
  %v4360 = vrot.slane %v4359, 4
  %v4361 = vmax.f32 %v4359, %v4360
  %v4362 = vrot.slane %v4361, 2
  %v4363 = vmax.f32 %v4361, %v4362
  %v4364 = vrot.slane %v4363, 1
  %v4365 = vmax.f32 %v4363, %v4364
  %v4366 = vpack.i.bf16 %v4365, %v4365
  %v4368 = vsel %vm2025, %v1391, 4286644096
  %v4370 = vunpack.i.l.bf16 %v4368
  %v4371 = vunpack.i.h.bf16 %v4368
  %v4372 = vmax.f32 %v4370, %v4371
  %v4373 = vrot.slane %v4372, 4
  %v4374 = vmax.f32 %v4372, %v4373
  %v4375 = vrot.slane %v4374, 2
  %v4376 = vmax.f32 %v4374, %v4375
  %v4377 = vrot.slane %v4376, 1
  %v4378 = vmax.f32 %v4376, %v4377
  %v4379 = vpack.i.bf16 %v4378, %v4378
  %v4381 = vsel %vm2025, %v1398, 4286644096
  %v4383 = vunpack.i.l.bf16 %v4381
  %v4384 = vunpack.i.h.bf16 %v4381
  %v4385 = vmax.f32 %v4383, %v4384
  %v4386 = vrot.slane %v4385, 4
  %v4387 = vmax.f32 %v4385, %v4386
  %v4388 = vrot.slane %v4387, 2
  %v4389 = vmax.f32 %v4387, %v4388
  %v4390 = vrot.slane %v4389, 1
  %v4391 = vmax.f32 %v4389, %v4390
  %v4392 = vpack.i.bf16 %v4391, %v4391
  %v4394 = vsel %vm2025, %v1399, 4286644096
  %v4396 = vunpack.i.l.bf16 %v4394
  %v4397 = vunpack.i.h.bf16 %v4394
  %v4398 = vmax.f32 %v4396, %v4397
  %v4399 = vrot.slane %v4398, 4
  %v4400 = vmax.f32 %v4398, %v4399
  %v4401 = vrot.slane %v4400, 2
  %v4402 = vmax.f32 %v4400, %v4401
  %v4403 = vrot.slane %v4402, 1
  %v4404 = vmax.f32 %v4402, %v4403
  %v4405 = vpack.i.bf16 %v4404, %v4404
  %v4407 = vsel %vm2025, %v1400, 4286644096
  %v4409 = vunpack.i.l.bf16 %v4407
  %v4410 = vunpack.i.h.bf16 %v4407
  %v4411 = vmax.f32 %v4409, %v4410
  %v4412 = vrot.slane %v4411, 4
  %v4413 = vmax.f32 %v4411, %v4412
  %v4414 = vrot.slane %v4413, 2
  %v4415 = vmax.f32 %v4413, %v4414
  %v4416 = vrot.slane %v4415, 1
  %v4417 = vmax.f32 %v4415, %v4416
  %v4418 = vpack.i.bf16 %v4417, %v4417
  %v4420 = vsel %vm2025, %v1415, 4286644096
  %v4422 = vunpack.i.l.bf16 %v4420
  %v4423 = vunpack.i.h.bf16 %v4420
  %v4424 = vmax.f32 %v4422, %v4423
  %v4425 = vrot.slane %v4424, 4
  %v4426 = vmax.f32 %v4424, %v4425
  %v4427 = vrot.slane %v4426, 2
  %v4428 = vmax.f32 %v4426, %v4427
  %v4429 = vrot.slane %v4428, 1
  %v4430 = vmax.f32 %v4428, %v4429
  %v4431 = vpack.i.bf16 %v4430, %v4430
  %v4433 = vsel %vm2025, %v1422, 4286644096
  %v4435 = vunpack.i.l.bf16 %v4433
  %v4436 = vunpack.i.h.bf16 %v4433
  %v4437 = vmax.f32 %v4435, %v4436
  %v4438 = vrot.slane %v4437, 4
  %v4439 = vmax.f32 %v4437, %v4438
  %v4440 = vrot.slane %v4439, 2
  %v4441 = vmax.f32 %v4439, %v4440
  %v4442 = vrot.slane %v4441, 1
  %v4443 = vmax.f32 %v4441, %v4442
  %v4444 = vpack.i.bf16 %v4443, %v4443
  %v4446 = vsel %vm2025, %v1423, 4286644096
  %v4448 = vunpack.i.l.bf16 %v4446
  %v4449 = vunpack.i.h.bf16 %v4446
  %v4450 = vmax.f32 %v4448, %v4449
  %v4451 = vrot.slane %v4450, 4
  %v4452 = vmax.f32 %v4450, %v4451
  %v4453 = vrot.slane %v4452, 2
  %v4454 = vmax.f32 %v4452, %v4453
  %v4455 = vrot.slane %v4454, 1
  %v4456 = vmax.f32 %v4454, %v4455
  %v4457 = vpack.i.bf16 %v4456, %v4456
  %v4459 = vsel %vm2025, %v1424, 4286644096
  %v4461 = vunpack.i.l.bf16 %v4459
  %v4462 = vunpack.i.h.bf16 %v4459
  %v4463 = vmax.f32 %v4461, %v4462
  %v4464 = vrot.slane %v4463, 4
  %v4465 = vmax.f32 %v4463, %v4464
  %v4466 = vrot.slane %v4465, 2
  %v4467 = vmax.f32 %v4465, %v4466
  %v4468 = vrot.slane %v4467, 1
  %v4469 = vmax.f32 %v4467, %v4468
  %v4470 = vpack.i.bf16 %v4469, %v4469
  %v4472 = vsel %vm2025, %v1439, 4286644096
  %v4474 = vunpack.i.l.bf16 %v4472
  %v4475 = vunpack.i.h.bf16 %v4472
  %v4476 = vmax.f32 %v4474, %v4475
  %v4477 = vrot.slane %v4476, 4
  %v4478 = vmax.f32 %v4476, %v4477
  %v4479 = vrot.slane %v4478, 2
  %v4480 = vmax.f32 %v4478, %v4479
  %v4481 = vrot.slane %v4480, 1
  %v4482 = vmax.f32 %v4480, %v4481
  %v4483 = vpack.i.bf16 %v4482, %v4482
  %v4485 = vsel %vm2025, %v1446, 4286644096
  %v4487 = vunpack.i.l.bf16 %v4485
  %v4488 = vunpack.i.h.bf16 %v4485
  %v4489 = vmax.f32 %v4487, %v4488
  %v4490 = vrot.slane %v4489, 4
  %v4491 = vmax.f32 %v4489, %v4490
  %v4492 = vrot.slane %v4491, 2
  %v4493 = vmax.f32 %v4491, %v4492
  %v4494 = vrot.slane %v4493, 1
  %v4495 = vmax.f32 %v4493, %v4494
  %v4496 = vpack.i.bf16 %v4495, %v4495
  %v4498 = vsel %vm2025, %v1447, 4286644096
  %v4500 = vunpack.i.l.bf16 %v4498
  %v4501 = vunpack.i.h.bf16 %v4498
  %v4502 = vmax.f32 %v4500, %v4501
  %v4503 = vrot.slane %v4502, 4
  %v4504 = vmax.f32 %v4502, %v4503
  %v4505 = vrot.slane %v4504, 2
  %v4506 = vmax.f32 %v4504, %v4505
  %v4507 = vrot.slane %v4506, 1
  %v4508 = vmax.f32 %v4506, %v4507
  %v4509 = vpack.i.bf16 %v4508, %v4508
  %v4511 = vsel %vm2025, %v1448, 4286644096
  %v4513 = vunpack.i.l.bf16 %v4511
  %v4514 = vunpack.i.h.bf16 %v4511
  %v4515 = vmax.f32 %v4513, %v4514
  %v4516 = vrot.slane %v4515, 4
  %v4517 = vmax.f32 %v4515, %v4516
  %v4518 = vrot.slane %v4517, 2
  %v4519 = vmax.f32 %v4517, %v4518
  %v4520 = vrot.slane %v4519, 1
  %v4521 = vmax.f32 %v4519, %v4520
  %v4522 = vpack.i.bf16 %v4521, %v4521
  %v4524 = vsel %vm2025, %v1463, 4286644096
  %v4526 = vunpack.i.l.bf16 %v4524
  %v4527 = vunpack.i.h.bf16 %v4524
  %v4528 = vmax.f32 %v4526, %v4527
  %v4529 = vrot.slane %v4528, 4
  %v4530 = vmax.f32 %v4528, %v4529
  %v4531 = vrot.slane %v4530, 2
  %v4532 = vmax.f32 %v4530, %v4531
  %v4533 = vrot.slane %v4532, 1
  %v4534 = vmax.f32 %v4532, %v4533
  %v4535 = vpack.i.bf16 %v4534, %v4534
  %v4537 = vsel %vm2025, %v1470, 4286644096
  %v4539 = vunpack.i.l.bf16 %v4537
  %v4540 = vunpack.i.h.bf16 %v4537
  %v4541 = vmax.f32 %v4539, %v4540
  %v4542 = vrot.slane %v4541, 4
  %v4543 = vmax.f32 %v4541, %v4542
  %v4544 = vrot.slane %v4543, 2
  %v4545 = vmax.f32 %v4543, %v4544
  %v4546 = vrot.slane %v4545, 1
  %v4547 = vmax.f32 %v4545, %v4546
  %v4548 = vpack.i.bf16 %v4547, %v4547
  %v4550 = vsel %vm2025, %v1471, 4286644096
  %v4552 = vunpack.i.l.bf16 %v4550
  %v4553 = vunpack.i.h.bf16 %v4550
  %v4554 = vmax.f32 %v4552, %v4553
  %v4555 = vrot.slane %v4554, 4
  %v4556 = vmax.f32 %v4554, %v4555
  %v4557 = vrot.slane %v4556, 2
  %v4558 = vmax.f32 %v4556, %v4557
  %v4559 = vrot.slane %v4558, 1
  %v4560 = vmax.f32 %v4558, %v4559
  %v4561 = vpack.i.bf16 %v4560, %v4560
  %v4563 = vsel %vm2025, %v1472, 4286644096
  %v4565 = vunpack.i.l.bf16 %v4563
  %v4566 = vunpack.i.h.bf16 %v4563
  %v4567 = vmax.f32 %v4565, %v4566
  %v4568 = vrot.slane %v4567, 4
  %v4569 = vmax.f32 %v4567, %v4568
  %v4570 = vrot.slane %v4569, 2
  %v4571 = vmax.f32 %v4569, %v4570
  %v4572 = vrot.slane %v4571, 1
  %v4573 = vmax.f32 %v4571, %v4572
  %v4574 = vpack.i.bf16 %v4573, %v4573
  %v4576 = vsel %vm2025, %v1487, 4286644096
  %v4578 = vunpack.i.l.bf16 %v4576
  %v4579 = vunpack.i.h.bf16 %v4576
  %v4580 = vmax.f32 %v4578, %v4579
  %v4581 = vrot.slane %v4580, 4
  %v4582 = vmax.f32 %v4580, %v4581
  %v4583 = vrot.slane %v4582, 2
  %v4584 = vmax.f32 %v4582, %v4583
  %v4585 = vrot.slane %v4584, 1
  %v4586 = vmax.f32 %v4584, %v4585
  %v4587 = vpack.i.bf16 %v4586, %v4586
  %v4589 = vsel %vm2025, %v1494, 4286644096
  %v4591 = vunpack.i.l.bf16 %v4589
  %v4592 = vunpack.i.h.bf16 %v4589
  %v4593 = vmax.f32 %v4591, %v4592
  %v4594 = vrot.slane %v4593, 4
  %v4595 = vmax.f32 %v4593, %v4594
  %v4596 = vrot.slane %v4595, 2
  %v4597 = vmax.f32 %v4595, %v4596
  %v4598 = vrot.slane %v4597, 1
  %v4599 = vmax.f32 %v4597, %v4598
  %v4600 = vpack.i.bf16 %v4599, %v4599
  %v4602 = vsel %vm2025, %v1495, 4286644096
  %v4604 = vunpack.i.l.bf16 %v4602
  %v4605 = vunpack.i.h.bf16 %v4602
  %v4606 = vmax.f32 %v4604, %v4605
  %v4607 = vrot.slane %v4606, 4
  %v4608 = vmax.f32 %v4606, %v4607
  %v4609 = vrot.slane %v4608, 2
  %v4610 = vmax.f32 %v4608, %v4609
  %v4611 = vrot.slane %v4610, 1
  %v4612 = vmax.f32 %v4610, %v4611
  %v4613 = vpack.i.bf16 %v4612, %v4612
  %v4615 = vsel %vm2025, %v1496, 4286644096
  %v4617 = vunpack.i.l.bf16 %v4615
  %v4618 = vunpack.i.h.bf16 %v4615
  %v4619 = vmax.f32 %v4617, %v4618
  %v4620 = vrot.slane %v4619, 4
  %v4621 = vmax.f32 %v4619, %v4620
  %v4622 = vrot.slane %v4621, 2
  %v4623 = vmax.f32 %v4621, %v4622
  %v4624 = vrot.slane %v4623, 1
  %v4625 = vmax.f32 %v4623, %v4624
  %v4626 = vpack.i.bf16 %v4625, %v4625
  %v4628 = vsel %vm2025, %v1511, 4286644096
  %v4630 = vunpack.i.l.bf16 %v4628
  %v4631 = vunpack.i.h.bf16 %v4628
  %v4632 = vmax.f32 %v4630, %v4631
  %v4633 = vrot.slane %v4632, 4
  %v4634 = vmax.f32 %v4632, %v4633
  %v4635 = vrot.slane %v4634, 2
  %v4636 = vmax.f32 %v4634, %v4635
  %v4637 = vrot.slane %v4636, 1
  %v4638 = vmax.f32 %v4636, %v4637
  %v4639 = vpack.i.bf16 %v4638, %v4638
  %v4641 = vsel %vm2025, %v1518, 4286644096
  %v4643 = vunpack.i.l.bf16 %v4641
  %v4644 = vunpack.i.h.bf16 %v4641
  %v4645 = vmax.f32 %v4643, %v4644
  %v4646 = vrot.slane %v4645, 4
  %v4647 = vmax.f32 %v4645, %v4646
  %v4648 = vrot.slane %v4647, 2
  %v4649 = vmax.f32 %v4647, %v4648
  %v4650 = vrot.slane %v4649, 1
  %v4651 = vmax.f32 %v4649, %v4650
  %v4652 = vpack.i.bf16 %v4651, %v4651
  %v4654 = vsel %vm2025, %v1519, 4286644096
  %v4656 = vunpack.i.l.bf16 %v4654
  %v4657 = vunpack.i.h.bf16 %v4654
  %v4658 = vmax.f32 %v4656, %v4657
  %v4659 = vrot.slane %v4658, 4
  %v4660 = vmax.f32 %v4658, %v4659
  %v4661 = vrot.slane %v4660, 2
  %v4662 = vmax.f32 %v4660, %v4661
  %v4663 = vrot.slane %v4662, 1
  %v4664 = vmax.f32 %v4662, %v4663
  %v4665 = vpack.i.bf16 %v4664, %v4664
  %v4667 = vsel %vm2025, %v1520, 4286644096
  %v4669 = vunpack.i.l.bf16 %v4667
  %v4670 = vunpack.i.h.bf16 %v4667
  %v4671 = vmax.f32 %v4669, %v4670
  %v4672 = vrot.slane %v4671, 4
  %v4673 = vmax.f32 %v4671, %v4672
  %v4674 = vrot.slane %v4673, 2
  %v4675 = vmax.f32 %v4673, %v4674
  %v4676 = vrot.slane %v4675, 1
  %v4677 = vmax.f32 %v4675, %v4676
  %v4678 = vpack.i.bf16 %v4677, %v4677
  %v4680 = vsel %vm2025, %v1535, 4286644096
  %v4682 = vunpack.i.l.bf16 %v4680
  %v4683 = vunpack.i.h.bf16 %v4680
  %v4684 = vmax.f32 %v4682, %v4683
  %v4685 = vrot.slane %v4684, 4
  %v4686 = vmax.f32 %v4684, %v4685
  %v4687 = vrot.slane %v4686, 2
  %v4688 = vmax.f32 %v4686, %v4687
  %v4689 = vrot.slane %v4688, 1
  %v4690 = vmax.f32 %v4688, %v4689
  %v4691 = vpack.i.bf16 %v4690, %v4690
  %v4693 = vsel %vm2025, %v1542, 4286644096
  %v4695 = vunpack.i.l.bf16 %v4693
  %v4696 = vunpack.i.h.bf16 %v4693
  %v4697 = vmax.f32 %v4695, %v4696
  %v4698 = vrot.slane %v4697, 4
  %v4699 = vmax.f32 %v4697, %v4698
  %v4700 = vrot.slane %v4699, 2
  %v4701 = vmax.f32 %v4699, %v4700
  %v4702 = vrot.slane %v4701, 1
  %v4703 = vmax.f32 %v4701, %v4702
  %v4704 = vpack.i.bf16 %v4703, %v4703
  %v4706 = vsel %vm2025, %v1543, 4286644096
  %v4708 = vunpack.i.l.bf16 %v4706
  %v4709 = vunpack.i.h.bf16 %v4706
  %v4710 = vmax.f32 %v4708, %v4709
  %v4711 = vrot.slane %v4710, 4
  %v4712 = vmax.f32 %v4710, %v4711
  %v4713 = vrot.slane %v4712, 2
  %v4714 = vmax.f32 %v4712, %v4713
  %v4715 = vrot.slane %v4714, 1
  %v4716 = vmax.f32 %v4714, %v4715
  %v4717 = vpack.i.bf16 %v4716, %v4716
  %v4719 = vsel %vm2025, %v1544, 4286644096
  %v4721 = vunpack.i.l.bf16 %v4719
  %v4722 = vunpack.i.h.bf16 %v4719
  %v4723 = vmax.f32 %v4721, %v4722
  %v4724 = vrot.slane %v4723, 4
  %v4725 = vmax.f32 %v4723, %v4724
  %v4726 = vrot.slane %v4725, 2
  %v4727 = vmax.f32 %v4725, %v4726
  %v4728 = vrot.slane %v4727, 1
  %v4729 = vmax.f32 %v4727, %v4728
  %v4730 = vpack.i.bf16 %v4729, %v4729
  %v4732 = vsel %vm2025, %v1559, 4286644096
  %v4734 = vunpack.i.l.bf16 %v4732
  %v4735 = vunpack.i.h.bf16 %v4732
  %v4736 = vmax.f32 %v4734, %v4735
  %v4737 = vrot.slane %v4736, 4
  %v4738 = vmax.f32 %v4736, %v4737
  %v4739 = vrot.slane %v4738, 2
  %v4740 = vmax.f32 %v4738, %v4739
  %v4741 = vrot.slane %v4740, 1
  %v4742 = vmax.f32 %v4740, %v4741
  %v4743 = vpack.i.bf16 %v4742, %v4742
  %v4745 = vsel %vm2025, %v1566, 4286644096
  %v4747 = vunpack.i.l.bf16 %v4745
  %v4748 = vunpack.i.h.bf16 %v4745
  %v4749 = vmax.f32 %v4747, %v4748
  %v4750 = vrot.slane %v4749, 4
  %v4751 = vmax.f32 %v4749, %v4750
  %v4752 = vrot.slane %v4751, 2
  %v4753 = vmax.f32 %v4751, %v4752
  %v4754 = vrot.slane %v4753, 1
  %v4755 = vmax.f32 %v4753, %v4754
  %v4756 = vpack.i.bf16 %v4755, %v4755
  %v4758 = vsel %vm2025, %v1567, 4286644096
  %v4760 = vunpack.i.l.bf16 %v4758
  %v4761 = vunpack.i.h.bf16 %v4758
  %v4762 = vmax.f32 %v4760, %v4761
  %v4763 = vrot.slane %v4762, 4
  %v4764 = vmax.f32 %v4762, %v4763
  %v4765 = vrot.slane %v4764, 2
  %v4766 = vmax.f32 %v4764, %v4765
  %v4767 = vrot.slane %v4766, 1
  %v4768 = vmax.f32 %v4766, %v4767
  %v4769 = vpack.i.bf16 %v4768, %v4768
  %v4771 = vsel %vm2025, %v1568, 4286644096
  %v4773 = vunpack.i.l.bf16 %v4771
  %v4774 = vunpack.i.h.bf16 %v4771
  %v4775 = vmax.f32 %v4773, %v4774
  %v4776 = vrot.slane %v4775, 4
  %v4777 = vmax.f32 %v4775, %v4776
  %v4778 = vrot.slane %v4777, 2
  %v4779 = vmax.f32 %v4777, %v4778
  %v4780 = vrot.slane %v4779, 1
  %v4781 = vmax.f32 %v4779, %v4780
  %v4782 = vpack.i.bf16 %v4781, %v4781
  %v4784 = vsel %vm2025, %v1583, 4286644096
  %v4786 = vunpack.i.l.bf16 %v4784
  %v4787 = vunpack.i.h.bf16 %v4784
  %v4788 = vmax.f32 %v4786, %v4787
  %v4789 = vrot.slane %v4788, 4
  %v4790 = vmax.f32 %v4788, %v4789
  %v4791 = vrot.slane %v4790, 2
  %v4792 = vmax.f32 %v4790, %v4791
  %v4793 = vrot.slane %v4792, 1
  %v4794 = vmax.f32 %v4792, %v4793
  %v4795 = vpack.i.bf16 %v4794, %v4794
  %v4797 = vsel %vm2025, %v1590, 4286644096
  %v4799 = vunpack.i.l.bf16 %v4797
  %v4800 = vunpack.i.h.bf16 %v4797
  %v4801 = vmax.f32 %v4799, %v4800
  %v4802 = vrot.slane %v4801, 4
  %v4803 = vmax.f32 %v4801, %v4802
  %v4804 = vrot.slane %v4803, 2
  %v4805 = vmax.f32 %v4803, %v4804
  %v4806 = vrot.slane %v4805, 1
  %v4807 = vmax.f32 %v4805, %v4806
  %v4808 = vpack.i.bf16 %v4807, %v4807
  %v4810 = vsel %vm2025, %v1591, 4286644096
  %v4812 = vunpack.i.l.bf16 %v4810
  %v4813 = vunpack.i.h.bf16 %v4810
  %v4814 = vmax.f32 %v4812, %v4813
  %v4815 = vrot.slane %v4814, 4
  %v4816 = vmax.f32 %v4814, %v4815
  %v4817 = vrot.slane %v4816, 2
  %v4818 = vmax.f32 %v4816, %v4817
  %v4819 = vrot.slane %v4818, 1
  %v4820 = vmax.f32 %v4818, %v4819
  %v4821 = vpack.i.bf16 %v4820, %v4820
  %v4823 = vsel %vm2025, %v1592, 4286644096
  %v4825 = vunpack.i.l.bf16 %v4823
  %v4826 = vunpack.i.h.bf16 %v4823
  %v4827 = vmax.f32 %v4825, %v4826
  %v4828 = vrot.slane %v4827, 4
  %v4829 = vmax.f32 %v4827, %v4828
  %v4830 = vrot.slane %v4829, 2
  %v4831 = vmax.f32 %v4829, %v4830
  %v4832 = vrot.slane %v4831, 1
  %v4833 = vmax.f32 %v4831, %v4832
  %v4834 = vpack.i.bf16 %v4833, %v4833
  %v4836 = vsel %vm2025, %v1607, 4286644096
  %v4838 = vunpack.i.l.bf16 %v4836
  %v4839 = vunpack.i.h.bf16 %v4836
  %v4840 = vmax.f32 %v4838, %v4839
  %v4841 = vrot.slane %v4840, 4
  %v4842 = vmax.f32 %v4840, %v4841
  %v4843 = vrot.slane %v4842, 2
  %v4844 = vmax.f32 %v4842, %v4843
  %v4845 = vrot.slane %v4844, 1
  %v4846 = vmax.f32 %v4844, %v4845
  %v4847 = vpack.i.bf16 %v4846, %v4846
  %v4849 = vsel %vm2025, %v1614, 4286644096
  %v4851 = vunpack.i.l.bf16 %v4849
  %v4852 = vunpack.i.h.bf16 %v4849
  %v4853 = vmax.f32 %v4851, %v4852
  %v4854 = vrot.slane %v4853, 4
  %v4855 = vmax.f32 %v4853, %v4854
  %v4856 = vrot.slane %v4855, 2
  %v4857 = vmax.f32 %v4855, %v4856
  %v4858 = vrot.slane %v4857, 1
  %v4859 = vmax.f32 %v4857, %v4858
  %v4860 = vpack.i.bf16 %v4859, %v4859
  %v4862 = vsel %vm2025, %v1615, 4286644096
  %v4864 = vunpack.i.l.bf16 %v4862
  %v4865 = vunpack.i.h.bf16 %v4862
  %v4866 = vmax.f32 %v4864, %v4865
  %v4867 = vrot.slane %v4866, 4
  %v4868 = vmax.f32 %v4866, %v4867
  %v4869 = vrot.slane %v4868, 2
  %v4870 = vmax.f32 %v4868, %v4869
  %v4871 = vrot.slane %v4870, 1
  %v4872 = vmax.f32 %v4870, %v4871
  %v4873 = vpack.i.bf16 %v4872, %v4872
  %v4875 = vsel %vm2025, %v1616, 4286644096
  %v4877 = vunpack.i.l.bf16 %v4875
  %v4878 = vunpack.i.h.bf16 %v4875
  %v4879 = vmax.f32 %v4877, %v4878
  %v4880 = vrot.slane %v4879, 4
  %v4881 = vmax.f32 %v4879, %v4880
  %v4882 = vrot.slane %v4881, 2
  %v4883 = vmax.f32 %v4881, %v4882
  %v4884 = vrot.slane %v4883, 1
  %v4885 = vmax.f32 %v4883, %v4884
  %v4886 = vpack.i.bf16 %v4885, %v4885
  %v4888 = vsel %vm2025, %v1631, 4286644096
  %v4890 = vunpack.i.l.bf16 %v4888
  %v4891 = vunpack.i.h.bf16 %v4888
  %v4892 = vmax.f32 %v4890, %v4891
  %v4893 = vrot.slane %v4892, 4
  %v4894 = vmax.f32 %v4892, %v4893
  %v4895 = vrot.slane %v4894, 2
  %v4896 = vmax.f32 %v4894, %v4895
  %v4897 = vrot.slane %v4896, 1
  %v4898 = vmax.f32 %v4896, %v4897
  %v4899 = vpack.i.bf16 %v4898, %v4898
  %v4901 = vsel %vm2025, %v1638, 4286644096
  %v4903 = vunpack.i.l.bf16 %v4901
  %v4904 = vunpack.i.h.bf16 %v4901
  %v4905 = vmax.f32 %v4903, %v4904
  %v4906 = vrot.slane %v4905, 4
  %v4907 = vmax.f32 %v4905, %v4906
  %v4908 = vrot.slane %v4907, 2
  %v4909 = vmax.f32 %v4907, %v4908
  %v4910 = vrot.slane %v4909, 1
  %v4911 = vmax.f32 %v4909, %v4910
  %v4912 = vpack.i.bf16 %v4911, %v4911
  %v4914 = vsel %vm2025, %v1639, 4286644096
  %v4916 = vunpack.i.l.bf16 %v4914
  %v4917 = vunpack.i.h.bf16 %v4914
  %v4918 = vmax.f32 %v4916, %v4917
  %v4919 = vrot.slane %v4918, 4
  %v4920 = vmax.f32 %v4918, %v4919
  %v4921 = vrot.slane %v4920, 2
  %v4922 = vmax.f32 %v4920, %v4921
  %v4923 = vrot.slane %v4922, 1
  %v4924 = vmax.f32 %v4922, %v4923
  %v4925 = vpack.i.bf16 %v4924, %v4924
  %v4927 = vsel %vm2025, %v1640, 4286644096
  %v4929 = vunpack.i.l.bf16 %v4927
  %v4930 = vunpack.i.h.bf16 %v4927
  %v4931 = vmax.f32 %v4929, %v4930
  %v4932 = vrot.slane %v4931, 4
  %v4933 = vmax.f32 %v4931, %v4932
  %v4934 = vrot.slane %v4933, 2
  %v4935 = vmax.f32 %v4933, %v4934
  %v4936 = vrot.slane %v4935, 1
  %v4937 = vmax.f32 %v4935, %v4936
  %v4938 = vpack.i.bf16 %v4937, %v4937
  %v4940 = vsel %vm2025, %v1655, 4286644096
  %v4942 = vunpack.i.l.bf16 %v4940
  %v4943 = vunpack.i.h.bf16 %v4940
  %v4944 = vmax.f32 %v4942, %v4943
  %v4945 = vrot.slane %v4944, 4
  %v4946 = vmax.f32 %v4944, %v4945
  %v4947 = vrot.slane %v4946, 2
  %v4948 = vmax.f32 %v4946, %v4947
  %v4949 = vrot.slane %v4948, 1
  %v4950 = vmax.f32 %v4948, %v4949
  %v4951 = vpack.i.bf16 %v4950, %v4950
  %v4953 = vsel %vm2025, %v1662, 4286644096
  %v4955 = vunpack.i.l.bf16 %v4953
  %v4956 = vunpack.i.h.bf16 %v4953
  %v4957 = vmax.f32 %v4955, %v4956
  %v4958 = vrot.slane %v4957, 4
  %v4959 = vmax.f32 %v4957, %v4958
  %v4960 = vrot.slane %v4959, 2
  %v4961 = vmax.f32 %v4959, %v4960
  %v4962 = vrot.slane %v4961, 1
  %v4963 = vmax.f32 %v4961, %v4962
  %v4964 = vpack.i.bf16 %v4963, %v4963
  %v4966 = vsel %vm2025, %v1663, 4286644096
  %v4968 = vunpack.i.l.bf16 %v4966
  %v4969 = vunpack.i.h.bf16 %v4966
  %v4970 = vmax.f32 %v4968, %v4969
  %v4971 = vrot.slane %v4970, 4
  %v4972 = vmax.f32 %v4970, %v4971
  %v4973 = vrot.slane %v4972, 2
  %v4974 = vmax.f32 %v4972, %v4973
  %v4975 = vrot.slane %v4974, 1
  %v4976 = vmax.f32 %v4974, %v4975
  %v4977 = vpack.i.bf16 %v4976, %v4976
  %v4979 = vsel %vm2025, %v1664, 4286644096
  %v4981 = vunpack.i.l.bf16 %v4979
  %v4982 = vunpack.i.h.bf16 %v4979
  %v4983 = vmax.f32 %v4981, %v4982
  %v4984 = vrot.slane %v4983, 4
  %v4985 = vmax.f32 %v4983, %v4984
  %v4986 = vrot.slane %v4985, 2
  %v4987 = vmax.f32 %v4985, %v4986
  %v4988 = vrot.slane %v4987, 1
  %v4989 = vmax.f32 %v4987, %v4988
  %v4990 = vpack.i.bf16 %v4989, %v4989
  %v4992 = vsel %vm2025, %v1679, 4286644096
  %v4994 = vunpack.i.l.bf16 %v4992
  %v4995 = vunpack.i.h.bf16 %v4992
  %v4996 = vmax.f32 %v4994, %v4995
  %v4997 = vrot.slane %v4996, 4
  %v4998 = vmax.f32 %v4996, %v4997
  %v4999 = vrot.slane %v4998, 2
  %v5000 = vmax.f32 %v4998, %v4999
  %v5001 = vrot.slane %v5000, 1
  %v5002 = vmax.f32 %v5000, %v5001
  %v5003 = vpack.i.bf16 %v5002, %v5002
  %v5005 = vsel %vm2025, %v1686, 4286644096
  %v5007 = vunpack.i.l.bf16 %v5005
  %v5008 = vunpack.i.h.bf16 %v5005
  %v5009 = vmax.f32 %v5007, %v5008
  %v5010 = vrot.slane %v5009, 4
  %v5011 = vmax.f32 %v5009, %v5010
  %v5012 = vrot.slane %v5011, 2
  %v5013 = vmax.f32 %v5011, %v5012
  %v5014 = vrot.slane %v5013, 1
  %v5015 = vmax.f32 %v5013, %v5014
  %v5016 = vpack.i.bf16 %v5015, %v5015
  %v5018 = vsel %vm2025, %v1687, 4286644096
  %v5020 = vunpack.i.l.bf16 %v5018
  %v5021 = vunpack.i.h.bf16 %v5018
  %v5022 = vmax.f32 %v5020, %v5021
  %v5023 = vrot.slane %v5022, 4
  %v5024 = vmax.f32 %v5022, %v5023
  %v5025 = vrot.slane %v5024, 2
  %v5026 = vmax.f32 %v5024, %v5025
  %v5027 = vrot.slane %v5026, 1
  %v5028 = vmax.f32 %v5026, %v5027
  %v5029 = vpack.i.bf16 %v5028, %v5028
  %v5031 = vsel %vm2025, %v1688, 4286644096
  %v5033 = vunpack.i.l.bf16 %v5031
  %v5034 = vunpack.i.h.bf16 %v5031
  %v5035 = vmax.f32 %v5033, %v5034
  %v5036 = vrot.slane %v5035, 4
  %v5037 = vmax.f32 %v5035, %v5036
  %v5038 = vrot.slane %v5037, 2
  %v5039 = vmax.f32 %v5037, %v5038
  %v5040 = vrot.slane %v5039, 1
  %v5041 = vmax.f32 %v5039, %v5040
  %v5042 = vpack.i.bf16 %v5041, %v5041
  %v5044 = vsel %vm2025, %v1703, 4286644096
  %v5046 = vunpack.i.l.bf16 %v5044
  %v5047 = vunpack.i.h.bf16 %v5044
  %v5048 = vmax.f32 %v5046, %v5047
  %v5049 = vrot.slane %v5048, 4
  %v5050 = vmax.f32 %v5048, %v5049
  %v5051 = vrot.slane %v5050, 2
  %v5052 = vmax.f32 %v5050, %v5051
  %v5053 = vrot.slane %v5052, 1
  %v5054 = vmax.f32 %v5052, %v5053
  %v5055 = vpack.i.bf16 %v5054, %v5054
  %v5057 = vsel %vm2025, %v1710, 4286644096
  %v5059 = vunpack.i.l.bf16 %v5057
  %v5060 = vunpack.i.h.bf16 %v5057
  %v5061 = vmax.f32 %v5059, %v5060
  %v5062 = vrot.slane %v5061, 4
  %v5063 = vmax.f32 %v5061, %v5062
  %v5064 = vrot.slane %v5063, 2
  %v5065 = vmax.f32 %v5063, %v5064
  %v5066 = vrot.slane %v5065, 1
  %v5067 = vmax.f32 %v5065, %v5066
  %v5068 = vpack.i.bf16 %v5067, %v5067
  %v5070 = vsel %vm2025, %v1711, 4286644096
  %v5072 = vunpack.i.l.bf16 %v5070
  %v5073 = vunpack.i.h.bf16 %v5070
  %v5074 = vmax.f32 %v5072, %v5073
  %v5075 = vrot.slane %v5074, 4
  %v5076 = vmax.f32 %v5074, %v5075
  %v5077 = vrot.slane %v5076, 2
  %v5078 = vmax.f32 %v5076, %v5077
  %v5079 = vrot.slane %v5078, 1
  %v5080 = vmax.f32 %v5078, %v5079
  %v5081 = vpack.i.bf16 %v5080, %v5080
  %v5083 = vsel %vm2025, %v1712, 4286644096
  %v5085 = vunpack.i.l.bf16 %v5083
  %v5086 = vunpack.i.h.bf16 %v5083
  %v5087 = vmax.f32 %v5085, %v5086
  %v5088 = vrot.slane %v5087, 4
  %v5089 = vmax.f32 %v5087, %v5088
  %v5090 = vrot.slane %v5089, 2
  %v5091 = vmax.f32 %v5089, %v5090
  %v5092 = vrot.slane %v5091, 1
  %v5093 = vmax.f32 %v5091, %v5092
  %v5094 = vpack.i.bf16 %v5093, %v5093
  %v5096 = vsel %vm2025, %v1727, 4286644096
  %v5098 = vunpack.i.l.bf16 %v5096
  %v5099 = vunpack.i.h.bf16 %v5096
  %v5100 = vmax.f32 %v5098, %v5099
  %v5101 = vrot.slane %v5100, 4
  %v5102 = vmax.f32 %v5100, %v5101
  %v5103 = vrot.slane %v5102, 2
  %v5104 = vmax.f32 %v5102, %v5103
  %v5105 = vrot.slane %v5104, 1
  %v5106 = vmax.f32 %v5104, %v5105
  %v5107 = vpack.i.bf16 %v5106, %v5106
  %v5109 = vsel %vm2025, %v1734, 4286644096
  %v5111 = vunpack.i.l.bf16 %v5109
  %v5112 = vunpack.i.h.bf16 %v5109
  %v5113 = vmax.f32 %v5111, %v5112
  %v5114 = vrot.slane %v5113, 4
  %v5115 = vmax.f32 %v5113, %v5114
  %v5116 = vrot.slane %v5115, 2
  %v5117 = vmax.f32 %v5115, %v5116
  %v5118 = vrot.slane %v5117, 1
  %v5119 = vmax.f32 %v5117, %v5118
  %v5120 = vpack.i.bf16 %v5119, %v5119
  %v5122 = vsel %vm2025, %v1735, 4286644096
  %v5124 = vunpack.i.l.bf16 %v5122
  %v5125 = vunpack.i.h.bf16 %v5122
  %v5126 = vmax.f32 %v5124, %v5125
  %v5127 = vrot.slane %v5126, 4
  %v5128 = vmax.f32 %v5126, %v5127
  %v5129 = vrot.slane %v5128, 2
  %v5130 = vmax.f32 %v5128, %v5129
  %v5131 = vrot.slane %v5130, 1
  %v5132 = vmax.f32 %v5130, %v5131
  %v5133 = vpack.i.bf16 %v5132, %v5132
  %v5135 = vsel %vm2025, %v1736, 4286644096
  %v5137 = vunpack.i.l.bf16 %v5135
  %v5138 = vunpack.i.h.bf16 %v5135
  %v5139 = vmax.f32 %v5137, %v5138
  %v5140 = vrot.slane %v5139, 4
  %v5141 = vmax.f32 %v5139, %v5140
  %v5142 = vrot.slane %v5141, 2
  %v5143 = vmax.f32 %v5141, %v5142
  %v5144 = vrot.slane %v5143, 1
  %v5145 = vmax.f32 %v5143, %v5144
  %v5146 = vpack.i.bf16 %v5145, %v5145
  %v5148 = vsel %vm2025, %v1751, 4286644096
  %v5150 = vunpack.i.l.bf16 %v5148
  %v5151 = vunpack.i.h.bf16 %v5148
  %v5152 = vmax.f32 %v5150, %v5151
  %v5153 = vrot.slane %v5152, 4
  %v5154 = vmax.f32 %v5152, %v5153
  %v5155 = vrot.slane %v5154, 2
  %v5156 = vmax.f32 %v5154, %v5155
  %v5157 = vrot.slane %v5156, 1
  %v5158 = vmax.f32 %v5156, %v5157
  %v5159 = vpack.i.bf16 %v5158, %v5158
  %v5161 = vsel %vm2025, %v1758, 4286644096
  %v5163 = vunpack.i.l.bf16 %v5161
  %v5164 = vunpack.i.h.bf16 %v5161
  %v5165 = vmax.f32 %v5163, %v5164
  %v5166 = vrot.slane %v5165, 4
  %v5167 = vmax.f32 %v5165, %v5166
  %v5168 = vrot.slane %v5167, 2
  %v5169 = vmax.f32 %v5167, %v5168
  %v5170 = vrot.slane %v5169, 1
  %v5171 = vmax.f32 %v5169, %v5170
  %v5172 = vpack.i.bf16 %v5171, %v5171
  %v5174 = vsel %vm2025, %v1759, 4286644096
  %v5176 = vunpack.i.l.bf16 %v5174
  %v5177 = vunpack.i.h.bf16 %v5174
  %v5178 = vmax.f32 %v5176, %v5177
  %v5179 = vrot.slane %v5178, 4
  %v5180 = vmax.f32 %v5178, %v5179
  %v5181 = vrot.slane %v5180, 2
  %v5182 = vmax.f32 %v5180, %v5181
  %v5183 = vrot.slane %v5182, 1
  %v5184 = vmax.f32 %v5182, %v5183
  %v5185 = vpack.i.bf16 %v5184, %v5184
  %v5187 = vsel %vm2025, %v1760, 4286644096
  %v5189 = vunpack.i.l.bf16 %v5187
  %v5190 = vunpack.i.h.bf16 %v5187
  %v5191 = vmax.f32 %v5189, %v5190
  %v5192 = vrot.slane %v5191, 4
  %v5193 = vmax.f32 %v5191, %v5192
  %v5194 = vrot.slane %v5193, 2
  %v5195 = vmax.f32 %v5193, %v5194
  %v5196 = vrot.slane %v5195, 1
  %v5197 = vmax.f32 %v5195, %v5196
  %v5198 = vpack.i.bf16 %v5197, %v5197
  %v5200 = vsel %vm2025, %v1775, 4286644096
  %v5202 = vunpack.i.l.bf16 %v5200
  %v5203 = vunpack.i.h.bf16 %v5200
  %v5204 = vmax.f32 %v5202, %v5203
  %v5205 = vrot.slane %v5204, 4
  %v5206 = vmax.f32 %v5204, %v5205
  %v5207 = vrot.slane %v5206, 2
  %v5208 = vmax.f32 %v5206, %v5207
  %v5209 = vrot.slane %v5208, 1
  %v5210 = vmax.f32 %v5208, %v5209
  %v5211 = vpack.i.bf16 %v5210, %v5210
  %v5213 = vsel %vm2025, %v1782, 4286644096
  %v5215 = vunpack.i.l.bf16 %v5213
  %v5216 = vunpack.i.h.bf16 %v5213
  %v5217 = vmax.f32 %v5215, %v5216
  %v5218 = vrot.slane %v5217, 4
  %v5219 = vmax.f32 %v5217, %v5218
  %v5220 = vrot.slane %v5219, 2
  %v5221 = vmax.f32 %v5219, %v5220
  %v5222 = vrot.slane %v5221, 1
  %v5223 = vmax.f32 %v5221, %v5222
  %v5224 = vpack.i.bf16 %v5223, %v5223
  %v5226 = vsel %vm2025, %v1783, 4286644096
  %v5228 = vunpack.i.l.bf16 %v5226
  %v5229 = vunpack.i.h.bf16 %v5226
  %v5230 = vmax.f32 %v5228, %v5229
  %v5231 = vrot.slane %v5230, 4
  %v5232 = vmax.f32 %v5230, %v5231
  %v5233 = vrot.slane %v5232, 2
  %v5234 = vmax.f32 %v5232, %v5233
  %v5235 = vrot.slane %v5234, 1
  %v5236 = vmax.f32 %v5234, %v5235
  %v5237 = vpack.i.bf16 %v5236, %v5236
  %v5239 = vsel %vm2025, %v1784, 4286644096
  %v5241 = vunpack.i.l.bf16 %v5239
  %v5242 = vunpack.i.h.bf16 %v5239
  %v5243 = vmax.f32 %v5241, %v5242
  %v5244 = vrot.slane %v5243, 4
  %v5245 = vmax.f32 %v5243, %v5244
  %v5246 = vrot.slane %v5245, 2
  %v5247 = vmax.f32 %v5245, %v5246
  %v5248 = vrot.slane %v5247, 1
  %v5249 = vmax.f32 %v5247, %v5248
  %v5250 = vpack.i.bf16 %v5249, %v5249
  %v5252 = vsel %vm2025, %v1799, 4286644096
  %v5254 = vunpack.i.l.bf16 %v5252
  %v5255 = vunpack.i.h.bf16 %v5252
  %v5256 = vmax.f32 %v5254, %v5255
  %v5257 = vrot.slane %v5256, 4
  %v5258 = vmax.f32 %v5256, %v5257
  %v5259 = vrot.slane %v5258, 2
  %v5260 = vmax.f32 %v5258, %v5259
  %v5261 = vrot.slane %v5260, 1
  %v5262 = vmax.f32 %v5260, %v5261
  %v5263 = vpack.i.bf16 %v5262, %v5262
  %v5265 = vsel %vm2025, %v1806, 4286644096
  %v5267 = vunpack.i.l.bf16 %v5265
  %v5268 = vunpack.i.h.bf16 %v5265
  %v5269 = vmax.f32 %v5267, %v5268
  %v5270 = vrot.slane %v5269, 4
  %v5271 = vmax.f32 %v5269, %v5270
  %v5272 = vrot.slane %v5271, 2
  %v5273 = vmax.f32 %v5271, %v5272
  %v5274 = vrot.slane %v5273, 1
  %v5275 = vmax.f32 %v5273, %v5274
  %v5276 = vpack.i.bf16 %v5275, %v5275
  %v5278 = vsel %vm2025, %v1807, 4286644096
  %v5280 = vunpack.i.l.bf16 %v5278
  %v5281 = vunpack.i.h.bf16 %v5278
  %v5282 = vmax.f32 %v5280, %v5281
  %v5283 = vrot.slane %v5282, 4
  %v5284 = vmax.f32 %v5282, %v5283
  %v5285 = vrot.slane %v5284, 2
  %v5286 = vmax.f32 %v5284, %v5285
  %v5287 = vrot.slane %v5286, 1
  %v5288 = vmax.f32 %v5286, %v5287
  %v5289 = vpack.i.bf16 %v5288, %v5288
  %v5291 = vsel %vm2025, %v1808, 4286644096
  %v5293 = vunpack.i.l.bf16 %v5291
  %v5294 = vunpack.i.h.bf16 %v5291
  %v5295 = vmax.f32 %v5293, %v5294
  %v5296 = vrot.slane %v5295, 4
  %v5297 = vmax.f32 %v5295, %v5296
  %v5298 = vrot.slane %v5297, 2
  %v5299 = vmax.f32 %v5297, %v5298
  %v5300 = vrot.slane %v5299, 1
  %v5301 = vmax.f32 %v5299, %v5300
  %v5302 = vpack.i.bf16 %v5301, %v5301
  %v5304 = vsel %vm2025, %v1823, 4286644096
  %v5306 = vunpack.i.l.bf16 %v5304
  %v5307 = vunpack.i.h.bf16 %v5304
  %v5308 = vmax.f32 %v5306, %v5307
  %v5309 = vrot.slane %v5308, 4
  %v5310 = vmax.f32 %v5308, %v5309
  %v5311 = vrot.slane %v5310, 2
  %v5312 = vmax.f32 %v5310, %v5311
  %v5313 = vrot.slane %v5312, 1
  %v5314 = vmax.f32 %v5312, %v5313
  %v5315 = vpack.i.bf16 %v5314, %v5314
  %v5317 = vsel %vm2025, %v1830, 4286644096
  %v5319 = vunpack.i.l.bf16 %v5317
  %v5320 = vunpack.i.h.bf16 %v5317
  %v5321 = vmax.f32 %v5319, %v5320
  %v5322 = vrot.slane %v5321, 4
  %v5323 = vmax.f32 %v5321, %v5322
  %v5324 = vrot.slane %v5323, 2
  %v5325 = vmax.f32 %v5323, %v5324
  %v5326 = vrot.slane %v5325, 1
  %v5327 = vmax.f32 %v5325, %v5326
  %v5328 = vpack.i.bf16 %v5327, %v5327
  %v5330 = vsel %vm2025, %v1831, 4286644096
  %v5332 = vunpack.i.l.bf16 %v5330
  %v5333 = vunpack.i.h.bf16 %v5330
  %v5334 = vmax.f32 %v5332, %v5333
  %v5335 = vrot.slane %v5334, 4
  %v5336 = vmax.f32 %v5334, %v5335
  %v5337 = vrot.slane %v5336, 2
  %v5338 = vmax.f32 %v5336, %v5337
  %v5339 = vrot.slane %v5338, 1
  %v5340 = vmax.f32 %v5338, %v5339
  %v5341 = vpack.i.bf16 %v5340, %v5340
  %v5343 = vsel %vm2025, %v1832, 4286644096
  %v5345 = vunpack.i.l.bf16 %v5343
  %v5346 = vunpack.i.h.bf16 %v5343
  %v5347 = vmax.f32 %v5345, %v5346
  %v5348 = vrot.slane %v5347, 4
  %v5349 = vmax.f32 %v5347, %v5348
  %v5350 = vrot.slane %v5349, 2
  %v5351 = vmax.f32 %v5349, %v5350
  %v5352 = vrot.slane %v5351, 1
  %v5353 = vmax.f32 %v5351, %v5352
  %v5354 = vpack.i.bf16 %v5353, %v5353
  %v5356 = vsel %vm2025, %v1847, 4286644096
  %v5358 = vunpack.i.l.bf16 %v5356
  %v5359 = vunpack.i.h.bf16 %v5356
  %v5360 = vmax.f32 %v5358, %v5359
  %v5361 = vrot.slane %v5360, 4
  %v5362 = vmax.f32 %v5360, %v5361
  %v5363 = vrot.slane %v5362, 2
  %v5364 = vmax.f32 %v5362, %v5363
  %v5365 = vrot.slane %v5364, 1
  %v5366 = vmax.f32 %v5364, %v5365
  %v5367 = vpack.i.bf16 %v5366, %v5366
  %v5369 = vsel %vm2025, %v1854, 4286644096
  %v5371 = vunpack.i.l.bf16 %v5369
  %v5372 = vunpack.i.h.bf16 %v5369
  %v5373 = vmax.f32 %v5371, %v5372
  %v5374 = vrot.slane %v5373, 4
  %v5375 = vmax.f32 %v5373, %v5374
  %v5376 = vrot.slane %v5375, 2
  %v5377 = vmax.f32 %v5375, %v5376
  %v5378 = vrot.slane %v5377, 1
  %v5379 = vmax.f32 %v5377, %v5378
  %v5380 = vpack.i.bf16 %v5379, %v5379
  %v5382 = vsel %vm2025, %v1855, 4286644096
  %v5384 = vunpack.i.l.bf16 %v5382
  %v5385 = vunpack.i.h.bf16 %v5382
  %v5386 = vmax.f32 %v5384, %v5385
  %v5387 = vrot.slane %v5386, 4
  %v5388 = vmax.f32 %v5386, %v5387
  %v5389 = vrot.slane %v5388, 2
  %v5390 = vmax.f32 %v5388, %v5389
  %v5391 = vrot.slane %v5390, 1
  %v5392 = vmax.f32 %v5390, %v5391
  %v5393 = vpack.i.bf16 %v5392, %v5392
  %v5395 = vsel %vm2025, %v1856, 4286644096
  %v5397 = vunpack.i.l.bf16 %v5395
  %v5398 = vunpack.i.h.bf16 %v5395
  %v5399 = vmax.f32 %v5397, %v5398
  %v5400 = vrot.slane %v5399, 4
  %v5401 = vmax.f32 %v5399, %v5400
  %v5402 = vrot.slane %v5401, 2
  %v5403 = vmax.f32 %v5401, %v5402
  %v5404 = vrot.slane %v5403, 1
  %v5405 = vmax.f32 %v5403, %v5404
  %v5406 = vpack.i.bf16 %v5405, %v5405
  %v5408 = vsel %vm2025, %v1871, 4286644096
  %v5410 = vunpack.i.l.bf16 %v5408
  %v5411 = vunpack.i.h.bf16 %v5408
  %v5412 = vmax.f32 %v5410, %v5411
  %v5413 = vrot.slane %v5412, 4
  %v5414 = vmax.f32 %v5412, %v5413
  %v5415 = vrot.slane %v5414, 2
  %v5416 = vmax.f32 %v5414, %v5415
  %v5417 = vrot.slane %v5416, 1
  %v5418 = vmax.f32 %v5416, %v5417
  %v5419 = vpack.i.bf16 %v5418, %v5418
  %v5421 = vsel %vm2025, %v1878, 4286644096
  %v5423 = vunpack.i.l.bf16 %v5421
  %v5424 = vunpack.i.h.bf16 %v5421
  %v5425 = vmax.f32 %v5423, %v5424
  %v5426 = vrot.slane %v5425, 4
  %v5427 = vmax.f32 %v5425, %v5426
  %v5428 = vrot.slane %v5427, 2
  %v5429 = vmax.f32 %v5427, %v5428
  %v5430 = vrot.slane %v5429, 1
  %v5431 = vmax.f32 %v5429, %v5430
  %v5432 = vpack.i.bf16 %v5431, %v5431
  %v5434 = vsel %vm2025, %v1879, 4286644096
  %v5436 = vunpack.i.l.bf16 %v5434
  %v5437 = vunpack.i.h.bf16 %v5434
  %v5438 = vmax.f32 %v5436, %v5437
  %v5439 = vrot.slane %v5438, 4
  %v5440 = vmax.f32 %v5438, %v5439
  %v5441 = vrot.slane %v5440, 2
  %v5442 = vmax.f32 %v5440, %v5441
  %v5443 = vrot.slane %v5442, 1
  %v5444 = vmax.f32 %v5442, %v5443
  %v5445 = vpack.i.bf16 %v5444, %v5444
  %v5447 = vsel %vm2025, %v1880, 4286644096
  %v5449 = vunpack.i.l.bf16 %v5447
  %v5450 = vunpack.i.h.bf16 %v5447
  %v5451 = vmax.f32 %v5449, %v5450
  %v5452 = vrot.slane %v5451, 4
  %v5453 = vmax.f32 %v5451, %v5452
  %v5454 = vrot.slane %v5453, 2
  %v5455 = vmax.f32 %v5453, %v5454
  %v5456 = vrot.slane %v5455, 1
  %v5457 = vmax.f32 %v5455, %v5456
  %v5458 = vpack.i.bf16 %v5457, %v5457
  %v5460 = vsel %vm2025, %v1895, 4286644096
  %v5462 = vunpack.i.l.bf16 %v5460
  %v5463 = vunpack.i.h.bf16 %v5460
  %v5464 = vmax.f32 %v5462, %v5463
  %v5465 = vrot.slane %v5464, 4
  %v5466 = vmax.f32 %v5464, %v5465
  %v5467 = vrot.slane %v5466, 2
  %v5468 = vmax.f32 %v5466, %v5467
  %v5469 = vrot.slane %v5468, 1
  %v5470 = vmax.f32 %v5468, %v5469
  %v5471 = vpack.i.bf16 %v5470, %v5470
  %v5473 = vsel %vm2025, %v1902, 4286644096
  %v5475 = vunpack.i.l.bf16 %v5473
  %v5476 = vunpack.i.h.bf16 %v5473
  %v5477 = vmax.f32 %v5475, %v5476
  %v5478 = vrot.slane %v5477, 4
  %v5479 = vmax.f32 %v5477, %v5478
  %v5480 = vrot.slane %v5479, 2
  %v5481 = vmax.f32 %v5479, %v5480
  %v5482 = vrot.slane %v5481, 1
  %v5483 = vmax.f32 %v5481, %v5482
  %v5484 = vpack.i.bf16 %v5483, %v5483
  %v5486 = vsel %vm2025, %v1903, 4286644096
  %v5488 = vunpack.i.l.bf16 %v5486
  %v5489 = vunpack.i.h.bf16 %v5486
  %v5490 = vmax.f32 %v5488, %v5489
  %v5491 = vrot.slane %v5490, 4
  %v5492 = vmax.f32 %v5490, %v5491
  %v5493 = vrot.slane %v5492, 2
  %v5494 = vmax.f32 %v5492, %v5493
  %v5495 = vrot.slane %v5494, 1
  %v5496 = vmax.f32 %v5494, %v5495
  %v5497 = vpack.i.bf16 %v5496, %v5496
  %v5499 = vsel %vm2025, %v1904, 4286644096
  %v5501 = vunpack.i.l.bf16 %v5499
  %v5502 = vunpack.i.h.bf16 %v5499
  %v5503 = vmax.f32 %v5501, %v5502
  %v5504 = vrot.slane %v5503, 4
  %v5505 = vmax.f32 %v5503, %v5504
  %v5506 = vrot.slane %v5505, 2
  %v5507 = vmax.f32 %v5505, %v5506
  %v5508 = vrot.slane %v5507, 1
  %v5509 = vmax.f32 %v5507, %v5508
  %v5510 = vpack.i.bf16 %v5509, %v5509
  %v5512 = vsel %vm2025, %v1919, 4286644096
  %v5514 = vunpack.i.l.bf16 %v5512
  %v5515 = vunpack.i.h.bf16 %v5512
  %v5516 = vmax.f32 %v5514, %v5515
  %v5517 = vrot.slane %v5516, 4
  %v5518 = vmax.f32 %v5516, %v5517
  %v5519 = vrot.slane %v5518, 2
  %v5520 = vmax.f32 %v5518, %v5519
  %v5521 = vrot.slane %v5520, 1
  %v5522 = vmax.f32 %v5520, %v5521
  %v5523 = vpack.i.bf16 %v5522, %v5522
  %v5525 = vsel %vm2025, %v1926, 4286644096
  %v5527 = vunpack.i.l.bf16 %v5525
  %v5528 = vunpack.i.h.bf16 %v5525
  %v5529 = vmax.f32 %v5527, %v5528
  %v5530 = vrot.slane %v5529, 4
  %v5531 = vmax.f32 %v5529, %v5530
  %v5532 = vrot.slane %v5531, 2
  %v5533 = vmax.f32 %v5531, %v5532
  %v5534 = vrot.slane %v5533, 1
  %v5535 = vmax.f32 %v5533, %v5534
  %v5536 = vpack.i.bf16 %v5535, %v5535
  %v5538 = vsel %vm2025, %v1927, 4286644096
  %v5540 = vunpack.i.l.bf16 %v5538
  %v5541 = vunpack.i.h.bf16 %v5538
  %v5542 = vmax.f32 %v5540, %v5541
  %v5543 = vrot.slane %v5542, 4
  %v5544 = vmax.f32 %v5542, %v5543
  %v5545 = vrot.slane %v5544, 2
  %v5546 = vmax.f32 %v5544, %v5545
  %v5547 = vrot.slane %v5546, 1
  %v5548 = vmax.f32 %v5546, %v5547
  %v5549 = vpack.i.bf16 %v5548, %v5548
  %v5551 = vsel %vm2025, %v1928, 4286644096
  %v5553 = vunpack.i.l.bf16 %v5551
  %v5554 = vunpack.i.h.bf16 %v5551
  %v5555 = vmax.f32 %v5553, %v5554
  %v5556 = vrot.slane %v5555, 4
  %v5557 = vmax.f32 %v5555, %v5556
  %v5558 = vrot.slane %v5557, 2
  %v5559 = vmax.f32 %v5557, %v5558
  %v5560 = vrot.slane %v5559, 1
  %v5561 = vmax.f32 %v5559, %v5560
  %v5562 = vpack.i.bf16 %v5561, %v5561
  %v5564 = vsel %vm2025, %v1943, 4286644096
  %v5566 = vunpack.i.l.bf16 %v5564
  %v5567 = vunpack.i.h.bf16 %v5564
  %v5568 = vmax.f32 %v5566, %v5567
  %v5569 = vrot.slane %v5568, 4
  %v5570 = vmax.f32 %v5568, %v5569
  %v5571 = vrot.slane %v5570, 2
  %v5572 = vmax.f32 %v5570, %v5571
  %v5573 = vrot.slane %v5572, 1
  %v5574 = vmax.f32 %v5572, %v5573
  %v5575 = vpack.i.bf16 %v5574, %v5574
  %v5577 = vsel %vm2025, %v1950, 4286644096
  %v5579 = vunpack.i.l.bf16 %v5577
  %v5580 = vunpack.i.h.bf16 %v5577
  %v5581 = vmax.f32 %v5579, %v5580
  %v5582 = vrot.slane %v5581, 4
  %v5583 = vmax.f32 %v5581, %v5582
  %v5584 = vrot.slane %v5583, 2
  %v5585 = vmax.f32 %v5583, %v5584
  %v5586 = vrot.slane %v5585, 1
  %v5587 = vmax.f32 %v5585, %v5586
  %v5588 = vpack.i.bf16 %v5587, %v5587
  %v5590 = vsel %vm2025, %v1951, 4286644096
  %v5592 = vunpack.i.l.bf16 %v5590
  %v5593 = vunpack.i.h.bf16 %v5590
  %v5594 = vmax.f32 %v5592, %v5593
  %v5595 = vrot.slane %v5594, 4
  %v5596 = vmax.f32 %v5594, %v5595
  %v5597 = vrot.slane %v5596, 2
  %v5598 = vmax.f32 %v5596, %v5597
  %v5599 = vrot.slane %v5598, 1
  %v5600 = vmax.f32 %v5598, %v5599
  %v5601 = vpack.i.bf16 %v5600, %v5600
  %v5603 = vsel %vm2025, %v1952, 4286644096
  %v5605 = vunpack.i.l.bf16 %v5603
  %v5606 = vunpack.i.h.bf16 %v5603
  %v5607 = vmax.f32 %v5605, %v5606
  %v5608 = vrot.slane %v5607, 4
  %v5609 = vmax.f32 %v5607, %v5608
  %v5610 = vrot.slane %v5609, 2
  %v5611 = vmax.f32 %v5609, %v5610
  %v5612 = vrot.slane %v5611, 1
  %v5613 = vmax.f32 %v5611, %v5612
  %v5614 = vpack.i.bf16 %v5613, %v5613
  %v5616 = vsel %vm2025, %v1967, 4286644096
  %v5618 = vunpack.i.l.bf16 %v5616
  %v5619 = vunpack.i.h.bf16 %v5616
  %v5620 = vmax.f32 %v5618, %v5619
  %v5621 = vrot.slane %v5620, 4
  %v5622 = vmax.f32 %v5620, %v5621
  %v5623 = vrot.slane %v5622, 2
  %v5624 = vmax.f32 %v5622, %v5623
  %v5625 = vrot.slane %v5624, 1
  %v5626 = vmax.f32 %v5624, %v5625
  %v5627 = vpack.i.bf16 %v5626, %v5626
  %v5629 = vsel %vm2025, %v1974, 4286644096
  %v5631 = vunpack.i.l.bf16 %v5629
  %v5632 = vunpack.i.h.bf16 %v5629
  %v5633 = vmax.f32 %v5631, %v5632
  %v5634 = vrot.slane %v5633, 4
  %v5635 = vmax.f32 %v5633, %v5634
  %v5636 = vrot.slane %v5635, 2
  %v5637 = vmax.f32 %v5635, %v5636
  %v5638 = vrot.slane %v5637, 1
  %v5639 = vmax.f32 %v5637, %v5638
  %v5640 = vpack.i.bf16 %v5639, %v5639
  %v5642 = vsel %vm2025, %v1975, 4286644096
  %v5644 = vunpack.i.l.bf16 %v5642
  %v5645 = vunpack.i.h.bf16 %v5642
  %v5646 = vmax.f32 %v5644, %v5645
  %v5647 = vrot.slane %v5646, 4
  %v5648 = vmax.f32 %v5646, %v5647
  %v5649 = vrot.slane %v5648, 2
  %v5650 = vmax.f32 %v5648, %v5649
  %v5651 = vrot.slane %v5650, 1
  %v5652 = vmax.f32 %v5650, %v5651
  %v5653 = vpack.i.bf16 %v5652, %v5652
  %v5655 = vsel %vm2025, %v1976, 4286644096
  %v5657 = vunpack.i.l.bf16 %v5655
  %v5658 = vunpack.i.h.bf16 %v5655
  %v5659 = vmax.f32 %v5657, %v5658
  %v5660 = vrot.slane %v5659, 4
  %v5661 = vmax.f32 %v5659, %v5660
  %v5662 = vrot.slane %v5661, 2
  %v5663 = vmax.f32 %v5661, %v5662
  %v5664 = vrot.slane %v5663, 1
  %v5665 = vmax.f32 %v5663, %v5664
  %v5666 = vpack.i.bf16 %v5665, %v5665
  %v5668 = vsel %vm2025, %v1991, 4286644096
  %v5670 = vunpack.i.l.bf16 %v5668
  %v5671 = vunpack.i.h.bf16 %v5668
  %v5672 = vmax.f32 %v5670, %v5671
  %v5673 = vrot.slane %v5672, 4
  %v5674 = vmax.f32 %v5672, %v5673
  %v5675 = vrot.slane %v5674, 2
  %v5676 = vmax.f32 %v5674, %v5675
  %v5677 = vrot.slane %v5676, 1
  %v5678 = vmax.f32 %v5676, %v5677
  %v5679 = vpack.i.bf16 %v5678, %v5678
  %v5681 = vsel %vm2025, %v1998, 4286644096
  %v5683 = vunpack.i.l.bf16 %v5681
  %v5684 = vunpack.i.h.bf16 %v5681
  %v5685 = vmax.f32 %v5683, %v5684
  %v5686 = vrot.slane %v5685, 4
  %v5687 = vmax.f32 %v5685, %v5686
  %v5688 = vrot.slane %v5687, 2
  %v5689 = vmax.f32 %v5687, %v5688
  %v5690 = vrot.slane %v5689, 1
  %v5691 = vmax.f32 %v5689, %v5690
  %v5692 = vpack.i.bf16 %v5691, %v5691
  %v5694 = vsel %vm2025, %v1999, 4286644096
  %v5696 = vunpack.i.l.bf16 %v5694
  %v5697 = vunpack.i.h.bf16 %v5694
  %v5698 = vmax.f32 %v5696, %v5697
  %v5699 = vrot.slane %v5698, 4
  %v5700 = vmax.f32 %v5698, %v5699
  %v5701 = vrot.slane %v5700, 2
  %v5702 = vmax.f32 %v5700, %v5701
  %v5703 = vrot.slane %v5702, 1
  %v5704 = vmax.f32 %v5702, %v5703
  %v5705 = vpack.i.bf16 %v5704, %v5704
  %v5707 = vsel %vm2025, %v2000, 4286644096
  %v5709 = vunpack.i.l.bf16 %v5707
  %v5710 = vunpack.i.h.bf16 %v5707
  %v5711 = vmax.f32 %v5709, %v5710
  %v5712 = vrot.slane %v5711, 4
  %v5713 = vmax.f32 %v5711, %v5712
  %v5714 = vrot.slane %v5713, 2
  %v5715 = vmax.f32 %v5713, %v5714
  %v5716 = vrot.slane %v5715, 1
  %v5717 = vmax.f32 %v5715, %v5716
  %v5718 = vpack.i.bf16 %v5717, %v5717
  %v5720 = vsel %vm2025, %v2015, 4286644096
  %v5722 = vunpack.i.l.bf16 %v5720
  %v5723 = vunpack.i.h.bf16 %v5720
  %v5724 = vmax.f32 %v5722, %v5723
  %v5725 = vrot.slane %v5724, 4
  %v5726 = vmax.f32 %v5724, %v5725
  %v5727 = vrot.slane %v5726, 2
  %v5728 = vmax.f32 %v5726, %v5727
  %v5729 = vrot.slane %v5728, 1
  %v5730 = vmax.f32 %v5728, %v5729
  %v5731 = vpack.i.bf16 %v5730, %v5730
  %v5733 = vsel %vm2025, %v2022, 4286644096
  %v5735 = vunpack.i.l.bf16 %v5733
  %v5736 = vunpack.i.h.bf16 %v5733
  %v5737 = vmax.f32 %v5735, %v5736
  %v5738 = vrot.slane %v5737, 4
  %v5739 = vmax.f32 %v5737, %v5738
  %v5740 = vrot.slane %v5739, 2
  %v5741 = vmax.f32 %v5739, %v5740
  %v5742 = vrot.slane %v5741, 1
  %v5743 = vmax.f32 %v5741, %v5742
  %v5744 = vpack.i.bf16 %v5743, %v5743
  %v5746 = vsel %vm2025, %v2023, 4286644096
  %v5748 = vunpack.i.l.bf16 %v5746
  %v5749 = vunpack.i.h.bf16 %v5746
  %v5750 = vmax.f32 %v5748, %v5749
  %v5751 = vrot.slane %v5750, 4
  %v5752 = vmax.f32 %v5750, %v5751
  %v5753 = vrot.slane %v5752, 2
  %v5754 = vmax.f32 %v5752, %v5753
  %v5755 = vrot.slane %v5754, 1
  %v5756 = vmax.f32 %v5754, %v5755
  %v5757 = vpack.i.bf16 %v5756, %v5756
  %v5759 = vsel %vm2025, %v2024, 4286644096
  %v5761 = vunpack.i.l.bf16 %v5759
  %v5762 = vunpack.i.h.bf16 %v5759
  %v5763 = vmax.f32 %v5761, %v5762
  %v5764 = vrot.slane %v5763, 4
  %v5765 = vmax.f32 %v5763, %v5764
  %v5766 = vrot.slane %v5765, 2
  %v5767 = vmax.f32 %v5765, %v5766
  %v5768 = vrot.slane %v5767, 1
  %v5769 = vmax.f32 %v5767, %v5768
  %v5770 = vpack.i.bf16 %v5769, %v5769
  %v6059 = vunpack.c.l.b16 %v2039
  %v6060 = vunpack.c.l.b16 %v2052
  %v6061 = vunpack.c.l.b16 %v2065
  %v6062 = vunpack.c.l.b16 %v2078
  %v6063 = vunpack.c.l.b16 %v2091
  %v6064 = vunpack.c.l.b16 %v2104
  %v6065 = vunpack.c.l.b16 %v2117
  %v6066 = vunpack.c.l.b16 %v2130
  %v6067 = vunpack.c.l.b16 %v2143
  %v6068 = vunpack.c.l.b16 %v2156
  %v6069 = vunpack.c.l.b16 %v2169
  %v6070 = vunpack.c.l.b16 %v2182
  %v6071 = vunpack.c.l.b16 %v2195
  %v6072 = vunpack.c.l.b16 %v2208
  %v6073 = vunpack.c.l.b16 %v2221
  %v6074 = vunpack.c.l.b16 %v2234
  %v6075 = vunpack.c.l.b16 %v2247
  %v6076 = vunpack.c.l.b16 %v2260
  %v6077 = vunpack.c.l.b16 %v2273
  %v6078 = vunpack.c.l.b16 %v2286
  %v6079 = vunpack.c.l.b16 %v2299
  %v6080 = vunpack.c.l.b16 %v2312
  %v6081 = vunpack.c.l.b16 %v2325
  %v6082 = vunpack.c.l.b16 %v2338
  %v6083 = vunpack.c.l.b16 %v2351
  %v6084 = vunpack.c.l.b16 %v2364
  %v6085 = vunpack.c.l.b16 %v2377
  %v6086 = vunpack.c.l.b16 %v2390
  %v6087 = vunpack.c.l.b16 %v2403
  %v6088 = vunpack.c.l.b16 %v2416
  %v6089 = vunpack.c.l.b16 %v2429
  %v6090 = vunpack.c.l.b16 %v2442
  %v6091 = vunpack.c.l.b16 %v2455
  %v6092 = vunpack.c.l.b16 %v2468
  %v6093 = vunpack.c.l.b16 %v2481
  %v6094 = vunpack.c.l.b16 %v2494
  %v6095 = vunpack.c.l.b16 %v2507
  %v6096 = vunpack.c.l.b16 %v2520
  %v6097 = vunpack.c.l.b16 %v2533
  %v6098 = vunpack.c.l.b16 %v2546
  %v6099 = vunpack.c.l.b16 %v2559
  %v6100 = vunpack.c.l.b16 %v2572
  %v6101 = vunpack.c.l.b16 %v2585
  %v6102 = vunpack.c.l.b16 %v2598
  %v6103 = vunpack.c.l.b16 %v2611
  %v6104 = vunpack.c.l.b16 %v2624
  %v6105 = vunpack.c.l.b16 %v2637
  %v6106 = vunpack.c.l.b16 %v2650
  %v6107 = vunpack.c.l.b16 %v2663
  %v6108 = vunpack.c.l.b16 %v2676
  %v6109 = vunpack.c.l.b16 %v2689
  %v6110 = vunpack.c.l.b16 %v2702
  %v6111 = vunpack.c.l.b16 %v2715
  %v6112 = vunpack.c.l.b16 %v2728
  %v6113 = vunpack.c.l.b16 %v2741
  %v6114 = vunpack.c.l.b16 %v2754
  %v6115 = vunpack.c.l.b16 %v2767
  %v6116 = vunpack.c.l.b16 %v2780
  %v6117 = vunpack.c.l.b16 %v2793
  %v6118 = vunpack.c.l.b16 %v2806
  %v6119 = vunpack.c.l.b16 %v2819
  %v6120 = vunpack.c.l.b16 %v2832
  %v6121 = vunpack.c.l.b16 %v2845
  %v6122 = vunpack.c.l.b16 %v2858
  %v6123 = vunpack.c.l.b16 %v2871
  %v6124 = vunpack.c.l.b16 %v2884
  %v6125 = vunpack.c.l.b16 %v2897
  %v6126 = vunpack.c.l.b16 %v2910
  %v6127 = vunpack.c.l.b16 %v2923
  %v6128 = vunpack.c.l.b16 %v2936
  %v6129 = vunpack.c.l.b16 %v2949
  %v6130 = vunpack.c.l.b16 %v2962
  %v6131 = vunpack.c.l.b16 %v2975
  %v6132 = vunpack.c.l.b16 %v2988
  %v6133 = vunpack.c.l.b16 %v3001
  %v6134 = vunpack.c.l.b16 %v3014
  %v6135 = vunpack.c.l.b16 %v3027
  %v6136 = vunpack.c.l.b16 %v3040
  %v6137 = vunpack.c.l.b16 %v3053
  %v6138 = vunpack.c.l.b16 %v3066
  %v6139 = vunpack.c.l.b16 %v3079
  %v6140 = vunpack.c.l.b16 %v3092
  %v6141 = vunpack.c.l.b16 %v3105
  %v6142 = vunpack.c.l.b16 %v3118
  %v6143 = vunpack.c.l.b16 %v3131
  %v6144 = vunpack.c.l.b16 %v3144
  %v6145 = vunpack.c.l.b16 %v3157
  %v6146 = vunpack.c.l.b16 %v3170
  %v6147 = vunpack.c.l.b16 %v3183
  %v6148 = vunpack.c.l.b16 %v3196
  %v6149 = vunpack.c.l.b16 %v3209
  %v6150 = vunpack.c.l.b16 %v3222
  %v6151 = vunpack.c.l.b16 %v3235
  %v6152 = vunpack.c.l.b16 %v3248
  %v6153 = vunpack.c.l.b16 %v3261
  %v6154 = vunpack.c.l.b16 %v3274
  %v6155 = vunpack.c.l.b16 %v3287
  %v6156 = vunpack.c.l.b16 %v3300
  %v6157 = vunpack.c.l.b16 %v3313
  %v6158 = vunpack.c.l.b16 %v3326
  %v6159 = vunpack.c.l.b16 %v3339
  %v6160 = vunpack.c.l.b16 %v3352
  %v6161 = vunpack.c.l.b16 %v3365
  %v6162 = vunpack.c.l.b16 %v3378
  %v6163 = vunpack.c.l.b16 %v3391
  %v6164 = vunpack.c.l.b16 %v3404
  %v6165 = vunpack.c.l.b16 %v3417
  %v6166 = vunpack.c.l.b16 %v3430
  %v6167 = vunpack.c.l.b16 %v3443
  %v6168 = vunpack.c.l.b16 %v3456
  %v6169 = vunpack.c.l.b16 %v3469
  %v6170 = vunpack.c.l.b16 %v3482
  %v6171 = vunpack.c.l.b16 %v3495
  %v6172 = vunpack.c.l.b16 %v3508
  %v6173 = vunpack.c.l.b16 %v3521
  %v6174 = vunpack.c.l.b16 %v3534
  %v6175 = vunpack.c.l.b16 %v3547
  %v6176 = vunpack.c.l.b16 %v3560
  %v6177 = vunpack.c.l.b16 %v3573
  %v6178 = vunpack.c.l.b16 %v3586
  %v6179 = vunpack.c.l.b16 %v3599
  %v6180 = vunpack.c.l.b16 %v3612
  %v6181 = vunpack.c.l.b16 %v3625
  %v6182 = vunpack.c.l.b16 %v3638
  %v6183 = vunpack.c.l.b16 %v3651
  %v6184 = vunpack.c.l.b16 %v3664
  %v6185 = vunpack.c.l.b16 %v3677
  %v6186 = vunpack.c.l.b16 %v3690
  %v6187 = vunpack.c.l.b16 %v3703
  %v6188 = vunpack.c.l.b16 %v3716
  %v6189 = vunpack.c.l.b16 %v3729
  %v6190 = vunpack.c.l.b16 %v3742
  %v6191 = vunpack.c.l.b16 %v3755
  %v6192 = vunpack.c.l.b16 %v3768
  %v6193 = vunpack.c.l.b16 %v3781
  %v6194 = vunpack.c.l.b16 %v3794
  %v6195 = vunpack.c.l.b16 %v3807
  %v6196 = vunpack.c.l.b16 %v3820
  %v6197 = vunpack.c.l.b16 %v3833
  %v6198 = vunpack.c.l.b16 %v3846
  %v6199 = vunpack.c.l.b16 %v3859
  %v6200 = vunpack.c.l.b16 %v3872
  %v6201 = vunpack.c.l.b16 %v3885
  %v6202 = vunpack.c.l.b16 %v3898
  %v6203 = vunpack.c.l.b16 %v3911
  %v6204 = vunpack.c.l.b16 %v3924
  %v6205 = vunpack.c.l.b16 %v3937
  %v6206 = vunpack.c.l.b16 %v3950
  %v6207 = vunpack.c.l.b16 %v3963
  %v6208 = vunpack.c.l.b16 %v3976
  %v6209 = vunpack.c.l.b16 %v3989
  %v6210 = vunpack.c.l.b16 %v4002
  %v6211 = vunpack.c.l.b16 %v4015
  %v6212 = vunpack.c.l.b16 %v4028
  %v6213 = vunpack.c.l.b16 %v4041
  %v6214 = vunpack.c.l.b16 %v4054
  %v6215 = vunpack.c.l.b16 %v4067
  %v6216 = vunpack.c.l.b16 %v4080
  %v6217 = vunpack.c.l.b16 %v4093
  %v6218 = vunpack.c.l.b16 %v4106
  %v6219 = vunpack.c.l.b16 %v4119
  %v6220 = vunpack.c.l.b16 %v4132
  %v6221 = vunpack.c.l.b16 %v4145
  %v6222 = vunpack.c.l.b16 %v4158
  %v6223 = vunpack.c.l.b16 %v4171
  %v6224 = vunpack.c.l.b16 %v4184
  %v6225 = vunpack.c.l.b16 %v4197
  %v6226 = vunpack.c.l.b16 %v4210
  %v6227 = vunpack.c.l.b16 %v4223
  %v6228 = vunpack.c.l.b16 %v4236
  %v6229 = vunpack.c.l.b16 %v4249
  %v6230 = vunpack.c.l.b16 %v4262
  %v6231 = vunpack.c.l.b16 %v4275
  %v6232 = vunpack.c.l.b16 %v4288
  %v6233 = vunpack.c.l.b16 %v4301
  %v6234 = vunpack.c.l.b16 %v4314
  %v6235 = vunpack.c.l.b16 %v4327
  %v6236 = vunpack.c.l.b16 %v4340
  %v6237 = vunpack.c.l.b16 %v4353
  %v6238 = vunpack.c.l.b16 %v4366
  %v6239 = vunpack.c.l.b16 %v4379
  %v6240 = vunpack.c.l.b16 %v4392
  %v6241 = vunpack.c.l.b16 %v4405
  %v6242 = vunpack.c.l.b16 %v4418
  %v6243 = vunpack.c.l.b16 %v4431
  %v6244 = vunpack.c.l.b16 %v4444
  %v6245 = vunpack.c.l.b16 %v4457
  %v6246 = vunpack.c.l.b16 %v4470
  %v6247 = vunpack.c.l.b16 %v4483
  %v6248 = vunpack.c.l.b16 %v4496
  %v6249 = vunpack.c.l.b16 %v4509
  %v6250 = vunpack.c.l.b16 %v4522
  %v6251 = vunpack.c.l.b16 %v4535
  %v6252 = vunpack.c.l.b16 %v4548
  %v6253 = vunpack.c.l.b16 %v4561
  %v6254 = vunpack.c.l.b16 %v4574
  %v6255 = vunpack.c.l.b16 %v4587
  %v6256 = vunpack.c.l.b16 %v4600
  %v6257 = vunpack.c.l.b16 %v4613
  %v6258 = vunpack.c.l.b16 %v4626
  %v6259 = vunpack.c.l.b16 %v4639
  %v6260 = vunpack.c.l.b16 %v4652
  %v6261 = vunpack.c.l.b16 %v4665
  %v6262 = vunpack.c.l.b16 %v4678
  %v6263 = vunpack.c.l.b16 %v4691
  %v6264 = vunpack.c.l.b16 %v4704
  %v6265 = vunpack.c.l.b16 %v4717
  %v6266 = vunpack.c.l.b16 %v4730
  %v6267 = vunpack.c.l.b16 %v4743
  %v6268 = vunpack.c.l.b16 %v4756
  %v6269 = vunpack.c.l.b16 %v4769
  %v6270 = vunpack.c.l.b16 %v4782
  %v6271 = vunpack.c.l.b16 %v4795
  %v6272 = vunpack.c.l.b16 %v4808
  %v6273 = vunpack.c.l.b16 %v4821
  %v6274 = vunpack.c.l.b16 %v4834
  %v6275 = vunpack.c.l.b16 %v4847
  %v6276 = vunpack.c.l.b16 %v4860
  %v6277 = vunpack.c.l.b16 %v4873
  %v6278 = vunpack.c.l.b16 %v4886
  %v6279 = vunpack.c.l.b16 %v4899
  %v6280 = vunpack.c.l.b16 %v4912
  %v6281 = vunpack.c.l.b16 %v4925
  %v6282 = vunpack.c.l.b16 %v4938
  %v6283 = vunpack.c.l.b16 %v4951
  %v6284 = vunpack.c.l.b16 %v4964
  %v6285 = vunpack.c.l.b16 %v4977
  %v6286 = vunpack.c.l.b16 %v4990
  %v6287 = vunpack.c.l.b16 %v5003
  %v6288 = vunpack.c.l.b16 %v5016
  %v6289 = vunpack.c.l.b16 %v5029
  %v6290 = vunpack.c.l.b16 %v5042
  %v6291 = vunpack.c.l.b16 %v5055
  %v6292 = vunpack.c.l.b16 %v5068
  %v6293 = vunpack.c.l.b16 %v5081
  %v6294 = vunpack.c.l.b16 %v5094
  %v6295 = vunpack.c.l.b16 %v5107
  %v6296 = vunpack.c.l.b16 %v5120
  %v6297 = vunpack.c.l.b16 %v5133
  %v6298 = vunpack.c.l.b16 %v5146
  %v6299 = vunpack.c.l.b16 %v5159
  %v6300 = vunpack.c.l.b16 %v5172
  %v6301 = vunpack.c.l.b16 %v5185
  %v6302 = vunpack.c.l.b16 %v5198
  %v6303 = vunpack.c.l.b16 %v5211
  %v6304 = vunpack.c.l.b16 %v5224
  %v6305 = vunpack.c.l.b16 %v5237
  %v6306 = vunpack.c.l.b16 %v5250
  %v6307 = vunpack.c.l.b16 %v5263
  %v6308 = vunpack.c.l.b16 %v5276
  %v6309 = vunpack.c.l.b16 %v5289
  %v6310 = vunpack.c.l.b16 %v5302
  %v6311 = vunpack.c.l.b16 %v5315
  %v6312 = vunpack.c.l.b16 %v5328
  %v6313 = vunpack.c.l.b16 %v5341
  %v6314 = vunpack.c.l.b16 %v5354
  %v6315 = vunpack.c.l.b16 %v5367
  %v6316 = vunpack.c.l.b16 %v5380
  %v6317 = vunpack.c.l.b16 %v5393
  %v6318 = vunpack.c.l.b16 %v5406
  %v6319 = vunpack.c.l.b16 %v5419
  %v6320 = vunpack.c.l.b16 %v5432
  %v6321 = vunpack.c.l.b16 %v5445
  %v6322 = vunpack.c.l.b16 %v5458
  %v6323 = vunpack.c.l.b16 %v5471
  %v6324 = vunpack.c.l.b16 %v5484
  %v6325 = vunpack.c.l.b16 %v5497
  %v6326 = vunpack.c.l.b16 %v5510
  %v6327 = vunpack.c.l.b16 %v5523
  %v6328 = vunpack.c.l.b16 %v5536
  %v6329 = vunpack.c.l.b16 %v5549
  %v6330 = vunpack.c.l.b16 %v5562
  %v6331 = vunpack.c.l.b16 %v5575
  %v6332 = vunpack.c.l.b16 %v5588
  %v6333 = vunpack.c.l.b16 %v5601
  %v6334 = vunpack.c.l.b16 %v5614
  %v6335 = vunpack.c.l.b16 %v5627
  %v6336 = vunpack.c.l.b16 %v5640
  %v6337 = vunpack.c.l.b16 %v5653
  %v6338 = vunpack.c.l.b16 %v5666
  %v6339 = vunpack.c.l.b16 %v5679
  %v6340 = vunpack.c.l.b16 %v5692
  %v6341 = vunpack.c.l.b16 %v5705
  %v6342 = vunpack.c.l.b16 %v5718
  %v6343 = vunpack.c.l.b16 %v5731
  %v6344 = vunpack.c.l.b16 %v5744
  %v6345 = vunpack.c.l.b16 %v5757
  %v6346 = vunpack.c.l.b16 %v5770
  %v6347 = vpack.c.b16 %v6059, %v6059
  %v6348 = vpack.c.b16 %v6060, %v6060
  %v6349 = vpack.c.b16 %v6061, %v6061
  %v6350 = vpack.c.b16 %v6062, %v6062
  %v6351 = vpack.c.b16 %v6063, %v6063
  %v6352 = vpack.c.b16 %v6064, %v6064
  %v6353 = vpack.c.b16 %v6065, %v6065
  %v6354 = vpack.c.b16 %v6066, %v6066
  %v6355 = vpack.c.b16 %v6067, %v6067
  %v6356 = vpack.c.b16 %v6068, %v6068
  %v6357 = vpack.c.b16 %v6069, %v6069
  %v6358 = vpack.c.b16 %v6070, %v6070
  %v6359 = vpack.c.b16 %v6071, %v6071
  %v6360 = vpack.c.b16 %v6072, %v6072
  %v6361 = vpack.c.b16 %v6073, %v6073
  %v6362 = vpack.c.b16 %v6074, %v6074
  %v6363 = vpack.c.b16 %v6075, %v6075
  %v6364 = vpack.c.b16 %v6076, %v6076
  %v6365 = vpack.c.b16 %v6077, %v6077
  %v6366 = vpack.c.b16 %v6078, %v6078
  %v6367 = vpack.c.b16 %v6079, %v6079
  %v6368 = vpack.c.b16 %v6080, %v6080
  %v6369 = vpack.c.b16 %v6081, %v6081
  %v6370 = vpack.c.b16 %v6082, %v6082
  %v6371 = vpack.c.b16 %v6083, %v6083
  %v6372 = vpack.c.b16 %v6084, %v6084
  %v6373 = vpack.c.b16 %v6085, %v6085
  %v6374 = vpack.c.b16 %v6086, %v6086
  %v6375 = vpack.c.b16 %v6087, %v6087
  %v6376 = vpack.c.b16 %v6088, %v6088
  %v6377 = vpack.c.b16 %v6089, %v6089
  %v6378 = vpack.c.b16 %v6090, %v6090
  %v6379 = vpack.c.b16 %v6091, %v6091
  %v6380 = vpack.c.b16 %v6092, %v6092
  %v6381 = vpack.c.b16 %v6093, %v6093
  %v6382 = vpack.c.b16 %v6094, %v6094
  %v6383 = vpack.c.b16 %v6095, %v6095
  %v6384 = vpack.c.b16 %v6096, %v6096
  %v6385 = vpack.c.b16 %v6097, %v6097
  %v6386 = vpack.c.b16 %v6098, %v6098
  %v6387 = vpack.c.b16 %v6099, %v6099
  %v6388 = vpack.c.b16 %v6100, %v6100
  %v6389 = vpack.c.b16 %v6101, %v6101
  %v6390 = vpack.c.b16 %v6102, %v6102
  %v6391 = vpack.c.b16 %v6103, %v6103
  %v6392 = vpack.c.b16 %v6104, %v6104
  %v6393 = vpack.c.b16 %v6105, %v6105
  %v6394 = vpack.c.b16 %v6106, %v6106
  %v6395 = vpack.c.b16 %v6107, %v6107
  %v6396 = vpack.c.b16 %v6108, %v6108
  %v6397 = vpack.c.b16 %v6109, %v6109
  %v6398 = vpack.c.b16 %v6110, %v6110
  %v6399 = vpack.c.b16 %v6111, %v6111
  %v6400 = vpack.c.b16 %v6112, %v6112
  %v6401 = vpack.c.b16 %v6113, %v6113
  %v6402 = vpack.c.b16 %v6114, %v6114
  %v6403 = vpack.c.b16 %v6115, %v6115
  %v6404 = vpack.c.b16 %v6116, %v6116
  %v6405 = vpack.c.b16 %v6117, %v6117
  %v6406 = vpack.c.b16 %v6118, %v6118
  %v6407 = vpack.c.b16 %v6119, %v6119
  %v6408 = vpack.c.b16 %v6120, %v6120
  %v6409 = vpack.c.b16 %v6121, %v6121
  %v6410 = vpack.c.b16 %v6122, %v6122
  %v6411 = vpack.c.b16 %v6123, %v6123
  %v6412 = vpack.c.b16 %v6124, %v6124
  %v6413 = vpack.c.b16 %v6125, %v6125
  %v6414 = vpack.c.b16 %v6126, %v6126
  %v6415 = vpack.c.b16 %v6127, %v6127
  %v6416 = vpack.c.b16 %v6128, %v6128
  %v6417 = vpack.c.b16 %v6129, %v6129
  %v6418 = vpack.c.b16 %v6130, %v6130
  %v6419 = vpack.c.b16 %v6131, %v6131
  %v6420 = vpack.c.b16 %v6132, %v6132
  %v6421 = vpack.c.b16 %v6133, %v6133
  %v6422 = vpack.c.b16 %v6134, %v6134
  %v6423 = vpack.c.b16 %v6135, %v6135
  %v6424 = vpack.c.b16 %v6136, %v6136
  %v6425 = vpack.c.b16 %v6137, %v6137
  %v6426 = vpack.c.b16 %v6138, %v6138
  %v6427 = vpack.c.b16 %v6139, %v6139
  %v6428 = vpack.c.b16 %v6140, %v6140
  %v6429 = vpack.c.b16 %v6141, %v6141
  %v6430 = vpack.c.b16 %v6142, %v6142
  %v6431 = vpack.c.b16 %v6143, %v6143
  %v6432 = vpack.c.b16 %v6144, %v6144
  %v6433 = vpack.c.b16 %v6145, %v6145
  %v6434 = vpack.c.b16 %v6146, %v6146
  %v6435 = vpack.c.b16 %v6147, %v6147
  %v6436 = vpack.c.b16 %v6148, %v6148
  %v6437 = vpack.c.b16 %v6149, %v6149
  %v6438 = vpack.c.b16 %v6150, %v6150
  %v6439 = vpack.c.b16 %v6151, %v6151
  %v6440 = vpack.c.b16 %v6152, %v6152
  %v6441 = vpack.c.b16 %v6153, %v6153
  %v6442 = vpack.c.b16 %v6154, %v6154
  %v6443 = vpack.c.b16 %v6155, %v6155
  %v6444 = vpack.c.b16 %v6156, %v6156
  %v6445 = vpack.c.b16 %v6157, %v6157
  %v6446 = vpack.c.b16 %v6158, %v6158
  %v6447 = vpack.c.b16 %v6159, %v6159
  %v6448 = vpack.c.b16 %v6160, %v6160
  %v6449 = vpack.c.b16 %v6161, %v6161
  %v6450 = vpack.c.b16 %v6162, %v6162
  %v6451 = vpack.c.b16 %v6163, %v6163
  %v6452 = vpack.c.b16 %v6164, %v6164
  %v6453 = vpack.c.b16 %v6165, %v6165
  %v6454 = vpack.c.b16 %v6166, %v6166
  %v6455 = vpack.c.b16 %v6167, %v6167
  %v6456 = vpack.c.b16 %v6168, %v6168
  %v6457 = vpack.c.b16 %v6169, %v6169
  %v6458 = vpack.c.b16 %v6170, %v6170
  %v6459 = vpack.c.b16 %v6171, %v6171
  %v6460 = vpack.c.b16 %v6172, %v6172
  %v6461 = vpack.c.b16 %v6173, %v6173
  %v6462 = vpack.c.b16 %v6174, %v6174
  %v6463 = vpack.c.b16 %v6175, %v6175
  %v6464 = vpack.c.b16 %v6176, %v6176
  %v6465 = vpack.c.b16 %v6177, %v6177
  %v6466 = vpack.c.b16 %v6178, %v6178
  %v6467 = vpack.c.b16 %v6179, %v6179
  %v6468 = vpack.c.b16 %v6180, %v6180
  %v6469 = vpack.c.b16 %v6181, %v6181
  %v6470 = vpack.c.b16 %v6182, %v6182
  %v6471 = vpack.c.b16 %v6183, %v6183
  %v6472 = vpack.c.b16 %v6184, %v6184
  %v6473 = vpack.c.b16 %v6185, %v6185
  %v6474 = vpack.c.b16 %v6186, %v6186
  %v6475 = vpack.c.b16 %v6187, %v6187
  %v6476 = vpack.c.b16 %v6188, %v6188
  %v6477 = vpack.c.b16 %v6189, %v6189
  %v6478 = vpack.c.b16 %v6190, %v6190
  %v6479 = vpack.c.b16 %v6191, %v6191
  %v6480 = vpack.c.b16 %v6192, %v6192
  %v6481 = vpack.c.b16 %v6193, %v6193
  %v6482 = vpack.c.b16 %v6194, %v6194
  %v6483 = vpack.c.b16 %v6195, %v6195
  %v6484 = vpack.c.b16 %v6196, %v6196
  %v6485 = vpack.c.b16 %v6197, %v6197
  %v6486 = vpack.c.b16 %v6198, %v6198
  %v6487 = vpack.c.b16 %v6199, %v6199
  %v6488 = vpack.c.b16 %v6200, %v6200
  %v6489 = vpack.c.b16 %v6201, %v6201
  %v6490 = vpack.c.b16 %v6202, %v6202
  %v6491 = vpack.c.b16 %v6203, %v6203
  %v6492 = vpack.c.b16 %v6204, %v6204
  %v6493 = vpack.c.b16 %v6205, %v6205
  %v6494 = vpack.c.b16 %v6206, %v6206
  %v6495 = vpack.c.b16 %v6207, %v6207
  %v6496 = vpack.c.b16 %v6208, %v6208
  %v6497 = vpack.c.b16 %v6209, %v6209
  %v6498 = vpack.c.b16 %v6210, %v6210
  %v6499 = vpack.c.b16 %v6211, %v6211
  %v6500 = vpack.c.b16 %v6212, %v6212
  %v6501 = vpack.c.b16 %v6213, %v6213
  %v6502 = vpack.c.b16 %v6214, %v6214
  %v6503 = vpack.c.b16 %v6215, %v6215
  %v6504 = vpack.c.b16 %v6216, %v6216
  %v6505 = vpack.c.b16 %v6217, %v6217
  %v6506 = vpack.c.b16 %v6218, %v6218
  %v6507 = vpack.c.b16 %v6219, %v6219
  %v6508 = vpack.c.b16 %v6220, %v6220
  %v6509 = vpack.c.b16 %v6221, %v6221
  %v6510 = vpack.c.b16 %v6222, %v6222
  %v6511 = vpack.c.b16 %v6223, %v6223
  %v6512 = vpack.c.b16 %v6224, %v6224
  %v6513 = vpack.c.b16 %v6225, %v6225
  %v6514 = vpack.c.b16 %v6226, %v6226
  %v6515 = vpack.c.b16 %v6227, %v6227
  %v6516 = vpack.c.b16 %v6228, %v6228
  %v6517 = vpack.c.b16 %v6229, %v6229
  %v6518 = vpack.c.b16 %v6230, %v6230
  %v6519 = vpack.c.b16 %v6231, %v6231
  %v6520 = vpack.c.b16 %v6232, %v6232
  %v6521 = vpack.c.b16 %v6233, %v6233
  %v6522 = vpack.c.b16 %v6234, %v6234
  %v6523 = vpack.c.b16 %v6235, %v6235
  %v6524 = vpack.c.b16 %v6236, %v6236
  %v6525 = vpack.c.b16 %v6237, %v6237
  %v6526 = vpack.c.b16 %v6238, %v6238
  %v6527 = vpack.c.b16 %v6239, %v6239
  %v6528 = vpack.c.b16 %v6240, %v6240
  %v6529 = vpack.c.b16 %v6241, %v6241
  %v6530 = vpack.c.b16 %v6242, %v6242
  %v6531 = vpack.c.b16 %v6243, %v6243
  %v6532 = vpack.c.b16 %v6244, %v6244
  %v6533 = vpack.c.b16 %v6245, %v6245
  %v6534 = vpack.c.b16 %v6246, %v6246
  %v6535 = vpack.c.b16 %v6247, %v6247
  %v6536 = vpack.c.b16 %v6248, %v6248
  %v6537 = vpack.c.b16 %v6249, %v6249
  %v6538 = vpack.c.b16 %v6250, %v6250
  %v6539 = vpack.c.b16 %v6251, %v6251
  %v6540 = vpack.c.b16 %v6252, %v6252
  %v6541 = vpack.c.b16 %v6253, %v6253
  %v6542 = vpack.c.b16 %v6254, %v6254
  %v6543 = vpack.c.b16 %v6255, %v6255
  %v6544 = vpack.c.b16 %v6256, %v6256
  %v6545 = vpack.c.b16 %v6257, %v6257
  %v6546 = vpack.c.b16 %v6258, %v6258
  %v6547 = vpack.c.b16 %v6259, %v6259
  %v6548 = vpack.c.b16 %v6260, %v6260
  %v6549 = vpack.c.b16 %v6261, %v6261
  %v6550 = vpack.c.b16 %v6262, %v6262
  %v6551 = vpack.c.b16 %v6263, %v6263
  %v6552 = vpack.c.b16 %v6264, %v6264
  %v6553 = vpack.c.b16 %v6265, %v6265
  %v6554 = vpack.c.b16 %v6266, %v6266
  %v6555 = vpack.c.b16 %v6267, %v6267
  %v6556 = vpack.c.b16 %v6268, %v6268
  %v6557 = vpack.c.b16 %v6269, %v6269
  %v6558 = vpack.c.b16 %v6270, %v6270
  %v6559 = vpack.c.b16 %v6271, %v6271
  %v6560 = vpack.c.b16 %v6272, %v6272
  %v6561 = vpack.c.b16 %v6273, %v6273
  %v6562 = vpack.c.b16 %v6274, %v6274
  %v6563 = vpack.c.b16 %v6275, %v6275
  %v6564 = vpack.c.b16 %v6276, %v6276
  %v6565 = vpack.c.b16 %v6277, %v6277
  %v6566 = vpack.c.b16 %v6278, %v6278
  %v6567 = vpack.c.b16 %v6279, %v6279
  %v6568 = vpack.c.b16 %v6280, %v6280
  %v6569 = vpack.c.b16 %v6281, %v6281
  %v6570 = vpack.c.b16 %v6282, %v6282
  %v6571 = vpack.c.b16 %v6283, %v6283
  %v6572 = vpack.c.b16 %v6284, %v6284
  %v6573 = vpack.c.b16 %v6285, %v6285
  %v6574 = vpack.c.b16 %v6286, %v6286
  %v6575 = vpack.c.b16 %v6287, %v6287
  %v6576 = vpack.c.b16 %v6288, %v6288
  %v6577 = vpack.c.b16 %v6289, %v6289
  %v6578 = vpack.c.b16 %v6290, %v6290
  %v6579 = vpack.c.b16 %v6291, %v6291
  %v6580 = vpack.c.b16 %v6292, %v6292
  %v6581 = vpack.c.b16 %v6293, %v6293
  %v6582 = vpack.c.b16 %v6294, %v6294
  %v6583 = vpack.c.b16 %v6295, %v6295
  %v6584 = vpack.c.b16 %v6296, %v6296
  %v6585 = vpack.c.b16 %v6297, %v6297
  %v6586 = vpack.c.b16 %v6298, %v6298
  %v6587 = vpack.c.b16 %v6299, %v6299
  %v6588 = vpack.c.b16 %v6300, %v6300
  %v6589 = vpack.c.b16 %v6301, %v6301
  %v6590 = vpack.c.b16 %v6302, %v6302
  %v6591 = vpack.c.b16 %v6303, %v6303
  %v6592 = vpack.c.b16 %v6304, %v6304
  %v6593 = vpack.c.b16 %v6305, %v6305
  %v6594 = vpack.c.b16 %v6306, %v6306
  %v6595 = vpack.c.b16 %v6307, %v6307
  %v6596 = vpack.c.b16 %v6308, %v6308
  %v6597 = vpack.c.b16 %v6309, %v6309
  %v6598 = vpack.c.b16 %v6310, %v6310
  %v6599 = vpack.c.b16 %v6311, %v6311
  %v6600 = vpack.c.b16 %v6312, %v6312
  %v6601 = vpack.c.b16 %v6313, %v6313
  %v6602 = vpack.c.b16 %v6314, %v6314
  %v6603 = vpack.c.b16 %v6315, %v6315
  %v6604 = vpack.c.b16 %v6316, %v6316
  %v6605 = vpack.c.b16 %v6317, %v6317
  %v6606 = vpack.c.b16 %v6318, %v6318
  %v6607 = vpack.c.b16 %v6319, %v6319
  %v6608 = vpack.c.b16 %v6320, %v6320
  %v6609 = vpack.c.b16 %v6321, %v6321
  %v6610 = vpack.c.b16 %v6322, %v6322
  %v6611 = vpack.c.b16 %v6323, %v6323
  %v6612 = vpack.c.b16 %v6324, %v6324
  %v6613 = vpack.c.b16 %v6325, %v6325
  %v6614 = vpack.c.b16 %v6326, %v6326
  %v6615 = vpack.c.b16 %v6327, %v6327
  %v6616 = vpack.c.b16 %v6328, %v6328
  %v6617 = vpack.c.b16 %v6329, %v6329
  %v6618 = vpack.c.b16 %v6330, %v6330
  %v6619 = vpack.c.b16 %v6331, %v6331
  %v6620 = vpack.c.b16 %v6332, %v6332
  %v6621 = vpack.c.b16 %v6333, %v6333
  %v6622 = vpack.c.b16 %v6334, %v6334
  %v6623 = vpack.c.b16 %v6335, %v6335
  %v6624 = vpack.c.b16 %v6336, %v6336
  %v6625 = vpack.c.b16 %v6337, %v6337
  %v6626 = vpack.c.b16 %v6338, %v6338
  %v6627 = vpack.c.b16 %v6339, %v6339
  %v6628 = vpack.c.b16 %v6340, %v6340
  %v6629 = vpack.c.b16 %v6341, %v6341
  %v6630 = vpack.c.b16 %v6342, %v6342
  %v6631 = vpack.c.b16 %v6343, %v6343
  %v6632 = vpack.c.b16 %v6344, %v6344
  %v6633 = vpack.c.b16 %v6345, %v6345
  %v6634 = vpack.c.b16 %v6346, %v6346
  %v6635 = vunpack.c.l.b16 %v6347
  %v6636 = vunpack.c.l.b16 %v6348
  %v6637 = vunpack.c.l.b16 %v6349
  %v6638 = vunpack.c.l.b16 %v6350
  %v6639 = vunpack.c.l.b16 %v6351
  %v6640 = vunpack.c.l.b16 %v6352
  %v6641 = vunpack.c.l.b16 %v6353
  %v6642 = vunpack.c.l.b16 %v6354
  %v6643 = vunpack.c.l.b16 %v6355
  %v6644 = vunpack.c.l.b16 %v6356
  %v6645 = vunpack.c.l.b16 %v6357
  %v6646 = vunpack.c.l.b16 %v6358
  %v6647 = vunpack.c.l.b16 %v6359
  %v6648 = vunpack.c.l.b16 %v6360
  %v6649 = vunpack.c.l.b16 %v6361
  %v6650 = vunpack.c.l.b16 %v6362
  %v6651 = vunpack.c.l.b16 %v6363
  %v6652 = vunpack.c.l.b16 %v6364
  %v6653 = vunpack.c.l.b16 %v6365
  %v6654 = vunpack.c.l.b16 %v6366
  %v6655 = vunpack.c.l.b16 %v6367
  %v6656 = vunpack.c.l.b16 %v6368
  %v6657 = vunpack.c.l.b16 %v6369
  %v6658 = vunpack.c.l.b16 %v6370
  %v6659 = vunpack.c.l.b16 %v6371
  %v6660 = vunpack.c.l.b16 %v6372
  %v6661 = vunpack.c.l.b16 %v6373
  %v6662 = vunpack.c.l.b16 %v6374
  %v6663 = vunpack.c.l.b16 %v6375
  %v6664 = vunpack.c.l.b16 %v6376
  %v6665 = vunpack.c.l.b16 %v6377
  %v6666 = vunpack.c.l.b16 %v6378
  %v6667 = vunpack.c.l.b16 %v6379
  %v6668 = vunpack.c.l.b16 %v6380
  %v6669 = vunpack.c.l.b16 %v6381
  %v6670 = vunpack.c.l.b16 %v6382
  %v6671 = vunpack.c.l.b16 %v6383
  %v6672 = vunpack.c.l.b16 %v6384
  %v6673 = vunpack.c.l.b16 %v6385
  %v6674 = vunpack.c.l.b16 %v6386
  %v6675 = vunpack.c.l.b16 %v6387
  %v6676 = vunpack.c.l.b16 %v6388
  %v6677 = vunpack.c.l.b16 %v6389
  %v6678 = vunpack.c.l.b16 %v6390
  %v6679 = vunpack.c.l.b16 %v6391
  %v6680 = vunpack.c.l.b16 %v6392
  %v6681 = vunpack.c.l.b16 %v6393
  %v6682 = vunpack.c.l.b16 %v6394
  %v6683 = vunpack.c.l.b16 %v6395
  %v6684 = vunpack.c.l.b16 %v6396
  %v6685 = vunpack.c.l.b16 %v6397
  %v6686 = vunpack.c.l.b16 %v6398
  %v6687 = vunpack.c.l.b16 %v6399
  %v6688 = vunpack.c.l.b16 %v6400
  %v6689 = vunpack.c.l.b16 %v6401
  %v6690 = vunpack.c.l.b16 %v6402
  %v6691 = vunpack.c.l.b16 %v6403
  %v6692 = vunpack.c.l.b16 %v6404
  %v6693 = vunpack.c.l.b16 %v6405
  %v6694 = vunpack.c.l.b16 %v6406
  %v6695 = vunpack.c.l.b16 %v6407
  %v6696 = vunpack.c.l.b16 %v6408
  %v6697 = vunpack.c.l.b16 %v6409
  %v6698 = vunpack.c.l.b16 %v6410
  %v6699 = vunpack.c.l.b16 %v6411
  %v6700 = vunpack.c.l.b16 %v6412
  %v6701 = vunpack.c.l.b16 %v6413
  %v6702 = vunpack.c.l.b16 %v6414
  %v6703 = vunpack.c.l.b16 %v6415
  %v6704 = vunpack.c.l.b16 %v6416
  %v6705 = vunpack.c.l.b16 %v6417
  %v6706 = vunpack.c.l.b16 %v6418
  %v6707 = vunpack.c.l.b16 %v6419
  %v6708 = vunpack.c.l.b16 %v6420
  %v6709 = vunpack.c.l.b16 %v6421
  %v6710 = vunpack.c.l.b16 %v6422
  %v6711 = vunpack.c.l.b16 %v6423
  %v6712 = vunpack.c.l.b16 %v6424
  %v6713 = vunpack.c.l.b16 %v6425
  %v6714 = vunpack.c.l.b16 %v6426
  %v6715 = vunpack.c.l.b16 %v6427
  %v6716 = vunpack.c.l.b16 %v6428
  %v6717 = vunpack.c.l.b16 %v6429
  %v6718 = vunpack.c.l.b16 %v6430
  %v6719 = vunpack.c.l.b16 %v6431
  %v6720 = vunpack.c.l.b16 %v6432
  %v6721 = vunpack.c.l.b16 %v6433
  %v6722 = vunpack.c.l.b16 %v6434
  %v6723 = vunpack.c.l.b16 %v6435
  %v6724 = vunpack.c.l.b16 %v6436
  %v6725 = vunpack.c.l.b16 %v6437
  %v6726 = vunpack.c.l.b16 %v6438
  %v6727 = vunpack.c.l.b16 %v6439
  %v6728 = vunpack.c.l.b16 %v6440
  %v6729 = vunpack.c.l.b16 %v6441
  %v6730 = vunpack.c.l.b16 %v6442
  %v6731 = vunpack.c.l.b16 %v6443
  %v6732 = vunpack.c.l.b16 %v6444
  %v6733 = vunpack.c.l.b16 %v6445
  %v6734 = vunpack.c.l.b16 %v6446
  %v6735 = vunpack.c.l.b16 %v6447
  %v6736 = vunpack.c.l.b16 %v6448
  %v6737 = vunpack.c.l.b16 %v6449
  %v6738 = vunpack.c.l.b16 %v6450
  %v6739 = vunpack.c.l.b16 %v6451
  %v6740 = vunpack.c.l.b16 %v6452
  %v6741 = vunpack.c.l.b16 %v6453
  %v6742 = vunpack.c.l.b16 %v6454
  %v6743 = vunpack.c.l.b16 %v6455
  %v6744 = vunpack.c.l.b16 %v6456
  %v6745 = vunpack.c.l.b16 %v6457
  %v6746 = vunpack.c.l.b16 %v6458
  %v6747 = vunpack.c.l.b16 %v6459
  %v6748 = vunpack.c.l.b16 %v6460
  %v6749 = vunpack.c.l.b16 %v6461
  %v6750 = vunpack.c.l.b16 %v6462
  %v6751 = vunpack.c.l.b16 %v6463
  %v6752 = vunpack.c.l.b16 %v6464
  %v6753 = vunpack.c.l.b16 %v6465
  %v6754 = vunpack.c.l.b16 %v6466
  %v6755 = vunpack.c.l.b16 %v6467
  %v6756 = vunpack.c.l.b16 %v6468
  %v6757 = vunpack.c.l.b16 %v6469
  %v6758 = vunpack.c.l.b16 %v6470
  %v6759 = vunpack.c.l.b16 %v6471
  %v6760 = vunpack.c.l.b16 %v6472
  %v6761 = vunpack.c.l.b16 %v6473
  %v6762 = vunpack.c.l.b16 %v6474
  %v6763 = vunpack.c.l.b16 %v6475
  %v6764 = vunpack.c.l.b16 %v6476
  %v6765 = vunpack.c.l.b16 %v6477
  %v6766 = vunpack.c.l.b16 %v6478
  %v6767 = vunpack.c.l.b16 %v6479
  %v6768 = vunpack.c.l.b16 %v6480
  %v6769 = vunpack.c.l.b16 %v6481
  %v6770 = vunpack.c.l.b16 %v6482
  %v6771 = vunpack.c.l.b16 %v6483
  %v6772 = vunpack.c.l.b16 %v6484
  %v6773 = vunpack.c.l.b16 %v6485
  %v6774 = vunpack.c.l.b16 %v6486
  %v6775 = vunpack.c.l.b16 %v6487
  %v6776 = vunpack.c.l.b16 %v6488
  %v6777 = vunpack.c.l.b16 %v6489
  %v6778 = vunpack.c.l.b16 %v6490
  %v6779 = vunpack.c.l.b16 %v6491
  %v6780 = vunpack.c.l.b16 %v6492
  %v6781 = vunpack.c.l.b16 %v6493
  %v6782 = vunpack.c.l.b16 %v6494
  %v6783 = vunpack.c.l.b16 %v6495
  %v6784 = vunpack.c.l.b16 %v6496
  %v6785 = vunpack.c.l.b16 %v6497
  %v6786 = vunpack.c.l.b16 %v6498
  %v6787 = vunpack.c.l.b16 %v6499
  %v6788 = vunpack.c.l.b16 %v6500
  %v6789 = vunpack.c.l.b16 %v6501
  %v6790 = vunpack.c.l.b16 %v6502
  %v6791 = vunpack.c.l.b16 %v6503
  %v6792 = vunpack.c.l.b16 %v6504
  %v6793 = vunpack.c.l.b16 %v6505
  %v6794 = vunpack.c.l.b16 %v6506
  %v6795 = vunpack.c.l.b16 %v6507
  %v6796 = vunpack.c.l.b16 %v6508
  %v6797 = vunpack.c.l.b16 %v6509
  %v6798 = vunpack.c.l.b16 %v6510
  %v6799 = vunpack.c.l.b16 %v6511
  %v6800 = vunpack.c.l.b16 %v6512
  %v6801 = vunpack.c.l.b16 %v6513
  %v6802 = vunpack.c.l.b16 %v6514
  %v6803 = vunpack.c.l.b16 %v6515
  %v6804 = vunpack.c.l.b16 %v6516
  %v6805 = vunpack.c.l.b16 %v6517
  %v6806 = vunpack.c.l.b16 %v6518
  %v6807 = vunpack.c.l.b16 %v6519
  %v6808 = vunpack.c.l.b16 %v6520
  %v6809 = vunpack.c.l.b16 %v6521
  %v6810 = vunpack.c.l.b16 %v6522
  %v6811 = vunpack.c.l.b16 %v6523
  %v6812 = vunpack.c.l.b16 %v6524
  %v6813 = vunpack.c.l.b16 %v6525
  %v6814 = vunpack.c.l.b16 %v6526
  %v6815 = vunpack.c.l.b16 %v6527
  %v6816 = vunpack.c.l.b16 %v6528
  %v6817 = vunpack.c.l.b16 %v6529
  %v6818 = vunpack.c.l.b16 %v6530
  %v6819 = vunpack.c.l.b16 %v6531
  %v6820 = vunpack.c.l.b16 %v6532
  %v6821 = vunpack.c.l.b16 %v6533
  %v6822 = vunpack.c.l.b16 %v6534
  %v6823 = vunpack.c.l.b16 %v6535
  %v6824 = vunpack.c.l.b16 %v6536
  %v6825 = vunpack.c.l.b16 %v6537
  %v6826 = vunpack.c.l.b16 %v6538
  %v6827 = vunpack.c.l.b16 %v6539
  %v6828 = vunpack.c.l.b16 %v6540
  %v6829 = vunpack.c.l.b16 %v6541
  %v6830 = vunpack.c.l.b16 %v6542
  %v6831 = vunpack.c.l.b16 %v6543
  %v6832 = vunpack.c.l.b16 %v6544
  %v6833 = vunpack.c.l.b16 %v6545
  %v6834 = vunpack.c.l.b16 %v6546
  %v6835 = vunpack.c.l.b16 %v6547
  %v6836 = vunpack.c.l.b16 %v6548
  %v6837 = vunpack.c.l.b16 %v6549
  %v6838 = vunpack.c.l.b16 %v6550
  %v6839 = vunpack.c.l.b16 %v6551
  %v6840 = vunpack.c.l.b16 %v6552
  %v6841 = vunpack.c.l.b16 %v6553
  %v6842 = vunpack.c.l.b16 %v6554
  %v6843 = vunpack.c.l.b16 %v6555
  %v6844 = vunpack.c.l.b16 %v6556
  %v6845 = vunpack.c.l.b16 %v6557
  %v6846 = vunpack.c.l.b16 %v6558
  %v6847 = vunpack.c.l.b16 %v6559
  %v6848 = vunpack.c.l.b16 %v6560
  %v6849 = vunpack.c.l.b16 %v6561
  %v6850 = vunpack.c.l.b16 %v6562
  %v6851 = vunpack.c.l.b16 %v6563
  %v6852 = vunpack.c.l.b16 %v6564
  %v6853 = vunpack.c.l.b16 %v6565
  %v6854 = vunpack.c.l.b16 %v6566
  %v6855 = vunpack.c.l.b16 %v6567
  %v6856 = vunpack.c.l.b16 %v6568
  %v6857 = vunpack.c.l.b16 %v6569
  %v6858 = vunpack.c.l.b16 %v6570
  %v6859 = vunpack.c.l.b16 %v6571
  %v6860 = vunpack.c.l.b16 %v6572
  %v6861 = vunpack.c.l.b16 %v6573
  %v6862 = vunpack.c.l.b16 %v6574
  %v6863 = vunpack.c.l.b16 %v6575
  %v6864 = vunpack.c.l.b16 %v6576
  %v6865 = vunpack.c.l.b16 %v6577
  %v6866 = vunpack.c.l.b16 %v6578
  %v6867 = vunpack.c.l.b16 %v6579
  %v6868 = vunpack.c.l.b16 %v6580
  %v6869 = vunpack.c.l.b16 %v6581
  %v6870 = vunpack.c.l.b16 %v6582
  %v6871 = vunpack.c.l.b16 %v6583
  %v6872 = vunpack.c.l.b16 %v6584
  %v6873 = vunpack.c.l.b16 %v6585
  %v6874 = vunpack.c.l.b16 %v6586
  %v6875 = vunpack.c.l.b16 %v6587
  %v6876 = vunpack.c.l.b16 %v6588
  %v6877 = vunpack.c.l.b16 %v6589
  %v6878 = vunpack.c.l.b16 %v6590
  %v6879 = vunpack.c.l.b16 %v6591
  %v6880 = vunpack.c.l.b16 %v6592
  %v6881 = vunpack.c.l.b16 %v6593
  %v6882 = vunpack.c.l.b16 %v6594
  %v6883 = vunpack.c.l.b16 %v6595
  %v6884 = vunpack.c.l.b16 %v6596
  %v6885 = vunpack.c.l.b16 %v6597
  %v6886 = vunpack.c.l.b16 %v6598
  %v6887 = vunpack.c.l.b16 %v6599
  %v6888 = vunpack.c.l.b16 %v6600
  %v6889 = vunpack.c.l.b16 %v6601
  %v6890 = vunpack.c.l.b16 %v6602
  %v6891 = vunpack.c.l.b16 %v6603
  %v6892 = vunpack.c.l.b16 %v6604
  %v6893 = vunpack.c.l.b16 %v6605
  %v6894 = vunpack.c.l.b16 %v6606
  %v6895 = vunpack.c.l.b16 %v6607
  %v6896 = vunpack.c.l.b16 %v6608
  %v6897 = vunpack.c.l.b16 %v6609
  %v6898 = vunpack.c.l.b16 %v6610
  %v6899 = vunpack.c.l.b16 %v6611
  %v6900 = vunpack.c.l.b16 %v6612
  %v6901 = vunpack.c.l.b16 %v6613
  %v6902 = vunpack.c.l.b16 %v6614
  %v6903 = vunpack.c.l.b16 %v6615
  %v6904 = vunpack.c.l.b16 %v6616
  %v6905 = vunpack.c.l.b16 %v6617
  %v6906 = vunpack.c.l.b16 %v6618
  %v6907 = vunpack.c.l.b16 %v6619
  %v6908 = vunpack.c.l.b16 %v6620
  %v6909 = vunpack.c.l.b16 %v6621
  %v6910 = vunpack.c.l.b16 %v6622
  %v6911 = vunpack.c.l.b16 %v6623
  %v6912 = vunpack.c.l.b16 %v6624
  %v6913 = vunpack.c.l.b16 %v6625
  %v6914 = vunpack.c.l.b16 %v6626
  %v6915 = vunpack.c.l.b16 %v6627
  %v6916 = vunpack.c.l.b16 %v6628
  %v6917 = vunpack.c.l.b16 %v6629
  %v6918 = vunpack.c.l.b16 %v6630
  %v6919 = vunpack.c.l.b16 %v6631
  %v6920 = vunpack.c.l.b16 %v6632
  %v6921 = vunpack.c.l.b16 %v6633
  %v6922 = vunpack.c.l.b16 %v6634
  %vm6923 = vcmask 1041409
  %v6924 = vsel %vm6923, %v6636, %v6635
  %vm6925 = vcmask 1042434
  %v6926 = vsel %vm6925, %v6637, %v6924
  %vm6927 = vcmask 1043459
  %v6928 = vsel %vm6927, %v6638, %v6926
  %vm6929 = vcmask 1044484
  %v6930 = vsel %vm6929, %v6639, %v6928
  %vm6931 = vcmask 1045509
  %v6932 = vsel %vm6931, %v6640, %v6930
  %vm6933 = vcmask 1046534
  %v6934 = vsel %vm6933, %v6641, %v6932
  %vm6935 = vcmask 1047559
  %v6936 = vsel %vm6935, %v6642, %v6934
  %v6937 = vsel %vm6923, %v6644, %v6643
  %v6938 = vsel %vm6925, %v6645, %v6937
  %v6939 = vsel %vm6927, %v6646, %v6938
  %v6940 = vsel %vm6923, %v6648, %v6647
  %v6941 = vsel %vm6925, %v6649, %v6940
  %v6942 = vsel %vm6927, %v6650, %v6941
  %v6943 = vsel %vm6929, %v6651, %v6942
  %v6944 = vsel %vm6931, %v6652, %v6943
  %v6945 = vsel %vm6933, %v6653, %v6944
  %v6946 = vsel %vm6935, %v6654, %v6945
  %v6947 = vsel %vm6923, %v6656, %v6655
  %v6948 = vsel %vm6925, %v6657, %v6947
  %v6949 = vsel %vm6927, %v6658, %v6948
  %v6950 = vsel %vm6923, %v6660, %v6659
  %v6951 = vsel %vm6925, %v6661, %v6950
  %v6952 = vsel %vm6927, %v6662, %v6951
  %v6953 = vsel %vm6929, %v6663, %v6952
  %v6954 = vsel %vm6931, %v6664, %v6953
  %v6955 = vsel %vm6933, %v6665, %v6954
  %v6956 = vsel %vm6935, %v6666, %v6955
  %v6957 = vsel %vm6923, %v6668, %v6667
  %v6958 = vsel %vm6925, %v6669, %v6957
  %v6959 = vsel %vm6927, %v6670, %v6958
  %v6960 = vsel %vm6923, %v6672, %v6671
  %v6961 = vsel %vm6925, %v6673, %v6960
  %v6962 = vsel %vm6927, %v6674, %v6961
  %v6963 = vsel %vm6929, %v6675, %v6962
  %v6964 = vsel %vm6931, %v6676, %v6963
  %v6965 = vsel %vm6933, %v6677, %v6964
  %v6966 = vsel %vm6935, %v6678, %v6965
  %v6967 = vsel %vm6923, %v6680, %v6679
  %v6968 = vsel %vm6925, %v6681, %v6967
  %v6969 = vsel %vm6927, %v6682, %v6968
  %v6970 = vsel %vm6923, %v6684, %v6683
  %v6971 = vsel %vm6925, %v6685, %v6970
  %v6972 = vsel %vm6927, %v6686, %v6971
  %v6973 = vsel %vm6929, %v6687, %v6972
  %v6974 = vsel %vm6931, %v6688, %v6973
  %v6975 = vsel %vm6933, %v6689, %v6974
  %v6976 = vsel %vm6935, %v6690, %v6975
  %v6977 = vsel %vm6923, %v6692, %v6691
  %v6978 = vsel %vm6925, %v6693, %v6977
  %v6979 = vsel %vm6927, %v6694, %v6978
  %v6980 = vsel %vm6923, %v6696, %v6695
  %v6981 = vsel %vm6925, %v6697, %v6980
  %v6982 = vsel %vm6927, %v6698, %v6981
  %v6983 = vsel %vm6929, %v6699, %v6982
  %v6984 = vsel %vm6931, %v6700, %v6983
  %v6985 = vsel %vm6933, %v6701, %v6984
  %v6986 = vsel %vm6935, %v6702, %v6985
  %v6987 = vsel %vm6923, %v6704, %v6703
  %v6988 = vsel %vm6925, %v6705, %v6987
  %v6989 = vsel %vm6927, %v6706, %v6988
  %v6990 = vsel %vm6923, %v6708, %v6707
  %v6991 = vsel %vm6925, %v6709, %v6990
  %v6992 = vsel %vm6927, %v6710, %v6991
  %v6993 = vsel %vm6929, %v6711, %v6992
  %v6994 = vsel %vm6931, %v6712, %v6993
  %v6995 = vsel %vm6933, %v6713, %v6994
  %v6996 = vsel %vm6935, %v6714, %v6995
  %v6997 = vsel %vm6923, %v6716, %v6715
  %v6998 = vsel %vm6925, %v6717, %v6997
  %v6999 = vsel %vm6927, %v6718, %v6998
  %v7000 = vsel %vm6923, %v6720, %v6719
  %v7001 = vsel %vm6925, %v6721, %v7000
  %v7002 = vsel %vm6927, %v6722, %v7001
  %v7003 = vsel %vm6929, %v6723, %v7002
  %v7004 = vsel %vm6931, %v6724, %v7003
  %v7005 = vsel %vm6933, %v6725, %v7004
  %v7006 = vsel %vm6935, %v6726, %v7005
  %v7007 = vsel %vm6923, %v6728, %v6727
  %v7008 = vsel %vm6925, %v6729, %v7007
  %v7009 = vsel %vm6927, %v6730, %v7008
  %v7010 = vsel %vm6923, %v6732, %v6731
  %v7011 = vsel %vm6925, %v6733, %v7010
  %v7012 = vsel %vm6927, %v6734, %v7011
  %v7013 = vsel %vm6929, %v6735, %v7012
  %v7014 = vsel %vm6931, %v6736, %v7013
  %v7015 = vsel %vm6933, %v6737, %v7014
  %v7016 = vsel %vm6935, %v6738, %v7015
  %v7017 = vsel %vm6923, %v6740, %v6739
  %v7018 = vsel %vm6925, %v6741, %v7017
  %v7019 = vsel %vm6927, %v6742, %v7018
  %v7020 = vsel %vm6923, %v6744, %v6743
  %v7021 = vsel %vm6925, %v6745, %v7020
  %v7022 = vsel %vm6927, %v6746, %v7021
  %v7023 = vsel %vm6929, %v6747, %v7022
  %v7024 = vsel %vm6931, %v6748, %v7023
  %v7025 = vsel %vm6933, %v6749, %v7024
  %v7026 = vsel %vm6935, %v6750, %v7025
  %v7027 = vsel %vm6923, %v6752, %v6751
  %v7028 = vsel %vm6925, %v6753, %v7027
  %v7029 = vsel %vm6927, %v6754, %v7028
  %v7030 = vsel %vm6923, %v6756, %v6755
  %v7031 = vsel %vm6925, %v6757, %v7030
  %v7032 = vsel %vm6927, %v6758, %v7031
  %v7033 = vsel %vm6929, %v6759, %v7032
  %v7034 = vsel %vm6931, %v6760, %v7033
  %v7035 = vsel %vm6933, %v6761, %v7034
  %v7036 = vsel %vm6935, %v6762, %v7035
  %v7037 = vsel %vm6923, %v6764, %v6763
  %v7038 = vsel %vm6925, %v6765, %v7037
  %v7039 = vsel %vm6927, %v6766, %v7038
  %v7040 = vsel %vm6923, %v6768, %v6767
  %v7041 = vsel %vm6925, %v6769, %v7040
  %v7042 = vsel %vm6927, %v6770, %v7041
  %v7043 = vsel %vm6929, %v6771, %v7042
  %v7044 = vsel %vm6931, %v6772, %v7043
  %v7045 = vsel %vm6933, %v6773, %v7044
  %v7046 = vsel %vm6935, %v6774, %v7045
  %v7047 = vsel %vm6923, %v6776, %v6775
  %v7048 = vsel %vm6925, %v6777, %v7047
  %v7049 = vsel %vm6927, %v6778, %v7048
  %v7050 = vsel %vm6923, %v6780, %v6779
  %v7051 = vsel %vm6925, %v6781, %v7050
  %v7052 = vsel %vm6927, %v6782, %v7051
  %v7053 = vsel %vm6929, %v6783, %v7052
  %v7054 = vsel %vm6931, %v6784, %v7053
  %v7055 = vsel %vm6933, %v6785, %v7054
  %v7056 = vsel %vm6935, %v6786, %v7055
  %v7057 = vsel %vm6923, %v6788, %v6787
  %v7058 = vsel %vm6925, %v6789, %v7057
  %v7059 = vsel %vm6927, %v6790, %v7058
  %v7060 = vsel %vm6923, %v6792, %v6791
  %v7061 = vsel %vm6925, %v6793, %v7060
  %v7062 = vsel %vm6927, %v6794, %v7061
  %v7063 = vsel %vm6929, %v6795, %v7062
  %v7064 = vsel %vm6931, %v6796, %v7063
  %v7065 = vsel %vm6933, %v6797, %v7064
  %v7066 = vsel %vm6935, %v6798, %v7065
  %v7067 = vsel %vm6923, %v6800, %v6799
  %v7068 = vsel %vm6925, %v6801, %v7067
  %v7069 = vsel %vm6927, %v6802, %v7068
  %v7070 = vsel %vm6923, %v6804, %v6803
  %v7071 = vsel %vm6925, %v6805, %v7070
  %v7072 = vsel %vm6927, %v6806, %v7071
  %v7073 = vsel %vm6929, %v6807, %v7072
  %v7074 = vsel %vm6931, %v6808, %v7073
  %v7075 = vsel %vm6933, %v6809, %v7074
  %v7076 = vsel %vm6935, %v6810, %v7075
  %v7077 = vsel %vm6923, %v6812, %v6811
  %v7078 = vsel %vm6925, %v6813, %v7077
  %v7079 = vsel %vm6927, %v6814, %v7078
  %v7080 = vsel %vm6923, %v6816, %v6815
  %v7081 = vsel %vm6925, %v6817, %v7080
  %v7082 = vsel %vm6927, %v6818, %v7081
  %v7083 = vsel %vm6929, %v6819, %v7082
  %v7084 = vsel %vm6931, %v6820, %v7083
  %v7085 = vsel %vm6933, %v6821, %v7084
  %v7086 = vsel %vm6935, %v6822, %v7085
  %v7087 = vsel %vm6923, %v6824, %v6823
  %v7088 = vsel %vm6925, %v6825, %v7087
  %v7089 = vsel %vm6927, %v6826, %v7088
  %v7090 = vsel %vm6923, %v6828, %v6827
  %v7091 = vsel %vm6925, %v6829, %v7090
  %v7092 = vsel %vm6927, %v6830, %v7091
  %v7093 = vsel %vm6929, %v6831, %v7092
  %v7094 = vsel %vm6931, %v6832, %v7093
  %v7095 = vsel %vm6933, %v6833, %v7094
  %v7096 = vsel %vm6935, %v6834, %v7095
  %v7097 = vsel %vm6923, %v6836, %v6835
  %v7098 = vsel %vm6925, %v6837, %v7097
  %v7099 = vsel %vm6927, %v6838, %v7098
  %v7100 = vsel %vm6923, %v6840, %v6839
  %v7101 = vsel %vm6925, %v6841, %v7100
  %v7102 = vsel %vm6927, %v6842, %v7101
  %v7103 = vsel %vm6929, %v6843, %v7102
  %v7104 = vsel %vm6931, %v6844, %v7103
  %v7105 = vsel %vm6933, %v6845, %v7104
  %v7106 = vsel %vm6935, %v6846, %v7105
  %v7107 = vsel %vm6923, %v6848, %v6847
  %v7108 = vsel %vm6925, %v6849, %v7107
  %v7109 = vsel %vm6927, %v6850, %v7108
  %v7110 = vsel %vm6923, %v6852, %v6851
  %v7111 = vsel %vm6925, %v6853, %v7110
  %v7112 = vsel %vm6927, %v6854, %v7111
  %v7113 = vsel %vm6929, %v6855, %v7112
  %v7114 = vsel %vm6931, %v6856, %v7113
  %v7115 = vsel %vm6933, %v6857, %v7114
  %v7116 = vsel %vm6935, %v6858, %v7115
  %v7117 = vsel %vm6923, %v6860, %v6859
  %v7118 = vsel %vm6925, %v6861, %v7117
  %v7119 = vsel %vm6927, %v6862, %v7118
  %v7120 = vsel %vm6923, %v6864, %v6863
  %v7121 = vsel %vm6925, %v6865, %v7120
  %v7122 = vsel %vm6927, %v6866, %v7121
  %v7123 = vsel %vm6929, %v6867, %v7122
  %v7124 = vsel %vm6931, %v6868, %v7123
  %v7125 = vsel %vm6933, %v6869, %v7124
  %v7126 = vsel %vm6935, %v6870, %v7125
  %v7127 = vsel %vm6923, %v6872, %v6871
  %v7128 = vsel %vm6925, %v6873, %v7127
  %v7129 = vsel %vm6927, %v6874, %v7128
  %v7130 = vsel %vm6923, %v6876, %v6875
  %v7131 = vsel %vm6925, %v6877, %v7130
  %v7132 = vsel %vm6927, %v6878, %v7131
  %v7133 = vsel %vm6929, %v6879, %v7132
  %v7134 = vsel %vm6931, %v6880, %v7133
  %v7135 = vsel %vm6933, %v6881, %v7134
  %v7136 = vsel %vm6935, %v6882, %v7135
  %v7137 = vsel %vm6923, %v6884, %v6883
  %v7138 = vsel %vm6925, %v6885, %v7137
  %v7139 = vsel %vm6927, %v6886, %v7138
  %v7140 = vsel %vm6923, %v6888, %v6887
  %v7141 = vsel %vm6925, %v6889, %v7140
  %v7142 = vsel %vm6927, %v6890, %v7141
  %v7143 = vsel %vm6929, %v6891, %v7142
  %v7144 = vsel %vm6931, %v6892, %v7143
  %v7145 = vsel %vm6933, %v6893, %v7144
  %v7146 = vsel %vm6935, %v6894, %v7145
  %v7147 = vsel %vm6923, %v6896, %v6895
  %v7148 = vsel %vm6925, %v6897, %v7147
  %v7149 = vsel %vm6927, %v6898, %v7148
  %v7150 = vsel %vm6923, %v6900, %v6899
  %v7151 = vsel %vm6925, %v6901, %v7150
  %v7152 = vsel %vm6927, %v6902, %v7151
  %v7153 = vsel %vm6929, %v6903, %v7152
  %v7154 = vsel %vm6931, %v6904, %v7153
  %v7155 = vsel %vm6933, %v6905, %v7154
  %v7156 = vsel %vm6935, %v6906, %v7155
  %v7157 = vsel %vm6923, %v6908, %v6907
  %v7158 = vsel %vm6925, %v6909, %v7157
  %v7159 = vsel %vm6927, %v6910, %v7158
  %v7160 = vsel %vm6923, %v6912, %v6911
  %v7161 = vsel %vm6925, %v6913, %v7160
  %v7162 = vsel %vm6927, %v6914, %v7161
  %v7163 = vsel %vm6929, %v6915, %v7162
  %v7164 = vsel %vm6931, %v6916, %v7163
  %v7165 = vsel %vm6933, %v6917, %v7164
  %v7166 = vsel %vm6935, %v6918, %v7165
  %v7167 = vsel %vm6923, %v6920, %v6919
  %v7168 = vsel %vm6925, %v6921, %v7167
  %v7169 = vsel %vm6927, %v6922, %v7168
  %v7170 = vpack.c.b16 %v6936, %v6936
  %v7171 = vpack.c.b16 %v6939, %v6939
  %v7172 = vpack.c.b16 %v6946, %v6946
  %v7173 = vpack.c.b16 %v6949, %v6949
  %v7174 = vpack.c.b16 %v6956, %v6956
  %v7175 = vpack.c.b16 %v6959, %v6959
  %v7176 = vpack.c.b16 %v6966, %v6966
  %v7177 = vpack.c.b16 %v6969, %v6969
  %v7178 = vpack.c.b16 %v6976, %v6976
  %v7179 = vpack.c.b16 %v6979, %v6979
  %v7180 = vpack.c.b16 %v6986, %v6986
  %v7181 = vpack.c.b16 %v6989, %v6989
  %v7182 = vpack.c.b16 %v6996, %v6996
  %v7183 = vpack.c.b16 %v6999, %v6999
  %v7184 = vpack.c.b16 %v7006, %v7006
  %v7185 = vpack.c.b16 %v7009, %v7009
  %v7186 = vpack.c.b16 %v7016, %v7016
  %v7187 = vpack.c.b16 %v7019, %v7019
  %v7188 = vpack.c.b16 %v7026, %v7026
  %v7189 = vpack.c.b16 %v7029, %v7029
  %v7190 = vpack.c.b16 %v7036, %v7036
  %v7191 = vpack.c.b16 %v7039, %v7039
  %v7192 = vpack.c.b16 %v7046, %v7046
  %v7193 = vpack.c.b16 %v7049, %v7049
  %v7194 = vpack.c.b16 %v7056, %v7056
  %v7195 = vpack.c.b16 %v7059, %v7059
  %v7196 = vpack.c.b16 %v7066, %v7066
  %v7197 = vpack.c.b16 %v7069, %v7069
  %v7198 = vpack.c.b16 %v7076, %v7076
  %v7199 = vpack.c.b16 %v7079, %v7079
  %v7200 = vpack.c.b16 %v7086, %v7086
  %v7201 = vpack.c.b16 %v7089, %v7089
  %v7202 = vpack.c.b16 %v7096, %v7096
  %v7203 = vpack.c.b16 %v7099, %v7099
  %v7204 = vpack.c.b16 %v7106, %v7106
  %v7205 = vpack.c.b16 %v7109, %v7109
  %v7206 = vpack.c.b16 %v7116, %v7116
  %v7207 = vpack.c.b16 %v7119, %v7119
  %v7208 = vpack.c.b16 %v7126, %v7126
  %v7209 = vpack.c.b16 %v7129, %v7129
  %v7210 = vpack.c.b16 %v7136, %v7136
  %v7211 = vpack.c.b16 %v7139, %v7139
  %v7212 = vpack.c.b16 %v7146, %v7146
  %v7213 = vpack.c.b16 %v7149, %v7149
  %v7214 = vpack.c.b16 %v7156, %v7156
  %v7215 = vpack.c.b16 %v7159, %v7159
  %v7216 = vpack.c.b16 %v7166, %v7166
  %v7217 = vpack.c.b16 %v7169, %v7169
  %7266 = vst [vmem:[%s1] sm:$0xf] %v7170
  %7267 = vst [vmem:[%s1 + $0x4] sm:$0x3] %v7171
  %7268 = vst [vmem:[%s1 + $0x8] sm:$0xf] %v7172
  %7269 = vst [vmem:[%s1 + $0xc] sm:$0x3] %v7173
  %7270 = vst [vmem:[%s1 + $0x10] sm:$0xf] %v7174
  %7271 = vst [vmem:[%s1 + $0x14] sm:$0x3] %v7175
  %7272 = vst [vmem:[%s1 + $0x18] sm:$0xf] %v7176
  %7273 = vst [vmem:[%s1 + $0x1c] sm:$0x3] %v7177
  %7274 = vst [vmem:[%s1 + $0x20] sm:$0xf] %v7178
  %7275 = vst [vmem:[%s1 + $0x24] sm:$0x3] %v7179
  %7276 = vst [vmem:[%s1 + $0x28] sm:$0xf] %v7180
  %7277 = vst [vmem:[%s1 + $0x2c] sm:$0x3] %v7181
  %7278 = vst [vmem:[%s1 + $0x30] sm:$0xf] %v7182
  %7279 = vst [vmem:[%s1 + $0x34] sm:$0x3] %v7183
  %7280 = vst [vmem:[%s1 + $0x38] sm:$0xf] %v7184
  %7281 = vst [vmem:[%s1 + $0x3c] sm:$0x3] %v7185
  %7282 = vst [vmem:[%s1 + $0x40] sm:$0xf] %v7186
  %7283 = vst [vmem:[%s1 + $0x44] sm:$0x3] %v7187
  %7284 = vst [vmem:[%s1 + $0x48] sm:$0xf] %v7188
  %7285 = vst [vmem:[%s1 + $0x4c] sm:$0x3] %v7189
  %7286 = vst [vmem:[%s1 + $0x50] sm:$0xf] %v7190
  %7287 = vst [vmem:[%s1 + $0x54] sm:$0x3] %v7191
  %7288 = vst [vmem:[%s1 + $0x58] sm:$0xf] %v7192
  %7289 = vst [vmem:[%s1 + $0x5c] sm:$0x3] %v7193
  %7290 = vst [vmem:[%s1 + $0x60] sm:$0xf] %v7194
  %7291 = vst [vmem:[%s1 + $0x64] sm:$0x3] %v7195
  %7292 = vst [vmem:[%s1 + $0x68] sm:$0xf] %v7196
  %7293 = vst [vmem:[%s1 + $0x6c] sm:$0x3] %v7197
  %7294 = vst [vmem:[%s1 + $0x70] sm:$0xf] %v7198
  %7295 = vst [vmem:[%s1 + $0x74] sm:$0x3] %v7199
  %7296 = vst [vmem:[%s1 + $0x78] sm:$0xf] %v7200
  %7297 = vst [vmem:[%s1 + $0x7c] sm:$0x3] %v7201
  %7298 = vst [vmem:[%s1 + $0x80] sm:$0xf] %v7202
  %7299 = vst [vmem:[%s1 + $0x84] sm:$0x3] %v7203
  %7300 = vst [vmem:[%s1 + $0x88] sm:$0xf] %v7204
  %7301 = vst [vmem:[%s1 + $0x8c] sm:$0x3] %v7205
  %7302 = vst [vmem:[%s1 + $0x90] sm:$0xf] %v7206
  %7303 = vst [vmem:[%s1 + $0x94] sm:$0x3] %v7207
  %7304 = vst [vmem:[%s1 + $0x98] sm:$0xf] %v7208
  %7305 = vst [vmem:[%s1 + $0x9c] sm:$0x3] %v7209
  %7306 = vst [vmem:[%s1 + $0xa0] sm:$0xf] %v7210
  %7307 = vst [vmem:[%s1 + $0xa4] sm:$0x3] %v7211
  %7308 = vst [vmem:[%s1 + $0xa8] sm:$0xf] %v7212
  %7309 = vst [vmem:[%s1 + $0xac] sm:$0x3] %v7213
  %7310 = vst [vmem:[%s1 + $0xb0] sm:$0xf] %v7214
  %7311 = vst [vmem:[%s1 + $0xb4] sm:$0x3] %v7215
  %7312 = vst [vmem:[%s1 + $0xb8] sm:$0xf] %v7216
  %7313 = vst [vmem:[%s1 + $0xbc] sm:$0x3] %v7217
  // Predicated region
  $region6: #{simple_net_forward.6} parent=0 // pred_check
    _
  $region7: #{simple_net_forward.6} parent=0 // pred_check_branch
    %7315 = sbr.rel (0) target = $region9
  $region8: #{simple_net_forward.6} parent=0 // pred_region
    _
  $region9: #{simple_net_forward.6} parent=0 // pred_fallthru
    _
  // Predicated region
  $region10: #{simple_net_forward.6} parent=0 // pred_check
    _
  $region11: #{simple_net_forward.6} parent=0 // pred_check_branch
    %7317 = sbr.rel (0) target = $region13
  $region12: #{simple_net_forward.6} parent=0 // pred_region
    _
  $region13: #{simple_net_forward.6} parent=0 // pred_fallthru
    _

// kernel: simple_net_forward.8
$region0: #{simple_net_forward.8}
  #allocation0 [shape = 'u32[]', space=smem, size = 0x4, offset = 0x4, fixed_abs, tag = 'smem constant byte address 0x4 - core index']
  #allocation1 [shape = 'u32[144,128]{1,0:T(1,128)}', space=vmem, size = 0x12000, scoped, tag = 'internal scratch']
  %s0 = inlined_call_operand.vmem [shape: bf16[8,2,8,128], index: 0, kind: input, shape index: {}]
  %s1 = inlined_call_operand.vmem [shape: bf16[8,4,128], index: 1, kind: output, shape index: {}]
  %s2 = sld [smem:[#allocation0]]
  $region14: #{simple_net_forward.8} parent=0
    _
  %s4 = ssub.s32 1, %s2
  %s5 = scalar_select 0, %s4, %s2
  // Predicated region
  $region2: #{simple_net_forward.8} parent=0 // pred_check
    _
  $region3: #{simple_net_forward.8} parent=0 // pred_check_branch
    %7 = sbr.rel (0) target = $region5
  $region4: #{simple_net_forward.8} parent=0 // pred_region
    _
  $region5: #{simple_net_forward.8} parent=0 // pred_fallthru
    _
  %v9 = vld [vmem:[%s0] sm:$0xf]
  %v10 = vld [vmem:[%s0 + $0x4] sm:$0xf]
  %v11 = vld [vmem:[%s0 + $0x8] sm:$0xf]
  %v12 = vld [vmem:[%s0 + $0xc] sm:$0xf]
  %v13 = vld [vmem:[%s0 + $0x10] sm:$0xf]
  %v14 = vld [vmem:[%s0 + $0x14] sm:$0xf]
  %v15 = vld [vmem:[%s0 + $0x18] sm:$0xf]
  %v16 = vld [vmem:[%s0 + $0x1c] sm:$0xf]
  %v17 = vld [vmem:[%s0 + $0x20] sm:$0xf]
  %v18 = vld [vmem:[%s0 + $0x24] sm:$0xf]
  %v19 = vld [vmem:[%s0 + $0x28] sm:$0xf]
  %v20 = vld [vmem:[%s0 + $0x2c] sm:$0xf]
  %v21 = vld [vmem:[%s0 + $0x30] sm:$0xf]
  %v22 = vld [vmem:[%s0 + $0x34] sm:$0xf]
  %v23 = vld [vmem:[%s0 + $0x38] sm:$0xf]
  %v24 = vld [vmem:[%s0 + $0x3c] sm:$0xf]
  %v25 = vmax.bf16 %v9, %v10
  %v26 = vmax.bf16 %v11, %v12
  %v27 = vmax.bf16 %v13, %v14
  %v28 = vmax.bf16 %v15, %v16
  %v29 = vmax.bf16 %v17, %v18
  %v30 = vmax.bf16 %v19, %v20
  %v31 = vmax.bf16 %v21, %v22
  %v32 = vmax.bf16 %v23, %v24
  %v42 = vunpack.c.l.s4 1966171168
  %v43 = vunpack.c.0.s8 %v42
  %v44 = vlaneseq
  %v45 = vshrl.u32 %v44, 7
  %v46 = vsub.s32 %v43, %v45
  %v47 = vrot.slane %v25, %v46
  %v48 = vcombine.high %v47, %v47
  %v50 = vunpack.c.l.s4 1966171168
  %v51 = vunpack.c.0.s8 %v50
  %v52 = vlaneseq
  %v53 = vshrl.u32 %v52, 7
  %v54 = vsub.s32 %v51, %v53
  %v55 = vrot.slane %v47, %v54
  %v57 = vunpack.c.l.s4 1966171168
  %v58 = vunpack.c.0.s8 %v57
  %v59 = vlaneseq
  %v60 = vshrl.u32 %v59, 7
  %v61 = vsub.s32 %v58, %v60
  %v62 = vrot.slane %v48, %v61
  %v63 = vcombine.high %v55, %v55
  %v64 = vcombine.high %v62, %v62
  %v66 = vunpack.c.l.s4 1966171168
  %v67 = vunpack.c.0.s8 %v66
  %v68 = vlaneseq
  %v69 = vshrl.u32 %v68, 7
  %v70 = vsub.s32 %v67, %v69
  %v71 = vrot.slane %v26, %v70
  %v72 = vcombine.high %v71, %v71
  %v74 = vunpack.c.l.s4 1966171168
  %v75 = vunpack.c.0.s8 %v74
  %v76 = vlaneseq
  %v77 = vshrl.u32 %v76, 7
  %v78 = vsub.s32 %v75, %v77
  %v79 = vrot.slane %v71, %v78
  %v81 = vunpack.c.l.s4 1966171168
  %v82 = vunpack.c.0.s8 %v81
  %v83 = vlaneseq
  %v84 = vshrl.u32 %v83, 7
  %v85 = vsub.s32 %v82, %v84
  %v86 = vrot.slane %v72, %v85
  %v87 = vcombine.high %v79, %v79
  %v88 = vcombine.high %v86, %v86
  %v90 = vunpack.c.l.s4 1966171168
  %v91 = vunpack.c.0.s8 %v90
  %v92 = vlaneseq
  %v93 = vshrl.u32 %v92, 7
  %v94 = vsub.s32 %v91, %v93
  %v95 = vrot.slane %v27, %v94
  %v96 = vcombine.high %v95, %v95
  %v98 = vunpack.c.l.s4 1966171168
  %v99 = vunpack.c.0.s8 %v98
  %v100 = vlaneseq
  %v101 = vshrl.u32 %v100, 7
  %v102 = vsub.s32 %v99, %v101
  %v103 = vrot.slane %v95, %v102
  %v105 = vunpack.c.l.s4 1966171168
  %v106 = vunpack.c.0.s8 %v105
  %v107 = vlaneseq
  %v108 = vshrl.u32 %v107, 7
  %v109 = vsub.s32 %v106, %v108
  %v110 = vrot.slane %v96, %v109
  %v111 = vcombine.high %v103, %v103
  %v112 = vcombine.high %v110, %v110
  %v114 = vunpack.c.l.s4 1966171168
  %v115 = vunpack.c.0.s8 %v114
  %v116 = vlaneseq
  %v117 = vshrl.u32 %v116, 7
  %v118 = vsub.s32 %v115, %v117
  %v119 = vrot.slane %v28, %v118
  %v120 = vcombine.high %v119, %v119
  %v122 = vunpack.c.l.s4 1966171168
  %v123 = vunpack.c.0.s8 %v122
  %v124 = vlaneseq
  %v125 = vshrl.u32 %v124, 7
  %v126 = vsub.s32 %v123, %v125
  %v127 = vrot.slane %v119, %v126
  %v129 = vunpack.c.l.s4 1966171168
  %v130 = vunpack.c.0.s8 %v129
  %v131 = vlaneseq
  %v132 = vshrl.u32 %v131, 7
  %v133 = vsub.s32 %v130, %v132
  %v134 = vrot.slane %v120, %v133
  %v135 = vcombine.high %v127, %v127
  %v136 = vcombine.high %v134, %v134
  %v138 = vunpack.c.l.s4 1966171168
  %v139 = vunpack.c.0.s8 %v138
  %v140 = vlaneseq
  %v141 = vshrl.u32 %v140, 7
  %v142 = vsub.s32 %v139, %v141
  %v143 = vrot.slane %v29, %v142
  %v144 = vcombine.high %v143, %v143
  %v146 = vunpack.c.l.s4 1966171168
  %v147 = vunpack.c.0.s8 %v146
  %v148 = vlaneseq
  %v149 = vshrl.u32 %v148, 7
  %v150 = vsub.s32 %v147, %v149
  %v151 = vrot.slane %v143, %v150
  %v153 = vunpack.c.l.s4 1966171168
  %v154 = vunpack.c.0.s8 %v153
  %v155 = vlaneseq
  %v156 = vshrl.u32 %v155, 7
  %v157 = vsub.s32 %v154, %v156
  %v158 = vrot.slane %v144, %v157
  %v159 = vcombine.high %v151, %v151
  %v160 = vcombine.high %v158, %v158
  %v162 = vunpack.c.l.s4 1966171168
  %v163 = vunpack.c.0.s8 %v162
  %v164 = vlaneseq
  %v165 = vshrl.u32 %v164, 7
  %v166 = vsub.s32 %v163, %v165
  %v167 = vrot.slane %v30, %v166
  %v168 = vcombine.high %v167, %v167
  %v170 = vunpack.c.l.s4 1966171168
  %v171 = vunpack.c.0.s8 %v170
  %v172 = vlaneseq
  %v173 = vshrl.u32 %v172, 7
  %v174 = vsub.s32 %v171, %v173
  %v175 = vrot.slane %v167, %v174
  %v177 = vunpack.c.l.s4 1966171168
  %v178 = vunpack.c.0.s8 %v177
  %v179 = vlaneseq
  %v180 = vshrl.u32 %v179, 7
  %v181 = vsub.s32 %v178, %v180
  %v182 = vrot.slane %v168, %v181
  %v183 = vcombine.high %v175, %v175
  %v184 = vcombine.high %v182, %v182
  %v186 = vunpack.c.l.s4 1966171168
  %v187 = vunpack.c.0.s8 %v186
  %v188 = vlaneseq
  %v189 = vshrl.u32 %v188, 7
  %v190 = vsub.s32 %v187, %v189
  %v191 = vrot.slane %v31, %v190
  %v192 = vcombine.high %v191, %v191
  %v194 = vunpack.c.l.s4 1966171168
  %v195 = vunpack.c.0.s8 %v194
  %v196 = vlaneseq
  %v197 = vshrl.u32 %v196, 7
  %v198 = vsub.s32 %v195, %v197
  %v199 = vrot.slane %v191, %v198
  %v201 = vunpack.c.l.s4 1966171168
  %v202 = vunpack.c.0.s8 %v201
  %v203 = vlaneseq
  %v204 = vshrl.u32 %v203, 7
  %v205 = vsub.s32 %v202, %v204
  %v206 = vrot.slane %v192, %v205
  %v207 = vcombine.high %v199, %v199
  %v208 = vcombine.high %v206, %v206
  %v210 = vunpack.c.l.s4 1966171168
  %v211 = vunpack.c.0.s8 %v210
  %v212 = vlaneseq
  %v213 = vshrl.u32 %v212, 7
  %v214 = vsub.s32 %v211, %v213
  %v215 = vrot.slane %v32, %v214
  %v216 = vcombine.high %v215, %v215
  %v218 = vunpack.c.l.s4 1966171168
  %v219 = vunpack.c.0.s8 %v218
  %v220 = vlaneseq
  %v221 = vshrl.u32 %v220, 7
  %v222 = vsub.s32 %v219, %v221
  %v223 = vrot.slane %v215, %v222
  %v225 = vunpack.c.l.s4 1966171168
  %v226 = vunpack.c.0.s8 %v225
  %v227 = vlaneseq
  %v228 = vshrl.u32 %v227, 7
  %v229 = vsub.s32 %v226, %v228
  %v230 = vrot.slane %v216, %v229
  %v231 = vcombine.high %v223, %v223
  %v232 = vcombine.high %v230, %v230
  %vm233 = vcmask 1040384
  %v236 = vsel %vm233, %v55, 4286644096
  %v238 = vunpack.i.l.bf16 %v236
  %v239 = vunpack.i.h.bf16 %v236
  %v240 = vmax.f32 %v238, %v239
  %v241 = vrot.slane %v240, 4
  %v242 = vmax.f32 %v240, %v241
  %v243 = vrot.slane %v242, 2
  %v244 = vmax.f32 %v242, %v243
  %v245 = vrot.slane %v244, 1
  %v246 = vmax.f32 %v244, %v245
  %v247 = vpack.i.bf16 %v246, %v246
  %v249 = vsel %vm233, %v62, 4286644096
  %v251 = vunpack.i.l.bf16 %v249
  %v252 = vunpack.i.h.bf16 %v249
  %v253 = vmax.f32 %v251, %v252
  %v254 = vrot.slane %v253, 4
  %v255 = vmax.f32 %v253, %v254
  %v256 = vrot.slane %v255, 2
  %v257 = vmax.f32 %v255, %v256
  %v258 = vrot.slane %v257, 1
  %v259 = vmax.f32 %v257, %v258
  %v260 = vpack.i.bf16 %v259, %v259
  %v262 = vsel %vm233, %v63, 4286644096
  %v264 = vunpack.i.l.bf16 %v262
  %v265 = vunpack.i.h.bf16 %v262
  %v266 = vmax.f32 %v264, %v265
  %v267 = vrot.slane %v266, 4
  %v268 = vmax.f32 %v266, %v267
  %v269 = vrot.slane %v268, 2
  %v270 = vmax.f32 %v268, %v269
  %v271 = vrot.slane %v270, 1
  %v272 = vmax.f32 %v270, %v271
  %v273 = vpack.i.bf16 %v272, %v272
  %v275 = vsel %vm233, %v64, 4286644096
  %v277 = vunpack.i.l.bf16 %v275
  %v278 = vunpack.i.h.bf16 %v275
  %v279 = vmax.f32 %v277, %v278
  %v280 = vrot.slane %v279, 4
  %v281 = vmax.f32 %v279, %v280
  %v282 = vrot.slane %v281, 2
  %v283 = vmax.f32 %v281, %v282
  %v284 = vrot.slane %v283, 1
  %v285 = vmax.f32 %v283, %v284
  %v286 = vpack.i.bf16 %v285, %v285
  %v288 = vsel %vm233, %v79, 4286644096
  %v290 = vunpack.i.l.bf16 %v288
  %v291 = vunpack.i.h.bf16 %v288
  %v292 = vmax.f32 %v290, %v291
  %v293 = vrot.slane %v292, 4
  %v294 = vmax.f32 %v292, %v293
  %v295 = vrot.slane %v294, 2
  %v296 = vmax.f32 %v294, %v295
  %v297 = vrot.slane %v296, 1
  %v298 = vmax.f32 %v296, %v297
  %v299 = vpack.i.bf16 %v298, %v298
  %v301 = vsel %vm233, %v86, 4286644096
  %v303 = vunpack.i.l.bf16 %v301
  %v304 = vunpack.i.h.bf16 %v301
  %v305 = vmax.f32 %v303, %v304
  %v306 = vrot.slane %v305, 4
  %v307 = vmax.f32 %v305, %v306
  %v308 = vrot.slane %v307, 2
  %v309 = vmax.f32 %v307, %v308
  %v310 = vrot.slane %v309, 1
  %v311 = vmax.f32 %v309, %v310
  %v312 = vpack.i.bf16 %v311, %v311
  %v314 = vsel %vm233, %v87, 4286644096
  %v316 = vunpack.i.l.bf16 %v314
  %v317 = vunpack.i.h.bf16 %v314
  %v318 = vmax.f32 %v316, %v317
  %v319 = vrot.slane %v318, 4
  %v320 = vmax.f32 %v318, %v319
  %v321 = vrot.slane %v320, 2
  %v322 = vmax.f32 %v320, %v321
  %v323 = vrot.slane %v322, 1
  %v324 = vmax.f32 %v322, %v323
  %v325 = vpack.i.bf16 %v324, %v324
  %v327 = vsel %vm233, %v88, 4286644096
  %v329 = vunpack.i.l.bf16 %v327
  %v330 = vunpack.i.h.bf16 %v327
  %v331 = vmax.f32 %v329, %v330
  %v332 = vrot.slane %v331, 4
  %v333 = vmax.f32 %v331, %v332
  %v334 = vrot.slane %v333, 2
  %v335 = vmax.f32 %v333, %v334
  %v336 = vrot.slane %v335, 1
  %v337 = vmax.f32 %v335, %v336
  %v338 = vpack.i.bf16 %v337, %v337
  %v340 = vsel %vm233, %v103, 4286644096
  %v342 = vunpack.i.l.bf16 %v340
  %v343 = vunpack.i.h.bf16 %v340
  %v344 = vmax.f32 %v342, %v343
  %v345 = vrot.slane %v344, 4
  %v346 = vmax.f32 %v344, %v345
  %v347 = vrot.slane %v346, 2
  %v348 = vmax.f32 %v346, %v347
  %v349 = vrot.slane %v348, 1
  %v350 = vmax.f32 %v348, %v349
  %v351 = vpack.i.bf16 %v350, %v350
  %v353 = vsel %vm233, %v110, 4286644096
  %v355 = vunpack.i.l.bf16 %v353
  %v356 = vunpack.i.h.bf16 %v353
  %v357 = vmax.f32 %v355, %v356
  %v358 = vrot.slane %v357, 4
  %v359 = vmax.f32 %v357, %v358
  %v360 = vrot.slane %v359, 2
  %v361 = vmax.f32 %v359, %v360
  %v362 = vrot.slane %v361, 1
  %v363 = vmax.f32 %v361, %v362
  %v364 = vpack.i.bf16 %v363, %v363
  %v366 = vsel %vm233, %v111, 4286644096
  %v368 = vunpack.i.l.bf16 %v366
  %v369 = vunpack.i.h.bf16 %v366
  %v370 = vmax.f32 %v368, %v369
  %v371 = vrot.slane %v370, 4
  %v372 = vmax.f32 %v370, %v371
  %v373 = vrot.slane %v372, 2
  %v374 = vmax.f32 %v372, %v373
  %v375 = vrot.slane %v374, 1
  %v376 = vmax.f32 %v374, %v375
  %v377 = vpack.i.bf16 %v376, %v376
  %v379 = vsel %vm233, %v112, 4286644096
  %v381 = vunpack.i.l.bf16 %v379
  %v382 = vunpack.i.h.bf16 %v379
  %v383 = vmax.f32 %v381, %v382
  %v384 = vrot.slane %v383, 4
  %v385 = vmax.f32 %v383, %v384
  %v386 = vrot.slane %v385, 2
  %v387 = vmax.f32 %v385, %v386
  %v388 = vrot.slane %v387, 1
  %v389 = vmax.f32 %v387, %v388
  %v390 = vpack.i.bf16 %v389, %v389
  %v392 = vsel %vm233, %v127, 4286644096
  %v394 = vunpack.i.l.bf16 %v392
  %v395 = vunpack.i.h.bf16 %v392
  %v396 = vmax.f32 %v394, %v395
  %v397 = vrot.slane %v396, 4
  %v398 = vmax.f32 %v396, %v397
  %v399 = vrot.slane %v398, 2
  %v400 = vmax.f32 %v398, %v399
  %v401 = vrot.slane %v400, 1
  %v402 = vmax.f32 %v400, %v401
  %v403 = vpack.i.bf16 %v402, %v402
  %v405 = vsel %vm233, %v134, 4286644096
  %v407 = vunpack.i.l.bf16 %v405
  %v408 = vunpack.i.h.bf16 %v405
  %v409 = vmax.f32 %v407, %v408
  %v410 = vrot.slane %v409, 4
  %v411 = vmax.f32 %v409, %v410
  %v412 = vrot.slane %v411, 2
  %v413 = vmax.f32 %v411, %v412
  %v414 = vrot.slane %v413, 1
  %v415 = vmax.f32 %v413, %v414
  %v416 = vpack.i.bf16 %v415, %v415
  %v418 = vsel %vm233, %v135, 4286644096
  %v420 = vunpack.i.l.bf16 %v418
  %v421 = vunpack.i.h.bf16 %v418
  %v422 = vmax.f32 %v420, %v421
  %v423 = vrot.slane %v422, 4
  %v424 = vmax.f32 %v422, %v423
  %v425 = vrot.slane %v424, 2
  %v426 = vmax.f32 %v424, %v425
  %v427 = vrot.slane %v426, 1
  %v428 = vmax.f32 %v426, %v427
  %v429 = vpack.i.bf16 %v428, %v428
  %v431 = vsel %vm233, %v136, 4286644096
  %v433 = vunpack.i.l.bf16 %v431
  %v434 = vunpack.i.h.bf16 %v431
  %v435 = vmax.f32 %v433, %v434
  %v436 = vrot.slane %v435, 4
  %v437 = vmax.f32 %v435, %v436
  %v438 = vrot.slane %v437, 2
  %v439 = vmax.f32 %v437, %v438
  %v440 = vrot.slane %v439, 1
  %v441 = vmax.f32 %v439, %v440
  %v442 = vpack.i.bf16 %v441, %v441
  %v444 = vsel %vm233, %v151, 4286644096
  %v446 = vunpack.i.l.bf16 %v444
  %v447 = vunpack.i.h.bf16 %v444
  %v448 = vmax.f32 %v446, %v447
  %v449 = vrot.slane %v448, 4
  %v450 = vmax.f32 %v448, %v449
  %v451 = vrot.slane %v450, 2
  %v452 = vmax.f32 %v450, %v451
  %v453 = vrot.slane %v452, 1
  %v454 = vmax.f32 %v452, %v453
  %v455 = vpack.i.bf16 %v454, %v454
  %v457 = vsel %vm233, %v158, 4286644096
  %v459 = vunpack.i.l.bf16 %v457
  %v460 = vunpack.i.h.bf16 %v457
  %v461 = vmax.f32 %v459, %v460
  %v462 = vrot.slane %v461, 4
  %v463 = vmax.f32 %v461, %v462
  %v464 = vrot.slane %v463, 2
  %v465 = vmax.f32 %v463, %v464
  %v466 = vrot.slane %v465, 1
  %v467 = vmax.f32 %v465, %v466
  %v468 = vpack.i.bf16 %v467, %v467
  %v470 = vsel %vm233, %v159, 4286644096
  %v472 = vunpack.i.l.bf16 %v470
  %v473 = vunpack.i.h.bf16 %v470
  %v474 = vmax.f32 %v472, %v473
  %v475 = vrot.slane %v474, 4
  %v476 = vmax.f32 %v474, %v475
  %v477 = vrot.slane %v476, 2
  %v478 = vmax.f32 %v476, %v477
  %v479 = vrot.slane %v478, 1
  %v480 = vmax.f32 %v478, %v479
  %v481 = vpack.i.bf16 %v480, %v480
  %v483 = vsel %vm233, %v160, 4286644096
  %v485 = vunpack.i.l.bf16 %v483
  %v486 = vunpack.i.h.bf16 %v483
  %v487 = vmax.f32 %v485, %v486
  %v488 = vrot.slane %v487, 4
  %v489 = vmax.f32 %v487, %v488
  %v490 = vrot.slane %v489, 2
  %v491 = vmax.f32 %v489, %v490
  %v492 = vrot.slane %v491, 1
  %v493 = vmax.f32 %v491, %v492
  %v494 = vpack.i.bf16 %v493, %v493
  %v496 = vsel %vm233, %v175, 4286644096
  %v498 = vunpack.i.l.bf16 %v496
  %v499 = vunpack.i.h.bf16 %v496
  %v500 = vmax.f32 %v498, %v499
  %v501 = vrot.slane %v500, 4
  %v502 = vmax.f32 %v500, %v501
  %v503 = vrot.slane %v502, 2
  %v504 = vmax.f32 %v502, %v503
  %v505 = vrot.slane %v504, 1
  %v506 = vmax.f32 %v504, %v505
  %v507 = vpack.i.bf16 %v506, %v506
  %v509 = vsel %vm233, %v182, 4286644096
  %v511 = vunpack.i.l.bf16 %v509
  %v512 = vunpack.i.h.bf16 %v509
  %v513 = vmax.f32 %v511, %v512
  %v514 = vrot.slane %v513, 4
  %v515 = vmax.f32 %v513, %v514
  %v516 = vrot.slane %v515, 2
  %v517 = vmax.f32 %v515, %v516
  %v518 = vrot.slane %v517, 1
  %v519 = vmax.f32 %v517, %v518
  %v520 = vpack.i.bf16 %v519, %v519
  %v522 = vsel %vm233, %v183, 4286644096
  %v524 = vunpack.i.l.bf16 %v522
  %v525 = vunpack.i.h.bf16 %v522
  %v526 = vmax.f32 %v524, %v525
  %v527 = vrot.slane %v526, 4
  %v528 = vmax.f32 %v526, %v527
  %v529 = vrot.slane %v528, 2
  %v530 = vmax.f32 %v528, %v529
  %v531 = vrot.slane %v530, 1
  %v532 = vmax.f32 %v530, %v531
  %v533 = vpack.i.bf16 %v532, %v532
  %v535 = vsel %vm233, %v184, 4286644096
  %v537 = vunpack.i.l.bf16 %v535
  %v538 = vunpack.i.h.bf16 %v535
  %v539 = vmax.f32 %v537, %v538
  %v540 = vrot.slane %v539, 4
  %v541 = vmax.f32 %v539, %v540
  %v542 = vrot.slane %v541, 2
  %v543 = vmax.f32 %v541, %v542
  %v544 = vrot.slane %v543, 1
  %v545 = vmax.f32 %v543, %v544
  %v546 = vpack.i.bf16 %v545, %v545
  %v548 = vsel %vm233, %v199, 4286644096
  %v550 = vunpack.i.l.bf16 %v548
  %v551 = vunpack.i.h.bf16 %v548
  %v552 = vmax.f32 %v550, %v551
  %v553 = vrot.slane %v552, 4
  %v554 = vmax.f32 %v552, %v553
  %v555 = vrot.slane %v554, 2
  %v556 = vmax.f32 %v554, %v555
  %v557 = vrot.slane %v556, 1
  %v558 = vmax.f32 %v556, %v557
  %v559 = vpack.i.bf16 %v558, %v558
  %v561 = vsel %vm233, %v206, 4286644096
  %v563 = vunpack.i.l.bf16 %v561
  %v564 = vunpack.i.h.bf16 %v561
  %v565 = vmax.f32 %v563, %v564
  %v566 = vrot.slane %v565, 4
  %v567 = vmax.f32 %v565, %v566
  %v568 = vrot.slane %v567, 2
  %v569 = vmax.f32 %v567, %v568
  %v570 = vrot.slane %v569, 1
  %v571 = vmax.f32 %v569, %v570
  %v572 = vpack.i.bf16 %v571, %v571
  %v574 = vsel %vm233, %v207, 4286644096
  %v576 = vunpack.i.l.bf16 %v574
  %v577 = vunpack.i.h.bf16 %v574
  %v578 = vmax.f32 %v576, %v577
  %v579 = vrot.slane %v578, 4
  %v580 = vmax.f32 %v578, %v579
  %v581 = vrot.slane %v580, 2
  %v582 = vmax.f32 %v580, %v581
  %v583 = vrot.slane %v582, 1
  %v584 = vmax.f32 %v582, %v583
  %v585 = vpack.i.bf16 %v584, %v584
  %v587 = vsel %vm233, %v208, 4286644096
  %v589 = vunpack.i.l.bf16 %v587
  %v590 = vunpack.i.h.bf16 %v587
  %v591 = vmax.f32 %v589, %v590
  %v592 = vrot.slane %v591, 4
  %v593 = vmax.f32 %v591, %v592
  %v594 = vrot.slane %v593, 2
  %v595 = vmax.f32 %v593, %v594
  %v596 = vrot.slane %v595, 1
  %v597 = vmax.f32 %v595, %v596
  %v598 = vpack.i.bf16 %v597, %v597
  %v600 = vsel %vm233, %v223, 4286644096
  %v602 = vunpack.i.l.bf16 %v600
  %v603 = vunpack.i.h.bf16 %v600
  %v604 = vmax.f32 %v602, %v603
  %v605 = vrot.slane %v604, 4
  %v606 = vmax.f32 %v604, %v605
  %v607 = vrot.slane %v606, 2
  %v608 = vmax.f32 %v606, %v607
  %v609 = vrot.slane %v608, 1
  %v610 = vmax.f32 %v608, %v609
  %v611 = vpack.i.bf16 %v610, %v610
  %v613 = vsel %vm233, %v230, 4286644096
  %v615 = vunpack.i.l.bf16 %v613
  %v616 = vunpack.i.h.bf16 %v613
  %v617 = vmax.f32 %v615, %v616
  %v618 = vrot.slane %v617, 4
  %v619 = vmax.f32 %v617, %v618
  %v620 = vrot.slane %v619, 2
  %v621 = vmax.f32 %v619, %v620
  %v622 = vrot.slane %v621, 1
  %v623 = vmax.f32 %v621, %v622
  %v624 = vpack.i.bf16 %v623, %v623
  %v626 = vsel %vm233, %v231, 4286644096
  %v628 = vunpack.i.l.bf16 %v626
  %v629 = vunpack.i.h.bf16 %v626
  %v630 = vmax.f32 %v628, %v629
  %v631 = vrot.slane %v630, 4
  %v632 = vmax.f32 %v630, %v631
  %v633 = vrot.slane %v632, 2
  %v634 = vmax.f32 %v632, %v633
  %v635 = vrot.slane %v634, 1
  %v636 = vmax.f32 %v634, %v635
  %v637 = vpack.i.bf16 %v636, %v636
  %v639 = vsel %vm233, %v232, 4286644096
  %v641 = vunpack.i.l.bf16 %v639
  %v642 = vunpack.i.h.bf16 %v639
  %v643 = vmax.f32 %v641, %v642
  %v644 = vrot.slane %v643, 4
  %v645 = vmax.f32 %v643, %v644
  %v646 = vrot.slane %v645, 2
  %v647 = vmax.f32 %v645, %v646
  %v648 = vrot.slane %v647, 1
  %v649 = vmax.f32 %v647, %v648
  %v650 = vpack.i.bf16 %v649, %v649
  %v684 = vunpack.c.l.s4 1983009808
  %v685 = vunpack.c.0.s8 %v684
  %v686 = vlaneseq
  %v687 = vshrl.u32 %v686, 7
  %v688 = vsub.s32 %v685, %v687
  %v689 = vrot.slane %v247, %v688
  %v691 = vunpack.c.l.s4 1983009808
  %v692 = vunpack.c.0.s8 %v691
  %v693 = vlaneseq
  %v694 = vshrl.u32 %v693, 7
  %v695 = vsub.s32 %v692, %v694
  %v696 = vrot.slane %v260, %v695
  %v698 = vunpack.c.l.s4 1983009808
  %v699 = vunpack.c.0.s8 %v698
  %v700 = vlaneseq
  %v701 = vshrl.u32 %v700, 7
  %v702 = vsub.s32 %v699, %v701
  %v703 = vrot.slane %v273, %v702
  %v705 = vunpack.c.l.s4 1983009808
  %v706 = vunpack.c.0.s8 %v705
  %v707 = vlaneseq
  %v708 = vshrl.u32 %v707, 7
  %v709 = vsub.s32 %v706, %v708
  %v710 = vrot.slane %v286, %v709
  %v712 = vunpack.c.l.s4 1983009808
  %v713 = vunpack.c.0.s8 %v712
  %v714 = vlaneseq
  %v715 = vshrl.u32 %v714, 7
  %v716 = vsub.s32 %v713, %v715
  %v717 = vrot.slane %v299, %v716
  %v719 = vunpack.c.l.s4 1983009808
  %v720 = vunpack.c.0.s8 %v719
  %v721 = vlaneseq
  %v722 = vshrl.u32 %v721, 7
  %v723 = vsub.s32 %v720, %v722
  %v724 = vrot.slane %v312, %v723
  %v726 = vunpack.c.l.s4 1983009808
  %v727 = vunpack.c.0.s8 %v726
  %v728 = vlaneseq
  %v729 = vshrl.u32 %v728, 7
  %v730 = vsub.s32 %v727, %v729
  %v731 = vrot.slane %v325, %v730
  %v733 = vunpack.c.l.s4 1983009808
  %v734 = vunpack.c.0.s8 %v733
  %v735 = vlaneseq
  %v736 = vshrl.u32 %v735, 7
  %v737 = vsub.s32 %v734, %v736
  %v738 = vrot.slane %v338, %v737
  %v740 = vunpack.c.l.s4 1983009808
  %v741 = vunpack.c.0.s8 %v740
  %v742 = vlaneseq
  %v743 = vshrl.u32 %v742, 7
  %v744 = vsub.s32 %v741, %v743
  %v745 = vrot.slane %v351, %v744
  %v747 = vunpack.c.l.s4 1983009808
  %v748 = vunpack.c.0.s8 %v747
  %v749 = vlaneseq
  %v750 = vshrl.u32 %v749, 7
  %v751 = vsub.s32 %v748, %v750
  %v752 = vrot.slane %v364, %v751
  %v754 = vunpack.c.l.s4 1983009808
  %v755 = vunpack.c.0.s8 %v754
  %v756 = vlaneseq
  %v757 = vshrl.u32 %v756, 7
  %v758 = vsub.s32 %v755, %v757
  %v759 = vrot.slane %v377, %v758
  %v761 = vunpack.c.l.s4 1983009808
  %v762 = vunpack.c.0.s8 %v761
  %v763 = vlaneseq
  %v764 = vshrl.u32 %v763, 7
  %v765 = vsub.s32 %v762, %v764
  %v766 = vrot.slane %v390, %v765
  %v768 = vunpack.c.l.s4 1983009808
  %v769 = vunpack.c.0.s8 %v768
  %v770 = vlaneseq
  %v771 = vshrl.u32 %v770, 7
  %v772 = vsub.s32 %v769, %v771
  %v773 = vrot.slane %v403, %v772
  %v775 = vunpack.c.l.s4 1983009808
  %v776 = vunpack.c.0.s8 %v775
  %v777 = vlaneseq
  %v778 = vshrl.u32 %v777, 7
  %v779 = vsub.s32 %v776, %v778
  %v780 = vrot.slane %v416, %v779
  %v782 = vunpack.c.l.s4 1983009808
  %v783 = vunpack.c.0.s8 %v782
  %v784 = vlaneseq
  %v785 = vshrl.u32 %v784, 7
  %v786 = vsub.s32 %v783, %v785
  %v787 = vrot.slane %v429, %v786
  %v789 = vunpack.c.l.s4 1983009808
  %v790 = vunpack.c.0.s8 %v789
  %v791 = vlaneseq
  %v792 = vshrl.u32 %v791, 7
  %v793 = vsub.s32 %v790, %v792
  %v794 = vrot.slane %v442, %v793
  %v796 = vunpack.c.l.s4 1983009808
  %v797 = vunpack.c.0.s8 %v796
  %v798 = vlaneseq
  %v799 = vshrl.u32 %v798, 7
  %v800 = vsub.s32 %v797, %v799
  %v801 = vrot.slane %v455, %v800
  %v803 = vunpack.c.l.s4 1983009808
  %v804 = vunpack.c.0.s8 %v803
  %v805 = vlaneseq
  %v806 = vshrl.u32 %v805, 7
  %v807 = vsub.s32 %v804, %v806
  %v808 = vrot.slane %v468, %v807
  %v810 = vunpack.c.l.s4 1983009808
  %v811 = vunpack.c.0.s8 %v810
  %v812 = vlaneseq
  %v813 = vshrl.u32 %v812, 7
  %v814 = vsub.s32 %v811, %v813
  %v815 = vrot.slane %v481, %v814
  %v817 = vunpack.c.l.s4 1983009808
  %v818 = vunpack.c.0.s8 %v817
  %v819 = vlaneseq
  %v820 = vshrl.u32 %v819, 7
  %v821 = vsub.s32 %v818, %v820
  %v822 = vrot.slane %v494, %v821
  %v824 = vunpack.c.l.s4 1983009808
  %v825 = vunpack.c.0.s8 %v824
  %v826 = vlaneseq
  %v827 = vshrl.u32 %v826, 7
  %v828 = vsub.s32 %v825, %v827
  %v829 = vrot.slane %v507, %v828
  %v831 = vunpack.c.l.s4 1983009808
  %v832 = vunpack.c.0.s8 %v831
  %v833 = vlaneseq
  %v834 = vshrl.u32 %v833, 7
  %v835 = vsub.s32 %v832, %v834
  %v836 = vrot.slane %v520, %v835
  %v838 = vunpack.c.l.s4 1983009808
  %v839 = vunpack.c.0.s8 %v838
  %v840 = vlaneseq
  %v841 = vshrl.u32 %v840, 7
  %v842 = vsub.s32 %v839, %v841
  %v843 = vrot.slane %v533, %v842
  %v845 = vunpack.c.l.s4 1983009808
  %v846 = vunpack.c.0.s8 %v845
  %v847 = vlaneseq
  %v848 = vshrl.u32 %v847, 7
  %v849 = vsub.s32 %v846, %v848
  %v850 = vrot.slane %v546, %v849
  %v852 = vunpack.c.l.s4 1983009808
  %v853 = vunpack.c.0.s8 %v852
  %v854 = vlaneseq
  %v855 = vshrl.u32 %v854, 7
  %v856 = vsub.s32 %v853, %v855
  %v857 = vrot.slane %v559, %v856
  %v859 = vunpack.c.l.s4 1983009808
  %v860 = vunpack.c.0.s8 %v859
  %v861 = vlaneseq
  %v862 = vshrl.u32 %v861, 7
  %v863 = vsub.s32 %v860, %v862
  %v864 = vrot.slane %v572, %v863
  %v866 = vunpack.c.l.s4 1983009808
  %v867 = vunpack.c.0.s8 %v866
  %v868 = vlaneseq
  %v869 = vshrl.u32 %v868, 7
  %v870 = vsub.s32 %v867, %v869
  %v871 = vrot.slane %v585, %v870
  %v873 = vunpack.c.l.s4 1983009808
  %v874 = vunpack.c.0.s8 %v873
  %v875 = vlaneseq
  %v876 = vshrl.u32 %v875, 7
  %v877 = vsub.s32 %v874, %v876
  %v878 = vrot.slane %v598, %v877
  %v880 = vunpack.c.l.s4 1983009808
  %v881 = vunpack.c.0.s8 %v880
  %v882 = vlaneseq
  %v883 = vshrl.u32 %v882, 7
  %v884 = vsub.s32 %v881, %v883
  %v885 = vrot.slane %v611, %v884
  %v887 = vunpack.c.l.s4 1983009808
  %v888 = vunpack.c.0.s8 %v887
  %v889 = vlaneseq
  %v890 = vshrl.u32 %v889, 7
  %v891 = vsub.s32 %v888, %v890
  %v892 = vrot.slane %v624, %v891
  %v894 = vunpack.c.l.s4 1983009808
  %v895 = vunpack.c.0.s8 %v894
  %v896 = vlaneseq
  %v897 = vshrl.u32 %v896, 7
  %v898 = vsub.s32 %v895, %v897
  %v899 = vrot.slane %v637, %v898
  %v901 = vunpack.c.l.s4 1983009808
  %v902 = vunpack.c.0.s8 %v901
  %v903 = vlaneseq
  %v904 = vshrl.u32 %v903, 7
  %v905 = vsub.s32 %v902, %v904
  %v906 = vrot.slane %v650, %v905
  %v908 = vunpack.c.l.s4 1983009808
  %v909 = vunpack.c.0.s8 %v908
  %v910 = vlaneseq
  %v911 = vshrl.u32 %v910, 7
  %v912 = vsub.s32 %v909, %v911
  %v913 = vrot.slane %v689, %v912
  %v915 = vunpack.c.l.s4 1983009808
  %v916 = vunpack.c.0.s8 %v915
  %v917 = vlaneseq
  %v918 = vshrl.u32 %v917, 7
  %v919 = vsub.s32 %v916, %v918
  %v920 = vrot.slane %v696, %v919
  %v922 = vunpack.c.l.s4 1983009808
  %v923 = vunpack.c.0.s8 %v922
  %v924 = vlaneseq
  %v925 = vshrl.u32 %v924, 7
  %v926 = vsub.s32 %v923, %v925
  %v927 = vrot.slane %v703, %v926
  %v929 = vunpack.c.l.s4 1983009808
  %v930 = vunpack.c.0.s8 %v929
  %v931 = vlaneseq
  %v932 = vshrl.u32 %v931, 7
  %v933 = vsub.s32 %v930, %v932
  %v934 = vrot.slane %v710, %v933
  %v936 = vunpack.c.l.s4 1983009808
  %v937 = vunpack.c.0.s8 %v936
  %v938 = vlaneseq
  %v939 = vshrl.u32 %v938, 7
  %v940 = vsub.s32 %v937, %v939
  %v941 = vrot.slane %v717, %v940
  %v943 = vunpack.c.l.s4 1983009808
  %v944 = vunpack.c.0.s8 %v943
  %v945 = vlaneseq
  %v946 = vshrl.u32 %v945, 7
  %v947 = vsub.s32 %v944, %v946
  %v948 = vrot.slane %v724, %v947
  %v950 = vunpack.c.l.s4 1983009808
  %v951 = vunpack.c.0.s8 %v950
  %v952 = vlaneseq
  %v953 = vshrl.u32 %v952, 7
  %v954 = vsub.s32 %v951, %v953
  %v955 = vrot.slane %v731, %v954
  %v957 = vunpack.c.l.s4 1983009808
  %v958 = vunpack.c.0.s8 %v957
  %v959 = vlaneseq
  %v960 = vshrl.u32 %v959, 7
  %v961 = vsub.s32 %v958, %v960
  %v962 = vrot.slane %v738, %v961
  %v964 = vunpack.c.l.s4 1983009808
  %v965 = vunpack.c.0.s8 %v964
  %v966 = vlaneseq
  %v967 = vshrl.u32 %v966, 7
  %v968 = vsub.s32 %v965, %v967
  %v969 = vrot.slane %v745, %v968
  %v971 = vunpack.c.l.s4 1983009808
  %v972 = vunpack.c.0.s8 %v971
  %v973 = vlaneseq
  %v974 = vshrl.u32 %v973, 7
  %v975 = vsub.s32 %v972, %v974
  %v976 = vrot.slane %v752, %v975
  %v978 = vunpack.c.l.s4 1983009808
  %v979 = vunpack.c.0.s8 %v978
  %v980 = vlaneseq
  %v981 = vshrl.u32 %v980, 7
  %v982 = vsub.s32 %v979, %v981
  %v983 = vrot.slane %v759, %v982
  %v985 = vunpack.c.l.s4 1983009808
  %v986 = vunpack.c.0.s8 %v985
  %v987 = vlaneseq
  %v988 = vshrl.u32 %v987, 7
  %v989 = vsub.s32 %v986, %v988
  %v990 = vrot.slane %v766, %v989
  %v992 = vunpack.c.l.s4 1983009808
  %v993 = vunpack.c.0.s8 %v992
  %v994 = vlaneseq
  %v995 = vshrl.u32 %v994, 7
  %v996 = vsub.s32 %v993, %v995
  %v997 = vrot.slane %v773, %v996
  %v999 = vunpack.c.l.s4 1983009808
  %v1000 = vunpack.c.0.s8 %v999
  %v1001 = vlaneseq
  %v1002 = vshrl.u32 %v1001, 7
  %v1003 = vsub.s32 %v1000, %v1002
  %v1004 = vrot.slane %v780, %v1003
  %v1006 = vunpack.c.l.s4 1983009808
  %v1007 = vunpack.c.0.s8 %v1006
  %v1008 = vlaneseq
  %v1009 = vshrl.u32 %v1008, 7
  %v1010 = vsub.s32 %v1007, %v1009
  %v1011 = vrot.slane %v787, %v1010
  %v1013 = vunpack.c.l.s4 1983009808
  %v1014 = vunpack.c.0.s8 %v1013
  %v1015 = vlaneseq
  %v1016 = vshrl.u32 %v1015, 7
  %v1017 = vsub.s32 %v1014, %v1016
  %v1018 = vrot.slane %v794, %v1017
  %v1020 = vunpack.c.l.s4 1983009808
  %v1021 = vunpack.c.0.s8 %v1020
  %v1022 = vlaneseq
  %v1023 = vshrl.u32 %v1022, 7
  %v1024 = vsub.s32 %v1021, %v1023
  %v1025 = vrot.slane %v801, %v1024
  %v1027 = vunpack.c.l.s4 1983009808
  %v1028 = vunpack.c.0.s8 %v1027
  %v1029 = vlaneseq
  %v1030 = vshrl.u32 %v1029, 7
  %v1031 = vsub.s32 %v1028, %v1030
  %v1032 = vrot.slane %v808, %v1031
  %v1034 = vunpack.c.l.s4 1983009808
  %v1035 = vunpack.c.0.s8 %v1034
  %v1036 = vlaneseq
  %v1037 = vshrl.u32 %v1036, 7
  %v1038 = vsub.s32 %v1035, %v1037
  %v1039 = vrot.slane %v815, %v1038
  %v1041 = vunpack.c.l.s4 1983009808
  %v1042 = vunpack.c.0.s8 %v1041
  %v1043 = vlaneseq
  %v1044 = vshrl.u32 %v1043, 7
  %v1045 = vsub.s32 %v1042, %v1044
  %v1046 = vrot.slane %v822, %v1045
  %v1048 = vunpack.c.l.s4 1983009808
  %v1049 = vunpack.c.0.s8 %v1048
  %v1050 = vlaneseq
  %v1051 = vshrl.u32 %v1050, 7
  %v1052 = vsub.s32 %v1049, %v1051
  %v1053 = vrot.slane %v829, %v1052
  %v1055 = vunpack.c.l.s4 1983009808
  %v1056 = vunpack.c.0.s8 %v1055
  %v1057 = vlaneseq
  %v1058 = vshrl.u32 %v1057, 7
  %v1059 = vsub.s32 %v1056, %v1058
  %v1060 = vrot.slane %v836, %v1059
  %v1062 = vunpack.c.l.s4 1983009808
  %v1063 = vunpack.c.0.s8 %v1062
  %v1064 = vlaneseq
  %v1065 = vshrl.u32 %v1064, 7
  %v1066 = vsub.s32 %v1063, %v1065
  %v1067 = vrot.slane %v843, %v1066
  %v1069 = vunpack.c.l.s4 1983009808
  %v1070 = vunpack.c.0.s8 %v1069
  %v1071 = vlaneseq
  %v1072 = vshrl.u32 %v1071, 7
  %v1073 = vsub.s32 %v1070, %v1072
  %v1074 = vrot.slane %v850, %v1073
  %v1076 = vunpack.c.l.s4 1983009808
  %v1077 = vunpack.c.0.s8 %v1076
  %v1078 = vlaneseq
  %v1079 = vshrl.u32 %v1078, 7
  %v1080 = vsub.s32 %v1077, %v1079
  %v1081 = vrot.slane %v857, %v1080
  %v1083 = vunpack.c.l.s4 1983009808
  %v1084 = vunpack.c.0.s8 %v1083
  %v1085 = vlaneseq
  %v1086 = vshrl.u32 %v1085, 7
  %v1087 = vsub.s32 %v1084, %v1086
  %v1088 = vrot.slane %v864, %v1087
  %v1090 = vunpack.c.l.s4 1983009808
  %v1091 = vunpack.c.0.s8 %v1090
  %v1092 = vlaneseq
  %v1093 = vshrl.u32 %v1092, 7
  %v1094 = vsub.s32 %v1091, %v1093
  %v1095 = vrot.slane %v871, %v1094
  %v1097 = vunpack.c.l.s4 1983009808
  %v1098 = vunpack.c.0.s8 %v1097
  %v1099 = vlaneseq
  %v1100 = vshrl.u32 %v1099, 7
  %v1101 = vsub.s32 %v1098, %v1100
  %v1102 = vrot.slane %v878, %v1101
  %v1104 = vunpack.c.l.s4 1983009808
  %v1105 = vunpack.c.0.s8 %v1104
  %v1106 = vlaneseq
  %v1107 = vshrl.u32 %v1106, 7
  %v1108 = vsub.s32 %v1105, %v1107
  %v1109 = vrot.slane %v885, %v1108
  %v1111 = vunpack.c.l.s4 1983009808
  %v1112 = vunpack.c.0.s8 %v1111
  %v1113 = vlaneseq
  %v1114 = vshrl.u32 %v1113, 7
  %v1115 = vsub.s32 %v1112, %v1114
  %v1116 = vrot.slane %v892, %v1115
  %v1118 = vunpack.c.l.s4 1983009808
  %v1119 = vunpack.c.0.s8 %v1118
  %v1120 = vlaneseq
  %v1121 = vshrl.u32 %v1120, 7
  %v1122 = vsub.s32 %v1119, %v1121
  %v1123 = vrot.slane %v899, %v1122
  %v1125 = vunpack.c.l.s4 1983009808
  %v1126 = vunpack.c.0.s8 %v1125
  %v1127 = vlaneseq
  %v1128 = vshrl.u32 %v1127, 7
  %v1129 = vsub.s32 %v1126, %v1128
  %v1130 = vrot.slane %v906, %v1129
  %v1131 = vunpack.c.l.b16 %v913
  %v1132 = vunpack.c.l.b16 %v920
  %v1133 = vunpack.c.l.b16 %v927
  %v1134 = vunpack.c.l.b16 %v934
  %v1135 = vunpack.c.l.b16 %v941
  %v1136 = vunpack.c.l.b16 %v948
  %v1137 = vunpack.c.l.b16 %v955
  %v1138 = vunpack.c.l.b16 %v962
  %v1139 = vunpack.c.l.b16 %v969
  %v1140 = vunpack.c.l.b16 %v976
  %v1141 = vunpack.c.l.b16 %v983
  %v1142 = vunpack.c.l.b16 %v990
  %v1143 = vunpack.c.l.b16 %v997
  %v1144 = vunpack.c.l.b16 %v1004
  %v1145 = vunpack.c.l.b16 %v1011
  %v1146 = vunpack.c.l.b16 %v1018
  %v1147 = vunpack.c.l.b16 %v1025
  %v1148 = vunpack.c.l.b16 %v1032
  %v1149 = vunpack.c.l.b16 %v1039
  %v1150 = vunpack.c.l.b16 %v1046
  %v1151 = vunpack.c.l.b16 %v1053
  %v1152 = vunpack.c.l.b16 %v1060
  %v1153 = vunpack.c.l.b16 %v1067
  %v1154 = vunpack.c.l.b16 %v1074
  %v1155 = vunpack.c.l.b16 %v1081
  %v1156 = vunpack.c.l.b16 %v1088
  %v1157 = vunpack.c.l.b16 %v1095
  %v1158 = vunpack.c.l.b16 %v1102
  %v1159 = vunpack.c.l.b16 %v1109
  %v1160 = vunpack.c.l.b16 %v1116
  %v1161 = vunpack.c.l.b16 %v1123
  %v1162 = vunpack.c.l.b16 %v1130
  %v1163 = vrot.slane %v1132, 7
  %vm1164 = vcmask 1041409
  %v1165 = vsel %vm1164, %v1163, %v1131
  %v1166 = vrot.slane %v1133, 6
  %vm1167 = vcmask 1042434
  %v1168 = vsel %vm1167, %v1166, %v1165
  %v1169 = vrot.slane %v1134, 5
  %vm1170 = vcmask 1043459
  %v1171 = vsel %vm1170, %v1169, %v1168
  %v1172 = vrot.slane %v1136, 7
  %v1173 = vsel %vm1164, %v1172, %v1135
  %v1174 = vrot.slane %v1137, 6
  %v1175 = vsel %vm1167, %v1174, %v1173
  %v1176 = vrot.slane %v1138, 5
  %v1177 = vsel %vm1170, %v1176, %v1175
  %v1178 = vrot.slane %v1140, 7
  %v1179 = vsel %vm1164, %v1178, %v1139
  %v1180 = vrot.slane %v1141, 6
  %v1181 = vsel %vm1167, %v1180, %v1179
  %v1182 = vrot.slane %v1142, 5
  %v1183 = vsel %vm1170, %v1182, %v1181
  %v1184 = vrot.slane %v1144, 7
  %v1185 = vsel %vm1164, %v1184, %v1143
  %v1186 = vrot.slane %v1145, 6
  %v1187 = vsel %vm1167, %v1186, %v1185
  %v1188 = vrot.slane %v1146, 5
  %v1189 = vsel %vm1170, %v1188, %v1187
  %v1190 = vrot.slane %v1148, 7
  %v1191 = vsel %vm1164, %v1190, %v1147
  %v1192 = vrot.slane %v1149, 6
  %v1193 = vsel %vm1167, %v1192, %v1191
  %v1194 = vrot.slane %v1150, 5
  %v1195 = vsel %vm1170, %v1194, %v1193
  %v1196 = vrot.slane %v1152, 7
  %v1197 = vsel %vm1164, %v1196, %v1151
  %v1198 = vrot.slane %v1153, 6
  %v1199 = vsel %vm1167, %v1198, %v1197
  %v1200 = vrot.slane %v1154, 5
  %v1201 = vsel %vm1170, %v1200, %v1199
  %v1202 = vrot.slane %v1156, 7
  %v1203 = vsel %vm1164, %v1202, %v1155
  %v1204 = vrot.slane %v1157, 6
  %v1205 = vsel %vm1167, %v1204, %v1203
  %v1206 = vrot.slane %v1158, 5
  %v1207 = vsel %vm1170, %v1206, %v1205
  %v1208 = vrot.slane %v1160, 7
  %v1209 = vsel %vm1164, %v1208, %v1159
  %v1210 = vrot.slane %v1161, 6
  %v1211 = vsel %vm1167, %v1210, %v1209
  %v1212 = vrot.slane %v1162, 5
  %v1213 = vsel %vm1170, %v1212, %v1211
  %v1214 = vpack.c.b16 %v1171, %v1171
  %v1215 = vpack.c.b16 %v1177, %v1177
  %v1216 = vpack.c.b16 %v1183, %v1183
  %v1217 = vpack.c.b16 %v1189, %v1189
  %v1218 = vpack.c.b16 %v1195, %v1195
  %v1219 = vpack.c.b16 %v1201, %v1201
  %v1220 = vpack.c.b16 %v1207, %v1207
  %v1221 = vpack.c.b16 %v1213, %v1213
  %v1223 = vunpack.c.l.s4 1983009808
  %v1224 = vunpack.c.0.s8 %v1223
  %v1225 = vlaneseq
  %v1226 = vshrl.u32 %v1225, 7
  %v1227 = vsub.s32 %v1224, %v1226
  %v1228 = vrot.slane %v1214, %v1227
  %v1230 = vunpack.c.l.s4 1983009808
  %v1231 = vunpack.c.0.s8 %v1230
  %v1232 = vlaneseq
  %v1233 = vshrl.u32 %v1232, 7
  %v1234 = vsub.s32 %v1231, %v1233
  %v1235 = vrot.slane %v1215, %v1234
  %v1237 = vunpack.c.l.s4 1983009808
  %v1238 = vunpack.c.0.s8 %v1237
  %v1239 = vlaneseq
  %v1240 = vshrl.u32 %v1239, 7
  %v1241 = vsub.s32 %v1238, %v1240
  %v1242 = vrot.slane %v1216, %v1241
  %v1244 = vunpack.c.l.s4 1983009808
  %v1245 = vunpack.c.0.s8 %v1244
  %v1246 = vlaneseq
  %v1247 = vshrl.u32 %v1246, 7
  %v1248 = vsub.s32 %v1245, %v1247
  %v1249 = vrot.slane %v1217, %v1248
  %v1251 = vunpack.c.l.s4 1983009808
  %v1252 = vunpack.c.0.s8 %v1251
  %v1253 = vlaneseq
  %v1254 = vshrl.u32 %v1253, 7
  %v1255 = vsub.s32 %v1252, %v1254
  %v1256 = vrot.slane %v1218, %v1255
  %v1258 = vunpack.c.l.s4 1983009808
  %v1259 = vunpack.c.0.s8 %v1258
  %v1260 = vlaneseq
  %v1261 = vshrl.u32 %v1260, 7
  %v1262 = vsub.s32 %v1259, %v1261
  %v1263 = vrot.slane %v1219, %v1262
  %v1265 = vunpack.c.l.s4 1983009808
  %v1266 = vunpack.c.0.s8 %v1265
  %v1267 = vlaneseq
  %v1268 = vshrl.u32 %v1267, 7
  %v1269 = vsub.s32 %v1266, %v1268
  %v1270 = vrot.slane %v1220, %v1269
  %v1272 = vunpack.c.l.s4 1983009808
  %v1273 = vunpack.c.0.s8 %v1272
  %v1274 = vlaneseq
  %v1275 = vshrl.u32 %v1274, 7
  %v1276 = vsub.s32 %v1273, %v1275
  %v1277 = vrot.slane %v1221, %v1276
  %1286 = vst [vmem:[%s1] sm:$0x3] %v1228
  %1287 = vst [vmem:[%s1 + $0x2] sm:$0x3] %v1235
  %1288 = vst [vmem:[%s1 + $0x4] sm:$0x3] %v1242
  %1289 = vst [vmem:[%s1 + $0x6] sm:$0x3] %v1249
  %1290 = vst [vmem:[%s1 + $0x8] sm:$0x3] %v1256
  %1291 = vst [vmem:[%s1 + $0xa] sm:$0x3] %v1263
  %1292 = vst [vmem:[%s1 + $0xc] sm:$0x3] %v1270
  %1293 = vst [vmem:[%s1 + $0xe] sm:$0x3] %v1277
  // Predicated region
  $region6: #{simple_net_forward.8} parent=0 // pred_check
    _
  $region7: #{simple_net_forward.8} parent=0 // pred_check_branch
    %1295 = sbr.rel (0) target = $region9
  $region8: #{simple_net_forward.8} parent=0 // pred_region
    _
  $region9: #{simple_net_forward.8} parent=0 // pred_fallthru
    _
  // Predicated region
  $region10: #{simple_net_forward.8} parent=0 // pred_check
    _
  $region11: #{simple_net_forward.8} parent=0 // pred_check_branch
    %1297 = sbr.rel (0) target = $region13
  $region12: #{simple_net_forward.8} parent=0 // pred_region
    _
  $region13: #{simple_net_forward.8} parent=0 // pred_fallthru
    _

// kernel: simple_net_forward.9
$region0: #{simple_net_forward.9}
  #allocation0 [shape = 'u32[]', space=smem, size = 0x4, offset = 0x4, fixed_abs, tag = 'smem constant byte address 0x4 - core index']
  #allocation1 [shape = 'u32[144,128]{1,0:T(1,128)}', space=vmem, size = 0x12000, scoped, tag = 'internal scratch']
  %s0 = inlined_call_operand.vmem [shape: bf16[2,800], index: 0, kind: input, shape index: {}]
  %s1 = inlined_call_operand.vmem [shape: bf16[800,512], index: 1, kind: input, shape index: {}]
  %s2 = inlined_call_operand.vmem [shape: f32[1,512], index: 2, kind: input, shape index: {}]
  %s3 = inlined_call_operand.vmem [shape: bf16[512,128], index: 3, kind: input, shape index: {}]
  %s4 = inlined_call_operand.vmem [shape: f32[1,128], index: 4, kind: input, shape index: {}]
  %s5 = inlined_call_operand.hbm [shape: f32[2,128], index: 5, kind: output, shape index: {}]
  %s6 = sld [smem:[#allocation0]]
  $region30: #{simple_net_forward.9} parent=0
    _
  %s8 = ssub.s32 1, %s6
  %s9 = scalar_select 0, %s8, %s6
  $region1: #{simple_net_forward.9} parent=0
    #allocation2 [shape = 'u8[1024]{0}', space=vmem, size = 0x400, scoped, tag = 'output window, operand 0, single buffered']
    #allocation3 [shape = 's32[1]{0}', space=sflag, size = 0x4, scoped, tag = 'scoped memory for simple_net_forward.9']
    %10 = vsyncpa [#allocation3], 0
    // Predicated region
    $region2: #{simple_net_forward.9} parent=1 // pred_check
      _
    $region3: #{simple_net_forward.9} parent=1 // pred_check_branch
      %12 = sbr.rel (0) target = $region5
    $region4: #{simple_net_forward.9} parent=1 // pred_region
      _
    $region5: #{simple_net_forward.9} parent=1 // pred_fallthru
      _
    // Predicated region
    $region6: #{simple_net_forward.9} parent=1 // pred_check
      _
    $region7: #{simple_net_forward.9} parent=1 // pred_check_branch
      %14 = sbr.rel (0) target = $region9
    $region8: #{simple_net_forward.9} parent=1 // pred_region
      _
    $region9: #{simple_net_forward.9} parent=1 // pred_fallthru
      _
    // Predicated region
    $region10: #{simple_net_forward.9} parent=1 // pred_check
      _
    $region11: #{simple_net_forward.9} parent=1 // pred_check_branch
      %16 = sbr.rel (0) target = $region13
    $region12: #{simple_net_forward.9} parent=1 // pred_region
      _
    $region13: #{simple_net_forward.9} parent=1 // pred_fallthru
      _
    // Predicated region
    $region14: #{simple_net_forward.9} parent=1 // pred_check
      _
    $region15: #{simple_net_forward.9} parent=1 // pred_check_branch
      %18 = sbr.rel (0) target = $region17
    $region16: #{simple_net_forward.9} parent=1 // pred_region
      _
    $region17: #{simple_net_forward.9} parent=1 // pred_fallthru
      _
    // Predicated region
    $region18: #{simple_net_forward.9} parent=1 // pred_check
      _
    $region19: #{simple_net_forward.9} parent=1 // pred_check_branch
      %20 = sbr.rel (0) target = $region21
    $region20: #{simple_net_forward.9} parent=1 // pred_region
      _
    $region21: #{simple_net_forward.9} parent=1 // pred_fallthru
      _
    %v22 = vld [vmem:[%s0] sm:$0x7f]
    %v23 = vld [vmem:[%s1] sm:$0xff]
    %v24 = vld [vmem:[%s1 + $0x8] sm:$0xff]
    %v25 = vld [vmem:[%s1 + $0x10] sm:$0xff]
    %v26 = vld [vmem:[%s1 + $0x18] sm:$0xff]
    %v27 = vld [vmem:[%s1 + $0x20] sm:$0xff]
    %v28 = vld [vmem:[%s1 + $0x28] sm:$0xff]
    %v29 = vld [vmem:[%s1 + $0x30] sm:$0xff]
    %v30 = vld [vmem:[%s1 + $0x38] sm:$0xff]
    %v31 = vld [vmem:[%s1 + $0x40] sm:$0xff]
    %v32 = vld [vmem:[%s1 + $0x48] sm:$0xff]
    %v33 = vld [vmem:[%s1 + $0x50] sm:$0xff]
    %v34 = vld [vmem:[%s1 + $0x58] sm:$0xff]
    %v35 = vld [vmem:[%s1 + $0x60] sm:$0xff]
    %v36 = vld [vmem:[%s1 + $0x68] sm:$0xff]
    %v37 = vld [vmem:[%s1 + $0x70] sm:$0xff]
    %v38 = vld [vmem:[%s1 + $0x78] sm:$0xff]
    %v39 = vld [vmem:[%s1 + $0x80] sm:$0xff]
    %v40 = vld [vmem:[%s1 + $0x88] sm:$0xff]
    %v41 = vld [vmem:[%s1 + $0x90] sm:$0xff]
    %v42 = vld [vmem:[%s1 + $0x98] sm:$0xff]
    %v43 = vld [vmem:[%s1 + $0xa0] sm:$0xff]
    %v44 = vld [vmem:[%s1 + $0xa8] sm:$0xff]
    %v45 = vld [vmem:[%s1 + $0xb0] sm:$0xff]
    %v46 = vld [vmem:[%s1 + $0xb8] sm:$0xff]
    %v47 = vld [vmem:[%s1 + $0xc0] sm:$0xff]
    %v48 = vld [vmem:[%s1 + $0xc8] sm:$0xff]
    %v49 = vld [vmem:[%s1 + $0xd0] sm:$0xff]
    %v50 = vld [vmem:[%s1 + $0xd8] sm:$0xff]
    %v51 = vld [vmem:[%s1 + $0xe0] sm:$0xff]
    %v52 = vld [vmem:[%s1 + $0xe8] sm:$0xff]
    %v53 = vld [vmem:[%s1 + $0xf0] sm:$0xff]
    %v54 = vld [vmem:[%s1 + $0xf8] sm:$0xff]
    %v55 = vld [vmem:[%s1 + $0x100] sm:$0xff]
    %v56 = vld [vmem:[%s1 + $0x108] sm:$0xff]
    %v57 = vld [vmem:[%s1 + $0x110] sm:$0xff]
    %v58 = vld [vmem:[%s1 + $0x118] sm:$0xff]
    %v59 = vld [vmem:[%s1 + $0x120] sm:$0xff]
    %v60 = vld [vmem:[%s1 + $0x128] sm:$0xff]
    %v61 = vld [vmem:[%s1 + $0x130] sm:$0xff]
    %v62 = vld [vmem:[%s1 + $0x138] sm:$0xff]
    %v63 = vld [vmem:[%s1 + $0x140] sm:$0xff]
    %v64 = vld [vmem:[%s1 + $0x148] sm:$0xff]
    %v65 = vld [vmem:[%s1 + $0x150] sm:$0xff]
    %v66 = vld [vmem:[%s1 + $0x158] sm:$0xff]
    %v67 = vld [vmem:[%s1 + $0x160] sm:$0xff]
    %v68 = vld [vmem:[%s1 + $0x168] sm:$0xff]
    %v69 = vld [vmem:[%s1 + $0x170] sm:$0xff]
    %v70 = vld [vmem:[%s1 + $0x178] sm:$0xff]
    %v71 = vld [vmem:[%s1 + $0x180] sm:$0xff]
    %v72 = vld [vmem:[%s1 + $0x188] sm:$0xff]
    %v73 = vld [vmem:[%s1 + $0x190] sm:$0xff]
    %v74 = vld [vmem:[%s1 + $0x198] sm:$0xff]
    %v75 = vld [vmem:[%s1 + $0x1a0] sm:$0xff]
    %v76 = vld [vmem:[%s1 + $0x1a8] sm:$0xff]
    %v77 = vld [vmem:[%s1 + $0x1b0] sm:$0xff]
    %v78 = vld [vmem:[%s1 + $0x1b8] sm:$0xff]
    %v79 = vld [vmem:[%s1 + $0x1c0] sm:$0xff]
    %v80 = vld [vmem:[%s1 + $0x1c8] sm:$0xff]
    %v81 = vld [vmem:[%s1 + $0x1d0] sm:$0xff]
    %v82 = vld [vmem:[%s1 + $0x1d8] sm:$0xff]
    %v83 = vld [vmem:[%s1 + $0x1e0] sm:$0xff]
    %v84 = vld [vmem:[%s1 + $0x1e8] sm:$0xff]
    %v85 = vld [vmem:[%s1 + $0x1f0] sm:$0xff]
    %v86 = vld [vmem:[%s1 + $0x1f8] sm:$0xff]
    %v87 = vld [vmem:[%s1 + $0x200] sm:$0xff]
    %v88 = vld [vmem:[%s1 + $0x208] sm:$0xff]
    %v89 = vld [vmem:[%s1 + $0x210] sm:$0xff]
    %v90 = vld [vmem:[%s1 + $0x218] sm:$0xff]
    %v91 = vld [vmem:[%s1 + $0x220] sm:$0xff]
    %v92 = vld [vmem:[%s1 + $0x228] sm:$0xff]
    %v93 = vld [vmem:[%s1 + $0x230] sm:$0xff]
    %v94 = vld [vmem:[%s1 + $0x238] sm:$0xff]
    %v95 = vld [vmem:[%s1 + $0x240] sm:$0xff]
    %v96 = vld [vmem:[%s1 + $0x248] sm:$0xff]
    %v97 = vld [vmem:[%s1 + $0x250] sm:$0xff]
    %v98 = vld [vmem:[%s1 + $0x258] sm:$0xff]
    %v99 = vld [vmem:[%s1 + $0x260] sm:$0xff]
    %v100 = vld [vmem:[%s1 + $0x268] sm:$0xff]
    %v101 = vld [vmem:[%s1 + $0x270] sm:$0xff]
    %v102 = vld [vmem:[%s1 + $0x278] sm:$0xff]
    %v103 = vld [vmem:[%s1 + $0x280] sm:$0xff]
    %v104 = vld [vmem:[%s1 + $0x288] sm:$0xff]
    %v105 = vld [vmem:[%s1 + $0x290] sm:$0xff]
    %v106 = vld [vmem:[%s1 + $0x298] sm:$0xff]
    %v107 = vld [vmem:[%s1 + $0x2a0] sm:$0xff]
    %v108 = vld [vmem:[%s1 + $0x2a8] sm:$0xff]
    %v109 = vld [vmem:[%s1 + $0x2b0] sm:$0xff]
    %v110 = vld [vmem:[%s1 + $0x2b8] sm:$0xff]
    %v111 = vld [vmem:[%s1 + $0x2c0] sm:$0xff]
    %v112 = vld [vmem:[%s1 + $0x2c8] sm:$0xff]
    %v113 = vld [vmem:[%s1 + $0x2d0] sm:$0xff]
    %v114 = vld [vmem:[%s1 + $0x2d8] sm:$0xff]
    %v115 = vld [vmem:[%s1 + $0x2e0] sm:$0xff]
    %v116 = vld [vmem:[%s1 + $0x2e8] sm:$0xff]
    %v117 = vld [vmem:[%s1 + $0x2f0] sm:$0xff]
    %v118 = vld [vmem:[%s1 + $0x2f8] sm:$0xff]
    %v119 = vld [vmem:[%s1 + $0x300] sm:$0xff]
    %v120 = vld [vmem:[%s1 + $0x308] sm:$0xff]
    %v121 = vld [vmem:[%s1 + $0x310] sm:$0xff]
    %v122 = vld [vmem:[%s1 + $0x318] sm:$0xff]
    %v123 = vld [vmem:[%s1 + $0x320] sm:$0xff]
    %v124 = vld [vmem:[%s1 + $0x328] sm:$0xff]
    %v125 = vld [vmem:[%s1 + $0x330] sm:$0xff]
    %v126 = vld [vmem:[%s1 + $0x338] sm:$0xff]
    %v127 = vld [vmem:[%s1 + $0x340] sm:$0xff]
    %v128 = vld [vmem:[%s1 + $0x348] sm:$0xff]
    %v129 = vld [vmem:[%s1 + $0x350] sm:$0xff]
    %v130 = vld [vmem:[%s1 + $0x358] sm:$0xff]
    %v131 = vld [vmem:[%s1 + $0x360] sm:$0xff]
    %v132 = vld [vmem:[%s1 + $0x368] sm:$0xff]
    %v133 = vld [vmem:[%s1 + $0x370] sm:$0xff]
    %v134 = vld [vmem:[%s1 + $0x378] sm:$0xff]
    %v135 = vld [vmem:[%s1 + $0x380] sm:$0xff]
    %v136 = vld [vmem:[%s1 + $0x388] sm:$0xff]
    %v137 = vld [vmem:[%s1 + $0x390] sm:$0xff]
    %v138 = vld [vmem:[%s1 + $0x398] sm:$0xff]
    %v139 = vld [vmem:[%s1 + $0x3a0] sm:$0xff]
    %v140 = vld [vmem:[%s1 + $0x3a8] sm:$0xff]
    %v141 = vld [vmem:[%s1 + $0x3b0] sm:$0xff]
    %v142 = vld [vmem:[%s1 + $0x3b8] sm:$0xff]
    %v143 = vld [vmem:[%s1 + $0x3c0] sm:$0xff]
    %v144 = vld [vmem:[%s1 + $0x3c8] sm:$0xff]
    %v145 = vld [vmem:[%s1 + $0x3d0] sm:$0xff]
    %v146 = vld [vmem:[%s1 + $0x3d8] sm:$0xff]
    %v147 = vld [vmem:[%s1 + $0x3e0] sm:$0xff]
    %v148 = vld [vmem:[%s1 + $0x3e8] sm:$0xff]
    %v149 = vld [vmem:[%s1 + $0x3f0] sm:$0xff]
    %v150 = vld [vmem:[%s1 + $0x3f8] sm:$0xff]
    %v151 = vld [vmem:[%s1 + $0x400] sm:$0xff]
    %v152 = vld [vmem:[%s1 + $0x408] sm:$0xff]
    %v153 = vld [vmem:[%s1 + $0x410] sm:$0xff]
    %v154 = vld [vmem:[%s1 + $0x418] sm:$0xff]
    %v155 = vld [vmem:[%s1 + $0x420] sm:$0xff]
    %v156 = vld [vmem:[%s1 + $0x428] sm:$0xff]
    %v157 = vld [vmem:[%s1 + $0x430] sm:$0xff]
    %v158 = vld [vmem:[%s1 + $0x438] sm:$0xff]
    %v159 = vld [vmem:[%s1 + $0x440] sm:$0xff]
    %v160 = vld [vmem:[%s1 + $0x448] sm:$0xff]
    %v161 = vld [vmem:[%s1 + $0x450] sm:$0xff]
    %v162 = vld [vmem:[%s1 + $0x458] sm:$0xff]
    %v163 = vld [vmem:[%s1 + $0x460] sm:$0xff]
    %v164 = vld [vmem:[%s1 + $0x468] sm:$0xff]
    %v165 = vld [vmem:[%s1 + $0x470] sm:$0xff]
    %v166 = vld [vmem:[%s1 + $0x478] sm:$0xff]
    %v167 = vld [vmem:[%s1 + $0x480] sm:$0xff]
    %v168 = vld [vmem:[%s1 + $0x488] sm:$0xff]
    %v169 = vld [vmem:[%s1 + $0x490] sm:$0xff]
    %v170 = vld [vmem:[%s1 + $0x498] sm:$0xff]
    %v171 = vld [vmem:[%s1 + $0x4a0] sm:$0xff]
    %v172 = vld [vmem:[%s1 + $0x4a8] sm:$0xff]
    %v173 = vld [vmem:[%s1 + $0x4b0] sm:$0xff]
    %v174 = vld [vmem:[%s1 + $0x4b8] sm:$0xff]
    %v175 = vld [vmem:[%s1 + $0x4c0] sm:$0xff]
    %v176 = vld [vmem:[%s1 + $0x4c8] sm:$0xff]
    %v177 = vld [vmem:[%s1 + $0x4d0] sm:$0xff]
    %v178 = vld [vmem:[%s1 + $0x4d8] sm:$0xff]
    %v179 = vld [vmem:[%s1 + $0x4e0] sm:$0xff]
    %v180 = vld [vmem:[%s1 + $0x4e8] sm:$0xff]
    %v181 = vld [vmem:[%s1 + $0x4f0] sm:$0xff]
    %v182 = vld [vmem:[%s1 + $0x4f8] sm:$0xff]
    %v183 = vld [vmem:[%s1 + $0x500] sm:$0xff]
    %v184 = vld [vmem:[%s1 + $0x508] sm:$0xff]
    %v185 = vld [vmem:[%s1 + $0x510] sm:$0xff]
    %v186 = vld [vmem:[%s1 + $0x518] sm:$0xff]
    %v187 = vld [vmem:[%s1 + $0x520] sm:$0xff]
    %v188 = vld [vmem:[%s1 + $0x528] sm:$0xff]
    %v189 = vld [vmem:[%s1 + $0x530] sm:$0xff]
    %v190 = vld [vmem:[%s1 + $0x538] sm:$0xff]
    %v191 = vld [vmem:[%s1 + $0x540] sm:$0xff]
    %v192 = vld [vmem:[%s1 + $0x548] sm:$0xff]
    %v193 = vld [vmem:[%s1 + $0x550] sm:$0xff]
    %v194 = vld [vmem:[%s1 + $0x558] sm:$0xff]
    %v195 = vld [vmem:[%s1 + $0x560] sm:$0xff]
    %v196 = vld [vmem:[%s1 + $0x568] sm:$0xff]
    %v197 = vld [vmem:[%s1 + $0x570] sm:$0xff]
    %v198 = vld [vmem:[%s1 + $0x578] sm:$0xff]
    %v199 = vld [vmem:[%s1 + $0x580] sm:$0xff]
    %v200 = vld [vmem:[%s1 + $0x588] sm:$0xff]
    %v201 = vld [vmem:[%s1 + $0x590] sm:$0xff]
    %v202 = vld [vmem:[%s1 + $0x598] sm:$0xff]
    %v203 = vld [vmem:[%s1 + $0x5a0] sm:$0xff]
    %v204 = vld [vmem:[%s1 + $0x5a8] sm:$0xff]
    %v205 = vld [vmem:[%s1 + $0x5b0] sm:$0xff]
    %v206 = vld [vmem:[%s1 + $0x5b8] sm:$0xff]
    %v207 = vld [vmem:[%s1 + $0x5c0] sm:$0xff]
    %v208 = vld [vmem:[%s1 + $0x5c8] sm:$0xff]
    %v209 = vld [vmem:[%s1 + $0x5d0] sm:$0xff]
    %v210 = vld [vmem:[%s1 + $0x5d8] sm:$0xff]
    %v211 = vld [vmem:[%s1 + $0x5e0] sm:$0xff]
    %v212 = vld [vmem:[%s1 + $0x5e8] sm:$0xff]
    %v213 = vld [vmem:[%s1 + $0x5f0] sm:$0xff]
    %v214 = vld [vmem:[%s1 + $0x5f8] sm:$0xff]
    %v215 = vld [vmem:[%s1 + $0x600] sm:$0xff]
    %v216 = vld [vmem:[%s1 + $0x608] sm:$0xff]
    %v217 = vld [vmem:[%s1 + $0x610] sm:$0xff]
    %v218 = vld [vmem:[%s1 + $0x618] sm:$0xff]
    %v219 = vld [vmem:[%s1 + $0x620] sm:$0xff]
    %v220 = vld [vmem:[%s1 + $0x628] sm:$0xff]
    %v221 = vld [vmem:[%s1 + $0x630] sm:$0xff]
    %v222 = vld [vmem:[%s1 + $0x638] sm:$0xff]
    %v223 = vld [vmem:[%s2] sm:$0xf]
    %v225 = vlaneseq
    %v226 = vshrl.u32 %v225, 7
    %v227 = vsub.s32 0, %v226
    %v228 = vrot.slane %v223, %v227
    %v229 = vlaneseq
    %v230 = vshrl.u32 %v229, 7
    %v231 = vsub.s32 1, %v230
    %v232 = vrot.slane %v223, %v231
    %v233 = vlaneseq
    %v234 = vshrl.u32 %v233, 7
    %v235 = vsub.s32 2, %v234
    %v236 = vrot.slane %v223, %v235
    %v237 = vlaneseq
    %v238 = vshrl.u32 %v237, 7
    %v239 = vsub.s32 3, %v238
    %v240 = vrot.slane %v223, %v239
    %v246 = vcombine.high %v22, %v22
    %v248 = vunpack.c.l.s4 1966171168
    %v249 = vunpack.c.0.s8 %v248
    %v250 = vlaneseq
    %v251 = vshrl.u32 %v250, 7
    %v252 = vsub.s32 %v249, %v251
    %v253 = vrot.slane %v22, %v252
    %v255 = vunpack.c.l.s4 1966171168
    %v256 = vunpack.c.0.s8 %v255
    %v257 = vlaneseq
    %v258 = vshrl.u32 %v257, 7
    %v259 = vsub.s32 %v256, %v258
    %v260 = vrot.slane %v246, %v259
    %v261 = vcombine.high %v253, %v253
    %v262 = vcombine.high %v260, %v260
    %v264 = vunpack.c.l.s4 1966171168
    %v265 = vunpack.c.0.s8 %v264
    %v266 = vlaneseq
    %v267 = vshrl.u32 %v266, 7
    %v268 = vsub.s32 %v265, %v267
    %v269 = vrot.slane %v253, %v268
    %v271 = vunpack.c.l.s4 1966171168
    %v272 = vunpack.c.0.s8 %v271
    %v273 = vlaneseq
    %v274 = vshrl.u32 %v273, 7
    %v275 = vsub.s32 %v272, %v274
    %v276 = vrot.slane %v260, %v275
    %v278 = vunpack.c.l.s4 1966171168
    %v279 = vunpack.c.0.s8 %v278
    %v280 = vlaneseq
    %v281 = vshrl.u32 %v280, 7
    %v282 = vsub.s32 %v279, %v281
    %v283 = vrot.slane %v261, %v282
    %v285 = vunpack.c.l.s4 1966171168
    %v286 = vunpack.c.0.s8 %v285
    %v287 = vlaneseq
    %v288 = vshrl.u32 %v287, 7
    %v289 = vsub.s32 %v286, %v288
    %v290 = vrot.slane %v262, %v289
    %v291 = vcombine.high %v269, %v269
    %v292 = vcombine.high %v276, %v276
    %v293 = vcombine.high %v283, %v283
    %v500 = vunpack.c.l.b16 %v23
    %v501 = vunpack.c.h.b16 %v23
    %v502 = vunpack.c.l.b16 %v24
    %v503 = vunpack.c.h.b16 %v24
    %v504 = vunpack.c.l.b16 %v25
    %v505 = vunpack.c.h.b16 %v25
    %v506 = vunpack.c.l.b16 %v26
    %v507 = vunpack.c.h.b16 %v26
    %v508 = vunpack.c.l.b16 %v27
    %v509 = vunpack.c.h.b16 %v27
    %v510 = vunpack.c.l.b16 %v28
    %v511 = vunpack.c.h.b16 %v28
    %v512 = vunpack.c.l.b16 %v29
    %v513 = vunpack.c.h.b16 %v29
    %v514 = vunpack.c.l.b16 %v30
    %v515 = vunpack.c.h.b16 %v30
    %v516 = vunpack.c.l.b16 %v31
    %v517 = vunpack.c.h.b16 %v31
    %v518 = vunpack.c.l.b16 %v32
    %v519 = vunpack.c.h.b16 %v32
    %v520 = vunpack.c.l.b16 %v33
    %v521 = vunpack.c.h.b16 %v33
    %v522 = vunpack.c.l.b16 %v34
    %v523 = vunpack.c.h.b16 %v34
    %v524 = vunpack.c.l.b16 %v35
    %v525 = vunpack.c.h.b16 %v35
    %v526 = vunpack.c.l.b16 %v36
    %v527 = vunpack.c.h.b16 %v36
    %v528 = vunpack.c.l.b16 %v37
    %v529 = vunpack.c.h.b16 %v37
    %v530 = vunpack.c.l.b16 %v38
    %v531 = vunpack.c.h.b16 %v38
    %v532 = vunpack.c.l.b16 %v39
    %v533 = vunpack.c.h.b16 %v39
    %v534 = vunpack.c.l.b16 %v40
    %v535 = vunpack.c.h.b16 %v40
    %v536 = vunpack.c.l.b16 %v41
    %v537 = vunpack.c.h.b16 %v41
    %v538 = vunpack.c.l.b16 %v42
    %v539 = vunpack.c.h.b16 %v42
    %v540 = vunpack.c.l.b16 %v43
    %v541 = vunpack.c.h.b16 %v43
    %v542 = vunpack.c.l.b16 %v44
    %v543 = vunpack.c.h.b16 %v44
    %v544 = vunpack.c.l.b16 %v45
    %v545 = vunpack.c.h.b16 %v45
    %v546 = vunpack.c.l.b16 %v46
    %v547 = vunpack.c.h.b16 %v46
    %v548 = vunpack.c.l.b16 %v47
    %v549 = vunpack.c.h.b16 %v47
    %v550 = vunpack.c.l.b16 %v48
    %v551 = vunpack.c.h.b16 %v48
    %v552 = vunpack.c.l.b16 %v49
    %v553 = vunpack.c.h.b16 %v49
    %v554 = vunpack.c.l.b16 %v50
    %v555 = vunpack.c.h.b16 %v50
    %v556 = vunpack.c.l.b16 %v51
    %v557 = vunpack.c.h.b16 %v51
    %v558 = vunpack.c.l.b16 %v52
    %v559 = vunpack.c.h.b16 %v52
    %v560 = vunpack.c.l.b16 %v53
    %v561 = vunpack.c.h.b16 %v53
    %v562 = vunpack.c.l.b16 %v54
    %v563 = vunpack.c.h.b16 %v54
    %v564 = vunpack.c.l.b16 %v55
    %v565 = vunpack.c.h.b16 %v55
    %v566 = vunpack.c.l.b16 %v56
    %v567 = vunpack.c.h.b16 %v56
    %v568 = vunpack.c.l.b16 %v57
    %v569 = vunpack.c.h.b16 %v57
    %v570 = vunpack.c.l.b16 %v58
    %v571 = vunpack.c.h.b16 %v58
    %v572 = vunpack.c.l.b16 %v59
    %v573 = vunpack.c.h.b16 %v59
    %v574 = vunpack.c.l.b16 %v60
    %v575 = vunpack.c.h.b16 %v60
    %v576 = vunpack.c.l.b16 %v61
    %v577 = vunpack.c.h.b16 %v61
    %v578 = vunpack.c.l.b16 %v62
    %v579 = vunpack.c.h.b16 %v62
    %v580 = vunpack.c.l.b16 %v63
    %v581 = vunpack.c.h.b16 %v63
    %v582 = vunpack.c.l.b16 %v64
    %v583 = vunpack.c.h.b16 %v64
    %v584 = vunpack.c.l.b16 %v65
    %v585 = vunpack.c.h.b16 %v65
    %v586 = vunpack.c.l.b16 %v66
    %v587 = vunpack.c.h.b16 %v66
    %v588 = vunpack.c.l.b16 %v67
    %v589 = vunpack.c.h.b16 %v67
    %v590 = vunpack.c.l.b16 %v68
    %v591 = vunpack.c.h.b16 %v68
    %v592 = vunpack.c.l.b16 %v69
    %v593 = vunpack.c.h.b16 %v69
    %v594 = vunpack.c.l.b16 %v70
    %v595 = vunpack.c.h.b16 %v70
    %v596 = vunpack.c.l.b16 %v71
    %v597 = vunpack.c.h.b16 %v71
    %v598 = vunpack.c.l.b16 %v72
    %v599 = vunpack.c.h.b16 %v72
    %v600 = vunpack.c.l.b16 %v73
    %v601 = vunpack.c.h.b16 %v73
    %v602 = vunpack.c.l.b16 %v74
    %v603 = vunpack.c.h.b16 %v74
    %v604 = vunpack.c.l.b16 %v75
    %v605 = vunpack.c.h.b16 %v75
    %v606 = vunpack.c.l.b16 %v76
    %v607 = vunpack.c.h.b16 %v76
    %v608 = vunpack.c.l.b16 %v77
    %v609 = vunpack.c.h.b16 %v77
    %v610 = vunpack.c.l.b16 %v78
    %v611 = vunpack.c.h.b16 %v78
    %v612 = vunpack.c.l.b16 %v79
    %v613 = vunpack.c.h.b16 %v79
    %v614 = vunpack.c.l.b16 %v80
    %v615 = vunpack.c.h.b16 %v80
    %v616 = vunpack.c.l.b16 %v81
    %v617 = vunpack.c.h.b16 %v81
    %v618 = vunpack.c.l.b16 %v82
    %v619 = vunpack.c.h.b16 %v82
    %v620 = vunpack.c.l.b16 %v83
    %v621 = vunpack.c.h.b16 %v83
    %v622 = vunpack.c.l.b16 %v84
    %v623 = vunpack.c.h.b16 %v84
    %v624 = vunpack.c.l.b16 %v85
    %v625 = vunpack.c.h.b16 %v85
    %v626 = vunpack.c.l.b16 %v86
    %v627 = vunpack.c.h.b16 %v86
    %v628 = vunpack.c.l.b16 %v87
    %v629 = vunpack.c.h.b16 %v87
    %v630 = vunpack.c.l.b16 %v88
    %v631 = vunpack.c.h.b16 %v88
    %v632 = vunpack.c.l.b16 %v89
    %v633 = vunpack.c.h.b16 %v89
    %v634 = vunpack.c.l.b16 %v90
    %v635 = vunpack.c.h.b16 %v90
    %v636 = vunpack.c.l.b16 %v91
    %v637 = vunpack.c.h.b16 %v91
    %v638 = vunpack.c.l.b16 %v92
    %v639 = vunpack.c.h.b16 %v92
    %v640 = vunpack.c.l.b16 %v93
    %v641 = vunpack.c.h.b16 %v93
    %v642 = vunpack.c.l.b16 %v94
    %v643 = vunpack.c.h.b16 %v94
    %v644 = vunpack.c.l.b16 %v95
    %v645 = vunpack.c.h.b16 %v95
    %v646 = vunpack.c.l.b16 %v96
    %v647 = vunpack.c.h.b16 %v96
    %v648 = vunpack.c.l.b16 %v97
    %v649 = vunpack.c.h.b16 %v97
    %v650 = vunpack.c.l.b16 %v98
    %v651 = vunpack.c.h.b16 %v98
    %v652 = vunpack.c.l.b16 %v99
    %v653 = vunpack.c.h.b16 %v99
    %v654 = vunpack.c.l.b16 %v100
    %v655 = vunpack.c.h.b16 %v100
    %v656 = vunpack.c.l.b16 %v101
    %v657 = vunpack.c.h.b16 %v101
    %v658 = vunpack.c.l.b16 %v102
    %v659 = vunpack.c.h.b16 %v102
    %v660 = vunpack.c.l.b16 %v103
    %v661 = vunpack.c.h.b16 %v103
    %v662 = vunpack.c.l.b16 %v104
    %v663 = vunpack.c.h.b16 %v104
    %v664 = vunpack.c.l.b16 %v105
    %v665 = vunpack.c.h.b16 %v105
    %v666 = vunpack.c.l.b16 %v106
    %v667 = vunpack.c.h.b16 %v106
    %v668 = vunpack.c.l.b16 %v107
    %v669 = vunpack.c.h.b16 %v107
    %v670 = vunpack.c.l.b16 %v108
    %v671 = vunpack.c.h.b16 %v108
    %v672 = vunpack.c.l.b16 %v109
    %v673 = vunpack.c.h.b16 %v109
    %v674 = vunpack.c.l.b16 %v110
    %v675 = vunpack.c.h.b16 %v110
    %v676 = vunpack.c.l.b16 %v111
    %v677 = vunpack.c.h.b16 %v111
    %v678 = vunpack.c.l.b16 %v112
    %v679 = vunpack.c.h.b16 %v112
    %v680 = vunpack.c.l.b16 %v113
    %v681 = vunpack.c.h.b16 %v113
    %v682 = vunpack.c.l.b16 %v114
    %v683 = vunpack.c.h.b16 %v114
    %v684 = vunpack.c.l.b16 %v115
    %v685 = vunpack.c.h.b16 %v115
    %v686 = vunpack.c.l.b16 %v116
    %v687 = vunpack.c.h.b16 %v116
    %v688 = vunpack.c.l.b16 %v117
    %v689 = vunpack.c.h.b16 %v117
    %v690 = vunpack.c.l.b16 %v118
    %v691 = vunpack.c.h.b16 %v118
    %v692 = vunpack.c.l.b16 %v119
    %v693 = vunpack.c.h.b16 %v119
    %v694 = vunpack.c.l.b16 %v120
    %v695 = vunpack.c.h.b16 %v120
    %v696 = vunpack.c.l.b16 %v121
    %v697 = vunpack.c.h.b16 %v121
    %v698 = vunpack.c.l.b16 %v122
    %v699 = vunpack.c.h.b16 %v122
    %v700 = vunpack.c.l.b16 %v123
    %v701 = vunpack.c.h.b16 %v123
    %v702 = vunpack.c.l.b16 %v124
    %v703 = vunpack.c.h.b16 %v124
    %v704 = vunpack.c.l.b16 %v125
    %v705 = vunpack.c.h.b16 %v125
    %v706 = vunpack.c.l.b16 %v126
    %v707 = vunpack.c.h.b16 %v126
    %v708 = vunpack.c.l.b16 %v127
    %v709 = vunpack.c.h.b16 %v127
    %v710 = vunpack.c.l.b16 %v128
    %v711 = vunpack.c.h.b16 %v128
    %v712 = vunpack.c.l.b16 %v129
    %v713 = vunpack.c.h.b16 %v129
    %v714 = vunpack.c.l.b16 %v130
    %v715 = vunpack.c.h.b16 %v130
    %v716 = vunpack.c.l.b16 %v131
    %v717 = vunpack.c.h.b16 %v131
    %v718 = vunpack.c.l.b16 %v132
    %v719 = vunpack.c.h.b16 %v132
    %v720 = vunpack.c.l.b16 %v133
    %v721 = vunpack.c.h.b16 %v133
    %v722 = vunpack.c.l.b16 %v134
    %v723 = vunpack.c.h.b16 %v134
    %v724 = vunpack.c.l.b16 %v135
    %v725 = vunpack.c.h.b16 %v135
    %v726 = vunpack.c.l.b16 %v136
    %v727 = vunpack.c.h.b16 %v136
    %v728 = vunpack.c.l.b16 %v137
    %v729 = vunpack.c.h.b16 %v137
    %v730 = vunpack.c.l.b16 %v138
    %v731 = vunpack.c.h.b16 %v138
    %v732 = vunpack.c.l.b16 %v139
    %v733 = vunpack.c.h.b16 %v139
    %v734 = vunpack.c.l.b16 %v140
    %v735 = vunpack.c.h.b16 %v140
    %v736 = vunpack.c.l.b16 %v141
    %v737 = vunpack.c.h.b16 %v141
    %v738 = vunpack.c.l.b16 %v142
    %v739 = vunpack.c.h.b16 %v142
    %v740 = vunpack.c.l.b16 %v143
    %v741 = vunpack.c.h.b16 %v143
    %v742 = vunpack.c.l.b16 %v144
    %v743 = vunpack.c.h.b16 %v144
    %v744 = vunpack.c.l.b16 %v145
    %v745 = vunpack.c.h.b16 %v145
    %v746 = vunpack.c.l.b16 %v146
    %v747 = vunpack.c.h.b16 %v146
    %v748 = vunpack.c.l.b16 %v147
    %v749 = vunpack.c.h.b16 %v147
    %v750 = vunpack.c.l.b16 %v148
    %v751 = vunpack.c.h.b16 %v148
    %v752 = vunpack.c.l.b16 %v149
    %v753 = vunpack.c.h.b16 %v149
    %v754 = vunpack.c.l.b16 %v150
    %v755 = vunpack.c.h.b16 %v150
    %v756 = vunpack.c.l.b16 %v151
    %v757 = vunpack.c.h.b16 %v151
    %v758 = vunpack.c.l.b16 %v152
    %v759 = vunpack.c.h.b16 %v152
    %v760 = vunpack.c.l.b16 %v153
    %v761 = vunpack.c.h.b16 %v153
    %v762 = vunpack.c.l.b16 %v154
    %v763 = vunpack.c.h.b16 %v154
    %v764 = vunpack.c.l.b16 %v155
    %v765 = vunpack.c.h.b16 %v155
    %v766 = vunpack.c.l.b16 %v156
    %v767 = vunpack.c.h.b16 %v156
    %v768 = vunpack.c.l.b16 %v157
    %v769 = vunpack.c.h.b16 %v157
    %v770 = vunpack.c.l.b16 %v158
    %v771 = vunpack.c.h.b16 %v158
    %v772 = vunpack.c.l.b16 %v159
    %v773 = vunpack.c.h.b16 %v159
    %v774 = vunpack.c.l.b16 %v160
    %v775 = vunpack.c.h.b16 %v160
    %v776 = vunpack.c.l.b16 %v161
    %v777 = vunpack.c.h.b16 %v161
    %v778 = vunpack.c.l.b16 %v162
    %v779 = vunpack.c.h.b16 %v162
    %v780 = vunpack.c.l.b16 %v163
    %v781 = vunpack.c.h.b16 %v163
    %v782 = vunpack.c.l.b16 %v164
    %v783 = vunpack.c.h.b16 %v164
    %v784 = vunpack.c.l.b16 %v165
    %v785 = vunpack.c.h.b16 %v165
    %v786 = vunpack.c.l.b16 %v166
    %v787 = vunpack.c.h.b16 %v166
    %v788 = vunpack.c.l.b16 %v167
    %v789 = vunpack.c.h.b16 %v167
    %v790 = vunpack.c.l.b16 %v168
    %v791 = vunpack.c.h.b16 %v168
    %v792 = vunpack.c.l.b16 %v169
    %v793 = vunpack.c.h.b16 %v169
    %v794 = vunpack.c.l.b16 %v170
    %v795 = vunpack.c.h.b16 %v170
    %v796 = vunpack.c.l.b16 %v171
    %v797 = vunpack.c.h.b16 %v171
    %v798 = vunpack.c.l.b16 %v172
    %v799 = vunpack.c.h.b16 %v172
    %v800 = vunpack.c.l.b16 %v173
    %v801 = vunpack.c.h.b16 %v173
    %v802 = vunpack.c.l.b16 %v174
    %v803 = vunpack.c.h.b16 %v174
    %v804 = vunpack.c.l.b16 %v175
    %v805 = vunpack.c.h.b16 %v175
    %v806 = vunpack.c.l.b16 %v176
    %v807 = vunpack.c.h.b16 %v176
    %v808 = vunpack.c.l.b16 %v177
    %v809 = vunpack.c.h.b16 %v177
    %v810 = vunpack.c.l.b16 %v178
    %v811 = vunpack.c.h.b16 %v178
    %v812 = vunpack.c.l.b16 %v179
    %v813 = vunpack.c.h.b16 %v179
    %v814 = vunpack.c.l.b16 %v180
    %v815 = vunpack.c.h.b16 %v180
    %v816 = vunpack.c.l.b16 %v181
    %v817 = vunpack.c.h.b16 %v181
    %v818 = vunpack.c.l.b16 %v182
    %v819 = vunpack.c.h.b16 %v182
    %v820 = vunpack.c.l.b16 %v183
    %v821 = vunpack.c.h.b16 %v183
    %v822 = vunpack.c.l.b16 %v184
    %v823 = vunpack.c.h.b16 %v184
    %v824 = vunpack.c.l.b16 %v185
    %v825 = vunpack.c.h.b16 %v185
    %v826 = vunpack.c.l.b16 %v186
    %v827 = vunpack.c.h.b16 %v186
    %v828 = vunpack.c.l.b16 %v187
    %v829 = vunpack.c.h.b16 %v187
    %v830 = vunpack.c.l.b16 %v188
    %v831 = vunpack.c.h.b16 %v188
    %v832 = vunpack.c.l.b16 %v189
    %v833 = vunpack.c.h.b16 %v189
    %v834 = vunpack.c.l.b16 %v190
    %v835 = vunpack.c.h.b16 %v190
    %v836 = vunpack.c.l.b16 %v191
    %v837 = vunpack.c.h.b16 %v191
    %v838 = vunpack.c.l.b16 %v192
    %v839 = vunpack.c.h.b16 %v192
    %v840 = vunpack.c.l.b16 %v193
    %v841 = vunpack.c.h.b16 %v193
    %v842 = vunpack.c.l.b16 %v194
    %v843 = vunpack.c.h.b16 %v194
    %v844 = vunpack.c.l.b16 %v195
    %v845 = vunpack.c.h.b16 %v195
    %v846 = vunpack.c.l.b16 %v196
    %v847 = vunpack.c.h.b16 %v196
    %v848 = vunpack.c.l.b16 %v197
    %v849 = vunpack.c.h.b16 %v197
    %v850 = vunpack.c.l.b16 %v198
    %v851 = vunpack.c.h.b16 %v198
    %v852 = vunpack.c.l.b16 %v199
    %v853 = vunpack.c.h.b16 %v199
    %v854 = vunpack.c.l.b16 %v200
    %v855 = vunpack.c.h.b16 %v200
    %v856 = vunpack.c.l.b16 %v201
    %v857 = vunpack.c.h.b16 %v201
    %v858 = vunpack.c.l.b16 %v202
    %v859 = vunpack.c.h.b16 %v202
    %v860 = vunpack.c.l.b16 %v203
    %v861 = vunpack.c.h.b16 %v203
    %v862 = vunpack.c.l.b16 %v204
    %v863 = vunpack.c.h.b16 %v204
    %v864 = vunpack.c.l.b16 %v205
    %v865 = vunpack.c.h.b16 %v205
    %v866 = vunpack.c.l.b16 %v206
    %v867 = vunpack.c.h.b16 %v206
    %v868 = vunpack.c.l.b16 %v207
    %v869 = vunpack.c.h.b16 %v207
    %v870 = vunpack.c.l.b16 %v208
    %v871 = vunpack.c.h.b16 %v208
    %v872 = vunpack.c.l.b16 %v209
    %v873 = vunpack.c.h.b16 %v209
    %v874 = vunpack.c.l.b16 %v210
    %v875 = vunpack.c.h.b16 %v210
    %v876 = vunpack.c.l.b16 %v211
    %v877 = vunpack.c.h.b16 %v211
    %v878 = vunpack.c.l.b16 %v212
    %v879 = vunpack.c.h.b16 %v212
    %v880 = vunpack.c.l.b16 %v213
    %v881 = vunpack.c.h.b16 %v213
    %v882 = vunpack.c.l.b16 %v214
    %v883 = vunpack.c.h.b16 %v214
    %v884 = vunpack.c.l.b16 %v215
    %v885 = vunpack.c.h.b16 %v215
    %v886 = vunpack.c.l.b16 %v216
    %v887 = vunpack.c.h.b16 %v216
    %v888 = vunpack.c.l.b16 %v217
    %v889 = vunpack.c.h.b16 %v217
    %v890 = vunpack.c.l.b16 %v218
    %v891 = vunpack.c.h.b16 %v218
    %v892 = vunpack.c.l.b16 %v219
    %v893 = vunpack.c.h.b16 %v219
    %v894 = vunpack.c.l.b16 %v220
    %v895 = vunpack.c.h.b16 %v220
    %v896 = vunpack.c.l.b16 %v221
    %v897 = vunpack.c.h.b16 %v221
    %v898 = vunpack.c.l.b16 %v222
    %v899 = vunpack.c.h.b16 %v222
    %v900 = vpack.c.b16 %v504, %v500
    %v901 = vpack.c.b16 %v505, %v501
    %v902 = vpack.c.b16 %v506, %v502
    %v903 = vpack.c.b16 %v507, %v503
    %v904 = vpack.c.b16 %v512, %v508
    %v905 = vpack.c.b16 %v513, %v509
    %v906 = vpack.c.b16 %v514, %v510
    %v907 = vpack.c.b16 %v515, %v511
    %v908 = vpack.c.b16 %v520, %v516
    %v909 = vpack.c.b16 %v521, %v517
    %v910 = vpack.c.b16 %v522, %v518
    %v911 = vpack.c.b16 %v523, %v519
    %v912 = vpack.c.b16 %v528, %v524
    %v913 = vpack.c.b16 %v529, %v525
    %v914 = vpack.c.b16 %v530, %v526
    %v915 = vpack.c.b16 %v531, %v527
    %v916 = vpack.c.b16 %v536, %v532
    %v917 = vpack.c.b16 %v537, %v533
    %v918 = vpack.c.b16 %v538, %v534
    %v919 = vpack.c.b16 %v539, %v535
    %v920 = vpack.c.b16 %v544, %v540
    %v921 = vpack.c.b16 %v545, %v541
    %v922 = vpack.c.b16 %v546, %v542
    %v923 = vpack.c.b16 %v547, %v543
    %v924 = vpack.c.b16 %v552, %v548
    %v925 = vpack.c.b16 %v553, %v549
    %v926 = vpack.c.b16 %v554, %v550
    %v927 = vpack.c.b16 %v555, %v551
    %v928 = vpack.c.b16 %v560, %v556
    %v929 = vpack.c.b16 %v561, %v557
    %v930 = vpack.c.b16 %v562, %v558
    %v931 = vpack.c.b16 %v563, %v559
    %v932 = vpack.c.b16 %v568, %v564
    %v933 = vpack.c.b16 %v569, %v565
    %v934 = vpack.c.b16 %v570, %v566
    %v935 = vpack.c.b16 %v571, %v567
    %v936 = vpack.c.b16 %v576, %v572
    %v937 = vpack.c.b16 %v577, %v573
    %v938 = vpack.c.b16 %v578, %v574
    %v939 = vpack.c.b16 %v579, %v575
    %v940 = vpack.c.b16 %v584, %v580
    %v941 = vpack.c.b16 %v585, %v581
    %v942 = vpack.c.b16 %v586, %v582
    %v943 = vpack.c.b16 %v587, %v583
    %v944 = vpack.c.b16 %v592, %v588
    %v945 = vpack.c.b16 %v593, %v589
    %v946 = vpack.c.b16 %v594, %v590
    %v947 = vpack.c.b16 %v595, %v591
    %v948 = vpack.c.b16 %v600, %v596
    %v949 = vpack.c.b16 %v601, %v597
    %v950 = vpack.c.b16 %v602, %v598
    %v951 = vpack.c.b16 %v603, %v599
    %v952 = vpack.c.b16 %v608, %v604
    %v953 = vpack.c.b16 %v609, %v605
    %v954 = vpack.c.b16 %v610, %v606
    %v955 = vpack.c.b16 %v611, %v607
    %v956 = vpack.c.b16 %v616, %v612
    %v957 = vpack.c.b16 %v617, %v613
    %v958 = vpack.c.b16 %v618, %v614
    %v959 = vpack.c.b16 %v619, %v615
    %v960 = vpack.c.b16 %v624, %v620
    %v961 = vpack.c.b16 %v625, %v621
    %v962 = vpack.c.b16 %v626, %v622
    %v963 = vpack.c.b16 %v627, %v623
    %v964 = vpack.c.b16 %v632, %v628
    %v965 = vpack.c.b16 %v633, %v629
    %v966 = vpack.c.b16 %v634, %v630
    %v967 = vpack.c.b16 %v635, %v631
    %v968 = vpack.c.b16 %v640, %v636
    %v969 = vpack.c.b16 %v641, %v637
    %v970 = vpack.c.b16 %v642, %v638
    %v971 = vpack.c.b16 %v643, %v639
    %v972 = vpack.c.b16 %v648, %v644
    %v973 = vpack.c.b16 %v649, %v645
    %v974 = vpack.c.b16 %v650, %v646
    %v975 = vpack.c.b16 %v651, %v647
    %v976 = vpack.c.b16 %v656, %v652
    %v977 = vpack.c.b16 %v657, %v653
    %v978 = vpack.c.b16 %v658, %v654
    %v979 = vpack.c.b16 %v659, %v655
    %v980 = vpack.c.b16 %v664, %v660
    %v981 = vpack.c.b16 %v665, %v661
    %v982 = vpack.c.b16 %v666, %v662
    %v983 = vpack.c.b16 %v667, %v663
    %v984 = vpack.c.b16 %v672, %v668
    %v985 = vpack.c.b16 %v673, %v669
    %v986 = vpack.c.b16 %v674, %v670
    %v987 = vpack.c.b16 %v675, %v671
    %v988 = vpack.c.b16 %v680, %v676
    %v989 = vpack.c.b16 %v681, %v677
    %v990 = vpack.c.b16 %v682, %v678
    %v991 = vpack.c.b16 %v683, %v679
    %v992 = vpack.c.b16 %v688, %v684
    %v993 = vpack.c.b16 %v689, %v685
    %v994 = vpack.c.b16 %v690, %v686
    %v995 = vpack.c.b16 %v691, %v687
    %v996 = vpack.c.b16 %v696, %v692
    %v997 = vpack.c.b16 %v697, %v693
    %v998 = vpack.c.b16 %v698, %v694
    %v999 = vpack.c.b16 %v699, %v695
    %v1000 = vpack.c.b16 %v704, %v700
    %v1001 = vpack.c.b16 %v705, %v701
    %v1002 = vpack.c.b16 %v706, %v702
    %v1003 = vpack.c.b16 %v707, %v703
    %v1004 = vpack.c.b16 %v712, %v708
    %v1005 = vpack.c.b16 %v713, %v709
    %v1006 = vpack.c.b16 %v714, %v710
    %v1007 = vpack.c.b16 %v715, %v711
    %v1008 = vpack.c.b16 %v720, %v716
    %v1009 = vpack.c.b16 %v721, %v717
    %v1010 = vpack.c.b16 %v722, %v718
    %v1011 = vpack.c.b16 %v723, %v719
    %v1012 = vpack.c.b16 %v728, %v724
    %v1013 = vpack.c.b16 %v729, %v725
    %v1014 = vpack.c.b16 %v730, %v726
    %v1015 = vpack.c.b16 %v731, %v727
    %v1016 = vpack.c.b16 %v736, %v732
    %v1017 = vpack.c.b16 %v737, %v733
    %v1018 = vpack.c.b16 %v738, %v734
    %v1019 = vpack.c.b16 %v739, %v735
    %v1020 = vpack.c.b16 %v744, %v740
    %v1021 = vpack.c.b16 %v745, %v741
    %v1022 = vpack.c.b16 %v746, %v742
    %v1023 = vpack.c.b16 %v747, %v743
    %v1024 = vpack.c.b16 %v752, %v748
    %v1025 = vpack.c.b16 %v753, %v749
    %v1026 = vpack.c.b16 %v754, %v750
    %v1027 = vpack.c.b16 %v755, %v751
    %v1028 = vpack.c.b16 %v760, %v756
    %v1029 = vpack.c.b16 %v761, %v757
    %v1030 = vpack.c.b16 %v762, %v758
    %v1031 = vpack.c.b16 %v763, %v759
    %v1032 = vpack.c.b16 %v768, %v764
    %v1033 = vpack.c.b16 %v769, %v765
    %v1034 = vpack.c.b16 %v770, %v766
    %v1035 = vpack.c.b16 %v771, %v767
    %v1036 = vpack.c.b16 %v776, %v772
    %v1037 = vpack.c.b16 %v777, %v773
    %v1038 = vpack.c.b16 %v778, %v774
    %v1039 = vpack.c.b16 %v779, %v775
    %v1040 = vpack.c.b16 %v784, %v780
    %v1041 = vpack.c.b16 %v785, %v781
    %v1042 = vpack.c.b16 %v786, %v782
    %v1043 = vpack.c.b16 %v787, %v783
    %v1044 = vpack.c.b16 %v792, %v788
    %v1045 = vpack.c.b16 %v793, %v789
    %v1046 = vpack.c.b16 %v794, %v790
    %v1047 = vpack.c.b16 %v795, %v791
    %v1048 = vpack.c.b16 %v800, %v796
    %v1049 = vpack.c.b16 %v801, %v797
    %v1050 = vpack.c.b16 %v802, %v798
    %v1051 = vpack.c.b16 %v803, %v799
    %v1052 = vpack.c.b16 %v808, %v804
    %v1053 = vpack.c.b16 %v809, %v805
    %v1054 = vpack.c.b16 %v810, %v806
    %v1055 = vpack.c.b16 %v811, %v807
    %v1056 = vpack.c.b16 %v816, %v812
    %v1057 = vpack.c.b16 %v817, %v813
    %v1058 = vpack.c.b16 %v818, %v814
    %v1059 = vpack.c.b16 %v819, %v815
    %v1060 = vpack.c.b16 %v824, %v820
    %v1061 = vpack.c.b16 %v825, %v821
    %v1062 = vpack.c.b16 %v826, %v822
    %v1063 = vpack.c.b16 %v827, %v823
    %v1064 = vpack.c.b16 %v832, %v828
    %v1065 = vpack.c.b16 %v833, %v829
    %v1066 = vpack.c.b16 %v834, %v830
    %v1067 = vpack.c.b16 %v835, %v831
    %v1068 = vpack.c.b16 %v840, %v836
    %v1069 = vpack.c.b16 %v841, %v837
    %v1070 = vpack.c.b16 %v842, %v838
    %v1071 = vpack.c.b16 %v843, %v839
    %v1072 = vpack.c.b16 %v848, %v844
    %v1073 = vpack.c.b16 %v849, %v845
    %v1074 = vpack.c.b16 %v850, %v846
    %v1075 = vpack.c.b16 %v851, %v847
    %v1076 = vpack.c.b16 %v856, %v852
    %v1077 = vpack.c.b16 %v857, %v853
    %v1078 = vpack.c.b16 %v858, %v854
    %v1079 = vpack.c.b16 %v859, %v855
    %v1080 = vpack.c.b16 %v864, %v860
    %v1081 = vpack.c.b16 %v865, %v861
    %v1082 = vpack.c.b16 %v866, %v862
    %v1083 = vpack.c.b16 %v867, %v863
    %v1084 = vpack.c.b16 %v872, %v868
    %v1085 = vpack.c.b16 %v873, %v869
    %v1086 = vpack.c.b16 %v874, %v870
    %v1087 = vpack.c.b16 %v875, %v871
    %v1088 = vpack.c.b16 %v880, %v876
    %v1089 = vpack.c.b16 %v881, %v877
    %v1090 = vpack.c.b16 %v882, %v878
    %v1091 = vpack.c.b16 %v883, %v879
    %v1092 = vpack.c.b16 %v888, %v884
    %v1093 = vpack.c.b16 %v889, %v885
    %v1094 = vpack.c.b16 %v890, %v886
    %v1095 = vpack.c.b16 %v891, %v887
    %v1096 = vpack.c.b16 %v896, %v892
    %v1097 = vpack.c.b16 %v897, %v893
    %v1098 = vpack.c.b16 %v898, %v894
    %v1099 = vpack.c.b16 %v899, %v895
    %vm1300 = vcmask 261120
    %v1302 = vsel %vm1300, %v292, 0
    %1304 = vmatprep.subr.bf16.mxu0 %v901
    %1305 = vmatpush1.bf16.msra.mxu0 %v900
    %1306 = vmatprep.subr.bf16.mxu0 %v905
    %1307 = vmatpush1.bf16.msra.mxu0 %v904
    %1308 = vmatprep.subr.bf16.mxu0 %v909
    %1309 = vmatpush1.bf16.msra.mxu0 %v908
    %1310 = vmatprep.subr.bf16.mxu0 %v913
    %1311 = vmatpush1.bf16.msra.mxu0 %v912
    %1312 = vmatprep.subr.bf16.mxu0 %v917
    %1313 = vmatpush1.bf16.msra.mxu0 %v916
    %1314 = vmatprep.subr.bf16.mxu0 %v921
    %1315 = vmatpush1.bf16.msra.mxu0 %v920
    %1316 = vmatprep.subr.bf16.mxu0 %v925
    %1317 = vmatpush1.bf16.msra.mxu0 %v924
    %1318 = vmatprep.subr.bf16.mxu0 %v929
    %1319 = vmatpush1.bf16.msra.mxu0 %v928
    %1320 = vmatprep.subr.bf16.mxu0 %v933
    %1321 = vmatpush1.bf16.msra.mxu0 %v932
    %1322 = vmatprep.subr.bf16.mxu0 %v937
    %1323 = vmatpush1.bf16.msra.mxu0 %v936
    %1324 = vmatprep.subr.bf16.mxu0 %v941
    %1325 = vmatpush1.bf16.msra.mxu0 %v940
    %1326 = vmatprep.subr.bf16.mxu0 %v945
    %1327 = vmatpush1.bf16.msra.mxu0 %v944
    %1328 = vmatprep.subr.bf16.mxu0 %v949
    %1329 = vmatpush1.bf16.msra.mxu0 %v948
    %1330 = vmatprep.subr.bf16.mxu0 %v953
    %1331 = vmatpush1.bf16.msra.mxu0 %v952
    %1332 = vmatprep.subr.bf16.mxu0 %v957
    %1333 = vmatpush1.bf16.msra.mxu0 %v956
    %1334 = vmatprep.subr.bf16.mxu0 %v961
    %1335 = vmatpush1.bf16.msra.mxu0 %v960
    %1336 = vmatprep.mubr.bf16.mxu0 %v283
    %1337 = vmatmul.mubr.bf16.gmra.mrb[0].mxu0 %v269
    %v1338 = vpop.f32.mrb[0].mxu0
    %v1339 = vadd.f32 %v228, %v1338
    %v1340 = vpop.f32.mrb[0].mxu0
    %v1341 = vadd.f32 %v232, %v1340
    %v1342 = vpop.f32.mrb[0].mxu0
    %v1343 = vpop.f32.mrb[0].mxu0
    %1344 = vdwg.mxu0
    %1345 = vmatprep.subr.bf16.mxu0 %v965
    %1346 = vmatpush1.bf16.msra.mxu0 %v964
    %1347 = vmatprep.subr.bf16.mxu0 %v969
    %1348 = vmatpush1.bf16.msra.mxu0 %v968
    %1349 = vmatprep.subr.bf16.mxu0 %v973
    %1350 = vmatpush1.bf16.msra.mxu0 %v972
    %1351 = vmatprep.subr.bf16.mxu0 %v977
    %1352 = vmatpush1.bf16.msra.mxu0 %v976
    %1353 = vmatprep.subr.bf16.mxu0 %v981
    %1354 = vmatpush1.bf16.msra.mxu0 %v980
    %1355 = vmatprep.subr.bf16.mxu0 %v985
    %1356 = vmatpush1.bf16.msra.mxu0 %v984
    %1357 = vmatprep.subr.bf16.mxu0 %v989
    %1358 = vmatpush1.bf16.msra.mxu0 %v988
    %1359 = vmatprep.subr.bf16.mxu0 %v993
    %1360 = vmatpush1.bf16.msra.mxu0 %v992
    %1361 = vmatprep.subr.bf16.mxu0 %v997
    %1362 = vmatpush1.bf16.msra.mxu0 %v996
    %1363 = vmatprep.subr.bf16.mxu0 %v1001
    %1364 = vmatpush1.bf16.msra.mxu0 %v1000
    %1365 = vmatprep.subr.bf16.mxu0 %v1005
    %1366 = vmatpush1.bf16.msra.mxu0 %v1004
    %1367 = vmatprep.subr.bf16.mxu0 %v1009
    %1368 = vmatpush1.bf16.msra.mxu0 %v1008
    %1369 = vmatprep.subr.bf16.mxu0 %v1013
    %1370 = vmatpush1.bf16.msra.mxu0 %v1012
    %1371 = vmatprep.subr.bf16.mxu0 %v1017
    %1372 = vmatpush1.bf16.msra.mxu0 %v1016
    %1373 = vmatprep.subr.bf16.mxu0 %v1021
    %1374 = vmatpush1.bf16.msra.mxu0 %v1020
    %1375 = vmatprep.subr.bf16.mxu0 %v1025
    %1376 = vmatpush1.bf16.msra.mxu0 %v1024
    %1377 = vmatprep.mubr.bf16.mxu0 %v293
    %1378 = vmatmul.mubr.bf16.gmra.mrb[0].mxu0 %v291
    %v1379 = vpop.f32.mrb[0].mxu0
    %v1380 = vadd.f32 %v1339, %v1379
    %v1381 = vpop.f32.mrb[0].mxu0
    %v1382 = vadd.f32 %v1341, %v1381
    %v1383 = vpop.f32.mrb[0].mxu0
    %v1384 = vpop.f32.mrb[0].mxu0
    %1385 = vdwg.mxu0
    %1386 = vmatprep.subr.bf16.mxu0 %v1029
    %1387 = vmatpush1.bf16.msra.mxu0 %v1028
    %1388 = vmatprep.subr.bf16.mxu0 %v1033
    %1389 = vmatpush1.bf16.msra.mxu0 %v1032
    %1390 = vmatprep.subr.bf16.mxu0 %v1037
    %1391 = vmatpush1.bf16.msra.mxu0 %v1036
    %1392 = vmatprep.subr.bf16.mxu0 %v1041
    %1393 = vmatpush1.bf16.msra.mxu0 %v1040
    %1394 = vmatprep.subr.bf16.mxu0 %v1045
    %1395 = vmatpush1.bf16.msra.mxu0 %v1044
    %1396 = vmatprep.subr.bf16.mxu0 %v1049
    %1397 = vmatpush1.bf16.msra.mxu0 %v1048
    %1398 = vmatprep.subr.bf16.mxu0 %v1053
    %1399 = vmatpush1.bf16.msra.mxu0 %v1052
    %1400 = vmatprep.subr.bf16.mxu0 %v1057
    %1401 = vmatpush1.bf16.msra.mxu0 %v1056
    %1402 = vmatprep.subr.bf16.mxu0 %v1061
    %1403 = vmatpush1.bf16.msra.mxu0 %v1060
    %1404 = vmatprep.subr.bf16.mxu0 %v1065
    %1405 = vmatpush1.bf16.msra.mxu0 %v1064
    %1406 = vmatprep.subr.bf16.mxu0 %v1069
    %1407 = vmatpush1.bf16.msra.mxu0 %v1068
    %1408 = vmatprep.subr.bf16.mxu0 %v1073
    %1409 = vmatpush1.bf16.msra.mxu0 %v1072
    %1410 = vmatprep.subr.bf16.mxu0 %v1077
    %1411 = vmatpush1.bf16.msra.mxu0 %v1076
    %1412 = vmatprep.subr.bf16.mxu0 %v1081
    %1413 = vmatpush1.bf16.msra.mxu0 %v1080
    %1414 = vmatprep.subr.bf16.mxu0 %v1085
    %1415 = vmatpush1.bf16.msra.mxu0 %v1084
    %1416 = vmatprep.subr.bf16.mxu0 %v1089
    %1417 = vmatpush1.bf16.msra.mxu0 %v1088
    %1418 = vmatprep.mubr.bf16.mxu0 %v290
    %1419 = vmatmul.mubr.bf16.gmra.mrb[0].mxu0 %v276
    %v1420 = vpop.f32.mrb[0].mxu0
    %v1421 = vadd.f32 %v1380, %v1420
    %v1422 = vpop.f32.mrb[0].mxu0
    %v1423 = vadd.f32 %v1382, %v1422
    %v1424 = vpop.f32.mrb[0].mxu0
    %v1425 = vpop.f32.mrb[0].mxu0
    %1426 = vdwg.mxu0
    %1427 = vmatprep.subr.bf16.mxu0 %v1093
    %1428 = vmatpush1.bf16.msra.mxu0 %v1092
    %1429 = vmatprep.subr.bf16.mxu0 %v1097
    %1430 = vmatpush1.bf16.msra.mxu0 %v1096
    %1431 = vmatprep.subr.bf16.mxu0 0
    %1432 = vmatpush1.bf16.msra.mxu0 0
    %1433 = vmatprep.subr.bf16.mxu0 0
    %1434 = vmatpush1.bf16.msra.mxu0 0
    %1435 = vmatprep.subr.bf16.mxu0 0
    %1436 = vmatpush1.bf16.msra.mxu0 0
    %1437 = vmatprep.subr.bf16.mxu0 0
    %1438 = vmatpush1.bf16.msra.mxu0 0
    %1439 = vmatprep.subr.bf16.mxu0 0
    %1440 = vmatpush1.bf16.msra.mxu0 0
    %1441 = vmatprep.subr.bf16.mxu0 0
    %1442 = vmatpush1.bf16.msra.mxu0 0
    %1443 = vmatprep.subr.bf16.mxu0 0
    %1444 = vmatpush1.bf16.msra.mxu0 0
    %1445 = vmatprep.subr.bf16.mxu0 0
    %1446 = vmatpush1.bf16.msra.mxu0 0
    %1447 = vmatprep.subr.bf16.mxu0 0
    %1448 = vmatpush1.bf16.msra.mxu0 0
    %1449 = vmatprep.subr.bf16.mxu0 0
    %1450 = vmatpush1.bf16.msra.mxu0 0
    %1451 = vmatprep.subr.bf16.mxu0 0
    %1452 = vmatpush1.bf16.msra.mxu0 0
    %1453 = vmatprep.subr.bf16.mxu0 0
    %1454 = vmatpush1.bf16.msra.mxu0 0
    %1455 = vmatprep.subr.bf16.mxu0 0
    %1456 = vmatpush1.bf16.msra.mxu0 0
    %1457 = vmatprep.subr.bf16.mxu0 0
    %1458 = vmatpush1.bf16.msra.mxu0 0
    %1459 = vmatprep.mubr.bf16.mxu0 0
    %1460 = vmatmul.mubr.bf16.gmra.mrb[0].mxu0 %v1302
    %v1461 = vpop.f32.mrb[0].mxu0
    %v1462 = vadd.f32 %v1421, %v1461
    %v1463 = vpop.f32.mrb[0].mxu0
    %v1464 = vadd.f32 %v1423, %v1463
    %v1465 = vpop.f32.mrb[0].mxu0
    %v1466 = vpop.f32.mrb[0].mxu0
    %1467 = vdwg.mxu0
    %1468 = vmatprep.subr.bf16.mxu0 %v903
    %1469 = vmatpush1.bf16.msra.mxu0 %v902
    %1470 = vmatprep.subr.bf16.mxu0 %v907
    %1471 = vmatpush1.bf16.msra.mxu0 %v906
    %1472 = vmatprep.subr.bf16.mxu0 %v911
    %1473 = vmatpush1.bf16.msra.mxu0 %v910
    %1474 = vmatprep.subr.bf16.mxu0 %v915
    %1475 = vmatpush1.bf16.msra.mxu0 %v914
    %1476 = vmatprep.subr.bf16.mxu0 %v919
    %1477 = vmatpush1.bf16.msra.mxu0 %v918
    %1478 = vmatprep.subr.bf16.mxu0 %v923
    %1479 = vmatpush1.bf16.msra.mxu0 %v922
    %1480 = vmatprep.subr.bf16.mxu0 %v927
    %1481 = vmatpush1.bf16.msra.mxu0 %v926
    %1482 = vmatprep.subr.bf16.mxu0 %v931
    %1483 = vmatpush1.bf16.msra.mxu0 %v930
    %1484 = vmatprep.subr.bf16.mxu0 %v935
    %1485 = vmatpush1.bf16.msra.mxu0 %v934
    %1486 = vmatprep.subr.bf16.mxu0 %v939
    %1487 = vmatpush1.bf16.msra.mxu0 %v938
    %1488 = vmatprep.subr.bf16.mxu0 %v943
    %1489 = vmatpush1.bf16.msra.mxu0 %v942
    %1490 = vmatprep.subr.bf16.mxu0 %v947
    %1491 = vmatpush1.bf16.msra.mxu0 %v946
    %1492 = vmatprep.subr.bf16.mxu0 %v951
    %1493 = vmatpush1.bf16.msra.mxu0 %v950
    %1494 = vmatprep.subr.bf16.mxu0 %v955
    %1495 = vmatpush1.bf16.msra.mxu0 %v954
    %1496 = vmatprep.subr.bf16.mxu0 %v959
    %1497 = vmatpush1.bf16.msra.mxu0 %v958
    %1498 = vmatprep.subr.bf16.mxu0 %v963
    %1499 = vmatpush1.bf16.msra.mxu0 %v962
    %1500 = vmatprep.mubr.bf16.mxu0 %v283
    %1501 = vmatmul.mubr.bf16.gmra.mrb[0].mxu0 %v269
    %v1502 = vpop.f32.mrb[0].mxu0
    %v1503 = vadd.f32 %v236, %v1502
    %v1504 = vpop.f32.mrb[0].mxu0
    %v1505 = vadd.f32 %v240, %v1504
    %v1506 = vpop.f32.mrb[0].mxu0
    %v1507 = vpop.f32.mrb[0].mxu0
    %1508 = vdwg.mxu0
    %1509 = vmatprep.subr.bf16.mxu0 %v967
    %1510 = vmatpush1.bf16.msra.mxu0 %v966
    %1511 = vmatprep.subr.bf16.mxu0 %v971
    %1512 = vmatpush1.bf16.msra.mxu0 %v970
    %1513 = vmatprep.subr.bf16.mxu0 %v975
    %1514 = vmatpush1.bf16.msra.mxu0 %v974
    %1515 = vmatprep.subr.bf16.mxu0 %v979
    %1516 = vmatpush1.bf16.msra.mxu0 %v978
    %1517 = vmatprep.subr.bf16.mxu0 %v983
    %1518 = vmatpush1.bf16.msra.mxu0 %v982
    %1519 = vmatprep.subr.bf16.mxu0 %v987
    %1520 = vmatpush1.bf16.msra.mxu0 %v986
    %1521 = vmatprep.subr.bf16.mxu0 %v991
    %1522 = vmatpush1.bf16.msra.mxu0 %v990
    %1523 = vmatprep.subr.bf16.mxu0 %v995
    %1524 = vmatpush1.bf16.msra.mxu0 %v994
    %1525 = vmatprep.subr.bf16.mxu0 %v999
    %1526 = vmatpush1.bf16.msra.mxu0 %v998
    %1527 = vmatprep.subr.bf16.mxu0 %v1003
    %1528 = vmatpush1.bf16.msra.mxu0 %v1002
    %1529 = vmatprep.subr.bf16.mxu0 %v1007
    %1530 = vmatpush1.bf16.msra.mxu0 %v1006
    %1531 = vmatprep.subr.bf16.mxu0 %v1011
    %1532 = vmatpush1.bf16.msra.mxu0 %v1010
    %1533 = vmatprep.subr.bf16.mxu0 %v1015
    %1534 = vmatpush1.bf16.msra.mxu0 %v1014
    %1535 = vmatprep.subr.bf16.mxu0 %v1019
    %1536 = vmatpush1.bf16.msra.mxu0 %v1018
    %1537 = vmatprep.subr.bf16.mxu0 %v1023
    %1538 = vmatpush1.bf16.msra.mxu0 %v1022
    %1539 = vmatprep.subr.bf16.mxu0 %v1027
    %1540 = vmatpush1.bf16.msra.mxu0 %v1026
    %1541 = vmatprep.mubr.bf16.mxu0 %v293
    %1542 = vmatmul.mubr.bf16.gmra.mrb[0].mxu0 %v291
    %v1543 = vpop.f32.mrb[0].mxu0
    %v1544 = vadd.f32 %v1503, %v1543
    %v1545 = vpop.f32.mrb[0].mxu0
    %v1546 = vadd.f32 %v1505, %v1545
    %v1547 = vpop.f32.mrb[0].mxu0
    %v1548 = vpop.f32.mrb[0].mxu0
    %1549 = vdwg.mxu0
    %1550 = vmatprep.subr.bf16.mxu0 %v1031
    %1551 = vmatpush1.bf16.msra.mxu0 %v1030
    %1552 = vmatprep.subr.bf16.mxu0 %v1035
    %1553 = vmatpush1.bf16.msra.mxu0 %v1034
    %1554 = vmatprep.subr.bf16.mxu0 %v1039
    %1555 = vmatpush1.bf16.msra.mxu0 %v1038
    %1556 = vmatprep.subr.bf16.mxu0 %v1043
    %1557 = vmatpush1.bf16.msra.mxu0 %v1042
    %1558 = vmatprep.subr.bf16.mxu0 %v1047
    %1559 = vmatpush1.bf16.msra.mxu0 %v1046
    %1560 = vmatprep.subr.bf16.mxu0 %v1051
    %1561 = vmatpush1.bf16.msra.mxu0 %v1050
    %1562 = vmatprep.subr.bf16.mxu0 %v1055
    %1563 = vmatpush1.bf16.msra.mxu0 %v1054
    %1564 = vmatprep.subr.bf16.mxu0 %v1059
    %1565 = vmatpush1.bf16.msra.mxu0 %v1058
    %1566 = vmatprep.subr.bf16.mxu0 %v1063
    %1567 = vmatpush1.bf16.msra.mxu0 %v1062
    %1568 = vmatprep.subr.bf16.mxu0 %v1067
    %1569 = vmatpush1.bf16.msra.mxu0 %v1066
    %1570 = vmatprep.subr.bf16.mxu0 %v1071
    %1571 = vmatpush1.bf16.msra.mxu0 %v1070
    %1572 = vmatprep.subr.bf16.mxu0 %v1075
    %1573 = vmatpush1.bf16.msra.mxu0 %v1074
    %1574 = vmatprep.subr.bf16.mxu0 %v1079
    %1575 = vmatpush1.bf16.msra.mxu0 %v1078
    %1576 = vmatprep.subr.bf16.mxu0 %v1083
    %1577 = vmatpush1.bf16.msra.mxu0 %v1082
    %1578 = vmatprep.subr.bf16.mxu0 %v1087
    %1579 = vmatpush1.bf16.msra.mxu0 %v1086
    %1580 = vmatprep.subr.bf16.mxu0 %v1091
    %1581 = vmatpush1.bf16.msra.mxu0 %v1090
    %1582 = vmatprep.mubr.bf16.mxu0 %v290
    %1583 = vmatmul.mubr.bf16.gmra.mrb[0].mxu0 %v276
    %v1584 = vpop.f32.mrb[0].mxu0
    %v1585 = vadd.f32 %v1544, %v1584
    %v1586 = vpop.f32.mrb[0].mxu0
    %v1587 = vadd.f32 %v1546, %v1586
    %v1588 = vpop.f32.mrb[0].mxu0
    %v1589 = vpop.f32.mrb[0].mxu0
    %1590 = vdwg.mxu0
    %1591 = vmatprep.subr.bf16.mxu0 %v1095
    %1592 = vmatpush1.bf16.msra.mxu0 %v1094
    %1593 = vmatprep.subr.bf16.mxu0 %v1099
    %1594 = vmatpush1.bf16.msra.mxu0 %v1098
    %1595 = vmatprep.subr.bf16.mxu0 0
    %1596 = vmatpush1.bf16.msra.mxu0 0
    %1597 = vmatprep.subr.bf16.mxu0 0
    %1598 = vmatpush1.bf16.msra.mxu0 0
    %1599 = vmatprep.subr.bf16.mxu0 0
    %1600 = vmatpush1.bf16.msra.mxu0 0
    %1601 = vmatprep.subr.bf16.mxu0 0
    %1602 = vmatpush1.bf16.msra.mxu0 0
    %1603 = vmatprep.subr.bf16.mxu0 0
    %1604 = vmatpush1.bf16.msra.mxu0 0
    %1605 = vmatprep.subr.bf16.mxu0 0
    %1606 = vmatpush1.bf16.msra.mxu0 0
    %1607 = vmatprep.subr.bf16.mxu0 0
    %1608 = vmatpush1.bf16.msra.mxu0 0
    %1609 = vmatprep.subr.bf16.mxu0 0
    %1610 = vmatpush1.bf16.msra.mxu0 0
    %1611 = vmatprep.subr.bf16.mxu0 0
    %1612 = vmatpush1.bf16.msra.mxu0 0
    %1613 = vmatprep.subr.bf16.mxu0 0
    %1614 = vmatpush1.bf16.msra.mxu0 0
    %1615 = vmatprep.subr.bf16.mxu0 0
    %1616 = vmatpush1.bf16.msra.mxu0 0
    %1617 = vmatprep.subr.bf16.mxu0 0
    %1618 = vmatpush1.bf16.msra.mxu0 0
    %1619 = vmatprep.subr.bf16.mxu0 0
    %1620 = vmatpush1.bf16.msra.mxu0 0
    %1621 = vmatprep.subr.bf16.mxu0 0
    %1622 = vmatpush1.bf16.msra.mxu0 0
    %1623 = vmatprep.mubr.bf16.mxu0 0
    %1624 = vmatmul.mubr.bf16.gmra.mrb[0].mxu0 %v1302
    %v1625 = vpop.f32.mrb[0].mxu0
    %v1626 = vadd.f32 %v1585, %v1625
    %v1627 = vpop.f32.mrb[0].mxu0
    %v1628 = vadd.f32 %v1587, %v1627
    %v1629 = vpop.f32.mrb[0].mxu0
    %v1630 = vpop.f32.mrb[0].mxu0
    %1631 = vdwg.mxu0
    %v1632 = vmax.f32 %v1462, 0.0
    %v1633 = vmax.f32 %v1464, 0.0
    %v1634 = vmax.f32 %v1626, 0.0
    %v1635 = vmax.f32 %v1628, 0.0
    %v1636 = vpack.c.bf16 %v1632, %v1632
    %v1637 = vpack.c.bf16 %v1633, %v1633
    %v1638 = vpack.c.bf16 %v1634, %v1634
    %v1639 = vpack.c.bf16 %v1635, %v1635
    %v1640 = vld [vmem:[%s3] sm:$0xf]
    %v1641 = vld [vmem:[%s3 + $0x4] sm:$0xf]
    %v1642 = vld [vmem:[%s3 + $0x8] sm:$0xf]
    %v1643 = vld [vmem:[%s3 + $0xc] sm:$0xf]
    %v1644 = vld [vmem:[%s3 + $0x10] sm:$0xf]
    %v1645 = vld [vmem:[%s3 + $0x14] sm:$0xf]
    %v1646 = vld [vmem:[%s3 + $0x18] sm:$0xf]
    %v1647 = vld [vmem:[%s3 + $0x1c] sm:$0xf]
    %v1648 = vld [vmem:[%s3 + $0x20] sm:$0xf]
    %v1649 = vld [vmem:[%s3 + $0x24] sm:$0xf]
    %v1650 = vld [vmem:[%s3 + $0x28] sm:$0xf]
    %v1651 = vld [vmem:[%s3 + $0x2c] sm:$0xf]
    %v1652 = vld [vmem:[%s3 + $0x30] sm:$0xf]
    %v1653 = vld [vmem:[%s3 + $0x34] sm:$0xf]
    %v1654 = vld [vmem:[%s3 + $0x38] sm:$0xf]
    %v1655 = vld [vmem:[%s3 + $0x3c] sm:$0xf]
    %v1656 = vld [vmem:[%s3 + $0x40] sm:$0xf]
    %v1657 = vld [vmem:[%s3 + $0x44] sm:$0xf]
    %v1658 = vld [vmem:[%s3 + $0x48] sm:$0xf]
    %v1659 = vld [vmem:[%s3 + $0x4c] sm:$0xf]
    %v1660 = vld [vmem:[%s3 + $0x50] sm:$0xf]
    %v1661 = vld [vmem:[%s3 + $0x54] sm:$0xf]
    %v1662 = vld [vmem:[%s3 + $0x58] sm:$0xf]
    %v1663 = vld [vmem:[%s3 + $0x5c] sm:$0xf]
    %v1664 = vld [vmem:[%s3 + $0x60] sm:$0xf]
    %v1665 = vld [vmem:[%s3 + $0x64] sm:$0xf]
    %v1666 = vld [vmem:[%s3 + $0x68] sm:$0xf]
    %v1667 = vld [vmem:[%s3 + $0x6c] sm:$0xf]
    %v1668 = vld [vmem:[%s3 + $0x70] sm:$0xf]
    %v1669 = vld [vmem:[%s3 + $0x74] sm:$0xf]
    %v1670 = vld [vmem:[%s3 + $0x78] sm:$0xf]
    %v1671 = vld [vmem:[%s3 + $0x7c] sm:$0xf]
    %v1672 = vld [vmem:[%s3 + $0x80] sm:$0xf]
    %v1673 = vld [vmem:[%s3 + $0x84] sm:$0xf]
    %v1674 = vld [vmem:[%s3 + $0x88] sm:$0xf]
    %v1675 = vld [vmem:[%s3 + $0x8c] sm:$0xf]
    %v1676 = vld [vmem:[%s3 + $0x90] sm:$0xf]
    %v1677 = vld [vmem:[%s3 + $0x94] sm:$0xf]
    %v1678 = vld [vmem:[%s3 + $0x98] sm:$0xf]
    %v1679 = vld [vmem:[%s3 + $0x9c] sm:$0xf]
    %v1680 = vld [vmem:[%s3 + $0xa0] sm:$0xf]
    %v1681 = vld [vmem:[%s3 + $0xa4] sm:$0xf]
    %v1682 = vld [vmem:[%s3 + $0xa8] sm:$0xf]
    %v1683 = vld [vmem:[%s3 + $0xac] sm:$0xf]
    %v1684 = vld [vmem:[%s3 + $0xb0] sm:$0xf]
    %v1685 = vld [vmem:[%s3 + $0xb4] sm:$0xf]
    %v1686 = vld [vmem:[%s3 + $0xb8] sm:$0xf]
    %v1687 = vld [vmem:[%s3 + $0xbc] sm:$0xf]
    %v1688 = vld [vmem:[%s3 + $0xc0] sm:$0xf]
    %v1689 = vld [vmem:[%s3 + $0xc4] sm:$0xf]
    %v1690 = vld [vmem:[%s3 + $0xc8] sm:$0xf]
    %v1691 = vld [vmem:[%s3 + $0xcc] sm:$0xf]
    %v1692 = vld [vmem:[%s3 + $0xd0] sm:$0xf]
    %v1693 = vld [vmem:[%s3 + $0xd4] sm:$0xf]
    %v1694 = vld [vmem:[%s3 + $0xd8] sm:$0xf]
    %v1695 = vld [vmem:[%s3 + $0xdc] sm:$0xf]
    %v1696 = vld [vmem:[%s3 + $0xe0] sm:$0xf]
    %v1697 = vld [vmem:[%s3 + $0xe4] sm:$0xf]
    %v1698 = vld [vmem:[%s3 + $0xe8] sm:$0xf]
    %v1699 = vld [vmem:[%s3 + $0xec] sm:$0xf]
    %v1700 = vld [vmem:[%s3 + $0xf0] sm:$0xf]
    %v1701 = vld [vmem:[%s3 + $0xf4] sm:$0xf]
    %v1702 = vld [vmem:[%s3 + $0xf8] sm:$0xf]
    %v1703 = vld [vmem:[%s3 + $0xfc] sm:$0xf]
    %v1704 = vld [vmem:[%s4] sm:$0x1]
    %v1706 = vlaneseq
    %v1707 = vshrl.u32 %v1706, 7
    %v1708 = vsub.s32 0, %v1707
    %v1709 = vrot.slane %v1704, %v1708
    %v1775 = vunpack.c.l.b16 %v1640
    %v1776 = vunpack.c.l.b16 %v1641
    %v1777 = vunpack.c.l.b16 %v1642
    %v1778 = vunpack.c.l.b16 %v1643
    %v1779 = vunpack.c.l.b16 %v1644
    %v1780 = vunpack.c.l.b16 %v1645
    %v1781 = vunpack.c.l.b16 %v1646
    %v1782 = vunpack.c.l.b16 %v1647
    %v1783 = vunpack.c.l.b16 %v1648
    %v1784 = vunpack.c.l.b16 %v1649
    %v1785 = vunpack.c.l.b16 %v1650
    %v1786 = vunpack.c.l.b16 %v1651
    %v1787 = vunpack.c.l.b16 %v1652
    %v1788 = vunpack.c.l.b16 %v1653
    %v1789 = vunpack.c.l.b16 %v1654
    %v1790 = vunpack.c.l.b16 %v1655
    %v1791 = vunpack.c.l.b16 %v1656
    %v1792 = vunpack.c.l.b16 %v1657
    %v1793 = vunpack.c.l.b16 %v1658
    %v1794 = vunpack.c.l.b16 %v1659
    %v1795 = vunpack.c.l.b16 %v1660
    %v1796 = vunpack.c.l.b16 %v1661
    %v1797 = vunpack.c.l.b16 %v1662
    %v1798 = vunpack.c.l.b16 %v1663
    %v1799 = vunpack.c.l.b16 %v1664
    %v1800 = vunpack.c.l.b16 %v1665
    %v1801 = vunpack.c.l.b16 %v1666
    %v1802 = vunpack.c.l.b16 %v1667
    %v1803 = vunpack.c.l.b16 %v1668
    %v1804 = vunpack.c.l.b16 %v1669
    %v1805 = vunpack.c.l.b16 %v1670
    %v1806 = vunpack.c.l.b16 %v1671
    %v1807 = vunpack.c.l.b16 %v1672
    %v1808 = vunpack.c.l.b16 %v1673
    %v1809 = vunpack.c.l.b16 %v1674
    %v1810 = vunpack.c.l.b16 %v1675
    %v1811 = vunpack.c.l.b16 %v1676
    %v1812 = vunpack.c.l.b16 %v1677
    %v1813 = vunpack.c.l.b16 %v1678
    %v1814 = vunpack.c.l.b16 %v1679
    %v1815 = vunpack.c.l.b16 %v1680
    %v1816 = vunpack.c.l.b16 %v1681
    %v1817 = vunpack.c.l.b16 %v1682
    %v1818 = vunpack.c.l.b16 %v1683
    %v1819 = vunpack.c.l.b16 %v1684
    %v1820 = vunpack.c.l.b16 %v1685
    %v1821 = vunpack.c.l.b16 %v1686
    %v1822 = vunpack.c.l.b16 %v1687
    %v1823 = vunpack.c.l.b16 %v1688
    %v1824 = vunpack.c.l.b16 %v1689
    %v1825 = vunpack.c.l.b16 %v1690
    %v1826 = vunpack.c.l.b16 %v1691
    %v1827 = vunpack.c.l.b16 %v1692
    %v1828 = vunpack.c.l.b16 %v1693
    %v1829 = vunpack.c.l.b16 %v1694
    %v1830 = vunpack.c.l.b16 %v1695
    %v1831 = vunpack.c.l.b16 %v1696
    %v1832 = vunpack.c.l.b16 %v1697
    %v1833 = vunpack.c.l.b16 %v1698
    %v1834 = vunpack.c.l.b16 %v1699
    %v1835 = vunpack.c.l.b16 %v1700
    %v1836 = vunpack.c.l.b16 %v1701
    %v1837 = vunpack.c.l.b16 %v1702
    %v1838 = vunpack.c.l.b16 %v1703
    %v1839 = vpack.c.b16 %v1776, %v1775
    %v1840 = vpack.c.b16 %v1778, %v1777
    %v1841 = vpack.c.b16 %v1780, %v1779
    %v1842 = vpack.c.b16 %v1782, %v1781
    %v1843 = vpack.c.b16 %v1784, %v1783
    %v1844 = vpack.c.b16 %v1786, %v1785
    %v1845 = vpack.c.b16 %v1788, %v1787
    %v1846 = vpack.c.b16 %v1790, %v1789
    %v1847 = vpack.c.b16 %v1792, %v1791
    %v1848 = vpack.c.b16 %v1794, %v1793
    %v1849 = vpack.c.b16 %v1796, %v1795
    %v1850 = vpack.c.b16 %v1798, %v1797
    %v1851 = vpack.c.b16 %v1800, %v1799
    %v1852 = vpack.c.b16 %v1802, %v1801
    %v1853 = vpack.c.b16 %v1804, %v1803
    %v1854 = vpack.c.b16 %v1806, %v1805
    %v1855 = vpack.c.b16 %v1808, %v1807
    %v1856 = vpack.c.b16 %v1810, %v1809
    %v1857 = vpack.c.b16 %v1812, %v1811
    %v1858 = vpack.c.b16 %v1814, %v1813
    %v1859 = vpack.c.b16 %v1816, %v1815
    %v1860 = vpack.c.b16 %v1818, %v1817
    %v1861 = vpack.c.b16 %v1820, %v1819
    %v1862 = vpack.c.b16 %v1822, %v1821
    %v1863 = vpack.c.b16 %v1824, %v1823
    %v1864 = vpack.c.b16 %v1826, %v1825
    %v1865 = vpack.c.b16 %v1828, %v1827
    %v1866 = vpack.c.b16 %v1830, %v1829
    %v1867 = vpack.c.b16 %v1832, %v1831
    %v1868 = vpack.c.b16 %v1834, %v1833
    %v1869 = vpack.c.b16 %v1836, %v1835
    %v1870 = vpack.c.b16 %v1838, %v1837
    %1903 = vmatprep.subr.bf16.mxu0 0
    %1904 = vmatpush1.bf16.msra.mxu0 %v1839
    %1905 = vmatprep.subr.bf16.mxu0 0
    %1906 = vmatpush1.bf16.msra.mxu0 %v1840
    %1907 = vmatprep.subr.bf16.mxu0 0
    %1908 = vmatpush1.bf16.msra.mxu0 %v1841
    %1909 = vmatprep.subr.bf16.mxu0 0
    %1910 = vmatpush1.bf16.msra.mxu0 %v1842
    %1911 = vmatprep.subr.bf16.mxu0 0
    %1912 = vmatpush1.bf16.msra.mxu0 %v1843
    %1913 = vmatprep.subr.bf16.mxu0 0
    %1914 = vmatpush1.bf16.msra.mxu0 %v1844
    %1915 = vmatprep.subr.bf16.mxu0 0
    %1916 = vmatpush1.bf16.msra.mxu0 %v1845
    %1917 = vmatprep.subr.bf16.mxu0 0
    %1918 = vmatpush1.bf16.msra.mxu0 %v1846
    %1919 = vmatprep.subr.bf16.mxu0 0
    %1920 = vmatpush1.bf16.msra.mxu0 %v1847
    %1921 = vmatprep.subr.bf16.mxu0 0
    %1922 = vmatpush1.bf16.msra.mxu0 %v1848
    %1923 = vmatprep.subr.bf16.mxu0 0
    %1924 = vmatpush1.bf16.msra.mxu0 %v1849
    %1925 = vmatprep.subr.bf16.mxu0 0
    %1926 = vmatpush1.bf16.msra.mxu0 %v1850
    %1927 = vmatprep.subr.bf16.mxu0 0
    %1928 = vmatpush1.bf16.msra.mxu0 %v1851
    %1929 = vmatprep.subr.bf16.mxu0 0
    %1930 = vmatpush1.bf16.msra.mxu0 %v1852
    %1931 = vmatprep.subr.bf16.mxu0 0
    %1932 = vmatpush1.bf16.msra.mxu0 %v1853
    %1933 = vmatprep.subr.bf16.mxu0 0
    %1934 = vmatpush1.bf16.msra.mxu0 %v1854
    %1935 = vmatprep.mubr.bf16.mxu0 %v1637
    %1936 = vmatmul.mubr.bf16.gmra.mrb[0].mxu0 %v1636
    %v1937 = vpop.f32.mrb[0].mxu0
    %v1938 = vadd.f32 %v1709, %v1937
    %v1939 = vpop.f32.mrb[0].mxu0
    %v1940 = vpop.f32.mrb[0].mxu0
    %v1941 = vpop.f32.mrb[0].mxu0
    %1942 = vdwg.mxu0
    %1943 = vmatprep.subr.bf16.mxu0 0
    %1944 = vmatpush1.bf16.msra.mxu0 %v1855
    %1945 = vmatprep.subr.bf16.mxu0 0
    %1946 = vmatpush1.bf16.msra.mxu0 %v1856
    %1947 = vmatprep.subr.bf16.mxu0 0
    %1948 = vmatpush1.bf16.msra.mxu0 %v1857
    %1949 = vmatprep.subr.bf16.mxu0 0
    %1950 = vmatpush1.bf16.msra.mxu0 %v1858
    %1951 = vmatprep.subr.bf16.mxu0 0
    %1952 = vmatpush1.bf16.msra.mxu0 %v1859
    %1953 = vmatprep.subr.bf16.mxu0 0
    %1954 = vmatpush1.bf16.msra.mxu0 %v1860
    %1955 = vmatprep.subr.bf16.mxu0 0
    %1956 = vmatpush1.bf16.msra.mxu0 %v1861
    %1957 = vmatprep.subr.bf16.mxu0 0
    %1958 = vmatpush1.bf16.msra.mxu0 %v1862
    %1959 = vmatprep.subr.bf16.mxu0 0
    %1960 = vmatpush1.bf16.msra.mxu0 %v1863
    %1961 = vmatprep.subr.bf16.mxu0 0
    %1962 = vmatpush1.bf16.msra.mxu0 %v1864
    %1963 = vmatprep.subr.bf16.mxu0 0
    %1964 = vmatpush1.bf16.msra.mxu0 %v1865
    %1965 = vmatprep.subr.bf16.mxu0 0
    %1966 = vmatpush1.bf16.msra.mxu0 %v1866
    %1967 = vmatprep.subr.bf16.mxu0 0
    %1968 = vmatpush1.bf16.msra.mxu0 %v1867
    %1969 = vmatprep.subr.bf16.mxu0 0
    %1970 = vmatpush1.bf16.msra.mxu0 %v1868
    %1971 = vmatprep.subr.bf16.mxu0 0
    %1972 = vmatpush1.bf16.msra.mxu0 %v1869
    %1973 = vmatprep.subr.bf16.mxu0 0
    %1974 = vmatpush1.bf16.msra.mxu0 %v1870
    %1975 = vmatprep.mubr.bf16.mxu0 %v1639
    %1976 = vmatmul.mubr.bf16.gmra.mrb[0].mxu0 %v1638
    %v1977 = vpop.f32.mrb[0].mxu0
    %v1978 = vadd.f32 %v1938, %v1977
    %v1979 = vpop.f32.mrb[0].mxu0
    %v1980 = vpop.f32.mrb[0].mxu0
    %v1981 = vpop.f32.mrb[0].mxu0
    %1982 = vdwg.mxu0
    %vm1983 = vcmask 1041408
    %v1984 = vsel %vm1983, %v1978, -inf
    %1985 = vmax.xlane.f32.xlu0 %v1984
    %v1986 = vpop.xlane.xlu0 %1985
    %v1987 = vsub.f32 %v1978, %v1986
    %v1988 = vmul.f32 %v1987, 1.442695
    %v1989 = vpow.pop %v1988
    %v1990 = vsel %vm1983, %v1989, 0.0
    %1991 = vadd.xlane.f32.xlu0 %v1990
    %v1992 = vpop.xlane.xlu0 %1991
    %v1993 = vlog2.pop %v1992
    %v1994 = vmul.f32 %v1993, 0.6931472
    %v1995 = vsub.f32 %v1987, %v1994
    %1996 = vst [vmem:[#allocation2] sm:$0x3] %v1995
    // Predicated region
    $region22: #{simple_net_forward.9} parent=1 // pred_check
      _
    $region23: #{simple_net_forward.9} parent=1 // pred_check_branch
      %1998 = sbr.rel (0) target = $region25
    $region24: #{simple_net_forward.9} parent=1 // pred_region
      %s2000 = ssub.s32 32, 32
      %2001 = vsyncadd [#allocation3], %s2000
      %s2003 = sshll.u32 [#allocation2], 4
      %s2004 = int_to_ptr.vmem [resolvable:$true] %s2003
      %2006 = dma.vmem_to_hbm [thread:$0]  %s2004, 32, %s5, [#allocation3]
    $region25: #{simple_net_forward.9} parent=1 // pred_fallthru
      _
    // Predicated region
    $region26: #{simple_net_forward.9} parent=1 // pred_check
      _
    $region27: #{simple_net_forward.9} parent=1 // pred_check_branch
      %2008 = sbr.rel (0) target = $region29
    $region28: #{simple_net_forward.9} parent=1 // pred_region
      %2009 = dma.done [#allocation3], 32
    $region29: #{simple_net_forward.9} parent=1 // pred_fallthru
      _
    %2010 = vsyncpa [#allocation3], 1

</llo_original>
